<compile_context>
chip_gen: v6e
topology: v6e:2x2x1
jax: 0.10.0
libtpu: 0.0.40
codegen_flags: <defaults>
</compile_context>

<pallas_src>
import jax
import jax.numpy as jnp
from jax import lax
from jax.experimental import pallas as pl
from jax.experimental.pallas import tpu as pltpu

# ---- synthetic stand-ins for args.* (small shapes) ----
BATCH = 2            # args.batch_size
CONTEXT_WINDOW = 3   # args.context_window
SEQ_LEN = 8          # seq_len of dig
VOCAB_SIZE = 50      # args.vocab_size
EMBEDDING_DIM = 16   # args.embedding_dim
UTTER_HIDDEN = 32    # args.utter_hidden
NUM_LAYERS = 2       # args.num_layers


def _make_stacked_bigru_kernel(num_layers, seq_len, hidden):
    """Builds a kernel that runs all GRU layers / both directions fused."""
    S = seq_len
    H = hidden
    G = 3 * H

    def kernel(*refs):
        # refs: x, mask, 6 weight refs per layer, out, gx_scr, yf_scr, yb_scr
        x_ref, mask_ref = refs[0], refs[1]
        w_refs = refs[2:2 + 6 * num_layers]
        out_ref = refs[2 + 6 * num_layers]
        gx_scr, yf_scr, yb_scr = refs[3 + 6 * num_layers:]

        N = x_ref.shape[1]           # padded (W*B) rows

        def precompute_gates(x_flat, wih_ref, bih_ref):
            # One wide MXU matmul for fw|bw gates of ALL timesteps/rows.
            gx = jnp.dot(x_flat, wih_ref[...],
                         preferred_element_type=jnp.float32) + bih_ref[...]
            gx_scr[...] = gx.reshape(S, N, 2 * G)

        def gru_update(gx, gh, h):
            r = jax.nn.sigmoid(gx[:, 0:H] + gh[:, 0:H])
            z = jax.nn.sigmoid(gx[:, H:2 * H] + gh[:, H:2 * H])
            n = jnp.tanh(gx[:, 2 * H:3 * H] + r * gh[:, 2 * H:3 * H])
            return (1.0 - z) * n + z * h

        def run_layer(whh_f_ref, bhh_f_ref, whh_b_ref, bhh_b_ref, write_y):
            h0 = jnp.zeros((N, H), jnp.float32)

            def step(t, carry):
                h_f, h_b = carry
                tb = S - 1 - t
                gx_f_all = gx_scr[t]          # (N, 6H)  fw gates at t
                gx_b_all = gx_scr[tb]         # (N, 6H)  bw gates at S-1-t
                # fw and bw dots issued back-to-back (independent chains).
                gh_f = jnp.dot(h_f, whh_f_ref[...],
                               preferred_element_type=jnp.float32) + bhh_f_ref[...]
                gh_b = jnp.dot(h_b, whh_b_ref[...],
                               preferred_element_type=jnp.float32) + bhh_b_ref[...]
                hf_new = gru_update(gx_f_all[:, :G], gh_f, h_f)
                hb_new = gru_update(gx_b_all[:, G:], gh_b, h_b)
                m_f = mask_ref[t]             # (N, 1)
                m_b = mask_ref[tb]
                h_f = m_f * hf_new + (1.0 - m_f) * h_f
                h_b = m_b * hb_new + (1.0 - m_b) * h_b
                if write_y:                   # static Python branch
                    yf_scr[t] = m_f * hf_new
                    yb_scr[tb] = m_b * hb_new
                return h_f, h_b

            # Short static trip count: fully unroll for LLO visibility.
            return lax.fori_loop(0, S, step, (h0, h0), unroll=True)

        h_f = h_b = None
        for l in range(num_layers):
            wih, bih, whh_f, bhh_f, whh_b, bhh_b = w_refs[6 * l:6 * l + 6]
            if l == 0:
                x_flat = x_ref[...].reshape(S * N, x_ref.shape[-1])
            else:
                # Previous layer's per-timestep outputs stay in VMEM.
                x_flat = jnp.concatenate(
                    [yf_scr[...], yb_scr[...]], axis=-1).reshape(S * N, 2 * H)
            precompute_gates(x_flat, wih, bih)
            h_f, h_b = run_layer(whh_f, bhh_f, whh_b, bhh_b,
                                 write_y=(l + 1 < num_layers))

        # Single lane-dense store of the final hiddens.
        out_ref[...] = jnp.concatenate([h_f, h_b], axis=-1)

    return kernel


def utterance_encoder(params, dig, dig_sent_length):
    """dig: [B, W, S] int32, dig_sent_length: [B, W] int32 -> [B, W, 2H]."""
    B, W, S = dig.shape
    H = UTTER_HIDDEN
    num_layers = len(params['gru'])

    # TODO(synk): embedding gather could be fused into the kernel via
    # scalar-prefetch row gather; kept as jnp.take in the wrapper here.
    emb = jnp.take(params['embedding'], dig, axis=0)          # [B, W, S, E]
    E = emb.shape[-1]
    N = B * W
    N_pad = ((N + 7) // 8) * 8                                # sublane align

    # Fold (B, W) into one recurrence-batch axis, timestep leading.
    x = jnp.transpose(emb, (2, 0, 1, 3)).reshape(S, N, E).astype(jnp.float32)
    lens = dig_sent_length.reshape(N)
    mask = (jnp.arange(S, dtype=jnp.int32)[:, None]
            < lens[None, :]).astype(jnp.float32)              # (S, N)
    if N_pad != N:
        x = jnp.pad(x, ((0, 0), (0, N_pad - N), (0, 0)))
        mask = jnp.pad(mask, ((0, 0), (0, N_pad - N)))
    mask = mask[:, :, None]                                   # (S, N_pad, 1)

    # Concatenate fw|bw input-to-hidden weights/biases -> one wide matmul.
    weight_args = []
    for layer in params['gru']:
        fw, bw = layer['fw'], layer['bw']
        wih = jnp.concatenate([fw['wih_t'], bw['wih_t']], axis=1)  # (Din, 6H)
        bih = jnp.concatenate([fw['bih'], bw['bih']], axis=1)      # (1, 6H)
        weight_args += [wih, bih, fw['whh_t'], fw['bhh'],
                        bw['whh_t'], bw['bhh']]

    kernel = _make_stacked_bigru_kernel(num_layers, S, H)
    inputs = [x, mask] + weight_args

    def full_spec(a):
        shp = a.shape
        return pl.BlockSpec(shp, lambda i, _s=shp: (0,) * len(_s))

    out = pl.pallas_call(
        kernel,
        out_shape=jax.ShapeDtypeStruct((N_pad, 2 * H), jnp.float32),
        grid=(1,),
        in_specs=[full_spec(a) for a in inputs],
        out_specs=pl.BlockSpec((N_pad, 2 * H), lambda i: (0, 0)),
        scratch_shapes=[
            pltpu.VMEM((S, N_pad, 6 * H), jnp.float32),   # gates (reused per layer)
            pltpu.VMEM((S, N_pad, H), jnp.float32),       # layer fw outputs
            pltpu.VMEM((S, N_pad, H), jnp.float32),       # layer bw outputs
        ],
        compiler_params=pltpu.CompilerParams(
            dimension_semantics=("arbitrary",)),
    )(*inputs)

    # TODO(synk): PyTorch applies dropout between GRU layers only in train
    # mode; omitted here (deterministic / inference semantics).
    return out[:N].reshape(B, W, 2 * H)


# ---------------- pure-JAX reference (for correctness check) ----------------
def _gru_dir_ref(x, lens, p, reverse):
    B, S, _ = x.shape
    H = p['whh_t'].shape[0]
    h = jnp.zeros((B, H), jnp.float32)
    outs = [None] * S
    order = range(S - 1, -1, -1) if reverse else range(S)
    for t in order:
        gx = x[:, t, :] @ p['wih_t'] + p['bih'][0]
        gh = h @ p['whh_t'] + p['bhh'][0]
        r = jax.nn.sigmoid(gx[:, :H] + gh[:, :H])
        z = jax.nn.sigmoid(gx[:, H:2 * H] + gh[:, H:2 * H])
        n = jnp.tanh(gx[:, 2 * H:] + r * gh[:, 2 * H:])
        h_new = (1.0 - z) * n + z * h
        m = (t < lens).astype(jnp.float32)[:, None]
        h = m * h_new + (1.0 - m) * h
        outs[t] = m * h
    return jnp.stack(outs, axis=1), h


def utterance_encoder_ref(params, dig, dig_sent_length):
    B, W, S = dig.shape
    emb = jnp.take(params['embedding'], dig, axis=0)
    enc = []
    for w in range(W):
        x = emb[:, w].astype(jnp.float32)
        lens = dig_sent_length[:, w]
        hf = hb = None
        for layer in params['gru']:
            of, hf = _gru_dir_ref(x, lens, layer['fw'], False)
            ob, hb = _gru_dir_ref(x, lens, layer['bw'], True)
            x = jnp.concatenate([of, ob], axis=-1)
        enc.append(jnp.concatenate([hf, hb], axis=-1))
    return jnp.stack(enc, axis=1)


# ---------------- deterministic parameter init ----------------
def init_params(key):
    n_keys = 1 + NUM_LAYERS * 2 * 4
    keys = iter(jax.random.split(key, n_keys))
    emb = 0.1 * jax.random.normal(next(keys), (VOCAB_SIZE, EMBEDDING_DIM),
                                  jnp.float32)
    bound = 1.0 / (UTTER_HIDDEN ** 0.5)
    layers = []
    for l in range(NUM_LAYERS):
        din = EMBEDDING_DIM if l == 0 else 2 * UTTER_HIDDEN
        dirs = {}
        for d in ('fw', 'bw'):
            dirs[d] = {
                'wih_t': jax.random.uniform(next(keys), (din, 3 * UTTER_HIDDEN),
                                            jnp.float32, -bound, bound),
                'whh_t': jax.random.uniform(next(keys),
                                            (UTTER_HIDDEN, 3 * UTTER_HIDDEN),
                                            jnp.float32, -bound, bound),
                'bih': jax.random.uniform(next(keys), (1, 3 * UTTER_HIDDEN),
                                          jnp.float32, -bound, bound),
                'bhh': jax.random.uniform(next(keys), (1, 3 * UTTER_HIDDEN),
                                          jnp.float32, -bound, bound),
            }
        layers.append(dirs)
    return {'embedding': emb, 'gru': layers}


if __name__ == "__main__":
    key = jax.random.PRNGKey(0)
    pkey, dkey, lkey = jax.random.split(key, 3)
    params = init_params(pkey)

    dig = jax.random.randint(dkey, (BATCH, CONTEXT_WINDOW, SEQ_LEN),
                             0, VOCAB_SIZE, dtype=jnp.int32)
    dig_sent_length = jax.random.randint(lkey, (BATCH, CONTEXT_WINDOW),
                                         1, SEQ_LEN + 1, dtype=jnp.int32)

    out = utterance_encoder(params, dig, dig_sent_length)
    out = jax.block_until_ready(out)

    ref = utterance_encoder_ref(params, dig, dig_sent_length)
    assert out.shape == (BATCH, CONTEXT_WINDOW, 2 * UTTER_HIDDEN), out.shape
    assert jnp.allclose(out, ref, atol=2e-3, rtol=2e-3), \
        float(jnp.max(jnp.abs(out - ref)))
    print("KERNEL_OK")
</pallas_src>

<mosaic_0001>
module attributes {stable_mosaic.version = 11 : i64} {
  func.func @kernel(%arg0: i32, %arg1: memref<8x8x16xf32, #tpu.memory_space<vmem>>, %arg2: memref<8x8x1xf32, #tpu.memory_space<vmem>>, %arg3: memref<16x192xf32, #tpu.memory_space<vmem>>, %arg4: memref<1x192xf32, #tpu.memory_space<vmem>>, %arg5: memref<32x96xf32, #tpu.memory_space<vmem>>, %arg6: memref<1x96xf32, #tpu.memory_space<vmem>>, %arg7: memref<32x96xf32, #tpu.memory_space<vmem>>, %arg8: memref<1x96xf32, #tpu.memory_space<vmem>>, %arg9: memref<64x192xf32, #tpu.memory_space<vmem>>, %arg10: memref<1x192xf32, #tpu.memory_space<vmem>>, %arg11: memref<32x96xf32, #tpu.memory_space<vmem>>, %arg12: memref<1x96xf32, #tpu.memory_space<vmem>>, %arg13: memref<32x96xf32, #tpu.memory_space<vmem>>, %arg14: memref<1x96xf32, #tpu.memory_space<vmem>>, %arg15: memref<8x64xf32, #tpu.memory_space<vmem>>, %arg16: memref<8x8x192xf32, #tpu.memory_space<vmem>>, %arg17: memref<8x8x32xf32, #tpu.memory_space<vmem>>, %arg18: memref<8x8x32xf32, #tpu.memory_space<vmem>>) attributes {dimension_semantics = [#tpu.dimension_semantics<arbitrary>], iteration_bounds = array<i64: 1>, scalar_prefetch = 0 : i64, scratch_operands = 3 : i64, tpu.core_type = #tpu.core_type<tc>, window_params = [{pipeline_mode = #tpu.pipeline_mode<synchronous>, transform_indices = @transform_0, window_bounds = array<i64: 8, 8, 16>}, {pipeline_mode = #tpu.pipeline_mode<synchronous>, transform_indices = @transform_1, window_bounds = array<i64: 8, 8, 1>}, {pipeline_mode = #tpu.pipeline_mode<synchronous>, transform_indices = @transform_2, window_bounds = array<i64: 16, 192>}, {pipeline_mode = #tpu.pipeline_mode<synchronous>, transform_indices = @transform_3, window_bounds = array<i64: 1, 192>}, {pipeline_mode = #tpu.pipeline_mode<synchronous>, transform_indices = @transform_4, window_bounds = array<i64: 32, 96>}, {pipeline_mode = #tpu.pipeline_mode<synchronous>, transform_indices = @transform_5, window_bounds = array<i64: 1, 96>}, {pipeline_mode = #tpu.pipeline_mode<synchronous>, transform_indices = @transform_6, window_bounds = array<i64: 32, 96>}, {pipeline_mode = #tpu.pipeline_mode<synchronous>, transform_indices = @transform_7, window_bounds = array<i64: 1, 96>}, {pipeline_mode = #tpu.pipeline_mode<synchronous>, transform_indices = @transform_8, window_bounds = array<i64: 64, 192>}, {pipeline_mode = #tpu.pipeline_mode<synchronous>, transform_indices = @transform_9, window_bounds = array<i64: 1, 192>}, {pipeline_mode = #tpu.pipeline_mode<synchronous>, transform_indices = @transform_10, window_bounds = array<i64: 32, 96>}, {pipeline_mode = #tpu.pipeline_mode<synchronous>, transform_indices = @transform_11, window_bounds = array<i64: 1, 96>}, {pipeline_mode = #tpu.pipeline_mode<synchronous>, transform_indices = @transform_12, window_bounds = array<i64: 32, 96>}, {pipeline_mode = #tpu.pipeline_mode<synchronous>, transform_indices = @transform_13, window_bounds = array<i64: 1, 96>}, {pipeline_mode = #tpu.pipeline_mode<synchronous>, transform_indices = @transform_14, window_bounds = array<i64: 8, 64>}]} {
    %c0 = arith.constant 0 : index
    %c0_0 = arith.constant 0 : index
    %c0_1 = arith.constant 0 : index
    %0 = vector.load %arg1[%c0, %c0_0, %c0_1] : memref<8x8x16xf32, #tpu.memory_space<vmem>>, vector<8x8x16xf32>
    %1 = vector.shape_cast %0 : vector<8x8x16xf32> to vector<64x16xf32>
    %c0_2 = arith.constant 0 : index
    %c0_3 = arith.constant 0 : index
    %2 = vector.load %arg3[%c0_2, %c0_3] : memref<16x192xf32, #tpu.memory_space<vmem>>, vector<16x192xf32>
    %cst = arith.constant dense<0.000000e+00> : vector<64x192xf32>
    %3 = tpu.matmul %1, %2, %cst {dimension_numbers = #tpu.dot_dimension_numbers<[1], [0], [0], [1], [0, 0, 1, 1], [], []>} : vector<64x16xf32>, vector<16x192xf32>, vector<64x192xf32> -> vector<64x192xf32>
    %c0_4 = arith.constant 0 : index
    %c0_5 = arith.constant 0 : index
    %4 = vector.load %arg4[%c0_4, %c0_5] : memref<1x192xf32, #tpu.memory_space<vmem>>, vector<1x192xf32>
    %5 = vector.broadcast %4 : vector<1x192xf32> to vector<64x192xf32>
    %6 = arith.addf %3, %5 : vector<64x192xf32>
    %7 = vector.shape_cast %6 : vector<64x192xf32> to vector<8x8x192xf32>
    %c0_6 = arith.constant 0 : index
    %c0_7 = arith.constant 0 : index
    %c0_8 = arith.constant 0 : index
    %8 = vector.load %arg16[%c0_6, %c0_7, %c0_8] : memref<8x8x192xf32, #tpu.memory_space<vmem>>, vector<8x8x192xf32>
    tpu.vector_store %arg16[%c0_6, %c0_7, %c0_8], %7 {strides = array<i32>} : memref<8x8x192xf32, #tpu.memory_space<vmem>>, vector<8x8x192xf32>,
    %cst_9 = arith.constant 0.000000e+00 : f32
    %9 = vector.broadcast %cst_9 : f32 to vector<8x32xf32>
    %c0_i32 = arith.constant 0 : i32
    %c7_i32 = arith.constant 7 : i32
    %10 = arith.subi %c7_i32, %c0_i32 : i32
    %11 = arith.index_cast %c0_i32 : i32 to index
    %c0_10 = arith.constant 0 : index
    %c0_11 = arith.constant 0 : index
    %12 = vector.load %arg16[%11, %c0_10, %c0_11] : memref<8x8x192xf32, #tpu.memory_space<vmem>>, vector<1x8x192xf32>
    %13 = vector.shape_cast %12 : vector<1x8x192xf32> to vector<8x192xf32>
    %14 = arith.index_cast %10 : i32 to index
    %c0_12 = arith.constant 0 : index
    %c0_13 = arith.constant 0 : index
    %15 = vector.load %arg16[%14, %c0_12, %c0_13] : memref<8x8x192xf32, #tpu.memory_space<vmem>>, vector<1x8x192xf32>
    %16 = vector.shape_cast %15 : vector<1x8x192xf32> to vector<8x192xf32>
    %c0_14 = arith.constant 0 : index
    %c0_15 = arith.constant 0 : index
    %17 = vector.load %arg5[%c0_14, %c0_15] : memref<32x96xf32, #tpu.memory_space<vmem>>, vector<32x96xf32>
    %cst_16 = arith.constant dense<0.000000e+00> : vector<8x96xf32>
    %18 = tpu.matmul %9, %17, %cst_16 {dimension_numbers = #tpu.dot_dimension_numbers<[1], [0], [0], [1], [0, 0, 1, 1], [], []>} : vector<8x32xf32>, vector<32x96xf32>, vector<8x96xf32> -> vector<8x96xf32>
    %c0_17 = arith.constant 0 : index
    %c0_18 = arith.constant 0 : index
    %19 = vector.load %arg6[%c0_17, %c0_18] : memref<1x96xf32, #tpu.memory_space<vmem>>, vector<1x96xf32>
    %20 = vector.broadcast %19 : vector<1x96xf32> to vector<8x96xf32>
    %21 = arith.addf %18, %20 : vector<8x96xf32>
    %c0_19 = arith.constant 0 : index
    %c0_20 = arith.constant 0 : index
    %22 = vector.load %arg7[%c0_19, %c0_20] : memref<32x96xf32, #tpu.memory_space<vmem>>, vector<32x96xf32>
    %cst_21 = arith.constant dense<0.000000e+00> : vector<8x96xf32>
    %23 = tpu.matmul %9, %22, %cst_21 {dimension_numbers = #tpu.dot_dimension_numbers<[1], [0], [0], [1], [0, 0, 1, 1], [], []>} : vector<8x32xf32>, vector<32x96xf32>, vector<8x96xf32> -> vector<8x96xf32>
    %c0_22 = arith.constant 0 : index
    %c0_23 = arith.constant 0 : index
    %24 = vector.load %arg8[%c0_22, %c0_23] : memref<1x96xf32, #tpu.memory_space<vmem>>, vector<1x96xf32>
    %25 = vector.broadcast %24 : vector<1x96xf32> to vector<8x96xf32>
    %26 = arith.addf %23, %25 : vector<8x96xf32>
    %27 = vector.extract_strided_slice %13 {offsets = [0, 0], sizes = [8, 96], strides = [1, 1]} : vector<8x192xf32> to vector<8x96xf32>
    %28 = vector.extract_strided_slice %27 {offsets = [0, 0], sizes = [8, 32], strides = [1, 1]} : vector<8x96xf32> to vector<8x32xf32>
    %29 = vector.extract_strided_slice %21 {offsets = [0, 0], sizes = [8, 32], strides = [1, 1]} : vector<8x96xf32> to vector<8x32xf32>
    %30 = arith.addf %28, %29 : vector<8x32xf32>
    %31 = arith.negf %30 : vector<8x32xf32>
    %32 = math.exp %31 : vector<8x32xf32>
    %cst_24 = arith.constant 1.000000e+00 : f32
    %33 = vector.broadcast %cst_24 : f32 to vector<8x32xf32>
    %34 = arith.addf %33, %32 : vector<8x32xf32>
    %35 = arith.divf %33, %34 : vector<8x32xf32>
    %36 = vector.extract_strided_slice %27 {offsets = [0, 32], sizes = [8, 32], strides = [1, 1]} : vector<8x96xf32> to vector<8x32xf32>
    %37 = vector.extract_strided_slice %21 {offsets = [0, 32], sizes = [8, 32], strides = [1, 1]} : vector<8x96xf32> to vector<8x32xf32>
    %38 = arith.addf %36, %37 : vector<8x32xf32>
    %39 = arith.negf %38 : vector<8x32xf32>
    %40 = math.exp %39 : vector<8x32xf32>
    %cst_25 = arith.constant 1.000000e+00 : f32
    %41 = vector.broadcast %cst_25 : f32 to vector<8x32xf32>
    %42 = arith.addf %41, %40 : vector<8x32xf32>
    %43 = arith.divf %41, %42 : vector<8x32xf32>
    %44 = vector.extract_strided_slice %27 {offsets = [0, 64], sizes = [8, 32], strides = [1, 1]} : vector<8x96xf32> to vector<8x32xf32>
    %45 = vector.extract_strided_slice %21 {offsets = [0, 64], sizes = [8, 32], strides = [1, 1]} : vector<8x96xf32> to vector<8x32xf32>
    %46 = arith.mulf %35, %45 : vector<8x32xf32>
    %47 = arith.addf %44, %46 : vector<8x32xf32>
    %48 = math.tanh %47 : vector<8x32xf32>
    %cst_26 = arith.constant 1.000000e+00 : f32
    %49 = vector.broadcast %cst_26 : f32 to vector<8x32xf32>
    %50 = arith.subf %49, %43 : vector<8x32xf32>
    %51 = arith.mulf %50, %48 : vector<8x32xf32>
    %52 = arith.mulf %43, %9 : vector<8x32xf32>
    %53 = arith.addf %51, %52 : vector<8x32xf32>
    %54 = vector.extract_strided_slice %16 {offsets = [0, 96], sizes = [8, 96], strides = [1, 1]} : vector<8x192xf32> to vector<8x96xf32>
    %55 = vector.extract_strided_slice %54 {offsets = [0, 0], sizes = [8, 32], strides = [1, 1]} : vector<8x96xf32> to vector<8x32xf32>
    %56 = vector.extract_strided_slice %26 {offsets = [0, 0], sizes = [8, 32], strides = [1, 1]} : vector<8x96xf32> to vector<8x32xf32>
    %57 = arith.addf %55, %56 : vector<8x32xf32>
    %58 = arith.negf %57 : vector<8x32xf32>
    %59 = math.exp %58 : vector<8x32xf32>
    %cst_27 = arith.constant 1.000000e+00 : f32
    %60 = vector.broadcast %cst_27 : f32 to vector<8x32xf32>
    %61 = arith.addf %60, %59 : vector<8x32xf32>
    %62 = arith.divf %60, %61 : vector<8x32xf32>
    %63 = vector.extract_strided_slice %54 {offsets = [0, 32], sizes = [8, 32], strides = [1, 1]} : vector<8x96xf32> to vector<8x32xf32>
    %64 = vector.extract_strided_slice %26 {offsets = [0, 32], sizes = [8, 32], strides = [1, 1]} : vector<8x96xf32> to vector<8x32xf32>
    %65 = arith.addf %63, %64 : vector<8x32xf32>
    %66 = arith.negf %65 : vector<8x32xf32>
    %67 = math.exp %66 : vector<8x32xf32>
    %cst_28 = arith.constant 1.000000e+00 : f32
    %68 = vector.broadcast %cst_28 : f32 to vector<8x32xf32>
    %69 = arith.addf %68, %67 : vector<8x32xf32>
    %70 = arith.divf %68, %69 : vector<8x32xf32>
    %71 = vector.extract_strided_slice %54 {offsets = [0, 64], sizes = [8, 32], strides = [1, 1]} : vector<8x96xf32> to vector<8x32xf32>
    %72 = vector.extract_strided_slice %26 {offsets = [0, 64], sizes = [8, 32], strides = [1, 1]} : vector<8x96xf32> to vector<8x32xf32>
    %73 = arith.mulf %62, %72 : vector<8x32xf32>
    %74 = arith.addf %71, %73 : vector<8x32xf32>
    %75 = math.tanh %74 : vector<8x32xf32>
    %cst_29 = arith.constant 1.000000e+00 : f32
    %76 = vector.broadcast %cst_29 : f32 to vector<8x32xf32>
    %77 = arith.subf %76, %70 : vector<8x32xf32>
    %78 = arith.mulf %77, %75 : vector<8x32xf32>
    %79 = arith.mulf %70, %9 : vector<8x32xf32>
    %80 = arith.addf %78, %79 : vector<8x32xf32>
    %81 = arith.index_cast %c0_i32 : i32 to index
    %c0_30 = arith.constant 0 : index
    %c0_31 = arith.constant 0 : index
    %82 = vector.load %arg2[%81, %c0_30, %c0_31] : memref<8x8x1xf32, #tpu.memory_space<vmem>>, vector<1x8x1xf32>
    %83 = vector.shape_cast %82 : vector<1x8x1xf32> to vector<8x1xf32>
    %84 = arith.index_cast %10 : i32 to index
    %c0_32 = arith.constant 0 : index
    %c0_33 = arith.constant 0 : index
    %85 = vector.load %arg2[%84, %c0_32, %c0_33] : memref<8x8x1xf32, #tpu.memory_space<vmem>>, vector<1x8x1xf32>
    %86 = vector.shape_cast %85 : vector<1x8x1xf32> to vector<8x1xf32>
    %87 = vector.broadcast %83 : vector<8x1xf32> to vector<8x32xf32>
    %88 = arith.mulf %87, %53 : vector<8x32xf32>
    %cst_34 = arith.constant 1.000000e+00 : f32
    %89 = vector.broadcast %cst_34 : f32 to vector<8x1xf32>
    %90 = arith.subf %89, %83 : vector<8x1xf32>
    %91 = vector.broadcast %90 : vector<8x1xf32> to vector<8x32xf32>
    %92 = arith.mulf %91, %9 : vector<8x32xf32>
    %93 = arith.addf %88, %92 : vector<8x32xf32>
    %94 = vector.broadcast %86 : vector<8x1xf32> to vector<8x32xf32>
    %95 = arith.mulf %94, %80 : vector<8x32xf32>
    %cst_35 = arith.constant 1.000000e+00 : f32
    %96 = vector.broadcast %cst_35 : f32 to vector<8x1xf32>
    %97 = arith.subf %96, %86 : vector<8x1xf32>
    %98 = vector.broadcast %97 : vector<8x1xf32> to vector<8x32xf32>
    %99 = arith.mulf %98, %9 : vector<8x32xf32>
    %100 = arith.addf %95, %99 : vector<8x32xf32>
    %101 = vector.broadcast %83 : vector<8x1xf32> to vector<8x32xf32>
    %102 = arith.mulf %101, %53 : vector<8x32xf32>
    %103 = arith.index_cast %c0_i32 : i32 to index
    %c0_36 = arith.constant 0 : index
    %c0_37 = arith.constant 0 : index
    %104 = vector.load %arg17[%103, %c0_36, %c0_37] : memref<8x8x32xf32, #tpu.memory_space<vmem>>, vector<1x8x32xf32>
    %105 = vector.shape_cast %104 : vector<1x8x32xf32> to vector<8x32xf32>
    %106 = vector.shape_cast %102 : vector<8x32xf32> to vector<1x8x32xf32>
    tpu.vector_store %arg17[%103, %c0_36, %c0_37], %106 {strides = array<i32>} : memref<8x8x32xf32, #tpu.memory_space<vmem>>, vector<1x8x32xf32>,
    %107 = vector.broadcast %86 : vector<8x1xf32> to vector<8x32xf32>
    %108 = arith.mulf %107, %80 : vector<8x32xf32>
    %109 = arith.index_cast %10 : i32 to index
    %c0_38 = arith.constant 0 : index
    %c0_39 = arith.constant 0 : index
    %110 = vector.load %arg18[%109, %c0_38, %c0_39] : memref<8x8x32xf32, #tpu.memory_space<vmem>>, vector<1x8x32xf32>
    %111 = vector.shape_cast %110 : vector<1x8x32xf32> to vector<8x32xf32>
    %112 = vector.shape_cast %108 : vector<8x32xf32> to vector<1x8x32xf32>
    tpu.vector_store %arg18[%109, %c0_38, %c0_39], %112 {strides = array<i32>} : memref<8x8x32xf32, #tpu.memory_space<vmem>>, vector<1x8x32xf32>,
    %c1_i32 = arith.constant 1 : i32
    %c7_i32_40 = arith.constant 7 : i32
    %113 = arith.subi %c7_i32_40, %c1_i32 : i32
    %114 = arith.index_cast %c1_i32 : i32 to index
    %c0_41 = arith.constant 0 : index
    %c0_42 = arith.constant 0 : index
    %115 = vector.load %arg16[%114, %c0_41, %c0_42] : memref<8x8x192xf32, #tpu.memory_space<vmem>>, vector<1x8x192xf32>
    %116 = vector.shape_cast %115 : vector<1x8x192xf32> to vector<8x192xf32>
    %117 = arith.index_cast %113 : i32 to index
    %c0_43 = arith.constant 0 : index
    %c0_44 = arith.constant 0 : index
    %118 = vector.load %arg16[%117, %c0_43, %c0_44] : memref<8x8x192xf32, #tpu.memory_space<vmem>>, vector<1x8x192xf32>
    %119 = vector.shape_cast %118 : vector<1x8x192xf32> to vector<8x192xf32>
    %c0_45 = arith.constant 0 : index
    %c0_46 = arith.constant 0 : index
    %120 = vector.load %arg5[%c0_45, %c0_46] : memref<32x96xf32, #tpu.memory_space<vmem>>, vector<32x96xf32>
    %cst_47 = arith.constant dense<0.000000e+00> : vector<8x96xf32>
    %121 = tpu.matmul %93, %120, %cst_47 {dimension_numbers = #tpu.dot_dimension_numbers<[1], [0], [0], [1], [0, 0, 1, 1], [], []>} : vector<8x32xf32>, vector<32x96xf32>, vector<8x96xf32> -> vector<8x96xf32>
    %c0_48 = arith.constant 0 : index
    %c0_49 = arith.constant 0 : index
    %122 = vector.load %arg6[%c0_48, %c0_49] : memref<1x96xf32, #tpu.memory_space<vmem>>, vector<1x96xf32>
    %123 = vector.broadcast %122 : vector<1x96xf32> to vector<8x96xf32>
    %124 = arith.addf %121, %123 : vector<8x96xf32>
    %c0_50 = arith.constant 0 : index
    %c0_51 = arith.constant 0 : index
    %125 = vector.load %arg7[%c0_50, %c0_51] : memref<32x96xf32, #tpu.memory_space<vmem>>, vector<32x96xf32>
    %cst_52 = arith.constant dense<0.000000e+00> : vector<8x96xf32>
    %126 = tpu.matmul %100, %125, %cst_52 {dimension_numbers = #tpu.dot_dimension_numbers<[1], [0], [0], [1], [0, 0, 1, 1], [], []>} : vector<8x32xf32>, vector<32x96xf32>, vector<8x96xf32> -> vector<8x96xf32>
    %c0_53 = arith.constant 0 : index
    %c0_54 = arith.constant 0 : index
    %127 = vector.load %arg8[%c0_53, %c0_54] : memref<1x96xf32, #tpu.memory_space<vmem>>, vector<1x96xf32>
    %128 = vector.broadcast %127 : vector<1x96xf32> to vector<8x96xf32>
    %129 = arith.addf %126, %128 : vector<8x96xf32>
    %130 = vector.extract_strided_slice %116 {offsets = [0, 0], sizes = [8, 96], strides = [1, 1]} : vector<8x192xf32> to vector<8x96xf32>
    %131 = vector.extract_strided_slice %130 {offsets = [0, 0], sizes = [8, 32], strides = [1, 1]} : vector<8x96xf32> to vector<8x32xf32>
    %132 = vector.extract_strided_slice %124 {offsets = [0, 0], sizes = [8, 32], strides = [1, 1]} : vector<8x96xf32> to vector<8x32xf32>
    %133 = arith.addf %131, %132 : vector<8x32xf32>
    %134 = arith.negf %133 : vector<8x32xf32>
    %135 = math.exp %134 : vector<8x32xf32>
    %cst_55 = arith.constant 1.000000e+00 : f32
    %136 = vector.broadcast %cst_55 : f32 to vector<8x32xf32>
    %137 = arith.addf %136, %135 : vector<8x32xf32>
    %138 = arith.divf %136, %137 : vector<8x32xf32>
    %139 = vector.extract_strided_slice %130 {offsets = [0, 32], sizes = [8, 32], strides = [1, 1]} : vector<8x96xf32> to vector<8x32xf32>
    %140 = vector.extract_strided_slice %124 {offsets = [0, 32], sizes = [8, 32], strides = [1, 1]} : vector<8x96xf32> to vector<8x32xf32>
    %141 = arith.addf %139, %140 : vector<8x32xf32>
    %142 = arith.negf %141 : vector<8x32xf32>
    %143 = math.exp %142 : vector<8x32xf32>
    %cst_56 = arith.constant 1.000000e+00 : f32
    %144 = vector.broadcast %cst_56 : f32 to vector<8x32xf32>
    %145 = arith.addf %144, %143 : vector<8x32xf32>
    %146 = arith.divf %144, %145 : vector<8x32xf32>
    %147 = vector.extract_strided_slice %130 {offsets = [0, 64], sizes = [8, 32], strides = [1, 1]} : vector<8x96xf32> to vector<8x32xf32>
    %148 = vector.extract_strided_slice %124 {offsets = [0, 64], sizes = [8, 32], strides = [1, 1]} : vector<8x96xf32> to vector<8x32xf32>
    %149 = arith.mulf %138, %148 : vector<8x32xf32>
    %150 = arith.addf %147, %149 : vector<8x32xf32>
    %151 = math.tanh %150 : vector<8x32xf32>
    %cst_57 = arith.constant 1.000000e+00 : f32
    %152 = vector.broadcast %cst_57 : f32 to vector<8x32xf32>
    %153 = arith.subf %152, %146 : vector<8x32xf32>
    %154 = arith.mulf %153, %151 : vector<8x32xf32>
    %155 = arith.mulf %146, %93 : vector<8x32xf32>
    %156 = arith.addf %154, %155 : vector<8x32xf32>
    %157 = vector.extract_strided_slice %119 {offsets = [0, 96], sizes = [8, 96], strides = [1, 1]} : vector<8x192xf32> to vector<8x96xf32>
    %158 = vector.extract_strided_slice %157 {offsets = [0, 0], sizes = [8, 32], strides = [1, 1]} : vector<8x96xf32> to vector<8x32xf32>
    %159 = vector.extract_strided_slice %129 {offsets = [0, 0], sizes = [8, 32], strides = [1, 1]} : vector<8x96xf32> to vector<8x32xf32>
    %160 = arith.addf %158, %159 : vector<8x32xf32>
    %161 = arith.negf %160 : vector<8x32xf32>
    %162 = math.exp %161 : vector<8x32xf32>
    %cst_58 = arith.constant 1.000000e+00 : f32
    %163 = vector.broadcast %cst_58 : f32 to vector<8x32xf32>
    %164 = arith.addf %163, %162 : vector<8x32xf32>
    %165 = arith.divf %163, %164 : vector<8x32xf32>
    %166 = vector.extract_strided_slice %157 {offsets = [0, 32], sizes = [8, 32], strides = [1, 1]} : vector<8x96xf32> to vector<8x32xf32>
    %167 = vector.extract_strided_slice %129 {offsets = [0, 32], sizes = [8, 32], strides = [1, 1]} : vector<8x96xf32> to vector<8x32xf32>
    %168 = arith.addf %166, %167 : vector<8x32xf32>
    %169 = arith.negf %168 : vector<8x32xf32>
    %170 = math.exp %169 : vector<8x32xf32>
    %cst_59 = arith.constant 1.000000e+00 : f32
    %171 = vector.broadcast %cst_59 : f32 to vector<8x32xf32>
    %172 = arith.addf %171, %170 : vector<8x32xf32>
    %173 = arith.divf %171, %172 : vector<8x32xf32>
    %174 = vector.extract_strided_slice %157 {offsets = [0, 64], sizes = [8, 32], strides = [1, 1]} : vector<8x96xf32> to vector<8x32xf32>
    %175 = vector.extract_strided_slice %129 {offsets = [0, 64], sizes = [8, 32], strides = [1, 1]} : vector<8x96xf32> to vector<8x32xf32>
    %176 = arith.mulf %165, %175 : vector<8x32xf32>
    %177 = arith.addf %174, %176 : vector<8x32xf32>
    %178 = math.tanh %177 : vector<8x32xf32>
    %cst_60 = arith.constant 1.000000e+00 : f32
    %179 = vector.broadcast %cst_60 : f32 to vector<8x32xf32>
    %180 = arith.subf %179, %173 : vector<8x32xf32>
    %181 = arith.mulf %180, %178 : vector<8x32xf32>
    %182 = arith.mulf %173, %100 : vector<8x32xf32>
    %183 = arith.addf %181, %182 : vector<8x32xf32>
    %184 = arith.index_cast %c1_i32 : i32 to index
    %c0_61 = arith.constant 0 : index
    %c0_62 = arith.constant 0 : index
    %185 = vector.load %arg2[%184, %c0_61, %c0_62] : memref<8x8x1xf32, #tpu.memory_space<vmem>>, vector<1x8x1xf32>
    %186 = vector.shape_cast %185 : vector<1x8x1xf32> to vector<8x1xf32>
    %187 = arith.index_cast %113 : i32 to index
    %c0_63 = arith.constant 0 : index
    %c0_64 = arith.constant 0 : index
    %188 = vector.load %arg2[%187, %c0_63, %c0_64] : memref<8x8x1xf32, #tpu.memory_space<vmem>>, vector<1x8x1xf32>
    %189 = vector.shape_cast %188 : vector<1x8x1xf32> to vector<8x1xf32>
    %190 = vector.broadcast %186 : vector<8x1xf32> to vector<8x32xf32>
    %191 = arith.mulf %190, %156 : vector<8x32xf32>
    %cst_65 = arith.constant 1.000000e+00 : f32
    %192 = vector.broadcast %cst_65 : f32 to vector<8x1xf32>
    %193 = arith.subf %192, %186 : vector<8x1xf32>
    %194 = vector.broadcast %193 : vector<8x1xf32> to vector<8x32xf32>
    %195 = arith.mulf %194, %93 : vector<8x32xf32>
    %196 = arith.addf %191, %195 : vector<8x32xf32>
    %197 = vector.broadcast %189 : vector<8x1xf32> to vector<8x32xf32>
    %198 = arith.mulf %197, %183 : vector<8x32xf32>
    %cst_66 = arith.constant 1.000000e+00 : f32
    %199 = vector.broadcast %cst_66 : f32 to vector<8x1xf32>
    %200 = arith.subf %199, %189 : vector<8x1xf32>
    %201 = vector.broadcast %200 : vector<8x1xf32> to vector<8x32xf32>
    %202 = arith.mulf %201, %100 : vector<8x32xf32>
    %203 = arith.addf %198, %202 : vector<8x32xf32>
    %204 = vector.broadcast %186 : vector<8x1xf32> to vector<8x32xf32>
    %205 = arith.mulf %204, %156 : vector<8x32xf32>
    %206 = arith.index_cast %c1_i32 : i32 to index
    %c0_67 = arith.constant 0 : index
    %c0_68 = arith.constant 0 : index
    %207 = vector.load %arg17[%206, %c0_67, %c0_68] : memref<8x8x32xf32, #tpu.memory_space<vmem>>, vector<1x8x32xf32>
    %208 = vector.shape_cast %207 : vector<1x8x32xf32> to vector<8x32xf32>
    %209 = vector.shape_cast %205 : vector<8x32xf32> to vector<1x8x32xf32>
    tpu.vector_store %arg17[%206, %c0_67, %c0_68], %209 {strides = array<i32>} : memref<8x8x32xf32, #tpu.memory_space<vmem>>, vector<1x8x32xf32>,
    %210 = vector.broadcast %189 : vector<8x1xf32> to vector<8x32xf32>
    %211 = arith.mulf %210, %183 : vector<8x32xf32>
    %212 = arith.index_cast %113 : i32 to index
    %c0_69 = arith.constant 0 : index
    %c0_70 = arith.constant 0 : index
    %213 = vector.load %arg18[%212, %c0_69, %c0_70] : memref<8x8x32xf32, #tpu.memory_space<vmem>>, vector<1x8x32xf32>
    %214 = vector.shape_cast %213 : vector<1x8x32xf32> to vector<8x32xf32>
    %215 = vector.shape_cast %211 : vector<8x32xf32> to vector<1x8x32xf32>
    tpu.vector_store %arg18[%212, %c0_69, %c0_70], %215 {strides = array<i32>} : memref<8x8x32xf32, #tpu.memory_space<vmem>>, vector<1x8x32xf32>,
    %c2_i32 = arith.constant 2 : i32
    %c7_i32_71 = arith.constant 7 : i32
    %216 = arith.subi %c7_i32_71, %c2_i32 : i32
    %217 = arith.index_cast %c2_i32 : i32 to index
    %c0_72 = arith.constant 0 : index
    %c0_73 = arith.constant 0 : index
    %218 = vector.load %arg16[%217, %c0_72, %c0_73] : memref<8x8x192xf32, #tpu.memory_space<vmem>>, vector<1x8x192xf32>
    %219 = vector.shape_cast %218 : vector<1x8x192xf32> to vector<8x192xf32>
    %220 = arith.index_cast %216 : i32 to index
    %c0_74 = arith.constant 0 : index
    %c0_75 = arith.constant 0 : index
    %221 = vector.load %arg16[%220, %c0_74, %c0_75] : memref<8x8x192xf32, #tpu.memory_space<vmem>>, vector<1x8x192xf32>
    %222 = vector.shape_cast %221 : vector<1x8x192xf32> to vector<8x192xf32>
    %c0_76 = arith.constant 0 : index
    %c0_77 = arith.constant 0 : index
    %223 = vector.load %arg5[%c0_76, %c0_77] : memref<32x96xf32, #tpu.memory_space<vmem>>, vector<32x96xf32>
    %cst_78 = arith.constant dense<0.000000e+00> : vector<8x96xf32>
    %224 = tpu.matmul %196, %223, %cst_78 {dimension_numbers = #tpu.dot_dimension_numbers<[1], [0], [0], [1], [0, 0, 1, 1], [], []>} : vector<8x32xf32>, vector<32x96xf32>, vector<8x96xf32> -> vector<8x96xf32>
    %c0_79 = arith.constant 0 : index
    %c0_80 = arith.constant 0 : index
    %225 = vector.load %arg6[%c0_79, %c0_80] : memref<1x96xf32, #tpu.memory_space<vmem>>, vector<1x96xf32>
    %226 = vector.broadcast %225 : vector<1x96xf32> to vector<8x96xf32>
    %227 = arith.addf %224, %226 : vector<8x96xf32>
    %c0_81 = arith.constant 0 : index
    %c0_82 = arith.constant 0 : index
    %228 = vector.load %arg7[%c0_81, %c0_82] : memref<32x96xf32, #tpu.memory_space<vmem>>, vector<32x96xf32>
    %cst_83 = arith.constant dense<0.000000e+00> : vector<8x96xf32>
    %229 = tpu.matmul %203, %228, %cst_83 {dimension_numbers = #tpu.dot_dimension_numbers<[1], [0], [0], [1], [0, 0, 1, 1], [], []>} : vector<8x32xf32>, vector<32x96xf32>, vector<8x96xf32> -> vector<8x96xf32>
    %c0_84 = arith.constant 0 : index
    %c0_85 = arith.constant 0 : index
    %230 = vector.load %arg8[%c0_84, %c0_85] : memref<1x96xf32, #tpu.memory_space<vmem>>, vector<1x96xf32>
    %231 = vector.broadcast %230 : vector<1x96xf32> to vector<8x96xf32>
    %232 = arith.addf %229, %231 : vector<8x96xf32>
    %233 = vector.extract_strided_slice %219 {offsets = [0, 0], sizes = [8, 96], strides = [1, 1]} : vector<8x192xf32> to vector<8x96xf32>
    %234 = vector.extract_strided_slice %233 {offsets = [0, 0], sizes = [8, 32], strides = [1, 1]} : vector<8x96xf32> to vector<8x32xf32>
    %235 = vector.extract_strided_slice %227 {offsets = [0, 0], sizes = [8, 32], strides = [1, 1]} : vector<8x96xf32> to vector<8x32xf32>
    %236 = arith.addf %234, %235 : vector<8x32xf32>
    %237 = arith.negf %236 : vector<8x32xf32>
    %238 = math.exp %237 : vector<8x32xf32>
    %cst_86 = arith.constant 1.000000e+00 : f32
    %239 = vector.broadcast %cst_86 : f32 to vector<8x32xf32>
    %240 = arith.addf %239, %238 : vector<8x32xf32>
    %241 = arith.divf %239, %240 : vector<8x32xf32>
    %242 = vector.extract_strided_slice %233 {offsets = [0, 32], sizes = [8, 32], strides = [1, 1]} : vector<8x96xf32> to vector<8x32xf32>
    %243 = vector.extract_strided_slice %227 {offsets = [0, 32], sizes = [8, 32], strides = [1, 1]} : vector<8x96xf32> to vector<8x32xf32>
    %244 = arith.addf %242, %243 : vector<8x32xf32>
    %245 = arith.negf %244 : vector<8x32xf32>
    %246 = math.exp %245 : vector<8x32xf32>
    %cst_87 = arith.constant 1.000000e+00 : f32
    %247 = vector.broadcast %cst_87 : f32 to vector<8x32xf32>
    %248 = arith.addf %247, %246 : vector<8x32xf32>
    %249 = arith.divf %247, %248 : vector<8x32xf32>
    %250 = vector.extract_strided_slice %233 {offsets = [0, 64], sizes = [8, 32], strides = [1, 1]} : vector<8x96xf32> to vector<8x32xf32>
    %251 = vector.extract_strided_slice %227 {offsets = [0, 64], sizes = [8, 32], strides = [1, 1]} : vector<8x96xf32> to vector<8x32xf32>
    %252 = arith.mulf %241, %251 : vector<8x32xf32>
    %253 = arith.addf %250, %252 : vector<8x32xf32>
    %254 = math.tanh %253 : vector<8x32xf32>
    %cst_88 = arith.constant 1.000000e+00 : f32
    %255 = vector.broadcast %cst_88 : f32 to vector<8x32xf32>
    %256 = arith.subf %255, %249 : vector<8x32xf32>
    %257 = arith.mulf %256, %254 : vector<8x32xf32>
    %258 = arith.mulf %249, %196 : vector<8x32xf32>
    %259 = arith.addf %257, %258 : vector<8x32xf32>
    %260 = vector.extract_strided_slice %222 {offsets = [0, 96], sizes = [8, 96], strides = [1, 1]} : vector<8x192xf32> to vector<8x96xf32>
    %261 = vector.extract_strided_slice %260 {offsets = [0, 0], sizes = [8, 32], strides = [1, 1]} : vector<8x96xf32> to vector<8x32xf32>
    %262 = vector.extract_strided_slice %232 {offsets = [0, 0], sizes = [8, 32], strides = [1, 1]} : vector<8x96xf32> to vector<8x32xf32>
    %263 = arith.addf %261, %262 : vector<8x32xf32>
    %264 = arith.negf %263 : vector<8x32xf32>
    %265 = math.exp %264 : vector<8x32xf32>
    %cst_89 = arith.constant 1.000000e+00 : f32
    %266 = vector.broadcast %cst_89 : f32 to vector<8x32xf32>
    %267 = arith.addf %266, %265 : vector<8x32xf32>
    %268 = arith.divf %266, %267 : vector<8x32xf32>
    %269 = vector.extract_strided_slice %260 {offsets = [0, 32], sizes = [8, 32], strides = [1, 1]} : vector<8x96xf32> to vector<8x32xf32>
    %270 = vector.extract_strided_slice %232 {offsets = [0, 32], sizes = [8, 32], strides = [1, 1]} : vector<8x96xf32> to vector<8x32xf32>
    %271 = arith.addf %269, %270 : vector<8x32xf32>
    %272 = arith.negf %271 : vector<8x32xf32>
    %273 = math.exp %272 : vector<8x32xf32>
    %cst_90 = arith.constant 1.000000e+00 : f32
    %274 = vector.broadcast %cst_90 : f32 to vector<8x32xf32>
    %275 = arith.addf %274, %273 : vector<8x32xf32>
    %276 = arith.divf %274, %275 : vector<8x32xf32>
    %277 = vector.extract_strided_slice %260 {offsets = [0, 64], sizes = [8, 32], strides = [1, 1]} : vector<8x96xf32> to vector<8x32xf32>
    %278 = vector.extract_strided_slice %232 {offsets = [0, 64], sizes = [8, 32], strides = [1, 1]} : vector<8x96xf32> to vector<8x32xf32>
    %279 = arith.mulf %268, %278 : vector<8x32xf32>
    %280 = arith.addf %277, %279 : vector<8x32xf32>
    %281 = math.tanh %280 : vector<8x32xf32>
    %cst_91 = arith.constant 1.000000e+00 : f32
    %282 = vector.broadcast %cst_91 : f32 to vector<8x32xf32>
    %283 = arith.subf %282, %276 : vector<8x32xf32>
    %284 = arith.mulf %283, %281 : vector<8x32xf32>
    %285 = arith.mulf %276, %203 : vector<8x32xf32>
    %286 = arith.addf %284, %285 : vector<8x32xf32>
    %287 = arith.index_cast %c2_i32 : i32 to index
    %c0_92 = arith.constant 0 : index
    %c0_93 = arith.constant 0 : index
    %288 = vector.load %arg2[%287, %c0_92, %c0_93] : memref<8x8x1xf32, #tpu.memory_space<vmem>>, vector<1x8x1xf32>
    %289 = vector.shape_cast %288 : vector<1x8x1xf32> to vector<8x1xf32>
    %290 = arith.index_cast %216 : i32 to index
    %c0_94 = arith.constant 0 : index
    %c0_95 = arith.constant 0 : index
    %291 = vector.load %arg2[%290, %c0_94, %c0_95] : memref<8x8x1xf32, #tpu.memory_space<vmem>>, vector<1x8x1xf32>
    %292 = vector.shape_cast %291 : vector<1x8x1xf32> to vector<8x1xf32>
    %293 = vector.broadcast %289 : vector<8x1xf32> to vector<8x32xf32>
    %294 = arith.mulf %293, %259 : vector<8x32xf32>
    %cst_96 = arith.constant 1.000000e+00 : f32
    %295 = vector.broadcast %cst_96 : f32 to vector<8x1xf32>
    %296 = arith.subf %295, %289 : vector<8x1xf32>
    %297 = vector.broadcast %296 : vector<8x1xf32> to vector<8x32xf32>
    %298 = arith.mulf %297, %196 : vector<8x32xf32>
    %299 = arith.addf %294, %298 : vector<8x32xf32>
    %300 = vector.broadcast %292 : vector<8x1xf32> to vector<8x32xf32>
    %301 = arith.mulf %300, %286 : vector<8x32xf32>
    %cst_97 = arith.constant 1.000000e+00 : f32
    %302 = vector.broadcast %cst_97 : f32 to vector<8x1xf32>
    %303 = arith.subf %302, %292 : vector<8x1xf32>
    %304 = vector.broadcast %303 : vector<8x1xf32> to vector<8x32xf32>
    %305 = arith.mulf %304, %203 : vector<8x32xf32>
    %306 = arith.addf %301, %305 : vector<8x32xf32>
    %307 = vector.broadcast %289 : vector<8x1xf32> to vector<8x32xf32>
    %308 = arith.mulf %307, %259 : vector<8x32xf32>
    %309 = arith.index_cast %c2_i32 : i32 to index
    %c0_98 = arith.constant 0 : index
    %c0_99 = arith.constant 0 : index
    %310 = vector.load %arg17[%309, %c0_98, %c0_99] : memref<8x8x32xf32, #tpu.memory_space<vmem>>, vector<1x8x32xf32>
    %311 = vector.shape_cast %310 : vector<1x8x32xf32> to vector<8x32xf32>
    %312 = vector.shape_cast %308 : vector<8x32xf32> to vector<1x8x32xf32>
    tpu.vector_store %arg17[%309, %c0_98, %c0_99], %312 {strides = array<i32>} : memref<8x8x32xf32, #tpu.memory_space<vmem>>, vector<1x8x32xf32>,
    %313 = vector.broadcast %292 : vector<8x1xf32> to vector<8x32xf32>
    %314 = arith.mulf %313, %286 : vector<8x32xf32>
    %315 = arith.index_cast %216 : i32 to index
    %c0_100 = arith.constant 0 : index
    %c0_101 = arith.constant 0 : index
    %316 = vector.load %arg18[%315, %c0_100, %c0_101] : memref<8x8x32xf32, #tpu.memory_space<vmem>>, vector<1x8x32xf32>
    %317 = vector.shape_cast %316 : vector<1x8x32xf32> to vector<8x32xf32>
    %318 = vector.shape_cast %314 : vector<8x32xf32> to vector<1x8x32xf32>
    tpu.vector_store %arg18[%315, %c0_100, %c0_101], %318 {strides = array<i32>} : memref<8x8x32xf32, #tpu.memory_space<vmem>>, vector<1x8x32xf32>,
    %c3_i32 = arith.constant 3 : i32
    %c7_i32_102 = arith.constant 7 : i32
    %319 = arith.subi %c7_i32_102, %c3_i32 : i32
    %320 = arith.index_cast %c3_i32 : i32 to index
    %c0_103 = arith.constant 0 : index
    %c0_104 = arith.constant 0 : index
    %321 = vector.load %arg16[%320, %c0_103, %c0_104] : memref<8x8x192xf32, #tpu.memory_space<vmem>>, vector<1x8x192xf32>
    %322 = vector.shape_cast %321 : vector<1x8x192xf32> to vector<8x192xf32>
    %323 = arith.index_cast %319 : i32 to index
    %c0_105 = arith.constant 0 : index
    %c0_106 = arith.constant 0 : index
    %324 = vector.load %arg16[%323, %c0_105, %c0_106] : memref<8x8x192xf32, #tpu.memory_space<vmem>>, vector<1x8x192xf32>
    %325 = vector.shape_cast %324 : vector<1x8x192xf32> to vector<8x192xf32>
    %c0_107 = arith.constant 0 : index
    %c0_108 = arith.constant 0 : index
    %326 = vector.load %arg5[%c0_107, %c0_108] : memref<32x96xf32, #tpu.memory_space<vmem>>, vector<32x96xf32>
    %cst_109 = arith.constant dense<0.000000e+00> : vector<8x96xf32>
    %327 = tpu.matmul %299, %326, %cst_109 {dimension_numbers = #tpu.dot_dimension_numbers<[1], [0], [0], [1], [0, 0, 1, 1], [], []>} : vector<8x32xf32>, vector<32x96xf32>, vector<8x96xf32> -> vector<8x96xf32>
    %c0_110 = arith.constant 0 : index
    %c0_111 = arith.constant 0 : index
    %328 = vector.load %arg6[%c0_110, %c0_111] : memref<1x96xf32, #tpu.memory_space<vmem>>, vector<1x96xf32>
    %329 = vector.broadcast %328 : vector<1x96xf32> to vector<8x96xf32>
    %330 = arith.addf %327, %329 : vector<8x96xf32>
    %c0_112 = arith.constant 0 : index
    %c0_113 = arith.constant 0 : index
    %331 = vector.load %arg7[%c0_112, %c0_113] : memref<32x96xf32, #tpu.memory_space<vmem>>, vector<32x96xf32>
    %cst_114 = arith.constant dense<0.000000e+00> : vector<8x96xf32>
    %332 = tpu.matmul %306, %331, %cst_114 {dimension_numbers = #tpu.dot_dimension_numbers<[1], [0], [0], [1], [0, 0, 1, 1], [], []>} : vector<8x32xf32>, vector<32x96xf32>, vector<8x96xf32> -> vector<8x96xf32>
    %c0_115 = arith.constant 0 : index
    %c0_116 = arith.constant 0 : index
    %333 = vector.load %arg8[%c0_115, %c0_116] : memref<1x96xf32, #tpu.memory_space<vmem>>, vector<1x96xf32>
    %334 = vector.broadcast %333 : vector<1x96xf32> to vector<8x96xf32>
    %335 = arith.addf %332, %334 : vector<8x96xf32>
    %336 = vector.extract_strided_slice %322 {offsets = [0, 0], sizes = [8, 96], strides = [1, 1]} : vector<8x192xf32> to vector<8x96xf32>
    %337 = vector.extract_strided_slice %336 {offsets = [0, 0], sizes = [8, 32], strides = [1, 1]} : vector<8x96xf32> to vector<8x32xf32>
    %338 = vector.extract_strided_slice %330 {offsets = [0, 0], sizes = [8, 32], strides = [1, 1]} : vector<8x96xf32> to vector<8x32xf32>
    %339 = arith.addf %337, %338 : vector<8x32xf32>
    %340 = arith.negf %339 : vector<8x32xf32>
    %341 = math.exp %340 : vector<8x32xf32>
    %cst_117 = arith.constant 1.000000e+00 : f32
    %342 = vector.broadcast %cst_117 : f32 to vector<8x32xf32>
    %343 = arith.addf %342, %341 : vector<8x32xf32>
    %344 = arith.divf %342, %343 : vector<8x32xf32>
    %345 = vector.extract_strided_slice %336 {offsets = [0, 32], sizes = [8, 32], strides = [1, 1]} : vector<8x96xf32> to vector<8x32xf32>
    %346 = vector.extract_strided_slice %330 {offsets = [0, 32], sizes = [8, 32], strides = [1, 1]} : vector<8x96xf32> to vector<8x32xf32>
    %347 = arith.addf %345, %346 : vector<8x32xf32>
    %348 = arith.negf %347 : vector<8x32xf32>
    %349 = math.exp %348 : vector<8x32xf32>
    %cst_118 = arith.constant 1.000000e+00 : f32
    %350 = vector.broadcast %cst_118 : f32 to vector<8x32xf32>
    %351 = arith.addf %350, %349 : vector<8x32xf32>
    %352 = arith.divf %350, %351 : vector<8x32xf32>
    %353 = vector.extract_strided_slice %336 {offsets = [0, 64], sizes = [8, 32], strides = [1, 1]} : vector<8x96xf32> to vector<8x32xf32>
    %354 = vector.extract_strided_slice %330 {offsets = [0, 64], sizes = [8, 32], strides = [1, 1]} : vector<8x96xf32> to vector<8x32xf32>
    %355 = arith.mulf %344, %354 : vector<8x32xf32>
    %356 = arith.addf %353, %355 : vector<8x32xf32>
    %357 = math.tanh %356 : vector<8x32xf32>
    %cst_119 = arith.constant 1.000000e+00 : f32
    %358 = vector.broadcast %cst_119 : f32 to vector<8x32xf32>
    %359 = arith.subf %358, %352 : vector<8x32xf32>
    %360 = arith.mulf %359, %357 : vector<8x32xf32>
    %361 = arith.mulf %352, %299 : vector<8x32xf32>
    %362 = arith.addf %360, %361 : vector<8x32xf32>
    %363 = vector.extract_strided_slice %325 {offsets = [0, 96], sizes = [8, 96], strides = [1, 1]} : vector<8x192xf32> to vector<8x96xf32>
    %364 = vector.extract_strided_slice %363 {offsets = [0, 0], sizes = [8, 32], strides = [1, 1]} : vector<8x96xf32> to vector<8x32xf32>
    %365 = vector.extract_strided_slice %335 {offsets = [0, 0], sizes = [8, 32], strides = [1, 1]} : vector<8x96xf32> to vector<8x32xf32>
    %366 = arith.addf %364, %365 : vector<8x32xf32>
    %367 = arith.negf %366 : vector<8x32xf32>
    %368 = math.exp %367 : vector<8x32xf32>
    %cst_120 = arith.constant 1.000000e+00 : f32
    %369 = vector.broadcast %cst_120 : f32 to vector<8x32xf32>
    %370 = arith.addf %369, %368 : vector<8x32xf32>
    %371 = arith.divf %369, %370 : vector<8x32xf32>
    %372 = vector.extract_strided_slice %363 {offsets = [0, 32], sizes = [8, 32], strides = [1, 1]} : vector<8x96xf32> to vector<8x32xf32>
    %373 = vector.extract_strided_slice %335 {offsets = [0, 32], sizes = [8, 32], strides = [1, 1]} : vector<8x96xf32> to vector<8x32xf32>
    %374 = arith.addf %372, %373 : vector<8x32xf32>
    %375 = arith.negf %374 : vector<8x32xf32>
    %376 = math.exp %375 : vector<8x32xf32>
    %cst_121 = arith.constant 1.000000e+00 : f32
    %377 = vector.broadcast %cst_121 : f32 to vector<8x32xf32>
    %378 = arith.addf %377, %376 : vector<8x32xf32>
    %379 = arith.divf %377, %378 : vector<8x32xf32>
    %380 = vector.extract_strided_slice %363 {offsets = [0, 64], sizes = [8, 32], strides = [1, 1]} : vector<8x96xf32> to vector<8x32xf32>
    %381 = vector.extract_strided_slice %335 {offsets = [0, 64], sizes = [8, 32], strides = [1, 1]} : vector<8x96xf32> to vector<8x32xf32>
    %382 = arith.mulf %371, %381 : vector<8x32xf32>
    %383 = arith.addf %380, %382 : vector<8x32xf32>
    %384 = math.tanh %383 : vector<8x32xf32>
    %cst_122 = arith.constant 1.000000e+00 : f32
    %385 = vector.broadcast %cst_122 : f32 to vector<8x32xf32>
    %386 = arith.subf %385, %379 : vector<8x32xf32>
    %387 = arith.mulf %386, %384 : vector<8x32xf32>
    %388 = arith.mulf %379, %306 : vector<8x32xf32>
    %389 = arith.addf %387, %388 : vector<8x32xf32>
    %390 = arith.index_cast %c3_i32 : i32 to index
    %c0_123 = arith.constant 0 : index
    %c0_124 = arith.constant 0 : index
    %391 = vector.load %arg2[%390, %c0_123, %c0_124] : memref<8x8x1xf32, #tpu.memory_space<vmem>>, vector<1x8x1xf32>
    %392 = vector.shape_cast %391 : vector<1x8x1xf32> to vector<8x1xf32>
    %393 = arith.index_cast %319 : i32 to index
    %c0_125 = arith.constant 0 : index
    %c0_126 = arith.constant 0 : index
    %394 = vector.load %arg2[%393, %c0_125, %c0_126] : memref<8x8x1xf32, #tpu.memory_space<vmem>>, vector<1x8x1xf32>
    %395 = vector.shape_cast %394 : vector<1x8x1xf32> to vector<8x1xf32>
    %396 = vector.broadcast %392 : vector<8x1xf32> to vector<8x32xf32>
    %397 = arith.mulf %396, %362 : vector<8x32xf32>
    %cst_127 = arith.constant 1.000000e+00 : f32
    %398 = vector.broadcast %cst_127 : f32 to vector<8x1xf32>
    %399 = arith.subf %398, %392 : vector<8x1xf32>
    %400 = vector.broadcast %399 : vector<8x1xf32> to vector<8x32xf32>
    %401 = arith.mulf %400, %299 : vector<8x32xf32>
    %402 = arith.addf %397, %401 : vector<8x32xf32>
    %403 = vector.broadcast %395 : vector<8x1xf32> to vector<8x32xf32>
    %404 = arith.mulf %403, %389 : vector<8x32xf32>
    %cst_128 = arith.constant 1.000000e+00 : f32
    %405 = vector.broadcast %cst_128 : f32 to vector<8x1xf32>
    %406 = arith.subf %405, %395 : vector<8x1xf32>
    %407 = vector.broadcast %406 : vector<8x1xf32> to vector<8x32xf32>
    %408 = arith.mulf %407, %306 : vector<8x32xf32>
    %409 = arith.addf %404, %408 : vector<8x32xf32>
    %410 = vector.broadcast %392 : vector<8x1xf32> to vector<8x32xf32>
    %411 = arith.mulf %410, %362 : vector<8x32xf32>
    %412 = arith.index_cast %c3_i32 : i32 to index
    %c0_129 = arith.constant 0 : index
    %c0_130 = arith.constant 0 : index
    %413 = vector.load %arg17[%412, %c0_129, %c0_130] : memref<8x8x32xf32, #tpu.memory_space<vmem>>, vector<1x8x32xf32>
    %414 = vector.shape_cast %413 : vector<1x8x32xf32> to vector<8x32xf32>
    %415 = vector.shape_cast %411 : vector<8x32xf32> to vector<1x8x32xf32>
    tpu.vector_store %arg17[%412, %c0_129, %c0_130], %415 {strides = array<i32>} : memref<8x8x32xf32, #tpu.memory_space<vmem>>, vector<1x8x32xf32>,
    %416 = vector.broadcast %395 : vector<8x1xf32> to vector<8x32xf32>
    %417 = arith.mulf %416, %389 : vector<8x32xf32>
    %418 = arith.index_cast %319 : i32 to index
    %c0_131 = arith.constant 0 : index
    %c0_132 = arith.constant 0 : index
    %419 = vector.load %arg18[%418, %c0_131, %c0_132] : memref<8x8x32xf32, #tpu.memory_space<vmem>>, vector<1x8x32xf32>
    %420 = vector.shape_cast %419 : vector<1x8x32xf32> to vector<8x32xf32>
    %421 = vector.shape_cast %417 : vector<8x32xf32> to vector<1x8x32xf32>
    tpu.vector_store %arg18[%418, %c0_131, %c0_132], %421 {strides = array<i32>} : memref<8x8x32xf32, #tpu.memory_space<vmem>>, vector<1x8x32xf32>,
    %c4_i32 = arith.constant 4 : i32
    %c7_i32_133 = arith.constant 7 : i32
    %422 = arith.subi %c7_i32_133, %c4_i32 : i32
    %423 = arith.index_cast %c4_i32 : i32 to index
    %c0_134 = arith.constant 0 : index
    %c0_135 = arith.constant 0 : index
    %424 = vector.load %arg16[%423, %c0_134, %c0_135] : memref<8x8x192xf32, #tpu.memory_space<vmem>>, vector<1x8x192xf32>
    %425 = vector.shape_cast %424 : vector<1x8x192xf32> to vector<8x192xf32>
    %426 = arith.index_cast %422 : i32 to index
    %c0_136 = arith.constant 0 : index
    %c0_137 = arith.constant 0 : index
    %427 = vector.load %arg16[%426, %c0_136, %c0_137] : memref<8x8x192xf32, #tpu.memory_space<vmem>>, vector<1x8x192xf32>
    %428 = vector.shape_cast %427 : vector<1x8x192xf32> to vector<8x192xf32>
    %c0_138 = arith.constant 0 : index
    %c0_139 = arith.constant 0 : index
    %429 = vector.load %arg5[%c0_138, %c0_139] : memref<32x96xf32, #tpu.memory_space<vmem>>, vector<32x96xf32>
    %cst_140 = arith.constant dense<0.000000e+00> : vector<8x96xf32>
    %430 = tpu.matmul %402, %429, %cst_140 {dimension_numbers = #tpu.dot_dimension_numbers<[1], [0], [0], [1], [0, 0, 1, 1], [], []>} : vector<8x32xf32>, vector<32x96xf32>, vector<8x96xf32> -> vector<8x96xf32>
    %c0_141 = arith.constant 0 : index
    %c0_142 = arith.constant 0 : index
    %431 = vector.load %arg6[%c0_141, %c0_142] : memref<1x96xf32, #tpu.memory_space<vmem>>, vector<1x96xf32>
    %432 = vector.broadcast %431 : vector<1x96xf32> to vector<8x96xf32>
    %433 = arith.addf %430, %432 : vector<8x96xf32>
    %c0_143 = arith.constant 0 : index
    %c0_144 = arith.constant 0 : index
    %434 = vector.load %arg7[%c0_143, %c0_144] : memref<32x96xf32, #tpu.memory_space<vmem>>, vector<32x96xf32>
    %cst_145 = arith.constant dense<0.000000e+00> : vector<8x96xf32>
    %435 = tpu.matmul %409, %434, %cst_145 {dimension_numbers = #tpu.dot_dimension_numbers<[1], [0], [0], [1], [0, 0, 1, 1], [], []>} : vector<8x32xf32>, vector<32x96xf32>, vector<8x96xf32> -> vector<8x96xf32>
    %c0_146 = arith.constant 0 : index
    %c0_147 = arith.constant 0 : index
    %436 = vector.load %arg8[%c0_146, %c0_147] : memref<1x96xf32, #tpu.memory_space<vmem>>, vector<1x96xf32>
    %437 = vector.broadcast %436 : vector<1x96xf32> to vector<8x96xf32>
    %438 = arith.addf %435, %437 : vector<8x96xf32>
    %439 = vector.extract_strided_slice %425 {offsets = [0, 0], sizes = [8, 96], strides = [1, 1]} : vector<8x192xf32> to vector<8x96xf32>
    %440 = vector.extract_strided_slice %439 {offsets = [0, 0], sizes = [8, 32], strides = [1, 1]} : vector<8x96xf32> to vector<8x32xf32>
    %441 = vector.extract_strided_slice %433 {offsets = [0, 0], sizes = [8, 32], strides = [1, 1]} : vector<8x96xf32> to vector<8x32xf32>
    %442 = arith.addf %440, %441 : vector<8x32xf32>
    %443 = arith.negf %442 : vector<8x32xf32>
    %444 = math.exp %443 : vector<8x32xf32>
    %cst_148 = arith.constant 1.000000e+00 : f32
    %445 = vector.broadcast %cst_148 : f32 to vector<8x32xf32>
    %446 = arith.addf %445, %444 : vector<8x32xf32>
    %447 = arith.divf %445, %446 : vector<8x32xf32>
    %448 = vector.extract_strided_slice %439 {offsets = [0, 32], sizes = [8, 32], strides = [1, 1]} : vector<8x96xf32> to vector<8x32xf32>
    %449 = vector.extract_strided_slice %433 {offsets = [0, 32], sizes = [8, 32], strides = [1, 1]} : vector<8x96xf32> to vector<8x32xf32>
    %450 = arith.addf %448, %449 : vector<8x32xf32>
    %451 = arith.negf %450 : vector<8x32xf32>
    %452 = math.exp %451 : vector<8x32xf32>
    %cst_149 = arith.constant 1.000000e+00 : f32
    %453 = vector.broadcast %cst_149 : f32 to vector<8x32xf32>
    %454 = arith.addf %453, %452 : vector<8x32xf32>
    %455 = arith.divf %453, %454 : vector<8x32xf32>
    %456 = vector.extract_strided_slice %439 {offsets = [0, 64], sizes = [8, 32], strides = [1, 1]} : vector<8x96xf32> to vector<8x32xf32>
    %457 = vector.extract_strided_slice %433 {offsets = [0, 64], sizes = [8, 32], strides = [1, 1]} : vector<8x96xf32> to vector<8x32xf32>
    %458 = arith.mulf %447, %457 : vector<8x32xf32>
    %459 = arith.addf %456, %458 : vector<8x32xf32>
    %460 = math.tanh %459 : vector<8x32xf32>
    %cst_150 = arith.constant 1.000000e+00 : f32
    %461 = vector.broadcast %cst_150 : f32 to vector<8x32xf32>
    %462 = arith.subf %461, %455 : vector<8x32xf32>
    %463 = arith.mulf %462, %460 : vector<8x32xf32>
    %464 = arith.mulf %455, %402 : vector<8x32xf32>
    %465 = arith.addf %463, %464 : vector<8x32xf32>
    %466 = vector.extract_strided_slice %428 {offsets = [0, 96], sizes = [8, 96], strides = [1, 1]} : vector<8x192xf32> to vector<8x96xf32>
    %467 = vector.extract_strided_slice %466 {offsets = [0, 0], sizes = [8, 32], strides = [1, 1]} : vector<8x96xf32> to vector<8x32xf32>
    %468 = vector.extract_strided_slice %438 {offsets = [0, 0], sizes = [8, 32], strides = [1, 1]} : vector<8x96xf32> to vector<8x32xf32>
    %469 = arith.addf %467, %468 : vector<8x32xf32>
    %470 = arith.negf %469 : vector<8x32xf32>
    %471 = math.exp %470 : vector<8x32xf32>
    %cst_151 = arith.constant 1.000000e+00 : f32
    %472 = vector.broadcast %cst_151 : f32 to vector<8x32xf32>
    %473 = arith.addf %472, %471 : vector<8x32xf32>
    %474 = arith.divf %472, %473 : vector<8x32xf32>
    %475 = vector.extract_strided_slice %466 {offsets = [0, 32], sizes = [8, 32], strides = [1, 1]} : vector<8x96xf32> to vector<8x32xf32>
    %476 = vector.extract_strided_slice %438 {offsets = [0, 32], sizes = [8, 32], strides = [1, 1]} : vector<8x96xf32> to vector<8x32xf32>
    %477 = arith.addf %475, %476 : vector<8x32xf32>
    %478 = arith.negf %477 : vector<8x32xf32>
    %479 = math.exp %478 : vector<8x32xf32>
    %cst_152 = arith.constant 1.000000e+00 : f32
    %480 = vector.broadcast %cst_152 : f32 to vector<8x32xf32>
    %481 = arith.addf %480, %479 : vector<8x32xf32>
    %482 = arith.divf %480, %481 : vector<8x32xf32>
    %483 = vector.extract_strided_slice %466 {offsets = [0, 64], sizes = [8, 32], strides = [1, 1]} : vector<8x96xf32> to vector<8x32xf32>
    %484 = vector.extract_strided_slice %438 {offsets = [0, 64], sizes = [8, 32], strides = [1, 1]} : vector<8x96xf32> to vector<8x32xf32>
    %485 = arith.mulf %474, %484 : vector<8x32xf32>
    %486 = arith.addf %483, %485 : vector<8x32xf32>
    %487 = math.tanh %486 : vector<8x32xf32>
    %cst_153 = arith.constant 1.000000e+00 : f32
    %488 = vector.broadcast %cst_153 : f32 to vector<8x32xf32>
    %489 = arith.subf %488, %482 : vector<8x32xf32>
    %490 = arith.mulf %489, %487 : vector<8x32xf32>
    %491 = arith.mulf %482, %409 : vector<8x32xf32>
    %492 = arith.addf %490, %491 : vector<8x32xf32>
    %493 = arith.index_cast %c4_i32 : i32 to index
    %c0_154 = arith.constant 0 : index
    %c0_155 = arith.constant 0 : index
    %494 = vector.load %arg2[%493, %c0_154, %c0_155] : memref<8x8x1xf32, #tpu.memory_space<vmem>>, vector<1x8x1xf32>
    %495 = vector.shape_cast %494 : vector<1x8x1xf32> to vector<8x1xf32>
    %496 = arith.index_cast %422 : i32 to index
    %c0_156 = arith.constant 0 : index
    %c0_157 = arith.constant 0 : index
    %497 = vector.load %arg2[%496, %c0_156, %c0_157] : memref<8x8x1xf32, #tpu.memory_space<vmem>>, vector<1x8x1xf32>
    %498 = vector.shape_cast %497 : vector<1x8x1xf32> to vector<8x1xf32>
    %499 = vector.broadcast %495 : vector<8x1xf32> to vector<8x32xf32>
    %500 = arith.mulf %499, %465 : vector<8x32xf32>
    %cst_158 = arith.constant 1.000000e+00 : f32
    %501 = vector.broadcast %cst_158 : f32 to vector<8x1xf32>
    %502 = arith.subf %501, %495 : vector<8x1xf32>
    %503 = vector.broadcast %502 : vector<8x1xf32> to vector<8x32xf32>
    %504 = arith.mulf %503, %402 : vector<8x32xf32>
    %505 = arith.addf %500, %504 : vector<8x32xf32>
    %506 = vector.broadcast %498 : vector<8x1xf32> to vector<8x32xf32>
    %507 = arith.mulf %506, %492 : vector<8x32xf32>
    %cst_159 = arith.constant 1.000000e+00 : f32
    %508 = vector.broadcast %cst_159 : f32 to vector<8x1xf32>
    %509 = arith.subf %508, %498 : vector<8x1xf32>
    %510 = vector.broadcast %509 : vector<8x1xf32> to vector<8x32xf32>
    %511 = arith.mulf %510, %409 : vector<8x32xf32>
    %512 = arith.addf %507, %511 : vector<8x32xf32>
    %513 = vector.broadcast %495 : vector<8x1xf32> to vector<8x32xf32>
    %514 = arith.mulf %513, %465 : vector<8x32xf32>
    %515 = arith.index_cast %c4_i32 : i32 to index
    %c0_160 = arith.constant 0 : index
    %c0_161 = arith.constant 0 : index
    %516 = vector.load %arg17[%515, %c0_160, %c0_161] : memref<8x8x32xf32, #tpu.memory_space<vmem>>, vector<1x8x32xf32>
    %517 = vector.shape_cast %516 : vector<1x8x32xf32> to vector<8x32xf32>
    %518 = vector.shape_cast %514 : vector<8x32xf32> to vector<1x8x32xf32>
    tpu.vector_store %arg17[%515, %c0_160, %c0_161], %518 {strides = array<i32>} : memref<8x8x32xf32, #tpu.memory_space<vmem>>, vector<1x8x32xf32>,
    %519 = vector.broadcast %498 : vector<8x1xf32> to vector<8x32xf32>
    %520 = arith.mulf %519, %492 : vector<8x32xf32>
    %521 = arith.index_cast %422 : i32 to index
    %c0_162 = arith.constant 0 : index
    %c0_163 = arith.constant 0 : index
    %522 = vector.load %arg18[%521, %c0_162, %c0_163] : memref<8x8x32xf32, #tpu.memory_space<vmem>>, vector<1x8x32xf32>
    %523 = vector.shape_cast %522 : vector<1x8x32xf32> to vector<8x32xf32>
    %524 = vector.shape_cast %520 : vector<8x32xf32> to vector<1x8x32xf32>
    tpu.vector_store %arg18[%521, %c0_162, %c0_163], %524 {strides = array<i32>} : memref<8x8x32xf32, #tpu.memory_space<vmem>>, vector<1x8x32xf32>,
    %c5_i32 = arith.constant 5 : i32
    %c7_i32_164 = arith.constant 7 : i32
    %525 = arith.subi %c7_i32_164, %c5_i32 : i32
    %526 = arith.index_cast %c5_i32 : i32 to index
    %c0_165 = arith.constant 0 : index
    %c0_166 = arith.constant 0 : index
    %527 = vector.load %arg16[%526, %c0_165, %c0_166] : memref<8x8x192xf32, #tpu.memory_space<vmem>>, vector<1x8x192xf32>
    %528 = vector.shape_cast %527 : vector<1x8x192xf32> to vector<8x192xf32>
    %529 = arith.index_cast %525 : i32 to index
    %c0_167 = arith.constant 0 : index
    %c0_168 = arith.constant 0 : index
    %530 = vector.load %arg16[%529, %c0_167, %c0_168] : memref<8x8x192xf32, #tpu.memory_space<vmem>>, vector<1x8x192xf32>
    %531 = vector.shape_cast %530 : vector<1x8x192xf32> to vector<8x192xf32>
    %c0_169 = arith.constant 0 : index
    %c0_170 = arith.constant 0 : index
    %532 = vector.load %arg5[%c0_169, %c0_170] : memref<32x96xf32, #tpu.memory_space<vmem>>, vector<32x96xf32>
    %cst_171 = arith.constant dense<0.000000e+00> : vector<8x96xf32>
    %533 = tpu.matmul %505, %532, %cst_171 {dimension_numbers = #tpu.dot_dimension_numbers<[1], [0], [0], [1], [0, 0, 1, 1], [], []>} : vector<8x32xf32>, vector<32x96xf32>, vector<8x96xf32> -> vector<8x96xf32>
    %c0_172 = arith.constant 0 : index
    %c0_173 = arith.constant 0 : index
    %534 = vector.load %arg6[%c0_172, %c0_173] : memref<1x96xf32, #tpu.memory_space<vmem>>, vector<1x96xf32>
    %535 = vector.broadcast %534 : vector<1x96xf32> to vector<8x96xf32>
    %536 = arith.addf %533, %535 : vector<8x96xf32>
    %c0_174 = arith.constant 0 : index
    %c0_175 = arith.constant 0 : index
    %537 = vector.load %arg7[%c0_174, %c0_175] : memref<32x96xf32, #tpu.memory_space<vmem>>, vector<32x96xf32>
    %cst_176 = arith.constant dense<0.000000e+00> : vector<8x96xf32>
    %538 = tpu.matmul %512, %537, %cst_176 {dimension_numbers = #tpu.dot_dimension_numbers<[1], [0], [0], [1], [0, 0, 1, 1], [], []>} : vector<8x32xf32>, vector<32x96xf32>, vector<8x96xf32> -> vector<8x96xf32>
    %c0_177 = arith.constant 0 : index
    %c0_178 = arith.constant 0 : index
    %539 = vector.load %arg8[%c0_177, %c0_178] : memref<1x96xf32, #tpu.memory_space<vmem>>, vector<1x96xf32>
    %540 = vector.broadcast %539 : vector<1x96xf32> to vector<8x96xf32>
    %541 = arith.addf %538, %540 : vector<8x96xf32>
    %542 = vector.extract_strided_slice %528 {offsets = [0, 0], sizes = [8, 96], strides = [1, 1]} : vector<8x192xf32> to vector<8x96xf32>
    %543 = vector.extract_strided_slice %542 {offsets = [0, 0], sizes = [8, 32], strides = [1, 1]} : vector<8x96xf32> to vector<8x32xf32>
    %544 = vector.extract_strided_slice %536 {offsets = [0, 0], sizes = [8, 32], strides = [1, 1]} : vector<8x96xf32> to vector<8x32xf32>
    %545 = arith.addf %543, %544 : vector<8x32xf32>
    %546 = arith.negf %545 : vector<8x32xf32>
    %547 = math.exp %546 : vector<8x32xf32>
    %cst_179 = arith.constant 1.000000e+00 : f32
    %548 = vector.broadcast %cst_179 : f32 to vector<8x32xf32>
    %549 = arith.addf %548, %547 : vector<8x32xf32>
    %550 = arith.divf %548, %549 : vector<8x32xf32>
    %551 = vector.extract_strided_slice %542 {offsets = [0, 32], sizes = [8, 32], strides = [1, 1]} : vector<8x96xf32> to vector<8x32xf32>
    %552 = vector.extract_strided_slice %536 {offsets = [0, 32], sizes = [8, 32], strides = [1, 1]} : vector<8x96xf32> to vector<8x32xf32>
    %553 = arith.addf %551, %552 : vector<8x32xf32>
    %554 = arith.negf %553 : vector<8x32xf32>
    %555 = math.exp %554 : vector<8x32xf32>
    %cst_180 = arith.constant 1.000000e+00 : f32
    %556 = vector.broadcast %cst_180 : f32 to vector<8x32xf32>
    %557 = arith.addf %556, %555 : vector<8x32xf32>
    %558 = arith.divf %556, %557 : vector<8x32xf32>
    %559 = vector.extract_strided_slice %542 {offsets = [0, 64], sizes = [8, 32], strides = [1, 1]} : vector<8x96xf32> to vector<8x32xf32>
    %560 = vector.extract_strided_slice %536 {offsets = [0, 64], sizes = [8, 32], strides = [1, 1]} : vector<8x96xf32> to vector<8x32xf32>
    %561 = arith.mulf %550, %560 : vector<8x32xf32>
    %562 = arith.addf %559, %561 : vector<8x32xf32>
    %563 = math.tanh %562 : vector<8x32xf32>
    %cst_181 = arith.constant 1.000000e+00 : f32
    %564 = vector.broadcast %cst_181 : f32 to vector<8x32xf32>
    %565 = arith.subf %564, %558 : vector<8x32xf32>
    %566 = arith.mulf %565, %563 : vector<8x32xf32>
    %567 = arith.mulf %558, %505 : vector<8x32xf32>
    %568 = arith.addf %566, %567 : vector<8x32xf32>
    %569 = vector.extract_strided_slice %531 {offsets = [0, 96], sizes = [8, 96], strides = [1, 1]} : vector<8x192xf32> to vector<8x96xf32>
    %570 = vector.extract_strided_slice %569 {offsets = [0, 0], sizes = [8, 32], strides = [1, 1]} : vector<8x96xf32> to vector<8x32xf32>
    %571 = vector.extract_strided_slice %541 {offsets = [0, 0], sizes = [8, 32], strides = [1, 1]} : vector<8x96xf32> to vector<8x32xf32>
    %572 = arith.addf %570, %571 : vector<8x32xf32>
    %573 = arith.negf %572 : vector<8x32xf32>
    %574 = math.exp %573 : vector<8x32xf32>
    %cst_182 = arith.constant 1.000000e+00 : f32
    %575 = vector.broadcast %cst_182 : f32 to vector<8x32xf32>
    %576 = arith.addf %575, %574 : vector<8x32xf32>
    %577 = arith.divf %575, %576 : vector<8x32xf32>
    %578 = vector.extract_strided_slice %569 {offsets = [0, 32], sizes = [8, 32], strides = [1, 1]} : vector<8x96xf32> to vector<8x32xf32>
    %579 = vector.extract_strided_slice %541 {offsets = [0, 32], sizes = [8, 32], strides = [1, 1]} : vector<8x96xf32> to vector<8x32xf32>
    %580 = arith.addf %578, %579 : vector<8x32xf32>
    %581 = arith.negf %580 : vector<8x32xf32>
    %582 = math.exp %581 : vector<8x32xf32>
    %cst_183 = arith.constant 1.000000e+00 : f32
    %583 = vector.broadcast %cst_183 : f32 to vector<8x32xf32>
    %584 = arith.addf %583, %582 : vector<8x32xf32>
    %585 = arith.divf %583, %584 : vector<8x32xf32>
    %586 = vector.extract_strided_slice %569 {offsets = [0, 64], sizes = [8, 32], strides = [1, 1]} : vector<8x96xf32> to vector<8x32xf32>
    %587 = vector.extract_strided_slice %541 {offsets = [0, 64], sizes = [8, 32], strides = [1, 1]} : vector<8x96xf32> to vector<8x32xf32>
    %588 = arith.mulf %577, %587 : vector<8x32xf32>
    %589 = arith.addf %586, %588 : vector<8x32xf32>
    %590 = math.tanh %589 : vector<8x32xf32>
    %cst_184 = arith.constant 1.000000e+00 : f32
    %591 = vector.broadcast %cst_184 : f32 to vector<8x32xf32>
    %592 = arith.subf %591, %585 : vector<8x32xf32>
    %593 = arith.mulf %592, %590 : vector<8x32xf32>
    %594 = arith.mulf %585, %512 : vector<8x32xf32>
    %595 = arith.addf %593, %594 : vector<8x32xf32>
    %596 = arith.index_cast %c5_i32 : i32 to index
    %c0_185 = arith.constant 0 : index
    %c0_186 = arith.constant 0 : index
    %597 = vector.load %arg2[%596, %c0_185, %c0_186] : memref<8x8x1xf32, #tpu.memory_space<vmem>>, vector<1x8x1xf32>
    %598 = vector.shape_cast %597 : vector<1x8x1xf32> to vector<8x1xf32>
    %599 = arith.index_cast %525 : i32 to index
    %c0_187 = arith.constant 0 : index
    %c0_188 = arith.constant 0 : index
    %600 = vector.load %arg2[%599, %c0_187, %c0_188] : memref<8x8x1xf32, #tpu.memory_space<vmem>>, vector<1x8x1xf32>
    %601 = vector.shape_cast %600 : vector<1x8x1xf32> to vector<8x1xf32>
    %602 = vector.broadcast %598 : vector<8x1xf32> to vector<8x32xf32>
    %603 = arith.mulf %602, %568 : vector<8x32xf32>
    %cst_189 = arith.constant 1.000000e+00 : f32
    %604 = vector.broadcast %cst_189 : f32 to vector<8x1xf32>
    %605 = arith.subf %604, %598 : vector<8x1xf32>
    %606 = vector.broadcast %605 : vector<8x1xf32> to vector<8x32xf32>
    %607 = arith.mulf %606, %505 : vector<8x32xf32>
    %608 = arith.addf %603, %607 : vector<8x32xf32>
    %609 = vector.broadcast %601 : vector<8x1xf32> to vector<8x32xf32>
    %610 = arith.mulf %609, %595 : vector<8x32xf32>
    %cst_190 = arith.constant 1.000000e+00 : f32
    %611 = vector.broadcast %cst_190 : f32 to vector<8x1xf32>
    %612 = arith.subf %611, %601 : vector<8x1xf32>
    %613 = vector.broadcast %612 : vector<8x1xf32> to vector<8x32xf32>
    %614 = arith.mulf %613, %512 : vector<8x32xf32>
    %615 = arith.addf %610, %614 : vector<8x32xf32>
    %616 = vector.broadcast %598 : vector<8x1xf32> to vector<8x32xf32>
    %617 = arith.mulf %616, %568 : vector<8x32xf32>
    %618 = arith.index_cast %c5_i32 : i32 to index
    %c0_191 = arith.constant 0 : index
    %c0_192 = arith.constant 0 : index
    %619 = vector.load %arg17[%618, %c0_191, %c0_192] : memref<8x8x32xf32, #tpu.memory_space<vmem>>, vector<1x8x32xf32>
    %620 = vector.shape_cast %619 : vector<1x8x32xf32> to vector<8x32xf32>
    %621 = vector.shape_cast %617 : vector<8x32xf32> to vector<1x8x32xf32>
    tpu.vector_store %arg17[%618, %c0_191, %c0_192], %621 {strides = array<i32>} : memref<8x8x32xf32, #tpu.memory_space<vmem>>, vector<1x8x32xf32>,
    %622 = vector.broadcast %601 : vector<8x1xf32> to vector<8x32xf32>
    %623 = arith.mulf %622, %595 : vector<8x32xf32>
    %624 = arith.index_cast %525 : i32 to index
    %c0_193 = arith.constant 0 : index
    %c0_194 = arith.constant 0 : index
    %625 = vector.load %arg18[%624, %c0_193, %c0_194] : memref<8x8x32xf32, #tpu.memory_space<vmem>>, vector<1x8x32xf32>
    %626 = vector.shape_cast %625 : vector<1x8x32xf32> to vector<8x32xf32>
    %627 = vector.shape_cast %623 : vector<8x32xf32> to vector<1x8x32xf32>
    tpu.vector_store %arg18[%624, %c0_193, %c0_194], %627 {strides = array<i32>} : memref<8x8x32xf32, #tpu.memory_space<vmem>>, vector<1x8x32xf32>,
    %c6_i32 = arith.constant 6 : i32
    %c7_i32_195 = arith.constant 7 : i32
    %628 = arith.subi %c7_i32_195, %c6_i32 : i32
    %629 = arith.index_cast %c6_i32 : i32 to index
    %c0_196 = arith.constant 0 : index
    %c0_197 = arith.constant 0 : index
    %630 = vector.load %arg16[%629, %c0_196, %c0_197] : memref<8x8x192xf32, #tpu.memory_space<vmem>>, vector<1x8x192xf32>
    %631 = vector.shape_cast %630 : vector<1x8x192xf32> to vector<8x192xf32>
    %632 = arith.index_cast %628 : i32 to index
    %c0_198 = arith.constant 0 : index
    %c0_199 = arith.constant 0 : index
    %633 = vector.load %arg16[%632, %c0_198, %c0_199] : memref<8x8x192xf32, #tpu.memory_space<vmem>>, vector<1x8x192xf32>
    %634 = vector.shape_cast %633 : vector<1x8x192xf32> to vector<8x192xf32>
    %c0_200 = arith.constant 0 : index
    %c0_201 = arith.constant 0 : index
    %635 = vector.load %arg5[%c0_200, %c0_201] : memref<32x96xf32, #tpu.memory_space<vmem>>, vector<32x96xf32>
    %cst_202 = arith.constant dense<0.000000e+00> : vector<8x96xf32>
    %636 = tpu.matmul %608, %635, %cst_202 {dimension_numbers = #tpu.dot_dimension_numbers<[1], [0], [0], [1], [0, 0, 1, 1], [], []>} : vector<8x32xf32>, vector<32x96xf32>, vector<8x96xf32> -> vector<8x96xf32>
    %c0_203 = arith.constant 0 : index
    %c0_204 = arith.constant 0 : index
    %637 = vector.load %arg6[%c0_203, %c0_204] : memref<1x96xf32, #tpu.memory_space<vmem>>, vector<1x96xf32>
    %638 = vector.broadcast %637 : vector<1x96xf32> to vector<8x96xf32>
    %639 = arith.addf %636, %638 : vector<8x96xf32>
    %c0_205 = arith.constant 0 : index
    %c0_206 = arith.constant 0 : index
    %640 = vector.load %arg7[%c0_205, %c0_206] : memref<32x96xf32, #tpu.memory_space<vmem>>, vector<32x96xf32>
    %cst_207 = arith.constant dense<0.000000e+00> : vector<8x96xf32>
    %641 = tpu.matmul %615, %640, %cst_207 {dimension_numbers = #tpu.dot_dimension_numbers<[1], [0], [0], [1], [0, 0, 1, 1], [], []>} : vector<8x32xf32>, vector<32x96xf32>, vector<8x96xf32> -> vector<8x96xf32>
    %c0_208 = arith.constant 0 : index
    %c0_209 = arith.constant 0 : index
    %642 = vector.load %arg8[%c0_208, %c0_209] : memref<1x96xf32, #tpu.memory_space<vmem>>, vector<1x96xf32>
    %643 = vector.broadcast %642 : vector<1x96xf32> to vector<8x96xf32>
    %644 = arith.addf %641, %643 : vector<8x96xf32>
    %645 = vector.extract_strided_slice %631 {offsets = [0, 0], sizes = [8, 96], strides = [1, 1]} : vector<8x192xf32> to vector<8x96xf32>
    %646 = vector.extract_strided_slice %645 {offsets = [0, 0], sizes = [8, 32], strides = [1, 1]} : vector<8x96xf32> to vector<8x32xf32>
    %647 = vector.extract_strided_slice %639 {offsets = [0, 0], sizes = [8, 32], strides = [1, 1]} : vector<8x96xf32> to vector<8x32xf32>
    %648 = arith.addf %646, %647 : vector<8x32xf32>
    %649 = arith.negf %648 : vector<8x32xf32>
    %650 = math.exp %649 : vector<8x32xf32>
    %cst_210 = arith.constant 1.000000e+00 : f32
    %651 = vector.broadcast %cst_210 : f32 to vector<8x32xf32>
    %652 = arith.addf %651, %650 : vector<8x32xf32>
    %653 = arith.divf %651, %652 : vector<8x32xf32>
    %654 = vector.extract_strided_slice %645 {offsets = [0, 32], sizes = [8, 32], strides = [1, 1]} : vector<8x96xf32> to vector<8x32xf32>
    %655 = vector.extract_strided_slice %639 {offsets = [0, 32], sizes = [8, 32], strides = [1, 1]} : vector<8x96xf32> to vector<8x32xf32>
    %656 = arith.addf %654, %655 : vector<8x32xf32>
    %657 = arith.negf %656 : vector<8x32xf32>
    %658 = math.exp %657 : vector<8x32xf32>
    %cst_211 = arith.constant 1.000000e+00 : f32
    %659 = vector.broadcast %cst_211 : f32 to vector<8x32xf32>
    %660 = arith.addf %659, %658 : vector<8x32xf32>
    %661 = arith.divf %659, %660 : vector<8x32xf32>
    %662 = vector.extract_strided_slice %645 {offsets = [0, 64], sizes = [8, 32], strides = [1, 1]} : vector<8x96xf32> to vector<8x32xf32>
    %663 = vector.extract_strided_slice %639 {offsets = [0, 64], sizes = [8, 32], strides = [1, 1]} : vector<8x96xf32> to vector<8x32xf32>
    %664 = arith.mulf %653, %663 : vector<8x32xf32>
    %665 = arith.addf %662, %664 : vector<8x32xf32>
    %666 = math.tanh %665 : vector<8x32xf32>
    %cst_212 = arith.constant 1.000000e+00 : f32
    %667 = vector.broadcast %cst_212 : f32 to vector<8x32xf32>
    %668 = arith.subf %667, %661 : vector<8x32xf32>
    %669 = arith.mulf %668, %666 : vector<8x32xf32>
    %670 = arith.mulf %661, %608 : vector<8x32xf32>
    %671 = arith.addf %669, %670 : vector<8x32xf32>
    %672 = vector.extract_strided_slice %634 {offsets = [0, 96], sizes = [8, 96], strides = [1, 1]} : vector<8x192xf32> to vector<8x96xf32>
    %673 = vector.extract_strided_slice %672 {offsets = [0, 0], sizes = [8, 32], strides = [1, 1]} : vector<8x96xf32> to vector<8x32xf32>
    %674 = vector.extract_strided_slice %644 {offsets = [0, 0], sizes = [8, 32], strides = [1, 1]} : vector<8x96xf32> to vector<8x32xf32>
    %675 = arith.addf %673, %674 : vector<8x32xf32>
    %676 = arith.negf %675 : vector<8x32xf32>
    %677 = math.exp %676 : vector<8x32xf32>
    %cst_213 = arith.constant 1.000000e+00 : f32
    %678 = vector.broadcast %cst_213 : f32 to vector<8x32xf32>
    %679 = arith.addf %678, %677 : vector<8x32xf32>
    %680 = arith.divf %678, %679 : vector<8x32xf32>
    %681 = vector.extract_strided_slice %672 {offsets = [0, 32], sizes = [8, 32], strides = [1, 1]} : vector<8x96xf32> to vector<8x32xf32>
    %682 = vector.extract_strided_slice %644 {offsets = [0, 32], sizes = [8, 32], strides = [1, 1]} : vector<8x96xf32> to vector<8x32xf32>
    %683 = arith.addf %681, %682 : vector<8x32xf32>
    %684 = arith.negf %683 : vector<8x32xf32>
    %685 = math.exp %684 : vector<8x32xf32>
    %cst_214 = arith.constant 1.000000e+00 : f32
    %686 = vector.broadcast %cst_214 : f32 to vector<8x32xf32>
    %687 = arith.addf %686, %685 : vector<8x32xf32>
    %688 = arith.divf %686, %687 : vector<8x32xf32>
    %689 = vector.extract_strided_slice %672 {offsets = [0, 64], sizes = [8, 32], strides = [1, 1]} : vector<8x96xf32> to vector<8x32xf32>
    %690 = vector.extract_strided_slice %644 {offsets = [0, 64], sizes = [8, 32], strides = [1, 1]} : vector<8x96xf32> to vector<8x32xf32>
    %691 = arith.mulf %680, %690 : vector<8x32xf32>
    %692 = arith.addf %689, %691 : vector<8x32xf32>
    %693 = math.tanh %692 : vector<8x32xf32>
    %cst_215 = arith.constant 1.000000e+00 : f32
    %694 = vector.broadcast %cst_215 : f32 to vector<8x32xf32>
    %695 = arith.subf %694, %688 : vector<8x32xf32>
    %696 = arith.mulf %695, %693 : vector<8x32xf32>
    %697 = arith.mulf %688, %615 : vector<8x32xf32>
    %698 = arith.addf %696, %697 : vector<8x32xf32>
    %699 = arith.index_cast %c6_i32 : i32 to index
    %c0_216 = arith.constant 0 : index
    %c0_217 = arith.constant 0 : index
    %700 = vector.load %arg2[%699, %c0_216, %c0_217] : memref<8x8x1xf32, #tpu.memory_space<vmem>>, vector<1x8x1xf32>
    %701 = vector.shape_cast %700 : vector<1x8x1xf32> to vector<8x1xf32>
    %702 = arith.index_cast %628 : i32 to index
    %c0_218 = arith.constant 0 : index
    %c0_219 = arith.constant 0 : index
    %703 = vector.load %arg2[%702, %c0_218, %c0_219] : memref<8x8x1xf32, #tpu.memory_space<vmem>>, vector<1x8x1xf32>
    %704 = vector.shape_cast %703 : vector<1x8x1xf32> to vector<8x1xf32>
    %705 = vector.broadcast %701 : vector<8x1xf32> to vector<8x32xf32>
    %706 = arith.mulf %705, %671 : vector<8x32xf32>
    %cst_220 = arith.constant 1.000000e+00 : f32
    %707 = vector.broadcast %cst_220 : f32 to vector<8x1xf32>
    %708 = arith.subf %707, %701 : vector<8x1xf32>
    %709 = vector.broadcast %708 : vector<8x1xf32> to vector<8x32xf32>
    %710 = arith.mulf %709, %608 : vector<8x32xf32>
    %711 = arith.addf %706, %710 : vector<8x32xf32>
    %712 = vector.broadcast %704 : vector<8x1xf32> to vector<8x32xf32>
    %713 = arith.mulf %712, %698 : vector<8x32xf32>
    %cst_221 = arith.constant 1.000000e+00 : f32
    %714 = vector.broadcast %cst_221 : f32 to vector<8x1xf32>
    %715 = arith.subf %714, %704 : vector<8x1xf32>
    %716 = vector.broadcast %715 : vector<8x1xf32> to vector<8x32xf32>
    %717 = arith.mulf %716, %615 : vector<8x32xf32>
    %718 = arith.addf %713, %717 : vector<8x32xf32>
    %719 = vector.broadcast %701 : vector<8x1xf32> to vector<8x32xf32>
    %720 = arith.mulf %719, %671 : vector<8x32xf32>
    %721 = arith.index_cast %c6_i32 : i32 to index
    %c0_222 = arith.constant 0 : index
    %c0_223 = arith.constant 0 : index
    %722 = vector.load %arg17[%721, %c0_222, %c0_223] : memref<8x8x32xf32, #tpu.memory_space<vmem>>, vector<1x8x32xf32>
    %723 = vector.shape_cast %722 : vector<1x8x32xf32> to vector<8x32xf32>
    %724 = vector.shape_cast %720 : vector<8x32xf32> to vector<1x8x32xf32>
    tpu.vector_store %arg17[%721, %c0_222, %c0_223], %724 {strides = array<i32>} : memref<8x8x32xf32, #tpu.memory_space<vmem>>, vector<1x8x32xf32>,
    %725 = vector.broadcast %704 : vector<8x1xf32> to vector<8x32xf32>
    %726 = arith.mulf %725, %698 : vector<8x32xf32>
    %727 = arith.index_cast %628 : i32 to index
    %c0_224 = arith.constant 0 : index
    %c0_225 = arith.constant 0 : index
    %728 = vector.load %arg18[%727, %c0_224, %c0_225] : memref<8x8x32xf32, #tpu.memory_space<vmem>>, vector<1x8x32xf32>
    %729 = vector.shape_cast %728 : vector<1x8x32xf32> to vector<8x32xf32>
    %730 = vector.shape_cast %726 : vector<8x32xf32> to vector<1x8x32xf32>
    tpu.vector_store %arg18[%727, %c0_224, %c0_225], %730 {strides = array<i32>} : memref<8x8x32xf32, #tpu.memory_space<vmem>>, vector<1x8x32xf32>,
    %c7_i32_226 = arith.constant 7 : i32
    %c7_i32_227 = arith.constant 7 : i32
    %731 = arith.subi %c7_i32_227, %c7_i32_226 : i32
    %732 = arith.index_cast %c7_i32_226 : i32 to index
    %c0_228 = arith.constant 0 : index
    %c0_229 = arith.constant 0 : index
    %733 = vector.load %arg16[%732, %c0_228, %c0_229] : memref<8x8x192xf32, #tpu.memory_space<vmem>>, vector<1x8x192xf32>
    %734 = vector.shape_cast %733 : vector<1x8x192xf32> to vector<8x192xf32>
    %735 = arith.index_cast %731 : i32 to index
    %c0_230 = arith.constant 0 : index
    %c0_231 = arith.constant 0 : index
    %736 = vector.load %arg16[%735, %c0_230, %c0_231] : memref<8x8x192xf32, #tpu.memory_space<vmem>>, vector<1x8x192xf32>
    %737 = vector.shape_cast %736 : vector<1x8x192xf32> to vector<8x192xf32>
    %c0_232 = arith.constant 0 : index
    %c0_233 = arith.constant 0 : index
    %738 = vector.load %arg5[%c0_232, %c0_233] : memref<32x96xf32, #tpu.memory_space<vmem>>, vector<32x96xf32>
    %cst_234 = arith.constant dense<0.000000e+00> : vector<8x96xf32>
    %739 = tpu.matmul %711, %738, %cst_234 {dimension_numbers = #tpu.dot_dimension_numbers<[1], [0], [0], [1], [0, 0, 1, 1], [], []>} : vector<8x32xf32>, vector<32x96xf32>, vector<8x96xf32> -> vector<8x96xf32>
    %c0_235 = arith.constant 0 : index
    %c0_236 = arith.constant 0 : index
    %740 = vector.load %arg6[%c0_235, %c0_236] : memref<1x96xf32, #tpu.memory_space<vmem>>, vector<1x96xf32>
    %741 = vector.broadcast %740 : vector<1x96xf32> to vector<8x96xf32>
    %742 = arith.addf %739, %741 : vector<8x96xf32>
    %c0_237 = arith.constant 0 : index
    %c0_238 = arith.constant 0 : index
    %743 = vector.load %arg7[%c0_237, %c0_238] : memref<32x96xf32, #tpu.memory_space<vmem>>, vector<32x96xf32>
    %cst_239 = arith.constant dense<0.000000e+00> : vector<8x96xf32>
    %744 = tpu.matmul %718, %743, %cst_239 {dimension_numbers = #tpu.dot_dimension_numbers<[1], [0], [0], [1], [0, 0, 1, 1], [], []>} : vector<8x32xf32>, vector<32x96xf32>, vector<8x96xf32> -> vector<8x96xf32>
    %c0_240 = arith.constant 0 : index
    %c0_241 = arith.constant 0 : index
    %745 = vector.load %arg8[%c0_240, %c0_241] : memref<1x96xf32, #tpu.memory_space<vmem>>, vector<1x96xf32>
    %746 = vector.broadcast %745 : vector<1x96xf32> to vector<8x96xf32>
    %747 = arith.addf %744, %746 : vector<8x96xf32>
    %748 = vector.extract_strided_slice %734 {offsets = [0, 0], sizes = [8, 96], strides = [1, 1]} : vector<8x192xf32> to vector<8x96xf32>
    %749 = vector.extract_strided_slice %748 {offsets = [0, 0], sizes = [8, 32], strides = [1, 1]} : vector<8x96xf32> to vector<8x32xf32>
    %750 = vector.extract_strided_slice %742 {offsets = [0, 0], sizes = [8, 32], strides = [1, 1]} : vector<8x96xf32> to vector<8x32xf32>
    %751 = arith.addf %749, %750 : vector<8x32xf32>
    %752 = arith.negf %751 : vector<8x32xf32>
    %753 = math.exp %752 : vector<8x32xf32>
    %cst_242 = arith.constant 1.000000e+00 : f32
    %754 = vector.broadcast %cst_242 : f32 to vector<8x32xf32>
    %755 = arith.addf %754, %753 : vector<8x32xf32>
    %756 = arith.divf %754, %755 : vector<8x32xf32>
    %757 = vector.extract_strided_slice %748 {offsets = [0, 32], sizes = [8, 32], strides = [1, 1]} : vector<8x96xf32> to vector<8x32xf32>
    %758 = vector.extract_strided_slice %742 {offsets = [0, 32], sizes = [8, 32], strides = [1, 1]} : vector<8x96xf32> to vector<8x32xf32>
    %759 = arith.addf %757, %758 : vector<8x32xf32>
    %760 = arith.negf %759 : vector<8x32xf32>
    %761 = math.exp %760 : vector<8x32xf32>
    %cst_243 = arith.constant 1.000000e+00 : f32
    %762 = vector.broadcast %cst_243 : f32 to vector<8x32xf32>
    %763 = arith.addf %762, %761 : vector<8x32xf32>
    %764 = arith.divf %762, %763 : vector<8x32xf32>
    %765 = vector.extract_strided_slice %748 {offsets = [0, 64], sizes = [8, 32], strides = [1, 1]} : vector<8x96xf32> to vector<8x32xf32>
    %766 = vector.extract_strided_slice %742 {offsets = [0, 64], sizes = [8, 32], strides = [1, 1]} : vector<8x96xf32> to vector<8x32xf32>
    %767 = arith.mulf %756, %766 : vector<8x32xf32>
    %768 = arith.addf %765, %767 : vector<8x32xf32>
    %769 = math.tanh %768 : vector<8x32xf32>
    %cst_244 = arith.constant 1.000000e+00 : f32
    %770 = vector.broadcast %cst_244 : f32 to vector<8x32xf32>
    %771 = arith.subf %770, %764 : vector<8x32xf32>
    %772 = arith.mulf %771, %769 : vector<8x32xf32>
    %773 = arith.mulf %764, %711 : vector<8x32xf32>
    %774 = arith.addf %772, %773 : vector<8x32xf32>
    %775 = vector.extract_strided_slice %737 {offsets = [0, 96], sizes = [8, 96], strides = [1, 1]} : vector<8x192xf32> to vector<8x96xf32>
    %776 = vector.extract_strided_slice %775 {offsets = [0, 0], sizes = [8, 32], strides = [1, 1]} : vector<8x96xf32> to vector<8x32xf32>
    %777 = vector.extract_strided_slice %747 {offsets = [0, 0], sizes = [8, 32], strides = [1, 1]} : vector<8x96xf32> to vector<8x32xf32>
    %778 = arith.addf %776, %777 : vector<8x32xf32>
    %779 = arith.negf %778 : vector<8x32xf32>
    %780 = math.exp %779 : vector<8x32xf32>
    %cst_245 = arith.constant 1.000000e+00 : f32
    %781 = vector.broadcast %cst_245 : f32 to vector<8x32xf32>
    %782 = arith.addf %781, %780 : vector<8x32xf32>
    %783 = arith.divf %781, %782 : vector<8x32xf32>
    %784 = vector.extract_strided_slice %775 {offsets = [0, 32], sizes = [8, 32], strides = [1, 1]} : vector<8x96xf32> to vector<8x32xf32>
    %785 = vector.extract_strided_slice %747 {offsets = [0, 32], sizes = [8, 32], strides = [1, 1]} : vector<8x96xf32> to vector<8x32xf32>
    %786 = arith.addf %784, %785 : vector<8x32xf32>
    %787 = arith.negf %786 : vector<8x32xf32>
    %788 = math.exp %787 : vector<8x32xf32>
    %cst_246 = arith.constant 1.000000e+00 : f32
    %789 = vector.broadcast %cst_246 : f32 to vector<8x32xf32>
    %790 = arith.addf %789, %788 : vector<8x32xf32>
    %791 = arith.divf %789, %790 : vector<8x32xf32>
    %792 = vector.extract_strided_slice %775 {offsets = [0, 64], sizes = [8, 32], strides = [1, 1]} : vector<8x96xf32> to vector<8x32xf32>
    %793 = vector.extract_strided_slice %747 {offsets = [0, 64], sizes = [8, 32], strides = [1, 1]} : vector<8x96xf32> to vector<8x32xf32>
    %794 = arith.mulf %783, %793 : vector<8x32xf32>
    %795 = arith.addf %792, %794 : vector<8x32xf32>
    %796 = math.tanh %795 : vector<8x32xf32>
    %cst_247 = arith.constant 1.000000e+00 : f32
    %797 = vector.broadcast %cst_247 : f32 to vector<8x32xf32>
    %798 = arith.subf %797, %791 : vector<8x32xf32>
    %799 = arith.mulf %798, %796 : vector<8x32xf32>
    %800 = arith.mulf %791, %718 : vector<8x32xf32>
    %801 = arith.addf %799, %800 : vector<8x32xf32>
    %802 = arith.index_cast %c7_i32_226 : i32 to index
    %c0_248 = arith.constant 0 : index
    %c0_249 = arith.constant 0 : index
    %803 = vector.load %arg2[%802, %c0_248, %c0_249] : memref<8x8x1xf32, #tpu.memory_space<vmem>>, vector<1x8x1xf32>
    %804 = vector.shape_cast %803 : vector<1x8x1xf32> to vector<8x1xf32>
    %805 = arith.index_cast %731 : i32 to index
    %c0_250 = arith.constant 0 : index
    %c0_251 = arith.constant 0 : index
    %806 = vector.load %arg2[%805, %c0_250, %c0_251] : memref<8x8x1xf32, #tpu.memory_space<vmem>>, vector<1x8x1xf32>
    %807 = vector.shape_cast %806 : vector<1x8x1xf32> to vector<8x1xf32>
    %808 = vector.broadcast %804 : vector<8x1xf32> to vector<8x32xf32>
    %809 = arith.mulf %808, %774 : vector<8x32xf32>
    %cst_252 = arith.constant 1.000000e+00 : f32
    %810 = vector.broadcast %cst_252 : f32 to vector<8x1xf32>
    %811 = arith.subf %810, %804 : vector<8x1xf32>
    %812 = vector.broadcast %811 : vector<8x1xf32> to vector<8x32xf32>
    %813 = arith.mulf %812, %711 : vector<8x32xf32>
    %814 = arith.addf %809, %813 : vector<8x32xf32>
    %815 = vector.broadcast %807 : vector<8x1xf32> to vector<8x32xf32>
    %816 = arith.mulf %815, %801 : vector<8x32xf32>
    %cst_253 = arith.constant 1.000000e+00 : f32
    %817 = vector.broadcast %cst_253 : f32 to vector<8x1xf32>
    %818 = arith.subf %817, %807 : vector<8x1xf32>
    %819 = vector.broadcast %818 : vector<8x1xf32> to vector<8x32xf32>
    %820 = arith.mulf %819, %718 : vector<8x32xf32>
    %821 = arith.addf %816, %820 : vector<8x32xf32>
    %822 = vector.broadcast %804 : vector<8x1xf32> to vector<8x32xf32>
    %823 = arith.mulf %822, %774 : vector<8x32xf32>
    %824 = arith.index_cast %c7_i32_226 : i32 to index
    %c0_254 = arith.constant 0 : index
    %c0_255 = arith.constant 0 : index
    %825 = vector.load %arg17[%824, %c0_254, %c0_255] : memref<8x8x32xf32, #tpu.memory_space<vmem>>, vector<1x8x32xf32>
    %826 = vector.shape_cast %825 : vector<1x8x32xf32> to vector<8x32xf32>
    %827 = vector.shape_cast %823 : vector<8x32xf32> to vector<1x8x32xf32>
    tpu.vector_store %arg17[%824, %c0_254, %c0_255], %827 {strides = array<i32>} : memref<8x8x32xf32, #tpu.memory_space<vmem>>, vector<1x8x32xf32>,
    %828 = vector.broadcast %807 : vector<8x1xf32> to vector<8x32xf32>
    %829 = arith.mulf %828, %801 : vector<8x32xf32>
    %830 = arith.index_cast %731 : i32 to index
    %c0_256 = arith.constant 0 : index
    %c0_257 = arith.constant 0 : index
    %831 = vector.load %arg18[%830, %c0_256, %c0_257] : memref<8x8x32xf32, #tpu.memory_space<vmem>>, vector<1x8x32xf32>
    %832 = vector.shape_cast %831 : vector<1x8x32xf32> to vector<8x32xf32>
    %833 = vector.shape_cast %829 : vector<8x32xf32> to vector<1x8x32xf32>
    tpu.vector_store %arg18[%830, %c0_256, %c0_257], %833 {strides = array<i32>} : memref<8x8x32xf32, #tpu.memory_space<vmem>>, vector<1x8x32xf32>,
    %c8_i32 = arith.constant 8 : i32
    %c0_258 = arith.constant 0 : index
    %c0_259 = arith.constant 0 : index
    %c0_260 = arith.constant 0 : index
    %834 = vector.load %arg17[%c0_258, %c0_259, %c0_260] : memref<8x8x32xf32, #tpu.memory_space<vmem>>, vector<8x8x32xf32>
    %c0_261 = arith.constant 0 : index
    %c0_262 = arith.constant 0 : index
    %c0_263 = arith.constant 0 : index
    %835 = vector.load %arg18[%c0_261, %c0_262, %c0_263] : memref<8x8x32xf32, #tpu.memory_space<vmem>>, vector<8x8x32xf32>
    %836 = tpu.concatenate %834, %835 in 2 : vector<8x8x32xf32>, vector<8x8x32xf32> -> vector<8x8x64xf32>
    %837 = vector.shape_cast %836 : vector<8x8x64xf32> to vector<64x64xf32>
    %c0_264 = arith.constant 0 : index
    %c0_265 = arith.constant 0 : index
    %838 = vector.load %arg9[%c0_264, %c0_265] : memref<64x192xf32, #tpu.memory_space<vmem>>, vector<64x192xf32>
    %cst_266 = arith.constant dense<0.000000e+00> : vector<64x192xf32>
    %839 = tpu.matmul %837, %838, %cst_266 {dimension_numbers = #tpu.dot_dimension_numbers<[1], [0], [0], [1], [0, 0, 1, 1], [], []>} : vector<64x64xf32>, vector<64x192xf32>, vector<64x192xf32> -> vector<64x192xf32>
    %c0_267 = arith.constant 0 : index
    %c0_268 = arith.constant 0 : index
    %840 = vector.load %arg10[%c0_267, %c0_268] : memref<1x192xf32, #tpu.memory_space<vmem>>, vector<1x192xf32>
    %841 = vector.broadcast %840 : vector<1x192xf32> to vector<64x192xf32>
    %842 = arith.addf %839, %841 : vector<64x192xf32>
    %843 = vector.shape_cast %842 : vector<64x192xf32> to vector<8x8x192xf32>
    %c0_269 = arith.constant 0 : index
    %c0_270 = arith.constant 0 : index
    %c0_271 = arith.constant 0 : index
    %844 = vector.load %arg16[%c0_269, %c0_270, %c0_271] : memref<8x8x192xf32, #tpu.memory_space<vmem>>, vector<8x8x192xf32>
    tpu.vector_store %arg16[%c0_269, %c0_270, %c0_271], %843 {strides = array<i32>} : memref<8x8x192xf32, #tpu.memory_space<vmem>>, vector<8x8x192xf32>,
    %cst_272 = arith.constant 0.000000e+00 : f32
    %845 = vector.broadcast %cst_272 : f32 to vector<8x32xf32>
    %c0_i32_273 = arith.constant 0 : i32
    %c7_i32_274 = arith.constant 7 : i32
    %846 = arith.subi %c7_i32_274, %c0_i32_273 : i32
    %847 = arith.index_cast %c0_i32_273 : i32 to index
    %c0_275 = arith.constant 0 : index
    %c0_276 = arith.constant 0 : index
    %848 = vector.load %arg16[%847, %c0_275, %c0_276] : memref<8x8x192xf32, #tpu.memory_space<vmem>>, vector<1x8x192xf32>
    %849 = vector.shape_cast %848 : vector<1x8x192xf32> to vector<8x192xf32>
    %850 = arith.index_cast %846 : i32 to index
    %c0_277 = arith.constant 0 : index
    %c0_278 = arith.constant 0 : index
    %851 = vector.load %arg16[%850, %c0_277, %c0_278] : memref<8x8x192xf32, #tpu.memory_space<vmem>>, vector<1x8x192xf32>
    %852 = vector.shape_cast %851 : vector<1x8x192xf32> to vector<8x192xf32>
    %c0_279 = arith.constant 0 : index
    %c0_280 = arith.constant 0 : index
    %853 = vector.load %arg11[%c0_279, %c0_280] : memref<32x96xf32, #tpu.memory_space<vmem>>, vector<32x96xf32>
    %cst_281 = arith.constant dense<0.000000e+00> : vector<8x96xf32>
    %854 = tpu.matmul %845, %853, %cst_281 {dimension_numbers = #tpu.dot_dimension_numbers<[1], [0], [0], [1], [0, 0, 1, 1], [], []>} : vector<8x32xf32>, vector<32x96xf32>, vector<8x96xf32> -> vector<8x96xf32>
    %c0_282 = arith.constant 0 : index
    %c0_283 = arith.constant 0 : index
    %855 = vector.load %arg12[%c0_282, %c0_283] : memref<1x96xf32, #tpu.memory_space<vmem>>, vector<1x96xf32>
    %856 = vector.broadcast %855 : vector<1x96xf32> to vector<8x96xf32>
    %857 = arith.addf %854, %856 : vector<8x96xf32>
    %c0_284 = arith.constant 0 : index
    %c0_285 = arith.constant 0 : index
    %858 = vector.load %arg13[%c0_284, %c0_285] : memref<32x96xf32, #tpu.memory_space<vmem>>, vector<32x96xf32>
    %cst_286 = arith.constant dense<0.000000e+00> : vector<8x96xf32>
    %859 = tpu.matmul %845, %858, %cst_286 {dimension_numbers = #tpu.dot_dimension_numbers<[1], [0], [0], [1], [0, 0, 1, 1], [], []>} : vector<8x32xf32>, vector<32x96xf32>, vector<8x96xf32> -> vector<8x96xf32>
    %c0_287 = arith.constant 0 : index
    %c0_288 = arith.constant 0 : index
    %860 = vector.load %arg14[%c0_287, %c0_288] : memref<1x96xf32, #tpu.memory_space<vmem>>, vector<1x96xf32>
    %861 = vector.broadcast %860 : vector<1x96xf32> to vector<8x96xf32>
    %862 = arith.addf %859, %861 : vector<8x96xf32>
    %863 = vector.extract_strided_slice %849 {offsets = [0, 0], sizes = [8, 96], strides = [1, 1]} : vector<8x192xf32> to vector<8x96xf32>
    %864 = vector.extract_strided_slice %863 {offsets = [0, 0], sizes = [8, 32], strides = [1, 1]} : vector<8x96xf32> to vector<8x32xf32>
    %865 = vector.extract_strided_slice %857 {offsets = [0, 0], sizes = [8, 32], strides = [1, 1]} : vector<8x96xf32> to vector<8x32xf32>
    %866 = arith.addf %864, %865 : vector<8x32xf32>
    %867 = arith.negf %866 : vector<8x32xf32>
    %868 = math.exp %867 : vector<8x32xf32>
    %cst_289 = arith.constant 1.000000e+00 : f32
    %869 = vector.broadcast %cst_289 : f32 to vector<8x32xf32>
    %870 = arith.addf %869, %868 : vector<8x32xf32>
    %871 = arith.divf %869, %870 : vector<8x32xf32>
    %872 = vector.extract_strided_slice %863 {offsets = [0, 32], sizes = [8, 32], strides = [1, 1]} : vector<8x96xf32> to vector<8x32xf32>
    %873 = vector.extract_strided_slice %857 {offsets = [0, 32], sizes = [8, 32], strides = [1, 1]} : vector<8x96xf32> to vector<8x32xf32>
    %874 = arith.addf %872, %873 : vector<8x32xf32>
    %875 = arith.negf %874 : vector<8x32xf32>
    %876 = math.exp %875 : vector<8x32xf32>
    %cst_290 = arith.constant 1.000000e+00 : f32
    %877 = vector.broadcast %cst_290 : f32 to vector<8x32xf32>
    %878 = arith.addf %877, %876 : vector<8x32xf32>
    %879 = arith.divf %877, %878 : vector<8x32xf32>
    %880 = vector.extract_strided_slice %863 {offsets = [0, 64], sizes = [8, 32], strides = [1, 1]} : vector<8x96xf32> to vector<8x32xf32>
    %881 = vector.extract_strided_slice %857 {offsets = [0, 64], sizes = [8, 32], strides = [1, 1]} : vector<8x96xf32> to vector<8x32xf32>
    %882 = arith.mulf %871, %881 : vector<8x32xf32>
    %883 = arith.addf %880, %882 : vector<8x32xf32>
    %884 = math.tanh %883 : vector<8x32xf32>
    %cst_291 = arith.constant 1.000000e+00 : f32
    %885 = vector.broadcast %cst_291 : f32 to vector<8x32xf32>
    %886 = arith.subf %885, %879 : vector<8x32xf32>
    %887 = arith.mulf %886, %884 : vector<8x32xf32>
    %888 = arith.mulf %879, %845 : vector<8x32xf32>
    %889 = arith.addf %887, %888 : vector<8x32xf32>
    %890 = vector.extract_strided_slice %852 {offsets = [0, 96], sizes = [8, 96], strides = [1, 1]} : vector<8x192xf32> to vector<8x96xf32>
    %891 = vector.extract_strided_slice %890 {offsets = [0, 0], sizes = [8, 32], strides = [1, 1]} : vector<8x96xf32> to vector<8x32xf32>
    %892 = vector.extract_strided_slice %862 {offsets = [0, 0], sizes = [8, 32], strides = [1, 1]} : vector<8x96xf32> to vector<8x32xf32>
    %893 = arith.addf %891, %892 : vector<8x32xf32>
    %894 = arith.negf %893 : vector<8x32xf32>
    %895 = math.exp %894 : vector<8x32xf32>
    %cst_292 = arith.constant 1.000000e+00 : f32
    %896 = vector.broadcast %cst_292 : f32 to vector<8x32xf32>
    %897 = arith.addf %896, %895 : vector<8x32xf32>
    %898 = arith.divf %896, %897 : vector<8x32xf32>
    %899 = vector.extract_strided_slice %890 {offsets = [0, 32], sizes = [8, 32], strides = [1, 1]} : vector<8x96xf32> to vector<8x32xf32>
    %900 = vector.extract_strided_slice %862 {offsets = [0, 32], sizes = [8, 32], strides = [1, 1]} : vector<8x96xf32> to vector<8x32xf32>
    %901 = arith.addf %899, %900 : vector<8x32xf32>
    %902 = arith.negf %901 : vector<8x32xf32>
    %903 = math.exp %902 : vector<8x32xf32>
    %cst_293 = arith.constant 1.000000e+00 : f32
    %904 = vector.broadcast %cst_293 : f32 to vector<8x32xf32>
    %905 = arith.addf %904, %903 : vector<8x32xf32>
    %906 = arith.divf %904, %905 : vector<8x32xf32>
    %907 = vector.extract_strided_slice %890 {offsets = [0, 64], sizes = [8, 32], strides = [1, 1]} : vector<8x96xf32> to vector<8x32xf32>
    %908 = vector.extract_strided_slice %862 {offsets = [0, 64], sizes = [8, 32], strides = [1, 1]} : vector<8x96xf32> to vector<8x32xf32>
    %909 = arith.mulf %898, %908 : vector<8x32xf32>
    %910 = arith.addf %907, %909 : vector<8x32xf32>
    %911 = math.tanh %910 : vector<8x32xf32>
    %cst_294 = arith.constant 1.000000e+00 : f32
    %912 = vector.broadcast %cst_294 : f32 to vector<8x32xf32>
    %913 = arith.subf %912, %906 : vector<8x32xf32>
    %914 = arith.mulf %913, %911 : vector<8x32xf32>
    %915 = arith.mulf %906, %845 : vector<8x32xf32>
    %916 = arith.addf %914, %915 : vector<8x32xf32>
    %917 = arith.index_cast %c0_i32_273 : i32 to index
    %c0_295 = arith.constant 0 : index
    %c0_296 = arith.constant 0 : index
    %918 = vector.load %arg2[%917, %c0_295, %c0_296] : memref<8x8x1xf32, #tpu.memory_space<vmem>>, vector<1x8x1xf32>
    %919 = vector.shape_cast %918 : vector<1x8x1xf32> to vector<8x1xf32>
    %920 = arith.index_cast %846 : i32 to index
    %c0_297 = arith.constant 0 : index
    %c0_298 = arith.constant 0 : index
    %921 = vector.load %arg2[%920, %c0_297, %c0_298] : memref<8x8x1xf32, #tpu.memory_space<vmem>>, vector<1x8x1xf32>
    %922 = vector.shape_cast %921 : vector<1x8x1xf32> to vector<8x1xf32>
    %923 = vector.broadcast %919 : vector<8x1xf32> to vector<8x32xf32>
    %924 = arith.mulf %923, %889 : vector<8x32xf32>
    %cst_299 = arith.constant 1.000000e+00 : f32
    %925 = vector.broadcast %cst_299 : f32 to vector<8x1xf32>
    %926 = arith.subf %925, %919 : vector<8x1xf32>
    %927 = vector.broadcast %926 : vector<8x1xf32> to vector<8x32xf32>
    %928 = arith.mulf %927, %845 : vector<8x32xf32>
    %929 = arith.addf %924, %928 : vector<8x32xf32>
    %930 = vector.broadcast %922 : vector<8x1xf32> to vector<8x32xf32>
    %931 = arith.mulf %930, %916 : vector<8x32xf32>
    %cst_300 = arith.constant 1.000000e+00 : f32
    %932 = vector.broadcast %cst_300 : f32 to vector<8x1xf32>
    %933 = arith.subf %932, %922 : vector<8x1xf32>
    %934 = vector.broadcast %933 : vector<8x1xf32> to vector<8x32xf32>
    %935 = arith.mulf %934, %845 : vector<8x32xf32>
    %936 = arith.addf %931, %935 : vector<8x32xf32>
    %c1_i32_301 = arith.constant 1 : i32
    %c7_i32_302 = arith.constant 7 : i32
    %937 = arith.subi %c7_i32_302, %c1_i32_301 : i32
    %938 = arith.index_cast %c1_i32_301 : i32 to index
    %c0_303 = arith.constant 0 : index
    %c0_304 = arith.constant 0 : index
    %939 = vector.load %arg16[%938, %c0_303, %c0_304] : memref<8x8x192xf32, #tpu.memory_space<vmem>>, vector<1x8x192xf32>
    %940 = vector.shape_cast %939 : vector<1x8x192xf32> to vector<8x192xf32>
    %941 = arith.index_cast %937 : i32 to index
    %c0_305 = arith.constant 0 : index
    %c0_306 = arith.constant 0 : index
    %942 = vector.load %arg16[%941, %c0_305, %c0_306] : memref<8x8x192xf32, #tpu.memory_space<vmem>>, vector<1x8x192xf32>
    %943 = vector.shape_cast %942 : vector<1x8x192xf32> to vector<8x192xf32>
    %c0_307 = arith.constant 0 : index
    %c0_308 = arith.constant 0 : index
    %944 = vector.load %arg11[%c0_307, %c0_308] : memref<32x96xf32, #tpu.memory_space<vmem>>, vector<32x96xf32>
    %cst_309 = arith.constant dense<0.000000e+00> : vector<8x96xf32>
    %945 = tpu.matmul %929, %944, %cst_309 {dimension_numbers = #tpu.dot_dimension_numbers<[1], [0], [0], [1], [0, 0, 1, 1], [], []>} : vector<8x32xf32>, vector<32x96xf32>, vector<8x96xf32> -> vector<8x96xf32>
    %c0_310 = arith.constant 0 : index
    %c0_311 = arith.constant 0 : index
    %946 = vector.load %arg12[%c0_310, %c0_311] : memref<1x96xf32, #tpu.memory_space<vmem>>, vector<1x96xf32>
    %947 = vector.broadcast %946 : vector<1x96xf32> to vector<8x96xf32>
    %948 = arith.addf %945, %947 : vector<8x96xf32>
    %c0_312 = arith.constant 0 : index
    %c0_313 = arith.constant 0 : index
    %949 = vector.load %arg13[%c0_312, %c0_313] : memref<32x96xf32, #tpu.memory_space<vmem>>, vector<32x96xf32>
    %cst_314 = arith.constant dense<0.000000e+00> : vector<8x96xf32>
    %950 = tpu.matmul %936, %949, %cst_314 {dimension_numbers = #tpu.dot_dimension_numbers<[1], [0], [0], [1], [0, 0, 1, 1], [], []>} : vector<8x32xf32>, vector<32x96xf32>, vector<8x96xf32> -> vector<8x96xf32>
    %c0_315 = arith.constant 0 : index
    %c0_316 = arith.constant 0 : index
    %951 = vector.load %arg14[%c0_315, %c0_316] : memref<1x96xf32, #tpu.memory_space<vmem>>, vector<1x96xf32>
    %952 = vector.broadcast %951 : vector<1x96xf32> to vector<8x96xf32>
    %953 = arith.addf %950, %952 : vector<8x96xf32>
    %954 = vector.extract_strided_slice %940 {offsets = [0, 0], sizes = [8, 96], strides = [1, 1]} : vector<8x192xf32> to vector<8x96xf32>
    %955 = vector.extract_strided_slice %954 {offsets = [0, 0], sizes = [8, 32], strides = [1, 1]} : vector<8x96xf32> to vector<8x32xf32>
    %956 = vector.extract_strided_slice %948 {offsets = [0, 0], sizes = [8, 32], strides = [1, 1]} : vector<8x96xf32> to vector<8x32xf32>
    %957 = arith.addf %955, %956 : vector<8x32xf32>
    %958 = arith.negf %957 : vector<8x32xf32>
    %959 = math.exp %958 : vector<8x32xf32>
    %cst_317 = arith.constant 1.000000e+00 : f32
    %960 = vector.broadcast %cst_317 : f32 to vector<8x32xf32>
    %961 = arith.addf %960, %959 : vector<8x32xf32>
    %962 = arith.divf %960, %961 : vector<8x32xf32>
    %963 = vector.extract_strided_slice %954 {offsets = [0, 32], sizes = [8, 32], strides = [1, 1]} : vector<8x96xf32> to vector<8x32xf32>
    %964 = vector.extract_strided_slice %948 {offsets = [0, 32], sizes = [8, 32], strides = [1, 1]} : vector<8x96xf32> to vector<8x32xf32>
    %965 = arith.addf %963, %964 : vector<8x32xf32>
    %966 = arith.negf %965 : vector<8x32xf32>
    %967 = math.exp %966 : vector<8x32xf32>
    %cst_318 = arith.constant 1.000000e+00 : f32
    %968 = vector.broadcast %cst_318 : f32 to vector<8x32xf32>
    %969 = arith.addf %968, %967 : vector<8x32xf32>
    %970 = arith.divf %968, %969 : vector<8x32xf32>
    %971 = vector.extract_strided_slice %954 {offsets = [0, 64], sizes = [8, 32], strides = [1, 1]} : vector<8x96xf32> to vector<8x32xf32>
    %972 = vector.extract_strided_slice %948 {offsets = [0, 64], sizes = [8, 32], strides = [1, 1]} : vector<8x96xf32> to vector<8x32xf32>
    %973 = arith.mulf %962, %972 : vector<8x32xf32>
    %974 = arith.addf %971, %973 : vector<8x32xf32>
    %975 = math.tanh %974 : vector<8x32xf32>
    %cst_319 = arith.constant 1.000000e+00 : f32
    %976 = vector.broadcast %cst_319 : f32 to vector<8x32xf32>
    %977 = arith.subf %976, %970 : vector<8x32xf32>
    %978 = arith.mulf %977, %975 : vector<8x32xf32>
    %979 = arith.mulf %970, %929 : vector<8x32xf32>
    %980 = arith.addf %978, %979 : vector<8x32xf32>
    %981 = vector.extract_strided_slice %943 {offsets = [0, 96], sizes = [8, 96], strides = [1, 1]} : vector<8x192xf32> to vector<8x96xf32>
    %982 = vector.extract_strided_slice %981 {offsets = [0, 0], sizes = [8, 32], strides = [1, 1]} : vector<8x96xf32> to vector<8x32xf32>
    %983 = vector.extract_strided_slice %953 {offsets = [0, 0], sizes = [8, 32], strides = [1, 1]} : vector<8x96xf32> to vector<8x32xf32>
    %984 = arith.addf %982, %983 : vector<8x32xf32>
    %985 = arith.negf %984 : vector<8x32xf32>
    %986 = math.exp %985 : vector<8x32xf32>
    %cst_320 = arith.constant 1.000000e+00 : f32
    %987 = vector.broadcast %cst_320 : f32 to vector<8x32xf32>
    %988 = arith.addf %987, %986 : vector<8x32xf32>
    %989 = arith.divf %987, %988 : vector<8x32xf32>
    %990 = vector.extract_strided_slice %981 {offsets = [0, 32], sizes = [8, 32], strides = [1, 1]} : vector<8x96xf32> to vector<8x32xf32>
    %991 = vector.extract_strided_slice %953 {offsets = [0, 32], sizes = [8, 32], strides = [1, 1]} : vector<8x96xf32> to vector<8x32xf32>
    %992 = arith.addf %990, %991 : vector<8x32xf32>
    %993 = arith.negf %992 : vector<8x32xf32>
    %994 = math.exp %993 : vector<8x32xf32>
    %cst_321 = arith.constant 1.000000e+00 : f32
    %995 = vector.broadcast %cst_321 : f32 to vector<8x32xf32>
    %996 = arith.addf %995, %994 : vector<8x32xf32>
    %997 = arith.divf %995, %996 : vector<8x32xf32>
    %998 = vector.extract_strided_slice %981 {offsets = [0, 64], sizes = [8, 32], strides = [1, 1]} : vector<8x96xf32> to vector<8x32xf32>
    %999 = vector.extract_strided_slice %953 {offsets = [0, 64], sizes = [8, 32], strides = [1, 1]} : vector<8x96xf32> to vector<8x32xf32>
    %1000 = arith.mulf %989, %999 : vector<8x32xf32>
    %1001 = arith.addf %998, %1000 : vector<8x32xf32>
    %1002 = math.tanh %1001 : vector<8x32xf32>
    %cst_322 = arith.constant 1.000000e+00 : f32
    %1003 = vector.broadcast %cst_322 : f32 to vector<8x32xf32>
    %1004 = arith.subf %1003, %997 : vector<8x32xf32>
    %1005 = arith.mulf %1004, %1002 : vector<8x32xf32>
    %1006 = arith.mulf %997, %936 : vector<8x32xf32>
    %1007 = arith.addf %1005, %1006 : vector<8x32xf32>
    %1008 = arith.index_cast %c1_i32_301 : i32 to index
    %c0_323 = arith.constant 0 : index
    %c0_324 = arith.constant 0 : index
    %1009 = vector.load %arg2[%1008, %c0_323, %c0_324] : memref<8x8x1xf32, #tpu.memory_space<vmem>>, vector<1x8x1xf32>
    %1010 = vector.shape_cast %1009 : vector<1x8x1xf32> to vector<8x1xf32>
    %1011 = arith.index_cast %937 : i32 to index
    %c0_325 = arith.constant 0 : index
    %c0_326 = arith.constant 0 : index
    %1012 = vector.load %arg2[%1011, %c0_325, %c0_326] : memref<8x8x1xf32, #tpu.memory_space<vmem>>, vector<1x8x1xf32>
    %1013 = vector.shape_cast %1012 : vector<1x8x1xf32> to vector<8x1xf32>
    %1014 = vector.broadcast %1010 : vector<8x1xf32> to vector<8x32xf32>
    %1015 = arith.mulf %1014, %980 : vector<8x32xf32>
    %cst_327 = arith.constant 1.000000e+00 : f32
    %1016 = vector.broadcast %cst_327 : f32 to vector<8x1xf32>
    %1017 = arith.subf %1016, %1010 : vector<8x1xf32>
    %1018 = vector.broadcast %1017 : vector<8x1xf32> to vector<8x32xf32>
    %1019 = arith.mulf %1018, %929 : vector<8x32xf32>
    %1020 = arith.addf %1015, %1019 : vector<8x32xf32>
    %1021 = vector.broadcast %1013 : vector<8x1xf32> to vector<8x32xf32>
    %1022 = arith.mulf %1021, %1007 : vector<8x32xf32>
    %cst_328 = arith.constant 1.000000e+00 : f32
    %1023 = vector.broadcast %cst_328 : f32 to vector<8x1xf32>
    %1024 = arith.subf %1023, %1013 : vector<8x1xf32>
    %1025 = vector.broadcast %1024 : vector<8x1xf32> to vector<8x32xf32>
    %1026 = arith.mulf %1025, %936 : vector<8x32xf32>
    %1027 = arith.addf %1022, %1026 : vector<8x32xf32>
    %c2_i32_329 = arith.constant 2 : i32
    %c7_i32_330 = arith.constant 7 : i32
    %1028 = arith.subi %c7_i32_330, %c2_i32_329 : i32
    %1029 = arith.index_cast %c2_i32_329 : i32 to index
    %c0_331 = arith.constant 0 : index
    %c0_332 = arith.constant 0 : index
    %1030 = vector.load %arg16[%1029, %c0_331, %c0_332] : memref<8x8x192xf32, #tpu.memory_space<vmem>>, vector<1x8x192xf32>
    %1031 = vector.shape_cast %1030 : vector<1x8x192xf32> to vector<8x192xf32>
    %1032 = arith.index_cast %1028 : i32 to index
    %c0_333 = arith.constant 0 : index
    %c0_334 = arith.constant 0 : index
    %1033 = vector.load %arg16[%1032, %c0_333, %c0_334] : memref<8x8x192xf32, #tpu.memory_space<vmem>>, vector<1x8x192xf32>
    %1034 = vector.shape_cast %1033 : vector<1x8x192xf32> to vector<8x192xf32>
    %c0_335 = arith.constant 0 : index
    %c0_336 = arith.constant 0 : index
    %1035 = vector.load %arg11[%c0_335, %c0_336] : memref<32x96xf32, #tpu.memory_space<vmem>>, vector<32x96xf32>
    %cst_337 = arith.constant dense<0.000000e+00> : vector<8x96xf32>
    %1036 = tpu.matmul %1020, %1035, %cst_337 {dimension_numbers = #tpu.dot_dimension_numbers<[1], [0], [0], [1], [0, 0, 1, 1], [], []>} : vector<8x32xf32>, vector<32x96xf32>, vector<8x96xf32> -> vector<8x96xf32>
    %c0_338 = arith.constant 0 : index
    %c0_339 = arith.constant 0 : index
    %1037 = vector.load %arg12[%c0_338, %c0_339] : memref<1x96xf32, #tpu.memory_space<vmem>>, vector<1x96xf32>
    %1038 = vector.broadcast %1037 : vector<1x96xf32> to vector<8x96xf32>
    %1039 = arith.addf %1036, %1038 : vector<8x96xf32>
    %c0_340 = arith.constant 0 : index
    %c0_341 = arith.constant 0 : index
    %1040 = vector.load %arg13[%c0_340, %c0_341] : memref<32x96xf32, #tpu.memory_space<vmem>>, vector<32x96xf32>
    %cst_342 = arith.constant dense<0.000000e+00> : vector<8x96xf32>
    %1041 = tpu.matmul %1027, %1040, %cst_342 {dimension_numbers = #tpu.dot_dimension_numbers<[1], [0], [0], [1], [0, 0, 1, 1], [], []>} : vector<8x32xf32>, vector<32x96xf32>, vector<8x96xf32> -> vector<8x96xf32>
    %c0_343 = arith.constant 0 : index
    %c0_344 = arith.constant 0 : index
    %1042 = vector.load %arg14[%c0_343, %c0_344] : memref<1x96xf32, #tpu.memory_space<vmem>>, vector<1x96xf32>
    %1043 = vector.broadcast %1042 : vector<1x96xf32> to vector<8x96xf32>
    %1044 = arith.addf %1041, %1043 : vector<8x96xf32>
    %1045 = vector.extract_strided_slice %1031 {offsets = [0, 0], sizes = [8, 96], strides = [1, 1]} : vector<8x192xf32> to vector<8x96xf32>
    %1046 = vector.extract_strided_slice %1045 {offsets = [0, 0], sizes = [8, 32], strides = [1, 1]} : vector<8x96xf32> to vector<8x32xf32>
    %1047 = vector.extract_strided_slice %1039 {offsets = [0, 0], sizes = [8, 32], strides = [1, 1]} : vector<8x96xf32> to vector<8x32xf32>
    %1048 = arith.addf %1046, %1047 : vector<8x32xf32>
    %1049 = arith.negf %1048 : vector<8x32xf32>
    %1050 = math.exp %1049 : vector<8x32xf32>
    %cst_345 = arith.constant 1.000000e+00 : f32
    %1051 = vector.broadcast %cst_345 : f32 to vector<8x32xf32>
    %1052 = arith.addf %1051, %1050 : vector<8x32xf32>
    %1053 = arith.divf %1051, %1052 : vector<8x32xf32>
    %1054 = vector.extract_strided_slice %1045 {offsets = [0, 32], sizes = [8, 32], strides = [1, 1]} : vector<8x96xf32> to vector<8x32xf32>
    %1055 = vector.extract_strided_slice %1039 {offsets = [0, 32], sizes = [8, 32], strides = [1, 1]} : vector<8x96xf32> to vector<8x32xf32>
    %1056 = arith.addf %1054, %1055 : vector<8x32xf32>
    %1057 = arith.negf %1056 : vector<8x32xf32>
    %1058 = math.exp %1057 : vector<8x32xf32>
    %cst_346 = arith.constant 1.000000e+00 : f32
    %1059 = vector.broadcast %cst_346 : f32 to vector<8x32xf32>
    %1060 = arith.addf %1059, %1058 : vector<8x32xf32>
    %1061 = arith.divf %1059, %1060 : vector<8x32xf32>
    %1062 = vector.extract_strided_slice %1045 {offsets = [0, 64], sizes = [8, 32], strides = [1, 1]} : vector<8x96xf32> to vector<8x32xf32>
    %1063 = vector.extract_strided_slice %1039 {offsets = [0, 64], sizes = [8, 32], strides = [1, 1]} : vector<8x96xf32> to vector<8x32xf32>
    %1064 = arith.mulf %1053, %1063 : vector<8x32xf32>
    %1065 = arith.addf %1062, %1064 : vector<8x32xf32>
    %1066 = math.tanh %1065 : vector<8x32xf32>
    %cst_347 = arith.constant 1.000000e+00 : f32
    %1067 = vector.broadcast %cst_347 : f32 to vector<8x32xf32>
    %1068 = arith.subf %1067, %1061 : vector<8x32xf32>
    %1069 = arith.mulf %1068, %1066 : vector<8x32xf32>
    %1070 = arith.mulf %1061, %1020 : vector<8x32xf32>
    %1071 = arith.addf %1069, %1070 : vector<8x32xf32>
    %1072 = vector.extract_strided_slice %1034 {offsets = [0, 96], sizes = [8, 96], strides = [1, 1]} : vector<8x192xf32> to vector<8x96xf32>
    %1073 = vector.extract_strided_slice %1072 {offsets = [0, 0], sizes = [8, 32], strides = [1, 1]} : vector<8x96xf32> to vector<8x32xf32>
    %1074 = vector.extract_strided_slice %1044 {offsets = [0, 0], sizes = [8, 32], strides = [1, 1]} : vector<8x96xf32> to vector<8x32xf32>
    %1075 = arith.addf %1073, %1074 : vector<8x32xf32>
    %1076 = arith.negf %1075 : vector<8x32xf32>
    %1077 = math.exp %1076 : vector<8x32xf32>
    %cst_348 = arith.constant 1.000000e+00 : f32
    %1078 = vector.broadcast %cst_348 : f32 to vector<8x32xf32>
    %1079 = arith.addf %1078, %1077 : vector<8x32xf32>
    %1080 = arith.divf %1078, %1079 : vector<8x32xf32>
    %1081 = vector.extract_strided_slice %1072 {offsets = [0, 32], sizes = [8, 32], strides = [1, 1]} : vector<8x96xf32> to vector<8x32xf32>
    %1082 = vector.extract_strided_slice %1044 {offsets = [0, 32], sizes = [8, 32], strides = [1, 1]} : vector<8x96xf32> to vector<8x32xf32>
    %1083 = arith.addf %1081, %1082 : vector<8x32xf32>
    %1084 = arith.negf %1083 : vector<8x32xf32>
    %1085 = math.exp %1084 : vector<8x32xf32>
    %cst_349 = arith.constant 1.000000e+00 : f32
    %1086 = vector.broadcast %cst_349 : f32 to vector<8x32xf32>
    %1087 = arith.addf %1086, %1085 : vector<8x32xf32>
    %1088 = arith.divf %1086, %1087 : vector<8x32xf32>
    %1089 = vector.extract_strided_slice %1072 {offsets = [0, 64], sizes = [8, 32], strides = [1, 1]} : vector<8x96xf32> to vector<8x32xf32>
    %1090 = vector.extract_strided_slice %1044 {offsets = [0, 64], sizes = [8, 32], strides = [1, 1]} : vector<8x96xf32> to vector<8x32xf32>
    %1091 = arith.mulf %1080, %1090 : vector<8x32xf32>
    %1092 = arith.addf %1089, %1091 : vector<8x32xf32>
    %1093 = math.tanh %1092 : vector<8x32xf32>
    %cst_350 = arith.constant 1.000000e+00 : f32
    %1094 = vector.broadcast %cst_350 : f32 to vector<8x32xf32>
    %1095 = arith.subf %1094, %1088 : vector<8x32xf32>
    %1096 = arith.mulf %1095, %1093 : vector<8x32xf32>
    %1097 = arith.mulf %1088, %1027 : vector<8x32xf32>
    %1098 = arith.addf %1096, %1097 : vector<8x32xf32>
    %1099 = arith.index_cast %c2_i32_329 : i32 to index
    %c0_351 = arith.constant 0 : index
    %c0_352 = arith.constant 0 : index
    %1100 = vector.load %arg2[%1099, %c0_351, %c0_352] : memref<8x8x1xf32, #tpu.memory_space<vmem>>, vector<1x8x1xf32>
    %1101 = vector.shape_cast %1100 : vector<1x8x1xf32> to vector<8x1xf32>
    %1102 = arith.index_cast %1028 : i32 to index
    %c0_353 = arith.constant 0 : index
    %c0_354 = arith.constant 0 : index
    %1103 = vector.load %arg2[%1102, %c0_353, %c0_354] : memref<8x8x1xf32, #tpu.memory_space<vmem>>, vector<1x8x1xf32>
    %1104 = vector.shape_cast %1103 : vector<1x8x1xf32> to vector<8x1xf32>
    %1105 = vector.broadcast %1101 : vector<8x1xf32> to vector<8x32xf32>
    %1106 = arith.mulf %1105, %1071 : vector<8x32xf32>
    %cst_355 = arith.constant 1.000000e+00 : f32
    %1107 = vector.broadcast %cst_355 : f32 to vector<8x1xf32>
    %1108 = arith.subf %1107, %1101 : vector<8x1xf32>
    %1109 = vector.broadcast %1108 : vector<8x1xf32> to vector<8x32xf32>
    %1110 = arith.mulf %1109, %1020 : vector<8x32xf32>
    %1111 = arith.addf %1106, %1110 : vector<8x32xf32>
    %1112 = vector.broadcast %1104 : vector<8x1xf32> to vector<8x32xf32>
    %1113 = arith.mulf %1112, %1098 : vector<8x32xf32>
    %cst_356 = arith.constant 1.000000e+00 : f32
    %1114 = vector.broadcast %cst_356 : f32 to vector<8x1xf32>
    %1115 = arith.subf %1114, %1104 : vector<8x1xf32>
    %1116 = vector.broadcast %1115 : vector<8x1xf32> to vector<8x32xf32>
    %1117 = arith.mulf %1116, %1027 : vector<8x32xf32>
    %1118 = arith.addf %1113, %1117 : vector<8x32xf32>
    %c3_i32_357 = arith.constant 3 : i32
    %c7_i32_358 = arith.constant 7 : i32
    %1119 = arith.subi %c7_i32_358, %c3_i32_357 : i32
    %1120 = arith.index_cast %c3_i32_357 : i32 to index
    %c0_359 = arith.constant 0 : index
    %c0_360 = arith.constant 0 : index
    %1121 = vector.load %arg16[%1120, %c0_359, %c0_360] : memref<8x8x192xf32, #tpu.memory_space<vmem>>, vector<1x8x192xf32>
    %1122 = vector.shape_cast %1121 : vector<1x8x192xf32> to vector<8x192xf32>
    %1123 = arith.index_cast %1119 : i32 to index
    %c0_361 = arith.constant 0 : index
    %c0_362 = arith.constant 0 : index
    %1124 = vector.load %arg16[%1123, %c0_361, %c0_362] : memref<8x8x192xf32, #tpu.memory_space<vmem>>, vector<1x8x192xf32>
    %1125 = vector.shape_cast %1124 : vector<1x8x192xf32> to vector<8x192xf32>
    %c0_363 = arith.constant 0 : index
    %c0_364 = arith.constant 0 : index
    %1126 = vector.load %arg11[%c0_363, %c0_364] : memref<32x96xf32, #tpu.memory_space<vmem>>, vector<32x96xf32>
    %cst_365 = arith.constant dense<0.000000e+00> : vector<8x96xf32>
    %1127 = tpu.matmul %1111, %1126, %cst_365 {dimension_numbers = #tpu.dot_dimension_numbers<[1], [0], [0], [1], [0, 0, 1, 1], [], []>} : vector<8x32xf32>, vector<32x96xf32>, vector<8x96xf32> -> vector<8x96xf32>
    %c0_366 = arith.constant 0 : index
    %c0_367 = arith.constant 0 : index
    %1128 = vector.load %arg12[%c0_366, %c0_367] : memref<1x96xf32, #tpu.memory_space<vmem>>, vector<1x96xf32>
    %1129 = vector.broadcast %1128 : vector<1x96xf32> to vector<8x96xf32>
    %1130 = arith.addf %1127, %1129 : vector<8x96xf32>
    %c0_368 = arith.constant 0 : index
    %c0_369 = arith.constant 0 : index
    %1131 = vector.load %arg13[%c0_368, %c0_369] : memref<32x96xf32, #tpu.memory_space<vmem>>, vector<32x96xf32>
    %cst_370 = arith.constant dense<0.000000e+00> : vector<8x96xf32>
    %1132 = tpu.matmul %1118, %1131, %cst_370 {dimension_numbers = #tpu.dot_dimension_numbers<[1], [0], [0], [1], [0, 0, 1, 1], [], []>} : vector<8x32xf32>, vector<32x96xf32>, vector<8x96xf32> -> vector<8x96xf32>
    %c0_371 = arith.constant 0 : index
    %c0_372 = arith.constant 0 : index
    %1133 = vector.load %arg14[%c0_371, %c0_372] : memref<1x96xf32, #tpu.memory_space<vmem>>, vector<1x96xf32>
    %1134 = vector.broadcast %1133 : vector<1x96xf32> to vector<8x96xf32>
    %1135 = arith.addf %1132, %1134 : vector<8x96xf32>
    %1136 = vector.extract_strided_slice %1122 {offsets = [0, 0], sizes = [8, 96], strides = [1, 1]} : vector<8x192xf32> to vector<8x96xf32>
    %1137 = vector.extract_strided_slice %1136 {offsets = [0, 0], sizes = [8, 32], strides = [1, 1]} : vector<8x96xf32> to vector<8x32xf32>
    %1138 = vector.extract_strided_slice %1130 {offsets = [0, 0], sizes = [8, 32], strides = [1, 1]} : vector<8x96xf32> to vector<8x32xf32>
    %1139 = arith.addf %1137, %1138 : vector<8x32xf32>
    %1140 = arith.negf %1139 : vector<8x32xf32>
    %1141 = math.exp %1140 : vector<8x32xf32>
    %cst_373 = arith.constant 1.000000e+00 : f32
    %1142 = vector.broadcast %cst_373 : f32 to vector<8x32xf32>
    %1143 = arith.addf %1142, %1141 : vector<8x32xf32>
    %1144 = arith.divf %1142, %1143 : vector<8x32xf32>
    %1145 = vector.extract_strided_slice %1136 {offsets = [0, 32], sizes = [8, 32], strides = [1, 1]} : vector<8x96xf32> to vector<8x32xf32>
    %1146 = vector.extract_strided_slice %1130 {offsets = [0, 32], sizes = [8, 32], strides = [1, 1]} : vector<8x96xf32> to vector<8x32xf32>
    %1147 = arith.addf %1145, %1146 : vector<8x32xf32>
    %1148 = arith.negf %1147 : vector<8x32xf32>
    %1149 = math.exp %1148 : vector<8x32xf32>
    %cst_374 = arith.constant 1.000000e+00 : f32
    %1150 = vector.broadcast %cst_374 : f32 to vector<8x32xf32>
    %1151 = arith.addf %1150, %1149 : vector<8x32xf32>
    %1152 = arith.divf %1150, %1151 : vector<8x32xf32>
    %1153 = vector.extract_strided_slice %1136 {offsets = [0, 64], sizes = [8, 32], strides = [1, 1]} : vector<8x96xf32> to vector<8x32xf32>
    %1154 = vector.extract_strided_slice %1130 {offsets = [0, 64], sizes = [8, 32], strides = [1, 1]} : vector<8x96xf32> to vector<8x32xf32>
    %1155 = arith.mulf %1144, %1154 : vector<8x32xf32>
    %1156 = arith.addf %1153, %1155 : vector<8x32xf32>
    %1157 = math.tanh %1156 : vector<8x32xf32>
    %cst_375 = arith.constant 1.000000e+00 : f32
    %1158 = vector.broadcast %cst_375 : f32 to vector<8x32xf32>
    %1159 = arith.subf %1158, %1152 : vector<8x32xf32>
    %1160 = arith.mulf %1159, %1157 : vector<8x32xf32>
    %1161 = arith.mulf %1152, %1111 : vector<8x32xf32>
    %1162 = arith.addf %1160, %1161 : vector<8x32xf32>
    %1163 = vector.extract_strided_slice %1125 {offsets = [0, 96], sizes = [8, 96], strides = [1, 1]} : vector<8x192xf32> to vector<8x96xf32>
    %1164 = vector.extract_strided_slice %1163 {offsets = [0, 0], sizes = [8, 32], strides = [1, 1]} : vector<8x96xf32> to vector<8x32xf32>
    %1165 = vector.extract_strided_slice %1135 {offsets = [0, 0], sizes = [8, 32], strides = [1, 1]} : vector<8x96xf32> to vector<8x32xf32>
    %1166 = arith.addf %1164, %1165 : vector<8x32xf32>
    %1167 = arith.negf %1166 : vector<8x32xf32>
    %1168 = math.exp %1167 : vector<8x32xf32>
    %cst_376 = arith.constant 1.000000e+00 : f32
    %1169 = vector.broadcast %cst_376 : f32 to vector<8x32xf32>
    %1170 = arith.addf %1169, %1168 : vector<8x32xf32>
    %1171 = arith.divf %1169, %1170 : vector<8x32xf32>
    %1172 = vector.extract_strided_slice %1163 {offsets = [0, 32], sizes = [8, 32], strides = [1, 1]} : vector<8x96xf32> to vector<8x32xf32>
    %1173 = vector.extract_strided_slice %1135 {offsets = [0, 32], sizes = [8, 32], strides = [1, 1]} : vector<8x96xf32> to vector<8x32xf32>
    %1174 = arith.addf %1172, %1173 : vector<8x32xf32>
    %1175 = arith.negf %1174 : vector<8x32xf32>
    %1176 = math.exp %1175 : vector<8x32xf32>
    %cst_377 = arith.constant 1.000000e+00 : f32
    %1177 = vector.broadcast %cst_377 : f32 to vector<8x32xf32>
    %1178 = arith.addf %1177, %1176 : vector<8x32xf32>
    %1179 = arith.divf %1177, %1178 : vector<8x32xf32>
    %1180 = vector.extract_strided_slice %1163 {offsets = [0, 64], sizes = [8, 32], strides = [1, 1]} : vector<8x96xf32> to vector<8x32xf32>
    %1181 = vector.extract_strided_slice %1135 {offsets = [0, 64], sizes = [8, 32], strides = [1, 1]} : vector<8x96xf32> to vector<8x32xf32>
    %1182 = arith.mulf %1171, %1181 : vector<8x32xf32>
    %1183 = arith.addf %1180, %1182 : vector<8x32xf32>
    %1184 = math.tanh %1183 : vector<8x32xf32>
    %cst_378 = arith.constant 1.000000e+00 : f32
    %1185 = vector.broadcast %cst_378 : f32 to vector<8x32xf32>
    %1186 = arith.subf %1185, %1179 : vector<8x32xf32>
    %1187 = arith.mulf %1186, %1184 : vector<8x32xf32>
    %1188 = arith.mulf %1179, %1118 : vector<8x32xf32>
    %1189 = arith.addf %1187, %1188 : vector<8x32xf32>
    %1190 = arith.index_cast %c3_i32_357 : i32 to index
    %c0_379 = arith.constant 0 : index
    %c0_380 = arith.constant 0 : index
    %1191 = vector.load %arg2[%1190, %c0_379, %c0_380] : memref<8x8x1xf32, #tpu.memory_space<vmem>>, vector<1x8x1xf32>
    %1192 = vector.shape_cast %1191 : vector<1x8x1xf32> to vector<8x1xf32>
    %1193 = arith.index_cast %1119 : i32 to index
    %c0_381 = arith.constant 0 : index
    %c0_382 = arith.constant 0 : index
    %1194 = vector.load %arg2[%1193, %c0_381, %c0_382] : memref<8x8x1xf32, #tpu.memory_space<vmem>>, vector<1x8x1xf32>
    %1195 = vector.shape_cast %1194 : vector<1x8x1xf32> to vector<8x1xf32>
    %1196 = vector.broadcast %1192 : vector<8x1xf32> to vector<8x32xf32>
    %1197 = arith.mulf %1196, %1162 : vector<8x32xf32>
    %cst_383 = arith.constant 1.000000e+00 : f32
    %1198 = vector.broadcast %cst_383 : f32 to vector<8x1xf32>
    %1199 = arith.subf %1198, %1192 : vector<8x1xf32>
    %1200 = vector.broadcast %1199 : vector<8x1xf32> to vector<8x32xf32>
    %1201 = arith.mulf %1200, %1111 : vector<8x32xf32>
    %1202 = arith.addf %1197, %1201 : vector<8x32xf32>
    %1203 = vector.broadcast %1195 : vector<8x1xf32> to vector<8x32xf32>
    %1204 = arith.mulf %1203, %1189 : vector<8x32xf32>
    %cst_384 = arith.constant 1.000000e+00 : f32
    %1205 = vector.broadcast %cst_384 : f32 to vector<8x1xf32>
    %1206 = arith.subf %1205, %1195 : vector<8x1xf32>
    %1207 = vector.broadcast %1206 : vector<8x1xf32> to vector<8x32xf32>
    %1208 = arith.mulf %1207, %1118 : vector<8x32xf32>
    %1209 = arith.addf %1204, %1208 : vector<8x32xf32>
    %c4_i32_385 = arith.constant 4 : i32
    %c7_i32_386 = arith.constant 7 : i32
    %1210 = arith.subi %c7_i32_386, %c4_i32_385 : i32
    %1211 = arith.index_cast %c4_i32_385 : i32 to index
    %c0_387 = arith.constant 0 : index
    %c0_388 = arith.constant 0 : index
    %1212 = vector.load %arg16[%1211, %c0_387, %c0_388] : memref<8x8x192xf32, #tpu.memory_space<vmem>>, vector<1x8x192xf32>
    %1213 = vector.shape_cast %1212 : vector<1x8x192xf32> to vector<8x192xf32>
    %1214 = arith.index_cast %1210 : i32 to index
    %c0_389 = arith.constant 0 : index
    %c0_390 = arith.constant 0 : index
    %1215 = vector.load %arg16[%1214, %c0_389, %c0_390] : memref<8x8x192xf32, #tpu.memory_space<vmem>>, vector<1x8x192xf32>
    %1216 = vector.shape_cast %1215 : vector<1x8x192xf32> to vector<8x192xf32>
    %c0_391 = arith.constant 0 : index
    %c0_392 = arith.constant 0 : index
    %1217 = vector.load %arg11[%c0_391, %c0_392] : memref<32x96xf32, #tpu.memory_space<vmem>>, vector<32x96xf32>
    %cst_393 = arith.constant dense<0.000000e+00> : vector<8x96xf32>
    %1218 = tpu.matmul %1202, %1217, %cst_393 {dimension_numbers = #tpu.dot_dimension_numbers<[1], [0], [0], [1], [0, 0, 1, 1], [], []>} : vector<8x32xf32>, vector<32x96xf32>, vector<8x96xf32> -> vector<8x96xf32>
    %c0_394 = arith.constant 0 : index
    %c0_395 = arith.constant 0 : index
    %1219 = vector.load %arg12[%c0_394, %c0_395] : memref<1x96xf32, #tpu.memory_space<vmem>>, vector<1x96xf32>
    %1220 = vector.broadcast %1219 : vector<1x96xf32> to vector<8x96xf32>
    %1221 = arith.addf %1218, %1220 : vector<8x96xf32>
    %c0_396 = arith.constant 0 : index
    %c0_397 = arith.constant 0 : index
    %1222 = vector.load %arg13[%c0_396, %c0_397] : memref<32x96xf32, #tpu.memory_space<vmem>>, vector<32x96xf32>
    %cst_398 = arith.constant dense<0.000000e+00> : vector<8x96xf32>
    %1223 = tpu.matmul %1209, %1222, %cst_398 {dimension_numbers = #tpu.dot_dimension_numbers<[1], [0], [0], [1], [0, 0, 1, 1], [], []>} : vector<8x32xf32>, vector<32x96xf32>, vector<8x96xf32> -> vector<8x96xf32>
    %c0_399 = arith.constant 0 : index
    %c0_400 = arith.constant 0 : index
    %1224 = vector.load %arg14[%c0_399, %c0_400] : memref<1x96xf32, #tpu.memory_space<vmem>>, vector<1x96xf32>
    %1225 = vector.broadcast %1224 : vector<1x96xf32> to vector<8x96xf32>
    %1226 = arith.addf %1223, %1225 : vector<8x96xf32>
    %1227 = vector.extract_strided_slice %1213 {offsets = [0, 0], sizes = [8, 96], strides = [1, 1]} : vector<8x192xf32> to vector<8x96xf32>
    %1228 = vector.extract_strided_slice %1227 {offsets = [0, 0], sizes = [8, 32], strides = [1, 1]} : vector<8x96xf32> to vector<8x32xf32>
    %1229 = vector.extract_strided_slice %1221 {offsets = [0, 0], sizes = [8, 32], strides = [1, 1]} : vector<8x96xf32> to vector<8x32xf32>
    %1230 = arith.addf %1228, %1229 : vector<8x32xf32>
    %1231 = arith.negf %1230 : vector<8x32xf32>
    %1232 = math.exp %1231 : vector<8x32xf32>
    %cst_401 = arith.constant 1.000000e+00 : f32
    %1233 = vector.broadcast %cst_401 : f32 to vector<8x32xf32>
    %1234 = arith.addf %1233, %1232 : vector<8x32xf32>
    %1235 = arith.divf %1233, %1234 : vector<8x32xf32>
    %1236 = vector.extract_strided_slice %1227 {offsets = [0, 32], sizes = [8, 32], strides = [1, 1]} : vector<8x96xf32> to vector<8x32xf32>
    %1237 = vector.extract_strided_slice %1221 {offsets = [0, 32], sizes = [8, 32], strides = [1, 1]} : vector<8x96xf32> to vector<8x32xf32>
    %1238 = arith.addf %1236, %1237 : vector<8x32xf32>
    %1239 = arith.negf %1238 : vector<8x32xf32>
    %1240 = math.exp %1239 : vector<8x32xf32>
    %cst_402 = arith.constant 1.000000e+00 : f32
    %1241 = vector.broadcast %cst_402 : f32 to vector<8x32xf32>
    %1242 = arith.addf %1241, %1240 : vector<8x32xf32>
    %1243 = arith.divf %1241, %1242 : vector<8x32xf32>
    %1244 = vector.extract_strided_slice %1227 {offsets = [0, 64], sizes = [8, 32], strides = [1, 1]} : vector<8x96xf32> to vector<8x32xf32>
    %1245 = vector.extract_strided_slice %1221 {offsets = [0, 64], sizes = [8, 32], strides = [1, 1]} : vector<8x96xf32> to vector<8x32xf32>
    %1246 = arith.mulf %1235, %1245 : vector<8x32xf32>
    %1247 = arith.addf %1244, %1246 : vector<8x32xf32>
    %1248 = math.tanh %1247 : vector<8x32xf32>
    %cst_403 = arith.constant 1.000000e+00 : f32
    %1249 = vector.broadcast %cst_403 : f32 to vector<8x32xf32>
    %1250 = arith.subf %1249, %1243 : vector<8x32xf32>
    %1251 = arith.mulf %1250, %1248 : vector<8x32xf32>
    %1252 = arith.mulf %1243, %1202 : vector<8x32xf32>
    %1253 = arith.addf %1251, %1252 : vector<8x32xf32>
    %1254 = vector.extract_strided_slice %1216 {offsets = [0, 96], sizes = [8, 96], strides = [1, 1]} : vector<8x192xf32> to vector<8x96xf32>
    %1255 = vector.extract_strided_slice %1254 {offsets = [0, 0], sizes = [8, 32], strides = [1, 1]} : vector<8x96xf32> to vector<8x32xf32>
    %1256 = vector.extract_strided_slice %1226 {offsets = [0, 0], sizes = [8, 32], strides = [1, 1]} : vector<8x96xf32> to vector<8x32xf32>
    %1257 = arith.addf %1255, %1256 : vector<8x32xf32>
    %1258 = arith.negf %1257 : vector<8x32xf32>
    %1259 = math.exp %1258 : vector<8x32xf32>
    %cst_404 = arith.constant 1.000000e+00 : f32
    %1260 = vector.broadcast %cst_404 : f32 to vector<8x32xf32>
    %1261 = arith.addf %1260, %1259 : vector<8x32xf32>
    %1262 = arith.divf %1260, %1261 : vector<8x32xf32>
    %1263 = vector.extract_strided_slice %1254 {offsets = [0, 32], sizes = [8, 32], strides = [1, 1]} : vector<8x96xf32> to vector<8x32xf32>
    %1264 = vector.extract_strided_slice %1226 {offsets = [0, 32], sizes = [8, 32], strides = [1, 1]} : vector<8x96xf32> to vector<8x32xf32>
    %1265 = arith.addf %1263, %1264 : vector<8x32xf32>
    %1266 = arith.negf %1265 : vector<8x32xf32>
    %1267 = math.exp %1266 : vector<8x32xf32>
    %cst_405 = arith.constant 1.000000e+00 : f32
    %1268 = vector.broadcast %cst_405 : f32 to vector<8x32xf32>
    %1269 = arith.addf %1268, %1267 : vector<8x32xf32>
    %1270 = arith.divf %1268, %1269 : vector<8x32xf32>
    %1271 = vector.extract_strided_slice %1254 {offsets = [0, 64], sizes = [8, 32], strides = [1, 1]} : vector<8x96xf32> to vector<8x32xf32>
    %1272 = vector.extract_strided_slice %1226 {offsets = [0, 64], sizes = [8, 32], strides = [1, 1]} : vector<8x96xf32> to vector<8x32xf32>
    %1273 = arith.mulf %1262, %1272 : vector<8x32xf32>
    %1274 = arith.addf %1271, %1273 : vector<8x32xf32>
    %1275 = math.tanh %1274 : vector<8x32xf32>
    %cst_406 = arith.constant 1.000000e+00 : f32
    %1276 = vector.broadcast %cst_406 : f32 to vector<8x32xf32>
    %1277 = arith.subf %1276, %1270 : vector<8x32xf32>
    %1278 = arith.mulf %1277, %1275 : vector<8x32xf32>
    %1279 = arith.mulf %1270, %1209 : vector<8x32xf32>
    %1280 = arith.addf %1278, %1279 : vector<8x32xf32>
    %1281 = arith.index_cast %c4_i32_385 : i32 to index
    %c0_407 = arith.constant 0 : index
    %c0_408 = arith.constant 0 : index
    %1282 = vector.load %arg2[%1281, %c0_407, %c0_408] : memref<8x8x1xf32, #tpu.memory_space<vmem>>, vector<1x8x1xf32>
    %1283 = vector.shape_cast %1282 : vector<1x8x1xf32> to vector<8x1xf32>
    %1284 = arith.index_cast %1210 : i32 to index
    %c0_409 = arith.constant 0 : index
    %c0_410 = arith.constant 0 : index
    %1285 = vector.load %arg2[%1284, %c0_409, %c0_410] : memref<8x8x1xf32, #tpu.memory_space<vmem>>, vector<1x8x1xf32>
    %1286 = vector.shape_cast %1285 : vector<1x8x1xf32> to vector<8x1xf32>
    %1287 = vector.broadcast %1283 : vector<8x1xf32> to vector<8x32xf32>
    %1288 = arith.mulf %1287, %1253 : vector<8x32xf32>
    %cst_411 = arith.constant 1.000000e+00 : f32
    %1289 = vector.broadcast %cst_411 : f32 to vector<8x1xf32>
    %1290 = arith.subf %1289, %1283 : vector<8x1xf32>
    %1291 = vector.broadcast %1290 : vector<8x1xf32> to vector<8x32xf32>
    %1292 = arith.mulf %1291, %1202 : vector<8x32xf32>
    %1293 = arith.addf %1288, %1292 : vector<8x32xf32>
    %1294 = vector.broadcast %1286 : vector<8x1xf32> to vector<8x32xf32>
    %1295 = arith.mulf %1294, %1280 : vector<8x32xf32>
    %cst_412 = arith.constant 1.000000e+00 : f32
    %1296 = vector.broadcast %cst_412 : f32 to vector<8x1xf32>
    %1297 = arith.subf %1296, %1286 : vector<8x1xf32>
    %1298 = vector.broadcast %1297 : vector<8x1xf32> to vector<8x32xf32>
    %1299 = arith.mulf %1298, %1209 : vector<8x32xf32>
    %1300 = arith.addf %1295, %1299 : vector<8x32xf32>
    %c5_i32_413 = arith.constant 5 : i32
    %c7_i32_414 = arith.constant 7 : i32
    %1301 = arith.subi %c7_i32_414, %c5_i32_413 : i32
    %1302 = arith.index_cast %c5_i32_413 : i32 to index
    %c0_415 = arith.constant 0 : index
    %c0_416 = arith.constant 0 : index
    %1303 = vector.load %arg16[%1302, %c0_415, %c0_416] : memref<8x8x192xf32, #tpu.memory_space<vmem>>, vector<1x8x192xf32>
    %1304 = vector.shape_cast %1303 : vector<1x8x192xf32> to vector<8x192xf32>
    %1305 = arith.index_cast %1301 : i32 to index
    %c0_417 = arith.constant 0 : index
    %c0_418 = arith.constant 0 : index
    %1306 = vector.load %arg16[%1305, %c0_417, %c0_418] : memref<8x8x192xf32, #tpu.memory_space<vmem>>, vector<1x8x192xf32>
    %1307 = vector.shape_cast %1306 : vector<1x8x192xf32> to vector<8x192xf32>
    %c0_419 = arith.constant 0 : index
    %c0_420 = arith.constant 0 : index
    %1308 = vector.load %arg11[%c0_419, %c0_420] : memref<32x96xf32, #tpu.memory_space<vmem>>, vector<32x96xf32>
    %cst_421 = arith.constant dense<0.000000e+00> : vector<8x96xf32>
    %1309 = tpu.matmul %1293, %1308, %cst_421 {dimension_numbers = #tpu.dot_dimension_numbers<[1], [0], [0], [1], [0, 0, 1, 1], [], []>} : vector<8x32xf32>, vector<32x96xf32>, vector<8x96xf32> -> vector<8x96xf32>
    %c0_422 = arith.constant 0 : index
    %c0_423 = arith.constant 0 : index
    %1310 = vector.load %arg12[%c0_422, %c0_423] : memref<1x96xf32, #tpu.memory_space<vmem>>, vector<1x96xf32>
    %1311 = vector.broadcast %1310 : vector<1x96xf32> to vector<8x96xf32>
    %1312 = arith.addf %1309, %1311 : vector<8x96xf32>
    %c0_424 = arith.constant 0 : index
    %c0_425 = arith.constant 0 : index
    %1313 = vector.load %arg13[%c0_424, %c0_425] : memref<32x96xf32, #tpu.memory_space<vmem>>, vector<32x96xf32>
    %cst_426 = arith.constant dense<0.000000e+00> : vector<8x96xf32>
    %1314 = tpu.matmul %1300, %1313, %cst_426 {dimension_numbers = #tpu.dot_dimension_numbers<[1], [0], [0], [1], [0, 0, 1, 1], [], []>} : vector<8x32xf32>, vector<32x96xf32>, vector<8x96xf32> -> vector<8x96xf32>
    %c0_427 = arith.constant 0 : index
    %c0_428 = arith.constant 0 : index
    %1315 = vector.load %arg14[%c0_427, %c0_428] : memref<1x96xf32, #tpu.memory_space<vmem>>, vector<1x96xf32>
    %1316 = vector.broadcast %1315 : vector<1x96xf32> to vector<8x96xf32>
    %1317 = arith.addf %1314, %1316 : vector<8x96xf32>
    %1318 = vector.extract_strided_slice %1304 {offsets = [0, 0], sizes = [8, 96], strides = [1, 1]} : vector<8x192xf32> to vector<8x96xf32>
    %1319 = vector.extract_strided_slice %1318 {offsets = [0, 0], sizes = [8, 32], strides = [1, 1]} : vector<8x96xf32> to vector<8x32xf32>
    %1320 = vector.extract_strided_slice %1312 {offsets = [0, 0], sizes = [8, 32], strides = [1, 1]} : vector<8x96xf32> to vector<8x32xf32>
    %1321 = arith.addf %1319, %1320 : vector<8x32xf32>
    %1322 = arith.negf %1321 : vector<8x32xf32>
    %1323 = math.exp %1322 : vector<8x32xf32>
    %cst_429 = arith.constant 1.000000e+00 : f32
    %1324 = vector.broadcast %cst_429 : f32 to vector<8x32xf32>
    %1325 = arith.addf %1324, %1323 : vector<8x32xf32>
    %1326 = arith.divf %1324, %1325 : vector<8x32xf32>
    %1327 = vector.extract_strided_slice %1318 {offsets = [0, 32], sizes = [8, 32], strides = [1, 1]} : vector<8x96xf32> to vector<8x32xf32>
    %1328 = vector.extract_strided_slice %1312 {offsets = [0, 32], sizes = [8, 32], strides = [1, 1]} : vector<8x96xf32> to vector<8x32xf32>
    %1329 = arith.addf %1327, %1328 : vector<8x32xf32>
    %1330 = arith.negf %1329 : vector<8x32xf32>
    %1331 = math.exp %1330 : vector<8x32xf32>
    %cst_430 = arith.constant 1.000000e+00 : f32
    %1332 = vector.broadcast %cst_430 : f32 to vector<8x32xf32>
    %1333 = arith.addf %1332, %1331 : vector<8x32xf32>
    %1334 = arith.divf %1332, %1333 : vector<8x32xf32>
    %1335 = vector.extract_strided_slice %1318 {offsets = [0, 64], sizes = [8, 32], strides = [1, 1]} : vector<8x96xf32> to vector<8x32xf32>
    %1336 = vector.extract_strided_slice %1312 {offsets = [0, 64], sizes = [8, 32], strides = [1, 1]} : vector<8x96xf32> to vector<8x32xf32>
    %1337 = arith.mulf %1326, %1336 : vector<8x32xf32>
    %1338 = arith.addf %1335, %1337 : vector<8x32xf32>
    %1339 = math.tanh %1338 : vector<8x32xf32>
    %cst_431 = arith.constant 1.000000e+00 : f32
    %1340 = vector.broadcast %cst_431 : f32 to vector<8x32xf32>
    %1341 = arith.subf %1340, %1334 : vector<8x32xf32>
    %1342 = arith.mulf %1341, %1339 : vector<8x32xf32>
    %1343 = arith.mulf %1334, %1293 : vector<8x32xf32>
    %1344 = arith.addf %1342, %1343 : vector<8x32xf32>
    %1345 = vector.extract_strided_slice %1307 {offsets = [0, 96], sizes = [8, 96], strides = [1, 1]} : vector<8x192xf32> to vector<8x96xf32>
    %1346 = vector.extract_strided_slice %1345 {offsets = [0, 0], sizes = [8, 32], strides = [1, 1]} : vector<8x96xf32> to vector<8x32xf32>
    %1347 = vector.extract_strided_slice %1317 {offsets = [0, 0], sizes = [8, 32], strides = [1, 1]} : vector<8x96xf32> to vector<8x32xf32>
    %1348 = arith.addf %1346, %1347 : vector<8x32xf32>
    %1349 = arith.negf %1348 : vector<8x32xf32>
    %1350 = math.exp %1349 : vector<8x32xf32>
    %cst_432 = arith.constant 1.000000e+00 : f32
    %1351 = vector.broadcast %cst_432 : f32 to vector<8x32xf32>
    %1352 = arith.addf %1351, %1350 : vector<8x32xf32>
    %1353 = arith.divf %1351, %1352 : vector<8x32xf32>
    %1354 = vector.extract_strided_slice %1345 {offsets = [0, 32], sizes = [8, 32], strides = [1, 1]} : vector<8x96xf32> to vector<8x32xf32>
    %1355 = vector.extract_strided_slice %1317 {offsets = [0, 32], sizes = [8, 32], strides = [1, 1]} : vector<8x96xf32> to vector<8x32xf32>
    %1356 = arith.addf %1354, %1355 : vector<8x32xf32>
    %1357 = arith.negf %1356 : vector<8x32xf32>
    %1358 = math.exp %1357 : vector<8x32xf32>
    %cst_433 = arith.constant 1.000000e+00 : f32
    %1359 = vector.broadcast %cst_433 : f32 to vector<8x32xf32>
    %1360 = arith.addf %1359, %1358 : vector<8x32xf32>
    %1361 = arith.divf %1359, %1360 : vector<8x32xf32>
    %1362 = vector.extract_strided_slice %1345 {offsets = [0, 64], sizes = [8, 32], strides = [1, 1]} : vector<8x96xf32> to vector<8x32xf32>
    %1363 = vector.extract_strided_slice %1317 {offsets = [0, 64], sizes = [8, 32], strides = [1, 1]} : vector<8x96xf32> to vector<8x32xf32>
    %1364 = arith.mulf %1353, %1363 : vector<8x32xf32>
    %1365 = arith.addf %1362, %1364 : vector<8x32xf32>
    %1366 = math.tanh %1365 : vector<8x32xf32>
    %cst_434 = arith.constant 1.000000e+00 : f32
    %1367 = vector.broadcast %cst_434 : f32 to vector<8x32xf32>
    %1368 = arith.subf %1367, %1361 : vector<8x32xf32>
    %1369 = arith.mulf %1368, %1366 : vector<8x32xf32>
    %1370 = arith.mulf %1361, %1300 : vector<8x32xf32>
    %1371 = arith.addf %1369, %1370 : vector<8x32xf32>
    %1372 = arith.index_cast %c5_i32_413 : i32 to index
    %c0_435 = arith.constant 0 : index
    %c0_436 = arith.constant 0 : index
    %1373 = vector.load %arg2[%1372, %c0_435, %c0_436] : memref<8x8x1xf32, #tpu.memory_space<vmem>>, vector<1x8x1xf32>
    %1374 = vector.shape_cast %1373 : vector<1x8x1xf32> to vector<8x1xf32>
    %1375 = arith.index_cast %1301 : i32 to index
    %c0_437 = arith.constant 0 : index
    %c0_438 = arith.constant 0 : index
    %1376 = vector.load %arg2[%1375, %c0_437, %c0_438] : memref<8x8x1xf32, #tpu.memory_space<vmem>>, vector<1x8x1xf32>
    %1377 = vector.shape_cast %1376 : vector<1x8x1xf32> to vector<8x1xf32>
    %1378 = vector.broadcast %1374 : vector<8x1xf32> to vector<8x32xf32>
    %1379 = arith.mulf %1378, %1344 : vector<8x32xf32>
    %cst_439 = arith.constant 1.000000e+00 : f32
    %1380 = vector.broadcast %cst_439 : f32 to vector<8x1xf32>
    %1381 = arith.subf %1380, %1374 : vector<8x1xf32>
    %1382 = vector.broadcast %1381 : vector<8x1xf32> to vector<8x32xf32>
    %1383 = arith.mulf %1382, %1293 : vector<8x32xf32>
    %1384 = arith.addf %1379, %1383 : vector<8x32xf32>
    %1385 = vector.broadcast %1377 : vector<8x1xf32> to vector<8x32xf32>
    %1386 = arith.mulf %1385, %1371 : vector<8x32xf32>
    %cst_440 = arith.constant 1.000000e+00 : f32
    %1387 = vector.broadcast %cst_440 : f32 to vector<8x1xf32>
    %1388 = arith.subf %1387, %1377 : vector<8x1xf32>
    %1389 = vector.broadcast %1388 : vector<8x1xf32> to vector<8x32xf32>
    %1390 = arith.mulf %1389, %1300 : vector<8x32xf32>
    %1391 = arith.addf %1386, %1390 : vector<8x32xf32>
    %c6_i32_441 = arith.constant 6 : i32
    %c7_i32_442 = arith.constant 7 : i32
    %1392 = arith.subi %c7_i32_442, %c6_i32_441 : i32
    %1393 = arith.index_cast %c6_i32_441 : i32 to index
    %c0_443 = arith.constant 0 : index
    %c0_444 = arith.constant 0 : index
    %1394 = vector.load %arg16[%1393, %c0_443, %c0_444] : memref<8x8x192xf32, #tpu.memory_space<vmem>>, vector<1x8x192xf32>
    %1395 = vector.shape_cast %1394 : vector<1x8x192xf32> to vector<8x192xf32>
    %1396 = arith.index_cast %1392 : i32 to index
    %c0_445 = arith.constant 0 : index
    %c0_446 = arith.constant 0 : index
    %1397 = vector.load %arg16[%1396, %c0_445, %c0_446] : memref<8x8x192xf32, #tpu.memory_space<vmem>>, vector<1x8x192xf32>
    %1398 = vector.shape_cast %1397 : vector<1x8x192xf32> to vector<8x192xf32>
    %c0_447 = arith.constant 0 : index
    %c0_448 = arith.constant 0 : index
    %1399 = vector.load %arg11[%c0_447, %c0_448] : memref<32x96xf32, #tpu.memory_space<vmem>>, vector<32x96xf32>
    %cst_449 = arith.constant dense<0.000000e+00> : vector<8x96xf32>
    %1400 = tpu.matmul %1384, %1399, %cst_449 {dimension_numbers = #tpu.dot_dimension_numbers<[1], [0], [0], [1], [0, 0, 1, 1], [], []>} : vector<8x32xf32>, vector<32x96xf32>, vector<8x96xf32> -> vector<8x96xf32>
    %c0_450 = arith.constant 0 : index
    %c0_451 = arith.constant 0 : index
    %1401 = vector.load %arg12[%c0_450, %c0_451] : memref<1x96xf32, #tpu.memory_space<vmem>>, vector<1x96xf32>
    %1402 = vector.broadcast %1401 : vector<1x96xf32> to vector<8x96xf32>
    %1403 = arith.addf %1400, %1402 : vector<8x96xf32>
    %c0_452 = arith.constant 0 : index
    %c0_453 = arith.constant 0 : index
    %1404 = vector.load %arg13[%c0_452, %c0_453] : memref<32x96xf32, #tpu.memory_space<vmem>>, vector<32x96xf32>
    %cst_454 = arith.constant dense<0.000000e+00> : vector<8x96xf32>
    %1405 = tpu.matmul %1391, %1404, %cst_454 {dimension_numbers = #tpu.dot_dimension_numbers<[1], [0], [0], [1], [0, 0, 1, 1], [], []>} : vector<8x32xf32>, vector<32x96xf32>, vector<8x96xf32> -> vector<8x96xf32>
    %c0_455 = arith.constant 0 : index
    %c0_456 = arith.constant 0 : index
    %1406 = vector.load %arg14[%c0_455, %c0_456] : memref<1x96xf32, #tpu.memory_space<vmem>>, vector<1x96xf32>
    %1407 = vector.broadcast %1406 : vector<1x96xf32> to vector<8x96xf32>
    %1408 = arith.addf %1405, %1407 : vector<8x96xf32>
    %1409 = vector.extract_strided_slice %1395 {offsets = [0, 0], sizes = [8, 96], strides = [1, 1]} : vector<8x192xf32> to vector<8x96xf32>
    %1410 = vector.extract_strided_slice %1409 {offsets = [0, 0], sizes = [8, 32], strides = [1, 1]} : vector<8x96xf32> to vector<8x32xf32>
    %1411 = vector.extract_strided_slice %1403 {offsets = [0, 0], sizes = [8, 32], strides = [1, 1]} : vector<8x96xf32> to vector<8x32xf32>
    %1412 = arith.addf %1410, %1411 : vector<8x32xf32>
    %1413 = arith.negf %1412 : vector<8x32xf32>
    %1414 = math.exp %1413 : vector<8x32xf32>
    %cst_457 = arith.constant 1.000000e+00 : f32
    %1415 = vector.broadcast %cst_457 : f32 to vector<8x32xf32>
    %1416 = arith.addf %1415, %1414 : vector<8x32xf32>
    %1417 = arith.divf %1415, %1416 : vector<8x32xf32>
    %1418 = vector.extract_strided_slice %1409 {offsets = [0, 32], sizes = [8, 32], strides = [1, 1]} : vector<8x96xf32> to vector<8x32xf32>
    %1419 = vector.extract_strided_slice %1403 {offsets = [0, 32], sizes = [8, 32], strides = [1, 1]} : vector<8x96xf32> to vector<8x32xf32>
    %1420 = arith.addf %1418, %1419 : vector<8x32xf32>
    %1421 = arith.negf %1420 : vector<8x32xf32>
    %1422 = math.exp %1421 : vector<8x32xf32>
    %cst_458 = arith.constant 1.000000e+00 : f32
    %1423 = vector.broadcast %cst_458 : f32 to vector<8x32xf32>
    %1424 = arith.addf %1423, %1422 : vector<8x32xf32>
    %1425 = arith.divf %1423, %1424 : vector<8x32xf32>
    %1426 = vector.extract_strided_slice %1409 {offsets = [0, 64], sizes = [8, 32], strides = [1, 1]} : vector<8x96xf32> to vector<8x32xf32>
    %1427 = vector.extract_strided_slice %1403 {offsets = [0, 64], sizes = [8, 32], strides = [1, 1]} : vector<8x96xf32> to vector<8x32xf32>
    %1428 = arith.mulf %1417, %1427 : vector<8x32xf32>
    %1429 = arith.addf %1426, %1428 : vector<8x32xf32>
    %1430 = math.tanh %1429 : vector<8x32xf32>
    %cst_459 = arith.constant 1.000000e+00 : f32
    %1431 = vector.broadcast %cst_459 : f32 to vector<8x32xf32>
    %1432 = arith.subf %1431, %1425 : vector<8x32xf32>
    %1433 = arith.mulf %1432, %1430 : vector<8x32xf32>
    %1434 = arith.mulf %1425, %1384 : vector<8x32xf32>
    %1435 = arith.addf %1433, %1434 : vector<8x32xf32>
    %1436 = vector.extract_strided_slice %1398 {offsets = [0, 96], sizes = [8, 96], strides = [1, 1]} : vector<8x192xf32> to vector<8x96xf32>
    %1437 = vector.extract_strided_slice %1436 {offsets = [0, 0], sizes = [8, 32], strides = [1, 1]} : vector<8x96xf32> to vector<8x32xf32>
    %1438 = vector.extract_strided_slice %1408 {offsets = [0, 0], sizes = [8, 32], strides = [1, 1]} : vector<8x96xf32> to vector<8x32xf32>
    %1439 = arith.addf %1437, %1438 : vector<8x32xf32>
    %1440 = arith.negf %1439 : vector<8x32xf32>
    %1441 = math.exp %1440 : vector<8x32xf32>
    %cst_460 = arith.constant 1.000000e+00 : f32
    %1442 = vector.broadcast %cst_460 : f32 to vector<8x32xf32>
    %1443 = arith.addf %1442, %1441 : vector<8x32xf32>
    %1444 = arith.divf %1442, %1443 : vector<8x32xf32>
    %1445 = vector.extract_strided_slice %1436 {offsets = [0, 32], sizes = [8, 32], strides = [1, 1]} : vector<8x96xf32> to vector<8x32xf32>
    %1446 = vector.extract_strided_slice %1408 {offsets = [0, 32], sizes = [8, 32], strides = [1, 1]} : vector<8x96xf32> to vector<8x32xf32>
    %1447 = arith.addf %1445, %1446 : vector<8x32xf32>
    %1448 = arith.negf %1447 : vector<8x32xf32>
    %1449 = math.exp %1448 : vector<8x32xf32>
    %cst_461 = arith.constant 1.000000e+00 : f32
    %1450 = vector.broadcast %cst_461 : f32 to vector<8x32xf32>
    %1451 = arith.addf %1450, %1449 : vector<8x32xf32>
    %1452 = arith.divf %1450, %1451 : vector<8x32xf32>
    %1453 = vector.extract_strided_slice %1436 {offsets = [0, 64], sizes = [8, 32], strides = [1, 1]} : vector<8x96xf32> to vector<8x32xf32>
    %1454 = vector.extract_strided_slice %1408 {offsets = [0, 64], sizes = [8, 32], strides = [1, 1]} : vector<8x96xf32> to vector<8x32xf32>
    %1455 = arith.mulf %1444, %1454 : vector<8x32xf32>
    %1456 = arith.addf %1453, %1455 : vector<8x32xf32>
    %1457 = math.tanh %1456 : vector<8x32xf32>
    %cst_462 = arith.constant 1.000000e+00 : f32
    %1458 = vector.broadcast %cst_462 : f32 to vector<8x32xf32>
    %1459 = arith.subf %1458, %1452 : vector<8x32xf32>
    %1460 = arith.mulf %1459, %1457 : vector<8x32xf32>
    %1461 = arith.mulf %1452, %1391 : vector<8x32xf32>
    %1462 = arith.addf %1460, %1461 : vector<8x32xf32>
    %1463 = arith.index_cast %c6_i32_441 : i32 to index
    %c0_463 = arith.constant 0 : index
    %c0_464 = arith.constant 0 : index
    %1464 = vector.load %arg2[%1463, %c0_463, %c0_464] : memref<8x8x1xf32, #tpu.memory_space<vmem>>, vector<1x8x1xf32>
    %1465 = vector.shape_cast %1464 : vector<1x8x1xf32> to vector<8x1xf32>
    %1466 = arith.index_cast %1392 : i32 to index
    %c0_465 = arith.constant 0 : index
    %c0_466 = arith.constant 0 : index
    %1467 = vector.load %arg2[%1466, %c0_465, %c0_466] : memref<8x8x1xf32, #tpu.memory_space<vmem>>, vector<1x8x1xf32>
    %1468 = vector.shape_cast %1467 : vector<1x8x1xf32> to vector<8x1xf32>
    %1469 = vector.broadcast %1465 : vector<8x1xf32> to vector<8x32xf32>
    %1470 = arith.mulf %1469, %1435 : vector<8x32xf32>
    %cst_467 = arith.constant 1.000000e+00 : f32
    %1471 = vector.broadcast %cst_467 : f32 to vector<8x1xf32>
    %1472 = arith.subf %1471, %1465 : vector<8x1xf32>
    %1473 = vector.broadcast %1472 : vector<8x1xf32> to vector<8x32xf32>
    %1474 = arith.mulf %1473, %1384 : vector<8x32xf32>
    %1475 = arith.addf %1470, %1474 : vector<8x32xf32>
    %1476 = vector.broadcast %1468 : vector<8x1xf32> to vector<8x32xf32>
    %1477 = arith.mulf %1476, %1462 : vector<8x32xf32>
    %cst_468 = arith.constant 1.000000e+00 : f32
    %1478 = vector.broadcast %cst_468 : f32 to vector<8x1xf32>
    %1479 = arith.subf %1478, %1468 : vector<8x1xf32>
    %1480 = vector.broadcast %1479 : vector<8x1xf32> to vector<8x32xf32>
    %1481 = arith.mulf %1480, %1391 : vector<8x32xf32>
    %1482 = arith.addf %1477, %1481 : vector<8x32xf32>
    %c7_i32_469 = arith.constant 7 : i32
    %c7_i32_470 = arith.constant 7 : i32
    %1483 = arith.subi %c7_i32_470, %c7_i32_469 : i32
    %1484 = arith.index_cast %c7_i32_469 : i32 to index
    %c0_471 = arith.constant 0 : index
    %c0_472 = arith.constant 0 : index
    %1485 = vector.load %arg16[%1484, %c0_471, %c0_472] : memref<8x8x192xf32, #tpu.memory_space<vmem>>, vector<1x8x192xf32>
    %1486 = vector.shape_cast %1485 : vector<1x8x192xf32> to vector<8x192xf32>
    %1487 = arith.index_cast %1483 : i32 to index
    %c0_473 = arith.constant 0 : index
    %c0_474 = arith.constant 0 : index
    %1488 = vector.load %arg16[%1487, %c0_473, %c0_474] : memref<8x8x192xf32, #tpu.memory_space<vmem>>, vector<1x8x192xf32>
    %1489 = vector.shape_cast %1488 : vector<1x8x192xf32> to vector<8x192xf32>
    %c0_475 = arith.constant 0 : index
    %c0_476 = arith.constant 0 : index
    %1490 = vector.load %arg11[%c0_475, %c0_476] : memref<32x96xf32, #tpu.memory_space<vmem>>, vector<32x96xf32>
    %cst_477 = arith.constant dense<0.000000e+00> : vector<8x96xf32>
    %1491 = tpu.matmul %1475, %1490, %cst_477 {dimension_numbers = #tpu.dot_dimension_numbers<[1], [0], [0], [1], [0, 0, 1, 1], [], []>} : vector<8x32xf32>, vector<32x96xf32>, vector<8x96xf32> -> vector<8x96xf32>
    %c0_478 = arith.constant 0 : index
    %c0_479 = arith.constant 0 : index
    %1492 = vector.load %arg12[%c0_478, %c0_479] : memref<1x96xf32, #tpu.memory_space<vmem>>, vector<1x96xf32>
    %1493 = vector.broadcast %1492 : vector<1x96xf32> to vector<8x96xf32>
    %1494 = arith.addf %1491, %1493 : vector<8x96xf32>
    %c0_480 = arith.constant 0 : index
    %c0_481 = arith.constant 0 : index
    %1495 = vector.load %arg13[%c0_480, %c0_481] : memref<32x96xf32, #tpu.memory_space<vmem>>, vector<32x96xf32>
    %cst_482 = arith.constant dense<0.000000e+00> : vector<8x96xf32>
    %1496 = tpu.matmul %1482, %1495, %cst_482 {dimension_numbers = #tpu.dot_dimension_numbers<[1], [0], [0], [1], [0, 0, 1, 1], [], []>} : vector<8x32xf32>, vector<32x96xf32>, vector<8x96xf32> -> vector<8x96xf32>
    %c0_483 = arith.constant 0 : index
    %c0_484 = arith.constant 0 : index
    %1497 = vector.load %arg14[%c0_483, %c0_484] : memref<1x96xf32, #tpu.memory_space<vmem>>, vector<1x96xf32>
    %1498 = vector.broadcast %1497 : vector<1x96xf32> to vector<8x96xf32>
    %1499 = arith.addf %1496, %1498 : vector<8x96xf32>
    %1500 = vector.extract_strided_slice %1486 {offsets = [0, 0], sizes = [8, 96], strides = [1, 1]} : vector<8x192xf32> to vector<8x96xf32>
    %1501 = vector.extract_strided_slice %1500 {offsets = [0, 0], sizes = [8, 32], strides = [1, 1]} : vector<8x96xf32> to vector<8x32xf32>
    %1502 = vector.extract_strided_slice %1494 {offsets = [0, 0], sizes = [8, 32], strides = [1, 1]} : vector<8x96xf32> to vector<8x32xf32>
    %1503 = arith.addf %1501, %1502 : vector<8x32xf32>
    %1504 = arith.negf %1503 : vector<8x32xf32>
    %1505 = math.exp %1504 : vector<8x32xf32>
    %cst_485 = arith.constant 1.000000e+00 : f32
    %1506 = vector.broadcast %cst_485 : f32 to vector<8x32xf32>
    %1507 = arith.addf %1506, %1505 : vector<8x32xf32>
    %1508 = arith.divf %1506, %1507 : vector<8x32xf32>
    %1509 = vector.extract_strided_slice %1500 {offsets = [0, 32], sizes = [8, 32], strides = [1, 1]} : vector<8x96xf32> to vector<8x32xf32>
    %1510 = vector.extract_strided_slice %1494 {offsets = [0, 32], sizes = [8, 32], strides = [1, 1]} : vector<8x96xf32> to vector<8x32xf32>
    %1511 = arith.addf %1509, %1510 : vector<8x32xf32>
    %1512 = arith.negf %1511 : vector<8x32xf32>
    %1513 = math.exp %1512 : vector<8x32xf32>
    %cst_486 = arith.constant 1.000000e+00 : f32
    %1514 = vector.broadcast %cst_486 : f32 to vector<8x32xf32>
    %1515 = arith.addf %1514, %1513 : vector<8x32xf32>
    %1516 = arith.divf %1514, %1515 : vector<8x32xf32>
    %1517 = vector.extract_strided_slice %1500 {offsets = [0, 64], sizes = [8, 32], strides = [1, 1]} : vector<8x96xf32> to vector<8x32xf32>
    %1518 = vector.extract_strided_slice %1494 {offsets = [0, 64], sizes = [8, 32], strides = [1, 1]} : vector<8x96xf32> to vector<8x32xf32>
    %1519 = arith.mulf %1508, %1518 : vector<8x32xf32>
    %1520 = arith.addf %1517, %1519 : vector<8x32xf32>
    %1521 = math.tanh %1520 : vector<8x32xf32>
    %cst_487 = arith.constant 1.000000e+00 : f32
    %1522 = vector.broadcast %cst_487 : f32 to vector<8x32xf32>
    %1523 = arith.subf %1522, %1516 : vector<8x32xf32>
    %1524 = arith.mulf %1523, %1521 : vector<8x32xf32>
    %1525 = arith.mulf %1516, %1475 : vector<8x32xf32>
    %1526 = arith.addf %1524, %1525 : vector<8x32xf32>
    %1527 = vector.extract_strided_slice %1489 {offsets = [0, 96], sizes = [8, 96], strides = [1, 1]} : vector<8x192xf32> to vector<8x96xf32>
    %1528 = vector.extract_strided_slice %1527 {offsets = [0, 0], sizes = [8, 32], strides = [1, 1]} : vector<8x96xf32> to vector<8x32xf32>
    %1529 = vector.extract_strided_slice %1499 {offsets = [0, 0], sizes = [8, 32], strides = [1, 1]} : vector<8x96xf32> to vector<8x32xf32>
    %1530 = arith.addf %1528, %1529 : vector<8x32xf32>
    %1531 = arith.negf %1530 : vector<8x32xf32>
    %1532 = math.exp %1531 : vector<8x32xf32>
    %cst_488 = arith.constant 1.000000e+00 : f32
    %1533 = vector.broadcast %cst_488 : f32 to vector<8x32xf32>
    %1534 = arith.addf %1533, %1532 : vector<8x32xf32>
    %1535 = arith.divf %1533, %1534 : vector<8x32xf32>
    %1536 = vector.extract_strided_slice %1527 {offsets = [0, 32], sizes = [8, 32], strides = [1, 1]} : vector<8x96xf32> to vector<8x32xf32>
    %1537 = vector.extract_strided_slice %1499 {offsets = [0, 32], sizes = [8, 32], strides = [1, 1]} : vector<8x96xf32> to vector<8x32xf32>
    %1538 = arith.addf %1536, %1537 : vector<8x32xf32>
    %1539 = arith.negf %1538 : vector<8x32xf32>
    %1540 = math.exp %1539 : vector<8x32xf32>
    %cst_489 = arith.constant 1.000000e+00 : f32
    %1541 = vector.broadcast %cst_489 : f32 to vector<8x32xf32>
    %1542 = arith.addf %1541, %1540 : vector<8x32xf32>
    %1543 = arith.divf %1541, %1542 : vector<8x32xf32>
    %1544 = vector.extract_strided_slice %1527 {offsets = [0, 64], sizes = [8, 32], strides = [1, 1]} : vector<8x96xf32> to vector<8x32xf32>
    %1545 = vector.extract_strided_slice %1499 {offsets = [0, 64], sizes = [8, 32], strides = [1, 1]} : vector<8x96xf32> to vector<8x32xf32>
    %1546 = arith.mulf %1535, %1545 : vector<8x32xf32>
    %1547 = arith.addf %1544, %1546 : vector<8x32xf32>
    %1548 = math.tanh %1547 : vector<8x32xf32>
    %cst_490 = arith.constant 1.000000e+00 : f32
    %1549 = vector.broadcast %cst_490 : f32 to vector<8x32xf32>
    %1550 = arith.subf %1549, %1543 : vector<8x32xf32>
    %1551 = arith.mulf %1550, %1548 : vector<8x32xf32>
    %1552 = arith.mulf %1543, %1482 : vector<8x32xf32>
    %1553 = arith.addf %1551, %1552 : vector<8x32xf32>
    %1554 = arith.index_cast %c7_i32_469 : i32 to index
    %c0_491 = arith.constant 0 : index
    %c0_492 = arith.constant 0 : index
    %1555 = vector.load %arg2[%1554, %c0_491, %c0_492] : memref<8x8x1xf32, #tpu.memory_space<vmem>>, vector<1x8x1xf32>
    %1556 = vector.shape_cast %1555 : vector<1x8x1xf32> to vector<8x1xf32>
    %1557 = arith.index_cast %1483 : i32 to index
    %c0_493 = arith.constant 0 : index
    %c0_494 = arith.constant 0 : index
    %1558 = vector.load %arg2[%1557, %c0_493, %c0_494] : memref<8x8x1xf32, #tpu.memory_space<vmem>>, vector<1x8x1xf32>
    %1559 = vector.shape_cast %1558 : vector<1x8x1xf32> to vector<8x1xf32>
    %1560 = vector.broadcast %1556 : vector<8x1xf32> to vector<8x32xf32>
    %1561 = arith.mulf %1560, %1526 : vector<8x32xf32>
    %cst_495 = arith.constant 1.000000e+00 : f32
    %1562 = vector.broadcast %cst_495 : f32 to vector<8x1xf32>
    %1563 = arith.subf %1562, %1556 : vector<8x1xf32>
    %1564 = vector.broadcast %1563 : vector<8x1xf32> to vector<8x32xf32>
    %1565 = arith.mulf %1564, %1475 : vector<8x32xf32>
    %1566 = arith.addf %1561, %1565 : vector<8x32xf32>
    %1567 = vector.broadcast %1559 : vector<8x1xf32> to vector<8x32xf32>
    %1568 = arith.mulf %1567, %1553 : vector<8x32xf32>
    %cst_496 = arith.constant 1.000000e+00 : f32
    %1569 = vector.broadcast %cst_496 : f32 to vector<8x1xf32>
    %1570 = arith.subf %1569, %1559 : vector<8x1xf32>
    %1571 = vector.broadcast %1570 : vector<8x1xf32> to vector<8x32xf32>
    %1572 = arith.mulf %1571, %1482 : vector<8x32xf32>
    %1573 = arith.addf %1568, %1572 : vector<8x32xf32>
    %c8_i32_497 = arith.constant 8 : i32
    %1574 = tpu.concatenate %1566, %1573 in 1 : vector<8x32xf32>, vector<8x32xf32> -> vector<8x64xf32>
    %c0_498 = arith.constant 0 : index
    %c0_499 = arith.constant 0 : index
    %1575 = vector.load %arg15[%c0_498, %c0_499] : memref<8x64xf32, #tpu.memory_space<vmem>>, vector<8x64xf32>
    tpu.vector_store %arg15[%c0_498, %c0_499], %1574 {strides = array<i32>} : memref<8x64xf32, #tpu.memory_space<vmem>>, vector<8x64xf32>,
    return
  }
  func.func @transform_0(%arg0: i32) -> (i32, i32, i32) {
    %c0_i32 = arith.constant 0 : i32
    %c0_i32_0 = arith.constant 0 : i32
    %c0_i32_1 = arith.constant 0 : i32
    %c0_i32_2 = arith.constant 0 : i32
    return %c0_i32, %c0_i32_0, %c0_i32_1 : i32, i32, i32
  }
  func.func @transform_1(%arg0: i32) -> (i32, i32, i32) {
    %c0_i32 = arith.constant 0 : i32
    %c0_i32_0 = arith.constant 0 : i32
    %c0_i32_1 = arith.constant 0 : i32
    %c0_i32_2 = arith.constant 0 : i32
    return %c0_i32, %c0_i32_0, %c0_i32_1 : i32, i32, i32
  }
  func.func @transform_2(%arg0: i32) -> (i32, i32) {
    %c0_i32 = arith.constant 0 : i32
    %c0_i32_0 = arith.constant 0 : i32
    %c0_i32_1 = arith.constant 0 : i32
    return %c0_i32, %c0_i32_0 : i32, i32
  }
  func.func @transform_3(%arg0: i32) -> (i32, i32) {
    %c0_i32 = arith.constant 0 : i32
    %c0_i32_0 = arith.constant 0 : i32
    %c0_i32_1 = arith.constant 0 : i32
    return %c0_i32, %c0_i32_0 : i32, i32
  }
  func.func @transform_4(%arg0: i32) -> (i32, i32) {
    %c0_i32 = arith.constant 0 : i32
    %c0_i32_0 = arith.constant 0 : i32
    %c0_i32_1 = arith.constant 0 : i32
    return %c0_i32, %c0_i32_0 : i32, i32
  }
  func.func @transform_5(%arg0: i32) -> (i32, i32) {
    %c0_i32 = arith.constant 0 : i32
    %c0_i32_0 = arith.constant 0 : i32
    %c0_i32_1 = arith.constant 0 : i32
    return %c0_i32, %c0_i32_0 : i32, i32
  }
  func.func @transform_6(%arg0: i32) -> (i32, i32) {
    %c0_i32 = arith.constant 0 : i32
    %c0_i32_0 = arith.constant 0 : i32
    %c0_i32_1 = arith.constant 0 : i32
    return %c0_i32, %c0_i32_0 : i32, i32
  }
  func.func @transform_7(%arg0: i32) -> (i32, i32) {
    %c0_i32 = arith.constant 0 : i32
    %c0_i32_0 = arith.constant 0 : i32
    %c0_i32_1 = arith.constant 0 : i32
    return %c0_i32, %c0_i32_0 : i32, i32
  }
  func.func @transform_8(%arg0: i32) -> (i32, i32) {
    %c0_i32 = arith.constant 0 : i32
    %c0_i32_0 = arith.constant 0 : i32
    %c0_i32_1 = arith.constant 0 : i32
    return %c0_i32, %c0_i32_0 : i32, i32
  }
  func.func @transform_9(%arg0: i32) -> (i32, i32) {
    %c0_i32 = arith.constant 0 : i32
    %c0_i32_0 = arith.constant 0 : i32
    %c0_i32_1 = arith.constant 0 : i32
    return %c0_i32, %c0_i32_0 : i32, i32
  }
  func.func @transform_10(%arg0: i32) -> (i32, i32) {
    %c0_i32 = arith.constant 0 : i32
    %c0_i32_0 = arith.constant 0 : i32
    %c0_i32_1 = arith.constant 0 : i32
    return %c0_i32, %c0_i32_0 : i32, i32
  }
  func.func @transform_11(%arg0: i32) -> (i32, i32) {
    %c0_i32 = arith.constant 0 : i32
    %c0_i32_0 = arith.constant 0 : i32
    %c0_i32_1 = arith.constant 0 : i32
    return %c0_i32, %c0_i32_0 : i32, i32
  }
  func.func @transform_12(%arg0: i32) -> (i32, i32) {
    %c0_i32 = arith.constant 0 : i32
    %c0_i32_0 = arith.constant 0 : i32
    %c0_i32_1 = arith.constant 0 : i32
    return %c0_i32, %c0_i32_0 : i32, i32
  }
  func.func @transform_13(%arg0: i32) -> (i32, i32) {
    %c0_i32 = arith.constant 0 : i32
    %c0_i32_0 = arith.constant 0 : i32
    %c0_i32_1 = arith.constant 0 : i32
    return %c0_i32, %c0_i32_0 : i32, i32
  }
  func.func @transform_14(%arg0: i32) -> (i32, i32) {
    %c0_i32 = arith.constant 0 : i32
    %c0_i32_0 = arith.constant 0 : i32
    %c0_i32_1 = arith.constant 0 : i32
    return %c0_i32, %c0_i32_0 : i32, i32
  }
}

</mosaic_0001>

<llo_original>
// kernel: tpu_custom_call.1
$region0: #{tpu_custom_call.1}
  #allocation0 [shape = 'u32[]', space=smem, size = 0x4, offset = 0x4, fixed_abs, tag = 'smem constant byte address 0x4 - core index']
  #allocation1 [shape = 'u32[144,128]{1,0:T(1,128)}', space=vmem, size = 0x12000, scoped, tag = 'internal scratch']
  #allocation2 [shape = 'f32[8,8,192]{2,1,0:T(8,128)}', space=vmem, size = 0x10000, scoped, tag = 'scratch operand']
  #allocation3 [shape = 'f32[8,8,32]{2,1,0:T(8,128)}', space=vmem, size = 0x8000, scoped, tag = 'scratch operand']
  #allocation4 [shape = 'f32[8,8,32]{2,1,0:T(8,128)}', space=vmem, size = 0x8000, scoped, tag = 'scratch operand']
  %s0 = inlined_call_operand.vmem [shape: f32[8,8,16], index: 0, kind: input, shape index: {}]
  %s1 = inlined_call_operand.vmem [shape: f32[8,8,1], index: 1, kind: input, shape index: {}]
  %s2 = inlined_call_operand.hbm [shape: f32[16,192], index: 2, kind: input, shape index: {}]
  %s3 = inlined_call_operand.vmem [shape: f32[1,192], index: 3, kind: input, shape index: {}]
  %s4 = inlined_call_operand.hbm [shape: f32[32,96], index: 4, kind: input, shape index: {}]
  %s5 = inlined_call_operand.vmem [shape: f32[1,96], index: 5, kind: input, shape index: {}]
  %s6 = inlined_call_operand.hbm [shape: f32[32,96], index: 6, kind: input, shape index: {}]
  %s7 = inlined_call_operand.vmem [shape: f32[1,96], index: 7, kind: input, shape index: {}]
  %s8 = inlined_call_operand.hbm [shape: f32[64,192], index: 8, kind: input, shape index: {}]
  %s9 = inlined_call_operand.vmem [shape: f32[1,192], index: 9, kind: input, shape index: {}]
  %s10 = inlined_call_operand.hbm [shape: f32[32,96], index: 10, kind: input, shape index: {}]
  %s11 = inlined_call_operand.vmem [shape: f32[1,96], index: 11, kind: input, shape index: {}]
  %s12 = inlined_call_operand.hbm [shape: f32[32,96], index: 12, kind: input, shape index: {}]
  %s13 = inlined_call_operand.vmem [shape: f32[1,96], index: 13, kind: input, shape index: {}]
  %s14 = inlined_call_operand.hbm [shape: f32[8,64], index: 14, kind: output, shape index: {}]
  %s15 = sld [smem:[#allocation0]]
  $region90: #{tpu_custom_call.1} parent=0
    _
  %s17 = ssub.s32 1, %s15
  %s18 = scalar_select 0, %s17, %s15
  $region1: #{tpu_custom_call.1} parent=0
    #allocation5 [shape = 'u8[16384]{0}', space=vmem, size = 0x4000, scoped, tag = 'input window, operand 2, single buffered']
    #allocation6 [shape = 's32[1]{0}', space=sflag, size = 0x4, scoped, tag = 'scoped memory for tpu_custom_call.1']
    #allocation7 [shape = 's32[1]{0}', space=sflag, size = 0x4, scoped, tag = 'scoped memory for tpu_custom_call.1']
    #allocation8 [shape = 'u8[16384]{0}', space=vmem, size = 0x4000, scoped, tag = 'input window, operand 4, single buffered']
    #allocation9 [shape = 's32[1]{0}', space=sflag, size = 0x4, scoped, tag = 'scoped memory for tpu_custom_call.1']
    #allocation10 [shape = 'u8[16384]{0}', space=vmem, size = 0x4000, scoped, tag = 'input window, operand 6, single buffered']
    #allocation11 [shape = 'u8[65536]{0}', space=vmem, size = 0x10000, scoped, tag = 'input window, operand 8, single buffered']
    #allocation12 [shape = 's32[1]{0}', space=sflag, size = 0x4, scoped, tag = 'scoped memory for tpu_custom_call.1']
    #allocation13 [shape = 'u8[16384]{0}', space=vmem, size = 0x4000, scoped, tag = 'input window, operand 10, single buffered']
    #allocation14 [shape = 'u8[16384]{0}', space=vmem, size = 0x4000, scoped, tag = 'input window, operand 12, single buffered']
    #allocation15 [shape = 's32[1]{0}', space=sflag, size = 0x4, scoped, tag = 'scoped memory for tpu_custom_call.1']
    #allocation16 [shape = 'u8[4096]{0}', space=vmem, size = 0x1000, scoped, tag = 'output window, operand 0, single buffered']
    %19 = vsyncpa [#allocation6], 0
    %20 = vsyncpa [#allocation9], 0
    %21 = vsyncpa [#allocation12], 0
    %22 = vsyncpa [#allocation15], 0
    %23 = vsyncpa [#allocation7], 0
    // Predicated region
    $region2: #{tpu_custom_call.1} parent=1 // pred_check
      _
    $region3: #{tpu_custom_call.1} parent=1 // pred_check_branch
      %25 = sbr.rel (0) target = $region5
    $region4: #{tpu_custom_call.1} parent=1 // pred_region
      _
    $region5: #{tpu_custom_call.1} parent=1 // pred_fallthru
      _
    // Predicated region
    $region6: #{tpu_custom_call.1} parent=1 // pred_check
      _
    $region7: #{tpu_custom_call.1} parent=1 // pred_check_branch
      %27 = sbr.rel (0) target = $region9
    $region8: #{tpu_custom_call.1} parent=1 // pred_region
      _
    $region9: #{tpu_custom_call.1} parent=1 // pred_fallthru
      _
    // Predicated region
    $region10: #{tpu_custom_call.1} parent=1 // pred_check
      _
    $region11: #{tpu_custom_call.1} parent=1 // pred_check_branch
      %29 = sbr.rel (0) target = $region13
    $region12: #{tpu_custom_call.1} parent=1 // pred_region
      %s31 = ssub.s32 512, 512
      %32 = vsyncadd [#allocation6], %s31
      %s33 = sshll.u32 [#allocation5], 4
      %s34 = int_to_ptr.vmem [resolvable:$true] %s33
      %39 = dma.hbm_to_vmem [thread:$0]  %s2, 512, %s34, [#allocation6], 256, 256, 16
    $region13: #{tpu_custom_call.1} parent=1 // pred_fallthru
      _
    // Predicated region
    $region14: #{tpu_custom_call.1} parent=1 // pred_check
      _
    $region15: #{tpu_custom_call.1} parent=1 // pred_check_branch
      %41 = sbr.rel (0) target = $region17
    $region16: #{tpu_custom_call.1} parent=1 // pred_region
      _
    $region17: #{tpu_custom_call.1} parent=1 // pred_fallthru
      _
    // Predicated region
    $region18: #{tpu_custom_call.1} parent=1 // pred_check
      _
    $region19: #{tpu_custom_call.1} parent=1 // pred_check_branch
      %43 = sbr.rel (0) target = $region21
    $region20: #{tpu_custom_call.1} parent=1 // pred_region
      %s45 = ssub.s32 512, 512
      %46 = vsyncadd [#allocation9], %s45
      %s47 = sshll.u32 [#allocation8], 4
      %s48 = int_to_ptr.vmem [resolvable:$true] %s47
      %53 = dma.hbm_to_vmem [thread:$0]  %s4, 512, %s48, [#allocation9], 128, 128, 8
    $region21: #{tpu_custom_call.1} parent=1 // pred_fallthru
      _
    // Predicated region
    $region22: #{tpu_custom_call.1} parent=1 // pred_check
      _
    $region23: #{tpu_custom_call.1} parent=1 // pred_check_branch
      %55 = sbr.rel (0) target = $region25
    $region24: #{tpu_custom_call.1} parent=1 // pred_region
      _
    $region25: #{tpu_custom_call.1} parent=1 // pred_fallthru
      _
    // Predicated region
    $region26: #{tpu_custom_call.1} parent=1 // pred_check
      _
    $region27: #{tpu_custom_call.1} parent=1 // pred_check_branch
      %57 = sbr.rel (0) target = $region29
    $region28: #{tpu_custom_call.1} parent=1 // pred_region
      %s59 = ssub.s32 512, 512
      %60 = vsyncadd [#allocation9], %s59
      %s61 = sshll.u32 [#allocation10], 4
      %s62 = int_to_ptr.vmem [resolvable:$true] %s61
      %67 = dma.hbm_to_vmem [thread:$0]  %s6, 512, %s62, [#allocation9], 128, 128, 8
    $region29: #{tpu_custom_call.1} parent=1 // pred_fallthru
      _
    // Predicated region
    $region30: #{tpu_custom_call.1} parent=1 // pred_check
      _
    $region31: #{tpu_custom_call.1} parent=1 // pred_check_branch
      %69 = sbr.rel (0) target = $region33
    $region32: #{tpu_custom_call.1} parent=1 // pred_region
      _
    $region33: #{tpu_custom_call.1} parent=1 // pred_fallthru
      _
    // Predicated region
    $region34: #{tpu_custom_call.1} parent=1 // pred_check
      _
    $region35: #{tpu_custom_call.1} parent=1 // pred_check_branch
      %71 = sbr.rel (0) target = $region37
    $region36: #{tpu_custom_call.1} parent=1 // pred_region
      %s73 = ssub.s32 2048, 2048
      %74 = vsyncadd [#allocation12], %s73
      %s75 = sshll.u32 [#allocation11], 4
      %s76 = int_to_ptr.vmem [resolvable:$true] %s75
      %81 = dma.hbm_to_vmem [thread:$0]  %s8, 2048, %s76, [#allocation12], 256, 256, 16
    $region37: #{tpu_custom_call.1} parent=1 // pred_fallthru
      _
    // Predicated region
    $region38: #{tpu_custom_call.1} parent=1 // pred_check
      _
    $region39: #{tpu_custom_call.1} parent=1 // pred_check_branch
      %83 = sbr.rel (0) target = $region41
    $region40: #{tpu_custom_call.1} parent=1 // pred_region
      _
    $region41: #{tpu_custom_call.1} parent=1 // pred_fallthru
      _
    // Predicated region
    $region42: #{tpu_custom_call.1} parent=1 // pred_check
      _
    $region43: #{tpu_custom_call.1} parent=1 // pred_check_branch
      %85 = sbr.rel (0) target = $region45
    $region44: #{tpu_custom_call.1} parent=1 // pred_region
      %s87 = ssub.s32 512, 512
      %88 = vsyncadd [#allocation12], %s87
      %s89 = sshll.u32 [#allocation13], 4
      %s90 = int_to_ptr.vmem [resolvable:$true] %s89
      %95 = dma.hbm_to_vmem [thread:$0]  %s10, 512, %s90, [#allocation12], 128, 128, 8
    $region45: #{tpu_custom_call.1} parent=1 // pred_fallthru
      _
    // Predicated region
    $region46: #{tpu_custom_call.1} parent=1 // pred_check
      _
    $region47: #{tpu_custom_call.1} parent=1 // pred_check_branch
      %97 = sbr.rel (0) target = $region49
    $region48: #{tpu_custom_call.1} parent=1 // pred_region
      _
    $region49: #{tpu_custom_call.1} parent=1 // pred_fallthru
      _
    // Predicated region
    $region50: #{tpu_custom_call.1} parent=1 // pred_check
      _
    $region51: #{tpu_custom_call.1} parent=1 // pred_check_branch
      %99 = sbr.rel (0) target = $region53
    $region52: #{tpu_custom_call.1} parent=1 // pred_region
      %s101 = ssub.s32 512, 512
      %102 = vsyncadd [#allocation15], %s101
      %s103 = sshll.u32 [#allocation14], 4
      %s104 = int_to_ptr.vmem [resolvable:$true] %s103
      %109 = dma.hbm_to_vmem [thread:$0]  %s12, 512, %s104, [#allocation15], 128, 128, 8
    $region53: #{tpu_custom_call.1} parent=1 // pred_fallthru
      _
    // Predicated region
    $region54: #{tpu_custom_call.1} parent=1 // pred_check
      _
    $region55: #{tpu_custom_call.1} parent=1 // pred_check_branch
      %111 = sbr.rel (0) target = $region57
    $region56: #{tpu_custom_call.1} parent=1 // pred_region
      _
    $region57: #{tpu_custom_call.1} parent=1 // pred_fallthru
      _
    // Predicated region
    $region58: #{tpu_custom_call.1} parent=1 // pred_check
      _
    $region59: #{tpu_custom_call.1} parent=1 // pred_check_branch
      %113 = sbr.rel (0) target = $region61
    $region60: #{tpu_custom_call.1} parent=1 // pred_region
      %114 = dma.done [#allocation6], 512
    $region61: #{tpu_custom_call.1} parent=1 // pred_fallthru
      _
    // Predicated region
    $region62: #{tpu_custom_call.1} parent=1 // pred_check
      _
    $region63: #{tpu_custom_call.1} parent=1 // pred_check_branch
      %116 = sbr.rel (0) target = $region65
    $region64: #{tpu_custom_call.1} parent=1 // pred_region
      %117 = dma.done [#allocation9], 512
    $region65: #{tpu_custom_call.1} parent=1 // pred_fallthru
      _
    // Predicated region
    $region66: #{tpu_custom_call.1} parent=1 // pred_check
      _
    $region67: #{tpu_custom_call.1} parent=1 // pred_check_branch
      %119 = sbr.rel (0) target = $region69
    $region68: #{tpu_custom_call.1} parent=1 // pred_region
      %120 = dma.done [#allocation9], 512
    $region69: #{tpu_custom_call.1} parent=1 // pred_fallthru
      _
    // Predicated region
    $region70: #{tpu_custom_call.1} parent=1 // pred_check
      _
    $region71: #{tpu_custom_call.1} parent=1 // pred_check_branch
      %122 = sbr.rel (0) target = $region73
    $region72: #{tpu_custom_call.1} parent=1 // pred_region
      %123 = dma.done [#allocation12], 2048
    $region73: #{tpu_custom_call.1} parent=1 // pred_fallthru
      _
    // Predicated region
    $region74: #{tpu_custom_call.1} parent=1 // pred_check
      _
    $region75: #{tpu_custom_call.1} parent=1 // pred_check_branch
      %125 = sbr.rel (0) target = $region77
    $region76: #{tpu_custom_call.1} parent=1 // pred_region
      %126 = dma.done [#allocation12], 512
    $region77: #{tpu_custom_call.1} parent=1 // pred_fallthru
      _
    // Predicated region
    $region78: #{tpu_custom_call.1} parent=1 // pred_check
      _
    $region79: #{tpu_custom_call.1} parent=1 // pred_check_branch
      %128 = sbr.rel (0) target = $region81
    $region80: #{tpu_custom_call.1} parent=1 // pred_region
      %129 = dma.done [#allocation15], 512
    $region81: #{tpu_custom_call.1} parent=1 // pred_fallthru
      _
    %v130 = vld [vmem:[%s0] sm:$0xff]
    %v131 = vld [vmem:[%s0 + $0x8] sm:$0xff]
    %v132 = vld [vmem:[%s0 + $0x10] sm:$0xff]
    %v133 = vld [vmem:[%s0 + $0x18] sm:$0xff]
    %v134 = vld [vmem:[%s0 + $0x20] sm:$0xff]
    %v135 = vld [vmem:[%s0 + $0x28] sm:$0xff]
    %v136 = vld [vmem:[%s0 + $0x30] sm:$0xff]
    %v137 = vld [vmem:[%s0 + $0x38] sm:$0xff]
    %v138 = vld [vmem:[#allocation5] sm:$0xff]
    %v139 = vld [vmem:[#allocation5 + $0x8] sm:$0xff]
    %v140 = vld [vmem:[#allocation5 + $0x10] sm:$0xff]
    %v141 = vld [vmem:[#allocation5 + $0x18] sm:$0xff]
    %v142 = vld [vmem:[%s3] sm:$0x3]
    %v144 = vlaneseq
    %v145 = vshrl.u32 %v144, 7
    %v146 = vsub.s32 0, %v145
    %v147 = vrot.slane %v142, %v146
    %v148 = vlaneseq
    %v149 = vshrl.u32 %v148, 7
    %v150 = vsub.s32 1, %v149
    %v151 = vrot.slane %v142, %v150
    %vm154 = vcmask 130048
    %v156 = vsel %vm154, %v130, 0
    %v159 = vsel %vm154, %v131, 0
    %v162 = vsel %vm154, %v132, 0
    %v165 = vsel %vm154, %v133, 0
    %v168 = vsel %vm154, %v134, 0
    %v171 = vsel %vm154, %v135, 0
    %v174 = vsel %vm154, %v136, 0
    %v177 = vsel %vm154, %v137, 0
    %179 = vmatprep.subr.mxu0 0.0
    %180 = vmatpush1.msra.mxu0 0.0
    %181 = vmatprep.subr.mxu0 0.0
    %182 = vmatpush1.msra.mxu0 0.0
    %183 = vmatprep.subr.mxu0 0.0
    %184 = vmatpush1.msra.mxu0 0.0
    %185 = vmatprep.subr.mxu0 0.0
    %186 = vmatpush1.msra.mxu0 0.0
    %187 = vmatprep.subr.mxu0 0.0
    %188 = vmatpush1.msra.mxu0 0.0
    %189 = vmatprep.subr.mxu0 0.0
    %190 = vmatpush1.msra.mxu0 0.0
    %191 = vmatprep.subr.mxu0 0.0
    %192 = vmatpush1.msra.mxu0 0.0
    %193 = vmatprep.subr.mxu0 0.0
    %194 = vmatpush1.msra.mxu0 0.0
    %195 = vmatprep.subr.mxu0 0.0
    %196 = vmatpush1.msra.mxu0 0.0
    %197 = vmatprep.subr.mxu0 0.0
    %198 = vmatpush1.msra.mxu0 0.0
    %199 = vmatprep.subr.mxu0 0.0
    %200 = vmatpush1.msra.mxu0 0.0
    %201 = vmatprep.subr.mxu0 0.0
    %202 = vmatpush1.msra.mxu0 0.0
    %203 = vmatprep.subr.mxu0 0.0
    %204 = vmatpush1.msra.mxu0 0.0
    %205 = vmatprep.subr.mxu0 0.0
    %206 = vmatpush1.msra.mxu0 0.0
    %207 = vmatprep.subr.mxu0 %v141
    %208 = vmatpush1.msra.mxu0 %v140
    %209 = vmatprep.subr.mxu0 %v139
    %210 = vmatpush1.msra.mxu0 %v138
    %211 = vmatprep.subr.mxu0 0.0
    %212 = vmatpush2.msra.mxu0 0.0
    %213 = vmatprep.subr.mxu0 0.0
    %214 = vmatpush2.msra.mxu0 0.0
    %215 = vmatprep.subr.mxu0 0.0
    %216 = vmatpush2.msra.mxu0 0.0
    %217 = vmatprep.subr.mxu0 0.0
    %218 = vmatpush2.msra.mxu0 0.0
    %219 = vmatprep.subr.mxu0 0.0
    %220 = vmatpush2.msra.mxu0 0.0
    %221 = vmatprep.subr.mxu0 0.0
    %222 = vmatpush2.msra.mxu0 0.0
    %223 = vmatprep.subr.mxu0 0.0
    %224 = vmatpush2.msra.mxu0 0.0
    %225 = vmatprep.subr.mxu0 0.0
    %226 = vmatpush2.msra.mxu0 0.0
    %227 = vmatprep.subr.mxu0 0.0
    %228 = vmatpush2.msra.mxu0 0.0
    %229 = vmatprep.subr.mxu0 0.0
    %230 = vmatpush2.msra.mxu0 0.0
    %231 = vmatprep.subr.mxu0 0.0
    %232 = vmatpush2.msra.mxu0 0.0
    %233 = vmatprep.subr.mxu0 0.0
    %234 = vmatpush2.msra.mxu0 0.0
    %235 = vmatprep.subr.mxu0 0.0
    %236 = vmatpush2.msra.mxu0 0.0
    %237 = vmatprep.subr.mxu0 0.0
    %238 = vmatpush2.msra.mxu0 0.0
    %239 = vmatprep.subr.mxu0 0.0
    %240 = vmatpush2.msra.mxu0 0.0
    %241 = vmatprep.subr.mxu0 0.0
    %242 = vmatpush2.msra.mxu0 0.0
    %243 = vmatprep.mubr.f32.mxu0 0.0
    %244 = vmatmul.mubr.f32.gmra.mxu0 %v156
    %v245 = vpop.f32.mrf.mxu0
    %v246 = vadd.f32 %v147, %v245
    %v247 = vpop.f32.mrf.mxu0
    %v248 = vadd.f32 %v151, %v247
    %249 = vmatprep.mubr.f32.mxu0 0.0
    %250 = vmatmul.mubr.f32.gmra.mxu0 %v159
    %v251 = vpop.f32.mrf.mxu0
    %v252 = vadd.f32 %v147, %v251
    %v253 = vpop.f32.mrf.mxu0
    %v254 = vadd.f32 %v151, %v253
    %255 = vmatprep.mubr.f32.mxu0 0.0
    %256 = vmatmul.mubr.f32.gmra.mxu0 %v162
    %v257 = vpop.f32.mrf.mxu0
    %v258 = vadd.f32 %v147, %v257
    %v259 = vpop.f32.mrf.mxu0
    %v260 = vadd.f32 %v151, %v259
    %261 = vmatprep.mubr.f32.mxu0 0.0
    %262 = vmatmul.mubr.f32.gmra.mxu0 %v165
    %v263 = vpop.f32.mrf.mxu0
    %v264 = vadd.f32 %v147, %v263
    %v265 = vpop.f32.mrf.mxu0
    %v266 = vadd.f32 %v151, %v265
    %267 = vmatprep.mubr.f32.mxu0 0.0
    %268 = vmatmul.mubr.f32.gmra.mxu0 %v168
    %v269 = vpop.f32.mrf.mxu0
    %v270 = vadd.f32 %v147, %v269
    %v271 = vpop.f32.mrf.mxu0
    %v272 = vadd.f32 %v151, %v271
    %273 = vmatprep.mubr.f32.mxu0 0.0
    %274 = vmatmul.mubr.f32.gmra.mxu0 %v171
    %v275 = vpop.f32.mrf.mxu0
    %v276 = vadd.f32 %v147, %v275
    %v277 = vpop.f32.mrf.mxu0
    %v278 = vadd.f32 %v151, %v277
    %279 = vmatprep.mubr.f32.mxu0 0.0
    %280 = vmatmul.mubr.f32.gmra.mxu0 %v174
    %v281 = vpop.f32.mrf.mxu0
    %v282 = vadd.f32 %v147, %v281
    %v283 = vpop.f32.mrf.mxu0
    %v284 = vadd.f32 %v151, %v283
    %285 = vmatprep.mubr.f32.mxu0 0.0
    %286 = vmatmul.mubr.f32.gmra.mxu0 %v177
    %v287 = vpop.f32.mrf.mxu0
    %v288 = vadd.f32 %v147, %v287
    %v289 = vpop.f32.mrf.mxu0
    %v290 = vadd.f32 %v151, %v289
    %291 = vdwg.mxu0
    %292 = vst [vmem:[#allocation2] sm:$0xff] %v246
    %vm293 = vcmask 523264
    %294 = vst.msk [vmem:[#allocation2 + $0x8] sm:$0xff] %vm293, %v248
    %295 = vst [vmem:[#allocation2 + $0x10] sm:$0xff] %v252
    %296 = vst.msk [vmem:[#allocation2 + $0x18] sm:$0xff] %vm293, %v254
    %297 = vst [vmem:[#allocation2 + $0x20] sm:$0xff] %v258
    %298 = vst.msk [vmem:[#allocation2 + $0x28] sm:$0xff] %vm293, %v260
    %299 = vst [vmem:[#allocation2 + $0x30] sm:$0xff] %v264
    %300 = vst.msk [vmem:[#allocation2 + $0x38] sm:$0xff] %vm293, %v266
    %301 = vst [vmem:[#allocation2 + $0x40] sm:$0xff] %v270
    %302 = vst.msk [vmem:[#allocation2 + $0x48] sm:$0xff] %vm293, %v272
    %303 = vst [vmem:[#allocation2 + $0x50] sm:$0xff] %v276
    %304 = vst.msk [vmem:[#allocation2 + $0x58] sm:$0xff] %vm293, %v278
    %305 = vst [vmem:[#allocation2 + $0x60] sm:$0xff] %v282
    %306 = vst.msk [vmem:[#allocation2 + $0x68] sm:$0xff] %vm293, %v284
    %307 = vst [vmem:[#allocation2 + $0x70] sm:$0xff] %v288
    %308 = vst.msk [vmem:[#allocation2 + $0x78] sm:$0xff] %vm293, %v290
    %v309 = vld [vmem:[#allocation2] sm:$0xff]
    %s310 = scalar_lea.vmem [#allocation2], 112
    %v311 = vld [vmem:[%s310] sm:$0xff]
    %v312 = vld [vmem:[%s310 + $0x8] sm:$0xff]
    %v313 = vld [vmem:[#allocation8] sm:$0xff]
    %v314 = vld [vmem:[#allocation8 + $0x8] sm:$0xff]
    %v315 = vld [vmem:[#allocation8 + $0x10] sm:$0xff]
    %v316 = vld [vmem:[#allocation8 + $0x18] sm:$0xff]
    %v317 = vld [vmem:[%s5] sm:$0x1]
    %v319 = vlaneseq
    %v320 = vshrl.u32 %v319, 7
    %v321 = vsub.s32 0, %v320
    %v322 = vrot.slane %v317, %v321
    %vm324 = vcmask 261120
    %v326 = vsel %vm324, 0.0, 0
    %328 = vmatprep.subr.mxu0 0.0
    %329 = vmatpush1.msra.mxu0 0.0
    %330 = vmatprep.subr.mxu0 0.0
    %331 = vmatpush1.msra.mxu0 0.0
    %332 = vmatprep.subr.mxu0 0.0
    %333 = vmatpush1.msra.mxu0 0.0
    %334 = vmatprep.subr.mxu0 0.0
    %335 = vmatpush1.msra.mxu0 0.0
    %336 = vmatprep.subr.mxu0 0.0
    %337 = vmatpush1.msra.mxu0 0.0
    %338 = vmatprep.subr.mxu0 0.0
    %339 = vmatpush1.msra.mxu0 0.0
    %340 = vmatprep.subr.mxu0 0.0
    %341 = vmatpush1.msra.mxu0 0.0
    %342 = vmatprep.subr.mxu0 0.0
    %343 = vmatpush1.msra.mxu0 0.0
    %344 = vmatprep.subr.mxu0 0.0
    %345 = vmatpush1.msra.mxu0 0.0
    %346 = vmatprep.subr.mxu0 0.0
    %347 = vmatpush1.msra.mxu0 0.0
    %348 = vmatprep.subr.mxu0 0.0
    %349 = vmatpush1.msra.mxu0 0.0
    %350 = vmatprep.subr.mxu0 0.0
    %351 = vmatpush1.msra.mxu0 0.0
    %352 = vmatprep.subr.mxu0 0.0
    %353 = vmatpush1.msra.mxu0 %v316
    %354 = vmatprep.subr.mxu0 0.0
    %355 = vmatpush1.msra.mxu0 %v315
    %356 = vmatprep.subr.mxu0 0.0
    %357 = vmatpush1.msra.mxu0 %v314
    %358 = vmatprep.subr.mxu0 0.0
    %359 = vmatpush1.msra.mxu0 %v313
    %360 = vmatprep.subr.mxu0 0.0
    %361 = vmatpush2.msra.mxu0 0.0
    %362 = vmatprep.subr.mxu0 0.0
    %363 = vmatpush2.msra.mxu0 0.0
    %364 = vmatprep.subr.mxu0 0.0
    %365 = vmatpush2.msra.mxu0 0.0
    %366 = vmatprep.subr.mxu0 0.0
    %367 = vmatpush2.msra.mxu0 0.0
    %368 = vmatprep.subr.mxu0 0.0
    %369 = vmatpush2.msra.mxu0 0.0
    %370 = vmatprep.subr.mxu0 0.0
    %371 = vmatpush2.msra.mxu0 0.0
    %372 = vmatprep.subr.mxu0 0.0
    %373 = vmatpush2.msra.mxu0 0.0
    %374 = vmatprep.subr.mxu0 0.0
    %375 = vmatpush2.msra.mxu0 0.0
    %376 = vmatprep.subr.mxu0 0.0
    %377 = vmatpush2.msra.mxu0 0.0
    %378 = vmatprep.subr.mxu0 0.0
    %379 = vmatpush2.msra.mxu0 0.0
    %380 = vmatprep.subr.mxu0 0.0
    %381 = vmatpush2.msra.mxu0 0.0
    %382 = vmatprep.subr.mxu0 0.0
    %383 = vmatpush2.msra.mxu0 0.0
    %384 = vmatprep.subr.mxu0 0.0
    %385 = vmatpush2.msra.mxu0 0.0
    %386 = vmatprep.subr.mxu0 0.0
    %387 = vmatpush2.msra.mxu0 0.0
    %388 = vmatprep.subr.mxu0 0.0
    %389 = vmatpush2.msra.mxu0 0.0
    %390 = vmatprep.subr.mxu0 0.0
    %391 = vmatpush2.msra.mxu0 0.0
    %392 = vmatprep.mubr.f32.mxu0 0.0
    %393 = vmatmul.mubr.f32.gmra.mxu0 %v326
    %v394 = vpop.f32.mrf.mxu0
    %v395 = vadd.f32 %v322, %v394
    %v396 = vpop.f32.mrf.mxu0
    %397 = vdwg.mxu0
    %v398 = vld [vmem:[#allocation10] sm:$0xff]
    %v399 = vld [vmem:[#allocation10 + $0x8] sm:$0xff]
    %v400 = vld [vmem:[#allocation10 + $0x10] sm:$0xff]
    %v401 = vld [vmem:[#allocation10 + $0x18] sm:$0xff]
    %v402 = vld [vmem:[%s7] sm:$0x1]
    %v404 = vlaneseq
    %v405 = vshrl.u32 %v404, 7
    %v406 = vsub.s32 0, %v405
    %v407 = vrot.slane %v402, %v406
    %409 = vmatprep.subr.mxu0 0.0
    %410 = vmatpush1.msra.mxu0 0.0
    %411 = vmatprep.subr.mxu0 0.0
    %412 = vmatpush1.msra.mxu0 0.0
    %413 = vmatprep.subr.mxu0 0.0
    %414 = vmatpush1.msra.mxu0 0.0
    %415 = vmatprep.subr.mxu0 0.0
    %416 = vmatpush1.msra.mxu0 0.0
    %417 = vmatprep.subr.mxu0 0.0
    %418 = vmatpush1.msra.mxu0 0.0
    %419 = vmatprep.subr.mxu0 0.0
    %420 = vmatpush1.msra.mxu0 0.0
    %421 = vmatprep.subr.mxu0 0.0
    %422 = vmatpush1.msra.mxu0 0.0
    %423 = vmatprep.subr.mxu0 0.0
    %424 = vmatpush1.msra.mxu0 0.0
    %425 = vmatprep.subr.mxu0 0.0
    %426 = vmatpush1.msra.mxu0 0.0
    %427 = vmatprep.subr.mxu0 0.0
    %428 = vmatpush1.msra.mxu0 0.0
    %429 = vmatprep.subr.mxu0 0.0
    %430 = vmatpush1.msra.mxu0 0.0
    %431 = vmatprep.subr.mxu0 0.0
    %432 = vmatpush1.msra.mxu0 0.0
    %433 = vmatprep.subr.mxu0 0.0
    %434 = vmatpush1.msra.mxu0 %v401
    %435 = vmatprep.subr.mxu0 0.0
    %436 = vmatpush1.msra.mxu0 %v400
    %437 = vmatprep.subr.mxu0 0.0
    %438 = vmatpush1.msra.mxu0 %v399
    %439 = vmatprep.subr.mxu0 0.0
    %440 = vmatpush1.msra.mxu0 %v398
    %441 = vmatprep.subr.mxu0 0.0
    %442 = vmatpush2.msra.mxu0 0.0
    %443 = vmatprep.subr.mxu0 0.0
    %444 = vmatpush2.msra.mxu0 0.0
    %445 = vmatprep.subr.mxu0 0.0
    %446 = vmatpush2.msra.mxu0 0.0
    %447 = vmatprep.subr.mxu0 0.0
    %448 = vmatpush2.msra.mxu0 0.0
    %449 = vmatprep.subr.mxu0 0.0
    %450 = vmatpush2.msra.mxu0 0.0
    %451 = vmatprep.subr.mxu0 0.0
    %452 = vmatpush2.msra.mxu0 0.0
    %453 = vmatprep.subr.mxu0 0.0
    %454 = vmatpush2.msra.mxu0 0.0
    %455 = vmatprep.subr.mxu0 0.0
    %456 = vmatpush2.msra.mxu0 0.0
    %457 = vmatprep.subr.mxu0 0.0
    %458 = vmatpush2.msra.mxu0 0.0
    %459 = vmatprep.subr.mxu0 0.0
    %460 = vmatpush2.msra.mxu0 0.0
    %461 = vmatprep.subr.mxu0 0.0
    %462 = vmatpush2.msra.mxu0 0.0
    %463 = vmatprep.subr.mxu0 0.0
    %464 = vmatpush2.msra.mxu0 0.0
    %465 = vmatprep.subr.mxu0 0.0
    %466 = vmatpush2.msra.mxu0 0.0
    %467 = vmatprep.subr.mxu0 0.0
    %468 = vmatpush2.msra.mxu0 0.0
    %469 = vmatprep.subr.mxu0 0.0
    %470 = vmatpush2.msra.mxu0 0.0
    %471 = vmatprep.subr.mxu0 0.0
    %472 = vmatpush2.msra.mxu0 0.0
    %473 = vmatprep.mubr.f32.mxu0 0.0
    %474 = vmatmul.mubr.f32.gmra.mxu0 %v326
    %v475 = vpop.f32.mrf.mxu0
    %v476 = vadd.f32 %v407, %v475
    %v477 = vpop.f32.mrf.mxu0
    %478 = vdwg.mxu0
    %v479 = vadd.f32 %v309, %v395
    %v480 = vxor.u32 %v479, 2147483648
    %v481 = vmul.f32 %v480, 1.442695
    %v482 = vpow.pop %v481
    %v483 = vadd.f32 %v482, 1.0
    %v484 = vrcp.pop %v483
    %v485 = vmul.f32 1.0, %v484
    %487 = vrot.lane.b32.xlu0 %v395, 64
    %v488 = vpop.permute.xlu0 %487
    %v490 = vmul.f32 %v485, %v488
    %492 = vrot.lane.b32.xlu0 %v490, 64
    %v493 = vpop.permute.xlu0 %492
    %v495 = vadd.f32 %v309, %v493
    %v496 = vtanh.pop %v495
    %v497 = vsub.f32 1.0, %v485
    %499 = vrot.lane.b32.xlu0 %v496, 96
    %v500 = vpop.permute.xlu0 %499
    %v502 = vmul.f32 %v497, %v500
    %v503 = vmul.f32 %v485, 0.0
    %v504 = vadd.f32 %v502, %v503
    %506 = vrot.lane.b32.xlu0 %v476, 96
    %v507 = vpop.permute.xlu0 %506
    %v509 = vadd.f32 %v311, %v507
    %v510 = vxor.u32 %v509, 2147483648
    %v511 = vmul.f32 %v510, 1.442695
    %v512 = vpow.pop %v511
    %v513 = vadd.f32 %v512, 1.0
    %v514 = vrcp.pop %v513
    %v515 = vmul.f32 1.0, %v514
    %v516 = vadd.f32 %v312, %v507
    %v517 = vxor.u32 %v516, 2147483648
    %v518 = vmul.f32 %v517, 1.442695
    %v519 = vpow.pop %v518
    %v520 = vadd.f32 %v519, 1.0
    %v521 = vrcp.pop %v520
    %v522 = vmul.f32 1.0, %v521
    %523 = vrot.lane.b32.xlu0 %v476, 32
    %v524 = vpop.permute.xlu0 %523
    %v526 = vmul.f32 %v515, %v524
    %528 = vrot.lane.b32.xlu0 %v526, 64
    %v529 = vpop.permute.xlu0 %528
    %v531 = vadd.f32 %v312, %v529
    %v532 = vtanh.pop %v531
    %v533 = vsub.f32 1.0, %v522
    %535 = vrot.lane.b32.xlu0 %v532, 96
    %v536 = vpop.permute.xlu0 %535
    %v538 = vmul.f32 %v533, %v536
    %v539 = vmul.f32 %v522, 0.0
    %v540 = vadd.f32 %v538, %v539
    %v541 = vld [vmem:[%s1] sm:$0xff]
    %s542 = scalar_lea.vmem %s1, 56
    %v543 = vld [vmem:[%s542] sm:$0xff]
    %545 = vset.pattern.permute.xlu0 0
    %546 = vperm.xlu0 %545, %v541
    %v547 = vpop.permute.xlu0 %546
    %v549 = vmul.f32 %v547, %v504
    %v550 = vsub.f32 1.0, %v541
    %552 = vset.pattern.permute.xlu0 0
    %553 = vperm.xlu0 %552, %v550
    %v554 = vpop.permute.xlu0 %553
    %v556 = vmul.f32 %v554, 0.0
    %v557 = vadd.f32 %v549, %v556
    %559 = vset.pattern.permute.xlu0 0
    %560 = vperm.xlu0 %559, %v543
    %v561 = vpop.permute.xlu0 %560
    %v563 = vmul.f32 %v561, %v540
    %v564 = vsub.f32 1.0, %v543
    %566 = vset.pattern.permute.xlu0 0
    %567 = vperm.xlu0 %566, %v564
    %v568 = vpop.permute.xlu0 %567
    %v570 = vmul.f32 %v568, 0.0
    %v571 = vadd.f32 %v563, %v570
    %573 = vrot.lane.b32.xlu0 %v549, 96
    %v574 = vpop.permute.xlu0 %573
    %576 = vst.msk [vmem:[#allocation3] sm:$0xff] %vm324, %v574
    %s577 = scalar_lea.vmem [#allocation4], 56
    %578 = vst.msk [vmem:[%s577] sm:$0xff] %vm324, %v563
    %s579 = scalar_lea.vmem [#allocation2], 16
    %v580 = vld [vmem:[%s579] sm:$0xff]
    %s581 = scalar_lea.vmem [#allocation2], 96
    %v582 = vld [vmem:[%s581] sm:$0xff]
    %v583 = vld [vmem:[%s581 + $0x8] sm:$0xff]
    %v584 = vld [vmem:[#allocation8] sm:$0xff]
    %v585 = vld [vmem:[#allocation8 + $0x8] sm:$0xff]
    %v586 = vld [vmem:[#allocation8 + $0x10] sm:$0xff]
    %v587 = vld [vmem:[#allocation8 + $0x18] sm:$0xff]
    %v588 = vld [vmem:[%s5] sm:$0x1]
    %v590 = vlaneseq
    %v591 = vshrl.u32 %v590, 7
    %v592 = vsub.s32 0, %v591
    %v593 = vrot.slane %v588, %v592
    %596 = vrot.lane.b32.xlu0 %v557, 96
    %v597 = vpop.permute.xlu0 %596
    %v598 = vsel %vm324, %v597, 0
    %600 = vmatprep.subr.mxu0 0.0
    %601 = vmatpush1.msra.mxu0 0.0
    %602 = vmatprep.subr.mxu0 0.0
    %603 = vmatpush1.msra.mxu0 0.0
    %604 = vmatprep.subr.mxu0 0.0
    %605 = vmatpush1.msra.mxu0 0.0
    %606 = vmatprep.subr.mxu0 0.0
    %607 = vmatpush1.msra.mxu0 0.0
    %608 = vmatprep.subr.mxu0 0.0
    %609 = vmatpush1.msra.mxu0 0.0
    %610 = vmatprep.subr.mxu0 0.0
    %611 = vmatpush1.msra.mxu0 0.0
    %612 = vmatprep.subr.mxu0 0.0
    %613 = vmatpush1.msra.mxu0 0.0
    %614 = vmatprep.subr.mxu0 0.0
    %615 = vmatpush1.msra.mxu0 0.0
    %616 = vmatprep.subr.mxu0 0.0
    %617 = vmatpush1.msra.mxu0 0.0
    %618 = vmatprep.subr.mxu0 0.0
    %619 = vmatpush1.msra.mxu0 0.0
    %620 = vmatprep.subr.mxu0 0.0
    %621 = vmatpush1.msra.mxu0 0.0
    %622 = vmatprep.subr.mxu0 0.0
    %623 = vmatpush1.msra.mxu0 0.0
    %624 = vmatprep.subr.mxu0 0.0
    %625 = vmatpush1.msra.mxu0 %v587
    %626 = vmatprep.subr.mxu0 0.0
    %627 = vmatpush1.msra.mxu0 %v586
    %628 = vmatprep.subr.mxu0 0.0
    %629 = vmatpush1.msra.mxu0 %v585
    %630 = vmatprep.subr.mxu0 0.0
    %631 = vmatpush1.msra.mxu0 %v584
    %632 = vmatprep.subr.mxu0 0.0
    %633 = vmatpush2.msra.mxu0 0.0
    %634 = vmatprep.subr.mxu0 0.0
    %635 = vmatpush2.msra.mxu0 0.0
    %636 = vmatprep.subr.mxu0 0.0
    %637 = vmatpush2.msra.mxu0 0.0
    %638 = vmatprep.subr.mxu0 0.0
    %639 = vmatpush2.msra.mxu0 0.0
    %640 = vmatprep.subr.mxu0 0.0
    %641 = vmatpush2.msra.mxu0 0.0
    %642 = vmatprep.subr.mxu0 0.0
    %643 = vmatpush2.msra.mxu0 0.0
    %644 = vmatprep.subr.mxu0 0.0
    %645 = vmatpush2.msra.mxu0 0.0
    %646 = vmatprep.subr.mxu0 0.0
    %647 = vmatpush2.msra.mxu0 0.0
    %648 = vmatprep.subr.mxu0 0.0
    %649 = vmatpush2.msra.mxu0 0.0
    %650 = vmatprep.subr.mxu0 0.0
    %651 = vmatpush2.msra.mxu0 0.0
    %652 = vmatprep.subr.mxu0 0.0
    %653 = vmatpush2.msra.mxu0 0.0
    %654 = vmatprep.subr.mxu0 0.0
    %655 = vmatpush2.msra.mxu0 0.0
    %656 = vmatprep.subr.mxu0 0.0
    %657 = vmatpush2.msra.mxu0 0.0
    %658 = vmatprep.subr.mxu0 0.0
    %659 = vmatpush2.msra.mxu0 0.0
    %660 = vmatprep.subr.mxu0 0.0
    %661 = vmatpush2.msra.mxu0 0.0
    %662 = vmatprep.subr.mxu0 0.0
    %663 = vmatpush2.msra.mxu0 0.0
    %664 = vmatprep.mubr.f32.mxu0 0.0
    %665 = vmatmul.mubr.f32.gmra.mxu0 %v598
    %v666 = vpop.f32.mrf.mxu0
    %v667 = vadd.f32 %v593, %v666
    %v668 = vpop.f32.mrf.mxu0
    %669 = vdwg.mxu0
    %v670 = vld [vmem:[#allocation10] sm:$0xff]
    %v671 = vld [vmem:[#allocation10 + $0x8] sm:$0xff]
    %v672 = vld [vmem:[#allocation10 + $0x10] sm:$0xff]
    %v673 = vld [vmem:[#allocation10 + $0x18] sm:$0xff]
    %v674 = vld [vmem:[%s7] sm:$0x1]
    %v676 = vlaneseq
    %v677 = vshrl.u32 %v676, 7
    %v678 = vsub.s32 0, %v677
    %v679 = vrot.slane %v674, %v678
    %v682 = vsel %vm324, %v571, 0
    %684 = vmatprep.subr.mxu0 0.0
    %685 = vmatpush1.msra.mxu0 0.0
    %686 = vmatprep.subr.mxu0 0.0
    %687 = vmatpush1.msra.mxu0 0.0
    %688 = vmatprep.subr.mxu0 0.0
    %689 = vmatpush1.msra.mxu0 0.0
    %690 = vmatprep.subr.mxu0 0.0
    %691 = vmatpush1.msra.mxu0 0.0
    %692 = vmatprep.subr.mxu0 0.0
    %693 = vmatpush1.msra.mxu0 0.0
    %694 = vmatprep.subr.mxu0 0.0
    %695 = vmatpush1.msra.mxu0 0.0
    %696 = vmatprep.subr.mxu0 0.0
    %697 = vmatpush1.msra.mxu0 0.0
    %698 = vmatprep.subr.mxu0 0.0
    %699 = vmatpush1.msra.mxu0 0.0
    %700 = vmatprep.subr.mxu0 0.0
    %701 = vmatpush1.msra.mxu0 0.0
    %702 = vmatprep.subr.mxu0 0.0
    %703 = vmatpush1.msra.mxu0 0.0
    %704 = vmatprep.subr.mxu0 0.0
    %705 = vmatpush1.msra.mxu0 0.0
    %706 = vmatprep.subr.mxu0 0.0
    %707 = vmatpush1.msra.mxu0 0.0
    %708 = vmatprep.subr.mxu0 0.0
    %709 = vmatpush1.msra.mxu0 %v673
    %710 = vmatprep.subr.mxu0 0.0
    %711 = vmatpush1.msra.mxu0 %v672
    %712 = vmatprep.subr.mxu0 0.0
    %713 = vmatpush1.msra.mxu0 %v671
    %714 = vmatprep.subr.mxu0 0.0
    %715 = vmatpush1.msra.mxu0 %v670
    %716 = vmatprep.subr.mxu0 0.0
    %717 = vmatpush2.msra.mxu0 0.0
    %718 = vmatprep.subr.mxu0 0.0
    %719 = vmatpush2.msra.mxu0 0.0
    %720 = vmatprep.subr.mxu0 0.0
    %721 = vmatpush2.msra.mxu0 0.0
    %722 = vmatprep.subr.mxu0 0.0
    %723 = vmatpush2.msra.mxu0 0.0
    %724 = vmatprep.subr.mxu0 0.0
    %725 = vmatpush2.msra.mxu0 0.0
    %726 = vmatprep.subr.mxu0 0.0
    %727 = vmatpush2.msra.mxu0 0.0
    %728 = vmatprep.subr.mxu0 0.0
    %729 = vmatpush2.msra.mxu0 0.0
    %730 = vmatprep.subr.mxu0 0.0
    %731 = vmatpush2.msra.mxu0 0.0
    %732 = vmatprep.subr.mxu0 0.0
    %733 = vmatpush2.msra.mxu0 0.0
    %734 = vmatprep.subr.mxu0 0.0
    %735 = vmatpush2.msra.mxu0 0.0
    %736 = vmatprep.subr.mxu0 0.0
    %737 = vmatpush2.msra.mxu0 0.0
    %738 = vmatprep.subr.mxu0 0.0
    %739 = vmatpush2.msra.mxu0 0.0
    %740 = vmatprep.subr.mxu0 0.0
    %741 = vmatpush2.msra.mxu0 0.0
    %742 = vmatprep.subr.mxu0 0.0
    %743 = vmatpush2.msra.mxu0 0.0
    %744 = vmatprep.subr.mxu0 0.0
    %745 = vmatpush2.msra.mxu0 0.0
    %746 = vmatprep.subr.mxu0 0.0
    %747 = vmatpush2.msra.mxu0 0.0
    %748 = vmatprep.mubr.f32.mxu0 0.0
    %749 = vmatmul.mubr.f32.gmra.mxu0 %v682
    %v750 = vpop.f32.mrf.mxu0
    %v751 = vadd.f32 %v679, %v750
    %v752 = vpop.f32.mrf.mxu0
    %753 = vdwg.mxu0
    %v754 = vadd.f32 %v580, %v667
    %v755 = vxor.u32 %v754, 2147483648
    %v756 = vmul.f32 %v755, 1.442695
    %v757 = vpow.pop %v756
    %v758 = vadd.f32 %v757, 1.0
    %v759 = vrcp.pop %v758
    %v760 = vmul.f32 1.0, %v759
    %762 = vrot.lane.b32.xlu0 %v667, 64
    %v763 = vpop.permute.xlu0 %762
    %v765 = vmul.f32 %v760, %v763
    %767 = vrot.lane.b32.xlu0 %v765, 64
    %v768 = vpop.permute.xlu0 %767
    %v770 = vadd.f32 %v580, %v768
    %v771 = vtanh.pop %v770
    %v772 = vsub.f32 1.0, %v760
    %774 = vrot.lane.b32.xlu0 %v771, 96
    %v775 = vpop.permute.xlu0 %774
    %v777 = vmul.f32 %v772, %v775
    %v778 = vmul.f32 %v760, %v557
    %v779 = vadd.f32 %v777, %v778
    %781 = vrot.lane.b32.xlu0 %v751, 96
    %v782 = vpop.permute.xlu0 %781
    %v784 = vadd.f32 %v582, %v782
    %v785 = vxor.u32 %v784, 2147483648
    %v786 = vmul.f32 %v785, 1.442695
    %v787 = vpow.pop %v786
    %v788 = vadd.f32 %v787, 1.0
    %v789 = vrcp.pop %v788
    %v790 = vmul.f32 1.0, %v789
    %v791 = vadd.f32 %v583, %v782
    %v792 = vxor.u32 %v791, 2147483648
    %v793 = vmul.f32 %v792, 1.442695
    %v794 = vpow.pop %v793
    %v795 = vadd.f32 %v794, 1.0
    %v796 = vrcp.pop %v795
    %v797 = vmul.f32 1.0, %v796
    %798 = vrot.lane.b32.xlu0 %v751, 32
    %v799 = vpop.permute.xlu0 %798
    %v801 = vmul.f32 %v790, %v799
    %803 = vrot.lane.b32.xlu0 %v801, 64
    %v804 = vpop.permute.xlu0 %803
    %v806 = vadd.f32 %v583, %v804
    %v807 = vtanh.pop %v806
    %v808 = vsub.f32 1.0, %v797
    %810 = vrot.lane.b32.xlu0 %v807, 96
    %v811 = vpop.permute.xlu0 %810
    %v813 = vmul.f32 %v808, %v811
    %v814 = vmul.f32 %v797, %v571
    %v815 = vadd.f32 %v813, %v814
    %s816 = scalar_lea.vmem %s1, 8
    %v817 = vld [vmem:[%s816] sm:$0xff]
    %s818 = scalar_lea.vmem %s1, 48
    %v819 = vld [vmem:[%s818] sm:$0xff]
    %821 = vset.pattern.permute.xlu0 0
    %822 = vperm.xlu0 %821, %v817
    %v823 = vpop.permute.xlu0 %822
    %v825 = vmul.f32 %v823, %v779
    %v826 = vsub.f32 1.0, %v817
    %828 = vset.pattern.permute.xlu0 0
    %829 = vperm.xlu0 %828, %v826
    %v830 = vpop.permute.xlu0 %829
    %v832 = vmul.f32 %v830, %v557
    %v833 = vadd.f32 %v825, %v832
    %835 = vset.pattern.permute.xlu0 0
    %836 = vperm.xlu0 %835, %v819
    %v837 = vpop.permute.xlu0 %836
    %v839 = vmul.f32 %v837, %v815
    %v840 = vsub.f32 1.0, %v819
    %842 = vset.pattern.permute.xlu0 0
    %843 = vperm.xlu0 %842, %v840
    %v844 = vpop.permute.xlu0 %843
    %v846 = vmul.f32 %v844, %v571
    %v847 = vadd.f32 %v839, %v846
    %849 = vrot.lane.b32.xlu0 %v825, 96
    %v850 = vpop.permute.xlu0 %849
    %s852 = scalar_lea.vmem [#allocation3], 8
    %853 = vst.msk [vmem:[%s852] sm:$0xff] %vm324, %v850
    %s854 = scalar_lea.vmem [#allocation4], 48
    %855 = vst.msk [vmem:[%s854] sm:$0xff] %vm324, %v839
    %s856 = scalar_lea.vmem [#allocation2], 32
    %v857 = vld [vmem:[%s856] sm:$0xff]
    %s858 = scalar_lea.vmem [#allocation2], 80
    %v859 = vld [vmem:[%s858] sm:$0xff]
    %v860 = vld [vmem:[%s858 + $0x8] sm:$0xff]
    %v861 = vld [vmem:[#allocation8] sm:$0xff]
    %v862 = vld [vmem:[#allocation8 + $0x8] sm:$0xff]
    %v863 = vld [vmem:[#allocation8 + $0x10] sm:$0xff]
    %v864 = vld [vmem:[#allocation8 + $0x18] sm:$0xff]
    %v865 = vld [vmem:[%s5] sm:$0x1]
    %v867 = vlaneseq
    %v868 = vshrl.u32 %v867, 7
    %v869 = vsub.s32 0, %v868
    %v870 = vrot.slane %v865, %v869
    %873 = vrot.lane.b32.xlu0 %v833, 96
    %v874 = vpop.permute.xlu0 %873
    %v875 = vsel %vm324, %v874, 0
    %877 = vmatprep.subr.mxu0 0.0
    %878 = vmatpush1.msra.mxu0 0.0
    %879 = vmatprep.subr.mxu0 0.0
    %880 = vmatpush1.msra.mxu0 0.0
    %881 = vmatprep.subr.mxu0 0.0
    %882 = vmatpush1.msra.mxu0 0.0
    %883 = vmatprep.subr.mxu0 0.0
    %884 = vmatpush1.msra.mxu0 0.0
    %885 = vmatprep.subr.mxu0 0.0
    %886 = vmatpush1.msra.mxu0 0.0
    %887 = vmatprep.subr.mxu0 0.0
    %888 = vmatpush1.msra.mxu0 0.0
    %889 = vmatprep.subr.mxu0 0.0
    %890 = vmatpush1.msra.mxu0 0.0
    %891 = vmatprep.subr.mxu0 0.0
    %892 = vmatpush1.msra.mxu0 0.0
    %893 = vmatprep.subr.mxu0 0.0
    %894 = vmatpush1.msra.mxu0 0.0
    %895 = vmatprep.subr.mxu0 0.0
    %896 = vmatpush1.msra.mxu0 0.0
    %897 = vmatprep.subr.mxu0 0.0
    %898 = vmatpush1.msra.mxu0 0.0
    %899 = vmatprep.subr.mxu0 0.0
    %900 = vmatpush1.msra.mxu0 0.0
    %901 = vmatprep.subr.mxu0 0.0
    %902 = vmatpush1.msra.mxu0 %v864
    %903 = vmatprep.subr.mxu0 0.0
    %904 = vmatpush1.msra.mxu0 %v863
    %905 = vmatprep.subr.mxu0 0.0
    %906 = vmatpush1.msra.mxu0 %v862
    %907 = vmatprep.subr.mxu0 0.0
    %908 = vmatpush1.msra.mxu0 %v861
    %909 = vmatprep.subr.mxu0 0.0
    %910 = vmatpush2.msra.mxu0 0.0
    %911 = vmatprep.subr.mxu0 0.0
    %912 = vmatpush2.msra.mxu0 0.0
    %913 = vmatprep.subr.mxu0 0.0
    %914 = vmatpush2.msra.mxu0 0.0
    %915 = vmatprep.subr.mxu0 0.0
    %916 = vmatpush2.msra.mxu0 0.0
    %917 = vmatprep.subr.mxu0 0.0
    %918 = vmatpush2.msra.mxu0 0.0
    %919 = vmatprep.subr.mxu0 0.0
    %920 = vmatpush2.msra.mxu0 0.0
    %921 = vmatprep.subr.mxu0 0.0
    %922 = vmatpush2.msra.mxu0 0.0
    %923 = vmatprep.subr.mxu0 0.0
    %924 = vmatpush2.msra.mxu0 0.0
    %925 = vmatprep.subr.mxu0 0.0
    %926 = vmatpush2.msra.mxu0 0.0
    %927 = vmatprep.subr.mxu0 0.0
    %928 = vmatpush2.msra.mxu0 0.0
    %929 = vmatprep.subr.mxu0 0.0
    %930 = vmatpush2.msra.mxu0 0.0
    %931 = vmatprep.subr.mxu0 0.0
    %932 = vmatpush2.msra.mxu0 0.0
    %933 = vmatprep.subr.mxu0 0.0
    %934 = vmatpush2.msra.mxu0 0.0
    %935 = vmatprep.subr.mxu0 0.0
    %936 = vmatpush2.msra.mxu0 0.0
    %937 = vmatprep.subr.mxu0 0.0
    %938 = vmatpush2.msra.mxu0 0.0
    %939 = vmatprep.subr.mxu0 0.0
    %940 = vmatpush2.msra.mxu0 0.0
    %941 = vmatprep.mubr.f32.mxu0 0.0
    %942 = vmatmul.mubr.f32.gmra.mxu0 %v875
    %v943 = vpop.f32.mrf.mxu0
    %v944 = vadd.f32 %v870, %v943
    %v945 = vpop.f32.mrf.mxu0
    %946 = vdwg.mxu0
    %v947 = vld [vmem:[#allocation10] sm:$0xff]
    %v948 = vld [vmem:[#allocation10 + $0x8] sm:$0xff]
    %v949 = vld [vmem:[#allocation10 + $0x10] sm:$0xff]
    %v950 = vld [vmem:[#allocation10 + $0x18] sm:$0xff]
    %v951 = vld [vmem:[%s7] sm:$0x1]
    %v953 = vlaneseq
    %v954 = vshrl.u32 %v953, 7
    %v955 = vsub.s32 0, %v954
    %v956 = vrot.slane %v951, %v955
    %v959 = vsel %vm324, %v847, 0
    %961 = vmatprep.subr.mxu0 0.0
    %962 = vmatpush1.msra.mxu0 0.0
    %963 = vmatprep.subr.mxu0 0.0
    %964 = vmatpush1.msra.mxu0 0.0
    %965 = vmatprep.subr.mxu0 0.0
    %966 = vmatpush1.msra.mxu0 0.0
    %967 = vmatprep.subr.mxu0 0.0
    %968 = vmatpush1.msra.mxu0 0.0
    %969 = vmatprep.subr.mxu0 0.0
    %970 = vmatpush1.msra.mxu0 0.0
    %971 = vmatprep.subr.mxu0 0.0
    %972 = vmatpush1.msra.mxu0 0.0
    %973 = vmatprep.subr.mxu0 0.0
    %974 = vmatpush1.msra.mxu0 0.0
    %975 = vmatprep.subr.mxu0 0.0
    %976 = vmatpush1.msra.mxu0 0.0
    %977 = vmatprep.subr.mxu0 0.0
    %978 = vmatpush1.msra.mxu0 0.0
    %979 = vmatprep.subr.mxu0 0.0
    %980 = vmatpush1.msra.mxu0 0.0
    %981 = vmatprep.subr.mxu0 0.0
    %982 = vmatpush1.msra.mxu0 0.0
    %983 = vmatprep.subr.mxu0 0.0
    %984 = vmatpush1.msra.mxu0 0.0
    %985 = vmatprep.subr.mxu0 0.0
    %986 = vmatpush1.msra.mxu0 %v950
    %987 = vmatprep.subr.mxu0 0.0
    %988 = vmatpush1.msra.mxu0 %v949
    %989 = vmatprep.subr.mxu0 0.0
    %990 = vmatpush1.msra.mxu0 %v948
    %991 = vmatprep.subr.mxu0 0.0
    %992 = vmatpush1.msra.mxu0 %v947
    %993 = vmatprep.subr.mxu0 0.0
    %994 = vmatpush2.msra.mxu0 0.0
    %995 = vmatprep.subr.mxu0 0.0
    %996 = vmatpush2.msra.mxu0 0.0
    %997 = vmatprep.subr.mxu0 0.0
    %998 = vmatpush2.msra.mxu0 0.0
    %999 = vmatprep.subr.mxu0 0.0
    %1000 = vmatpush2.msra.mxu0 0.0
    %1001 = vmatprep.subr.mxu0 0.0
    %1002 = vmatpush2.msra.mxu0 0.0
    %1003 = vmatprep.subr.mxu0 0.0
    %1004 = vmatpush2.msra.mxu0 0.0
    %1005 = vmatprep.subr.mxu0 0.0
    %1006 = vmatpush2.msra.mxu0 0.0
    %1007 = vmatprep.subr.mxu0 0.0
    %1008 = vmatpush2.msra.mxu0 0.0
    %1009 = vmatprep.subr.mxu0 0.0
    %1010 = vmatpush2.msra.mxu0 0.0
    %1011 = vmatprep.subr.mxu0 0.0
    %1012 = vmatpush2.msra.mxu0 0.0
    %1013 = vmatprep.subr.mxu0 0.0
    %1014 = vmatpush2.msra.mxu0 0.0
    %1015 = vmatprep.subr.mxu0 0.0
    %1016 = vmatpush2.msra.mxu0 0.0
    %1017 = vmatprep.subr.mxu0 0.0
    %1018 = vmatpush2.msra.mxu0 0.0
    %1019 = vmatprep.subr.mxu0 0.0
    %1020 = vmatpush2.msra.mxu0 0.0
    %1021 = vmatprep.subr.mxu0 0.0
    %1022 = vmatpush2.msra.mxu0 0.0
    %1023 = vmatprep.subr.mxu0 0.0
    %1024 = vmatpush2.msra.mxu0 0.0
    %1025 = vmatprep.mubr.f32.mxu0 0.0
    %1026 = vmatmul.mubr.f32.gmra.mxu0 %v959
    %v1027 = vpop.f32.mrf.mxu0
    %v1028 = vadd.f32 %v956, %v1027
    %v1029 = vpop.f32.mrf.mxu0
    %1030 = vdwg.mxu0
    %v1031 = vadd.f32 %v857, %v944
    %v1032 = vxor.u32 %v1031, 2147483648
    %v1033 = vmul.f32 %v1032, 1.442695
    %v1034 = vpow.pop %v1033
    %v1035 = vadd.f32 %v1034, 1.0
    %v1036 = vrcp.pop %v1035
    %v1037 = vmul.f32 1.0, %v1036
    %1039 = vrot.lane.b32.xlu0 %v944, 64
    %v1040 = vpop.permute.xlu0 %1039
    %v1042 = vmul.f32 %v1037, %v1040
    %1044 = vrot.lane.b32.xlu0 %v1042, 64
    %v1045 = vpop.permute.xlu0 %1044
    %v1047 = vadd.f32 %v857, %v1045
    %v1048 = vtanh.pop %v1047
    %v1049 = vsub.f32 1.0, %v1037
    %1051 = vrot.lane.b32.xlu0 %v1048, 96
    %v1052 = vpop.permute.xlu0 %1051
    %v1054 = vmul.f32 %v1049, %v1052
    %v1055 = vmul.f32 %v1037, %v833
    %v1056 = vadd.f32 %v1054, %v1055
    %1058 = vrot.lane.b32.xlu0 %v1028, 96
    %v1059 = vpop.permute.xlu0 %1058
    %v1061 = vadd.f32 %v859, %v1059
    %v1062 = vxor.u32 %v1061, 2147483648
    %v1063 = vmul.f32 %v1062, 1.442695
    %v1064 = vpow.pop %v1063
    %v1065 = vadd.f32 %v1064, 1.0
    %v1066 = vrcp.pop %v1065
    %v1067 = vmul.f32 1.0, %v1066
    %v1068 = vadd.f32 %v860, %v1059
    %v1069 = vxor.u32 %v1068, 2147483648
    %v1070 = vmul.f32 %v1069, 1.442695
    %v1071 = vpow.pop %v1070
    %v1072 = vadd.f32 %v1071, 1.0
    %v1073 = vrcp.pop %v1072
    %v1074 = vmul.f32 1.0, %v1073
    %1075 = vrot.lane.b32.xlu0 %v1028, 32
    %v1076 = vpop.permute.xlu0 %1075
    %v1078 = vmul.f32 %v1067, %v1076
    %1080 = vrot.lane.b32.xlu0 %v1078, 64
    %v1081 = vpop.permute.xlu0 %1080
    %v1083 = vadd.f32 %v860, %v1081
    %v1084 = vtanh.pop %v1083
    %v1085 = vsub.f32 1.0, %v1074
    %1087 = vrot.lane.b32.xlu0 %v1084, 96
    %v1088 = vpop.permute.xlu0 %1087
    %v1090 = vmul.f32 %v1085, %v1088
    %v1091 = vmul.f32 %v1074, %v847
    %v1092 = vadd.f32 %v1090, %v1091
    %s1093 = scalar_lea.vmem %s1, 16
    %v1094 = vld [vmem:[%s1093] sm:$0xff]
    %s1095 = scalar_lea.vmem %s1, 40
    %v1096 = vld [vmem:[%s1095] sm:$0xff]
    %1098 = vset.pattern.permute.xlu0 0
    %1099 = vperm.xlu0 %1098, %v1094
    %v1100 = vpop.permute.xlu0 %1099
    %v1102 = vmul.f32 %v1100, %v1056
    %v1103 = vsub.f32 1.0, %v1094
    %1105 = vset.pattern.permute.xlu0 0
    %1106 = vperm.xlu0 %1105, %v1103
    %v1107 = vpop.permute.xlu0 %1106
    %v1109 = vmul.f32 %v1107, %v833
    %v1110 = vadd.f32 %v1102, %v1109
    %1112 = vset.pattern.permute.xlu0 0
    %1113 = vperm.xlu0 %1112, %v1096
    %v1114 = vpop.permute.xlu0 %1113
    %v1116 = vmul.f32 %v1114, %v1092
    %v1117 = vsub.f32 1.0, %v1096
    %1119 = vset.pattern.permute.xlu0 0
    %1120 = vperm.xlu0 %1119, %v1117
    %v1121 = vpop.permute.xlu0 %1120
    %v1123 = vmul.f32 %v1121, %v847
    %v1124 = vadd.f32 %v1116, %v1123
    %1126 = vrot.lane.b32.xlu0 %v1102, 96
    %v1127 = vpop.permute.xlu0 %1126
    %s1129 = scalar_lea.vmem [#allocation3], 16
    %1130 = vst.msk [vmem:[%s1129] sm:$0xff] %vm324, %v1127
    %s1131 = scalar_lea.vmem [#allocation4], 40
    %1132 = vst.msk [vmem:[%s1131] sm:$0xff] %vm324, %v1116
    %s1133 = scalar_lea.vmem [#allocation2], 48
    %v1134 = vld [vmem:[%s1133] sm:$0xff]
    %s1135 = scalar_lea.vmem [#allocation2], 64
    %v1136 = vld [vmem:[%s1135] sm:$0xff]
    %v1137 = vld [vmem:[%s1135 + $0x8] sm:$0xff]
    %v1138 = vld [vmem:[#allocation8] sm:$0xff]
    %v1139 = vld [vmem:[#allocation8 + $0x8] sm:$0xff]
    %v1140 = vld [vmem:[#allocation8 + $0x10] sm:$0xff]
    %v1141 = vld [vmem:[#allocation8 + $0x18] sm:$0xff]
    %v1142 = vld [vmem:[%s5] sm:$0x1]
    %v1144 = vlaneseq
    %v1145 = vshrl.u32 %v1144, 7
    %v1146 = vsub.s32 0, %v1145
    %v1147 = vrot.slane %v1142, %v1146
    %1150 = vrot.lane.b32.xlu0 %v1110, 96
    %v1151 = vpop.permute.xlu0 %1150
    %v1152 = vsel %vm324, %v1151, 0
    %1154 = vmatprep.subr.mxu0 0.0
    %1155 = vmatpush1.msra.mxu0 0.0
    %1156 = vmatprep.subr.mxu0 0.0
    %1157 = vmatpush1.msra.mxu0 0.0
    %1158 = vmatprep.subr.mxu0 0.0
    %1159 = vmatpush1.msra.mxu0 0.0
    %1160 = vmatprep.subr.mxu0 0.0
    %1161 = vmatpush1.msra.mxu0 0.0
    %1162 = vmatprep.subr.mxu0 0.0
    %1163 = vmatpush1.msra.mxu0 0.0
    %1164 = vmatprep.subr.mxu0 0.0
    %1165 = vmatpush1.msra.mxu0 0.0
    %1166 = vmatprep.subr.mxu0 0.0
    %1167 = vmatpush1.msra.mxu0 0.0
    %1168 = vmatprep.subr.mxu0 0.0
    %1169 = vmatpush1.msra.mxu0 0.0
    %1170 = vmatprep.subr.mxu0 0.0
    %1171 = vmatpush1.msra.mxu0 0.0
    %1172 = vmatprep.subr.mxu0 0.0
    %1173 = vmatpush1.msra.mxu0 0.0
    %1174 = vmatprep.subr.mxu0 0.0
    %1175 = vmatpush1.msra.mxu0 0.0
    %1176 = vmatprep.subr.mxu0 0.0
    %1177 = vmatpush1.msra.mxu0 0.0
    %1178 = vmatprep.subr.mxu0 0.0
    %1179 = vmatpush1.msra.mxu0 %v1141
    %1180 = vmatprep.subr.mxu0 0.0
    %1181 = vmatpush1.msra.mxu0 %v1140
    %1182 = vmatprep.subr.mxu0 0.0
    %1183 = vmatpush1.msra.mxu0 %v1139
    %1184 = vmatprep.subr.mxu0 0.0
    %1185 = vmatpush1.msra.mxu0 %v1138
    %1186 = vmatprep.subr.mxu0 0.0
    %1187 = vmatpush2.msra.mxu0 0.0
    %1188 = vmatprep.subr.mxu0 0.0
    %1189 = vmatpush2.msra.mxu0 0.0
    %1190 = vmatprep.subr.mxu0 0.0
    %1191 = vmatpush2.msra.mxu0 0.0
    %1192 = vmatprep.subr.mxu0 0.0
    %1193 = vmatpush2.msra.mxu0 0.0
    %1194 = vmatprep.subr.mxu0 0.0
    %1195 = vmatpush2.msra.mxu0 0.0
    %1196 = vmatprep.subr.mxu0 0.0
    %1197 = vmatpush2.msra.mxu0 0.0
    %1198 = vmatprep.subr.mxu0 0.0
    %1199 = vmatpush2.msra.mxu0 0.0
    %1200 = vmatprep.subr.mxu0 0.0
    %1201 = vmatpush2.msra.mxu0 0.0
    %1202 = vmatprep.subr.mxu0 0.0
    %1203 = vmatpush2.msra.mxu0 0.0
    %1204 = vmatprep.subr.mxu0 0.0
    %1205 = vmatpush2.msra.mxu0 0.0
    %1206 = vmatprep.subr.mxu0 0.0
    %1207 = vmatpush2.msra.mxu0 0.0
    %1208 = vmatprep.subr.mxu0 0.0
    %1209 = vmatpush2.msra.mxu0 0.0
    %1210 = vmatprep.subr.mxu0 0.0
    %1211 = vmatpush2.msra.mxu0 0.0
    %1212 = vmatprep.subr.mxu0 0.0
    %1213 = vmatpush2.msra.mxu0 0.0
    %1214 = vmatprep.subr.mxu0 0.0
    %1215 = vmatpush2.msra.mxu0 0.0
    %1216 = vmatprep.subr.mxu0 0.0
    %1217 = vmatpush2.msra.mxu0 0.0
    %1218 = vmatprep.mubr.f32.mxu0 0.0
    %1219 = vmatmul.mubr.f32.gmra.mxu0 %v1152
    %v1220 = vpop.f32.mrf.mxu0
    %v1221 = vadd.f32 %v1147, %v1220
    %v1222 = vpop.f32.mrf.mxu0
    %1223 = vdwg.mxu0
    %v1224 = vld [vmem:[#allocation10] sm:$0xff]
    %v1225 = vld [vmem:[#allocation10 + $0x8] sm:$0xff]
    %v1226 = vld [vmem:[#allocation10 + $0x10] sm:$0xff]
    %v1227 = vld [vmem:[#allocation10 + $0x18] sm:$0xff]
    %v1228 = vld [vmem:[%s7] sm:$0x1]
    %v1230 = vlaneseq
    %v1231 = vshrl.u32 %v1230, 7
    %v1232 = vsub.s32 0, %v1231
    %v1233 = vrot.slane %v1228, %v1232
    %v1236 = vsel %vm324, %v1124, 0
    %1238 = vmatprep.subr.mxu0 0.0
    %1239 = vmatpush1.msra.mxu0 0.0
    %1240 = vmatprep.subr.mxu0 0.0
    %1241 = vmatpush1.msra.mxu0 0.0
    %1242 = vmatprep.subr.mxu0 0.0
    %1243 = vmatpush1.msra.mxu0 0.0
    %1244 = vmatprep.subr.mxu0 0.0
    %1245 = vmatpush1.msra.mxu0 0.0
    %1246 = vmatprep.subr.mxu0 0.0
    %1247 = vmatpush1.msra.mxu0 0.0
    %1248 = vmatprep.subr.mxu0 0.0
    %1249 = vmatpush1.msra.mxu0 0.0
    %1250 = vmatprep.subr.mxu0 0.0
    %1251 = vmatpush1.msra.mxu0 0.0
    %1252 = vmatprep.subr.mxu0 0.0
    %1253 = vmatpush1.msra.mxu0 0.0
    %1254 = vmatprep.subr.mxu0 0.0
    %1255 = vmatpush1.msra.mxu0 0.0
    %1256 = vmatprep.subr.mxu0 0.0
    %1257 = vmatpush1.msra.mxu0 0.0
    %1258 = vmatprep.subr.mxu0 0.0
    %1259 = vmatpush1.msra.mxu0 0.0
    %1260 = vmatprep.subr.mxu0 0.0
    %1261 = vmatpush1.msra.mxu0 0.0
    %1262 = vmatprep.subr.mxu0 0.0
    %1263 = vmatpush1.msra.mxu0 %v1227
    %1264 = vmatprep.subr.mxu0 0.0
    %1265 = vmatpush1.msra.mxu0 %v1226
    %1266 = vmatprep.subr.mxu0 0.0
    %1267 = vmatpush1.msra.mxu0 %v1225
    %1268 = vmatprep.subr.mxu0 0.0
    %1269 = vmatpush1.msra.mxu0 %v1224
    %1270 = vmatprep.subr.mxu0 0.0
    %1271 = vmatpush2.msra.mxu0 0.0
    %1272 = vmatprep.subr.mxu0 0.0
    %1273 = vmatpush2.msra.mxu0 0.0
    %1274 = vmatprep.subr.mxu0 0.0
    %1275 = vmatpush2.msra.mxu0 0.0
    %1276 = vmatprep.subr.mxu0 0.0
    %1277 = vmatpush2.msra.mxu0 0.0
    %1278 = vmatprep.subr.mxu0 0.0
    %1279 = vmatpush2.msra.mxu0 0.0
    %1280 = vmatprep.subr.mxu0 0.0
    %1281 = vmatpush2.msra.mxu0 0.0
    %1282 = vmatprep.subr.mxu0 0.0
    %1283 = vmatpush2.msra.mxu0 0.0
    %1284 = vmatprep.subr.mxu0 0.0
    %1285 = vmatpush2.msra.mxu0 0.0
    %1286 = vmatprep.subr.mxu0 0.0
    %1287 = vmatpush2.msra.mxu0 0.0
    %1288 = vmatprep.subr.mxu0 0.0
    %1289 = vmatpush2.msra.mxu0 0.0
    %1290 = vmatprep.subr.mxu0 0.0
    %1291 = vmatpush2.msra.mxu0 0.0
    %1292 = vmatprep.subr.mxu0 0.0
    %1293 = vmatpush2.msra.mxu0 0.0
    %1294 = vmatprep.subr.mxu0 0.0
    %1295 = vmatpush2.msra.mxu0 0.0
    %1296 = vmatprep.subr.mxu0 0.0
    %1297 = vmatpush2.msra.mxu0 0.0
    %1298 = vmatprep.subr.mxu0 0.0
    %1299 = vmatpush2.msra.mxu0 0.0
    %1300 = vmatprep.subr.mxu0 0.0
    %1301 = vmatpush2.msra.mxu0 0.0
    %1302 = vmatprep.mubr.f32.mxu0 0.0
    %1303 = vmatmul.mubr.f32.gmra.mxu0 %v1236
    %v1304 = vpop.f32.mrf.mxu0
    %v1305 = vadd.f32 %v1233, %v1304
    %v1306 = vpop.f32.mrf.mxu0
    %1307 = vdwg.mxu0
    %v1308 = vadd.f32 %v1134, %v1221
    %v1309 = vxor.u32 %v1308, 2147483648
    %v1310 = vmul.f32 %v1309, 1.442695
    %v1311 = vpow.pop %v1310
    %v1312 = vadd.f32 %v1311, 1.0
    %v1313 = vrcp.pop %v1312
    %v1314 = vmul.f32 1.0, %v1313
    %1316 = vrot.lane.b32.xlu0 %v1221, 64
    %v1317 = vpop.permute.xlu0 %1316
    %v1319 = vmul.f32 %v1314, %v1317
    %1321 = vrot.lane.b32.xlu0 %v1319, 64
    %v1322 = vpop.permute.xlu0 %1321
    %v1324 = vadd.f32 %v1134, %v1322
    %v1325 = vtanh.pop %v1324
    %v1326 = vsub.f32 1.0, %v1314
    %1328 = vrot.lane.b32.xlu0 %v1325, 96
    %v1329 = vpop.permute.xlu0 %1328
    %v1331 = vmul.f32 %v1326, %v1329
    %v1332 = vmul.f32 %v1314, %v1110
    %v1333 = vadd.f32 %v1331, %v1332
    %1335 = vrot.lane.b32.xlu0 %v1305, 96
    %v1336 = vpop.permute.xlu0 %1335
    %v1338 = vadd.f32 %v1136, %v1336
    %v1339 = vxor.u32 %v1338, 2147483648
    %v1340 = vmul.f32 %v1339, 1.442695
    %v1341 = vpow.pop %v1340
    %v1342 = vadd.f32 %v1341, 1.0
    %v1343 = vrcp.pop %v1342
    %v1344 = vmul.f32 1.0, %v1343
    %v1345 = vadd.f32 %v1137, %v1336
    %v1346 = vxor.u32 %v1345, 2147483648
    %v1347 = vmul.f32 %v1346, 1.442695
    %v1348 = vpow.pop %v1347
    %v1349 = vadd.f32 %v1348, 1.0
    %v1350 = vrcp.pop %v1349
    %v1351 = vmul.f32 1.0, %v1350
    %1352 = vrot.lane.b32.xlu0 %v1305, 32
    %v1353 = vpop.permute.xlu0 %1352
    %v1355 = vmul.f32 %v1344, %v1353
    %1357 = vrot.lane.b32.xlu0 %v1355, 64
    %v1358 = vpop.permute.xlu0 %1357
    %v1360 = vadd.f32 %v1137, %v1358
    %v1361 = vtanh.pop %v1360
    %v1362 = vsub.f32 1.0, %v1351
    %1364 = vrot.lane.b32.xlu0 %v1361, 96
    %v1365 = vpop.permute.xlu0 %1364
    %v1367 = vmul.f32 %v1362, %v1365
    %v1368 = vmul.f32 %v1351, %v1124
    %v1369 = vadd.f32 %v1367, %v1368
    %s1370 = scalar_lea.vmem %s1, 24
    %v1371 = vld [vmem:[%s1370] sm:$0xff]
    %s1372 = scalar_lea.vmem %s1, 32
    %v1373 = vld [vmem:[%s1372] sm:$0xff]
    %1375 = vset.pattern.permute.xlu0 0
    %1376 = vperm.xlu0 %1375, %v1371
    %v1377 = vpop.permute.xlu0 %1376
    %v1379 = vmul.f32 %v1377, %v1333
    %v1380 = vsub.f32 1.0, %v1371
    %1382 = vset.pattern.permute.xlu0 0
    %1383 = vperm.xlu0 %1382, %v1380
    %v1384 = vpop.permute.xlu0 %1383
    %v1386 = vmul.f32 %v1384, %v1110
    %v1387 = vadd.f32 %v1379, %v1386
    %1389 = vset.pattern.permute.xlu0 0
    %1390 = vperm.xlu0 %1389, %v1373
    %v1391 = vpop.permute.xlu0 %1390
    %v1393 = vmul.f32 %v1391, %v1369
    %v1394 = vsub.f32 1.0, %v1373
    %1396 = vset.pattern.permute.xlu0 0
    %1397 = vperm.xlu0 %1396, %v1394
    %v1398 = vpop.permute.xlu0 %1397
    %v1400 = vmul.f32 %v1398, %v1124
    %v1401 = vadd.f32 %v1393, %v1400
    %1403 = vrot.lane.b32.xlu0 %v1379, 96
    %v1404 = vpop.permute.xlu0 %1403
    %s1406 = scalar_lea.vmem [#allocation3], 24
    %1407 = vst.msk [vmem:[%s1406] sm:$0xff] %vm324, %v1404
    %s1408 = scalar_lea.vmem [#allocation4], 32
    %1409 = vst.msk [vmem:[%s1408] sm:$0xff] %vm324, %v1393
    %v1410 = vld [vmem:[%s1135] sm:$0xff]
    %v1411 = vld [vmem:[%s1133] sm:$0xff]
    %v1412 = vld [vmem:[%s1133 + $0x8] sm:$0xff]
    %v1413 = vld [vmem:[#allocation8] sm:$0xff]
    %v1414 = vld [vmem:[#allocation8 + $0x8] sm:$0xff]
    %v1415 = vld [vmem:[#allocation8 + $0x10] sm:$0xff]
    %v1416 = vld [vmem:[#allocation8 + $0x18] sm:$0xff]
    %v1417 = vld [vmem:[%s5] sm:$0x1]
    %v1419 = vlaneseq
    %v1420 = vshrl.u32 %v1419, 7
    %v1421 = vsub.s32 0, %v1420
    %v1422 = vrot.slane %v1417, %v1421
    %1425 = vrot.lane.b32.xlu0 %v1387, 96
    %v1426 = vpop.permute.xlu0 %1425
    %v1427 = vsel %vm324, %v1426, 0
    %1429 = vmatprep.subr.mxu0 0.0
    %1430 = vmatpush1.msra.mxu0 0.0
    %1431 = vmatprep.subr.mxu0 0.0
    %1432 = vmatpush1.msra.mxu0 0.0
    %1433 = vmatprep.subr.mxu0 0.0
    %1434 = vmatpush1.msra.mxu0 0.0
    %1435 = vmatprep.subr.mxu0 0.0
    %1436 = vmatpush1.msra.mxu0 0.0
    %1437 = vmatprep.subr.mxu0 0.0
    %1438 = vmatpush1.msra.mxu0 0.0
    %1439 = vmatprep.subr.mxu0 0.0
    %1440 = vmatpush1.msra.mxu0 0.0
    %1441 = vmatprep.subr.mxu0 0.0
    %1442 = vmatpush1.msra.mxu0 0.0
    %1443 = vmatprep.subr.mxu0 0.0
    %1444 = vmatpush1.msra.mxu0 0.0
    %1445 = vmatprep.subr.mxu0 0.0
    %1446 = vmatpush1.msra.mxu0 0.0
    %1447 = vmatprep.subr.mxu0 0.0
    %1448 = vmatpush1.msra.mxu0 0.0
    %1449 = vmatprep.subr.mxu0 0.0
    %1450 = vmatpush1.msra.mxu0 0.0
    %1451 = vmatprep.subr.mxu0 0.0
    %1452 = vmatpush1.msra.mxu0 0.0
    %1453 = vmatprep.subr.mxu0 0.0
    %1454 = vmatpush1.msra.mxu0 %v1416
    %1455 = vmatprep.subr.mxu0 0.0
    %1456 = vmatpush1.msra.mxu0 %v1415
    %1457 = vmatprep.subr.mxu0 0.0
    %1458 = vmatpush1.msra.mxu0 %v1414
    %1459 = vmatprep.subr.mxu0 0.0
    %1460 = vmatpush1.msra.mxu0 %v1413
    %1461 = vmatprep.subr.mxu0 0.0
    %1462 = vmatpush2.msra.mxu0 0.0
    %1463 = vmatprep.subr.mxu0 0.0
    %1464 = vmatpush2.msra.mxu0 0.0
    %1465 = vmatprep.subr.mxu0 0.0
    %1466 = vmatpush2.msra.mxu0 0.0
    %1467 = vmatprep.subr.mxu0 0.0
    %1468 = vmatpush2.msra.mxu0 0.0
    %1469 = vmatprep.subr.mxu0 0.0
    %1470 = vmatpush2.msra.mxu0 0.0
    %1471 = vmatprep.subr.mxu0 0.0
    %1472 = vmatpush2.msra.mxu0 0.0
    %1473 = vmatprep.subr.mxu0 0.0
    %1474 = vmatpush2.msra.mxu0 0.0
    %1475 = vmatprep.subr.mxu0 0.0
    %1476 = vmatpush2.msra.mxu0 0.0
    %1477 = vmatprep.subr.mxu0 0.0
    %1478 = vmatpush2.msra.mxu0 0.0
    %1479 = vmatprep.subr.mxu0 0.0
    %1480 = vmatpush2.msra.mxu0 0.0
    %1481 = vmatprep.subr.mxu0 0.0
    %1482 = vmatpush2.msra.mxu0 0.0
    %1483 = vmatprep.subr.mxu0 0.0
    %1484 = vmatpush2.msra.mxu0 0.0
    %1485 = vmatprep.subr.mxu0 0.0
    %1486 = vmatpush2.msra.mxu0 0.0
    %1487 = vmatprep.subr.mxu0 0.0
    %1488 = vmatpush2.msra.mxu0 0.0
    %1489 = vmatprep.subr.mxu0 0.0
    %1490 = vmatpush2.msra.mxu0 0.0
    %1491 = vmatprep.subr.mxu0 0.0
    %1492 = vmatpush2.msra.mxu0 0.0
    %1493 = vmatprep.mubr.f32.mxu0 0.0
    %1494 = vmatmul.mubr.f32.gmra.mxu0 %v1427
    %v1495 = vpop.f32.mrf.mxu0
    %v1496 = vadd.f32 %v1422, %v1495
    %v1497 = vpop.f32.mrf.mxu0
    %1498 = vdwg.mxu0
    %v1499 = vld [vmem:[#allocation10] sm:$0xff]
    %v1500 = vld [vmem:[#allocation10 + $0x8] sm:$0xff]
    %v1501 = vld [vmem:[#allocation10 + $0x10] sm:$0xff]
    %v1502 = vld [vmem:[#allocation10 + $0x18] sm:$0xff]
    %v1503 = vld [vmem:[%s7] sm:$0x1]
    %v1505 = vlaneseq
    %v1506 = vshrl.u32 %v1505, 7
    %v1507 = vsub.s32 0, %v1506
    %v1508 = vrot.slane %v1503, %v1507
    %v1511 = vsel %vm324, %v1401, 0
    %1513 = vmatprep.subr.mxu0 0.0
    %1514 = vmatpush1.msra.mxu0 0.0
    %1515 = vmatprep.subr.mxu0 0.0
    %1516 = vmatpush1.msra.mxu0 0.0
    %1517 = vmatprep.subr.mxu0 0.0
    %1518 = vmatpush1.msra.mxu0 0.0
    %1519 = vmatprep.subr.mxu0 0.0
    %1520 = vmatpush1.msra.mxu0 0.0
    %1521 = vmatprep.subr.mxu0 0.0
    %1522 = vmatpush1.msra.mxu0 0.0
    %1523 = vmatprep.subr.mxu0 0.0
    %1524 = vmatpush1.msra.mxu0 0.0
    %1525 = vmatprep.subr.mxu0 0.0
    %1526 = vmatpush1.msra.mxu0 0.0
    %1527 = vmatprep.subr.mxu0 0.0
    %1528 = vmatpush1.msra.mxu0 0.0
    %1529 = vmatprep.subr.mxu0 0.0
    %1530 = vmatpush1.msra.mxu0 0.0
    %1531 = vmatprep.subr.mxu0 0.0
    %1532 = vmatpush1.msra.mxu0 0.0
    %1533 = vmatprep.subr.mxu0 0.0
    %1534 = vmatpush1.msra.mxu0 0.0
    %1535 = vmatprep.subr.mxu0 0.0
    %1536 = vmatpush1.msra.mxu0 0.0
    %1537 = vmatprep.subr.mxu0 0.0
    %1538 = vmatpush1.msra.mxu0 %v1502
    %1539 = vmatprep.subr.mxu0 0.0
    %1540 = vmatpush1.msra.mxu0 %v1501
    %1541 = vmatprep.subr.mxu0 0.0
    %1542 = vmatpush1.msra.mxu0 %v1500
    %1543 = vmatprep.subr.mxu0 0.0
    %1544 = vmatpush1.msra.mxu0 %v1499
    %1545 = vmatprep.subr.mxu0 0.0
    %1546 = vmatpush2.msra.mxu0 0.0
    %1547 = vmatprep.subr.mxu0 0.0
    %1548 = vmatpush2.msra.mxu0 0.0
    %1549 = vmatprep.subr.mxu0 0.0
    %1550 = vmatpush2.msra.mxu0 0.0
    %1551 = vmatprep.subr.mxu0 0.0
    %1552 = vmatpush2.msra.mxu0 0.0
    %1553 = vmatprep.subr.mxu0 0.0
    %1554 = vmatpush2.msra.mxu0 0.0
    %1555 = vmatprep.subr.mxu0 0.0
    %1556 = vmatpush2.msra.mxu0 0.0
    %1557 = vmatprep.subr.mxu0 0.0
    %1558 = vmatpush2.msra.mxu0 0.0
    %1559 = vmatprep.subr.mxu0 0.0
    %1560 = vmatpush2.msra.mxu0 0.0
    %1561 = vmatprep.subr.mxu0 0.0
    %1562 = vmatpush2.msra.mxu0 0.0
    %1563 = vmatprep.subr.mxu0 0.0
    %1564 = vmatpush2.msra.mxu0 0.0
    %1565 = vmatprep.subr.mxu0 0.0
    %1566 = vmatpush2.msra.mxu0 0.0
    %1567 = vmatprep.subr.mxu0 0.0
    %1568 = vmatpush2.msra.mxu0 0.0
    %1569 = vmatprep.subr.mxu0 0.0
    %1570 = vmatpush2.msra.mxu0 0.0
    %1571 = vmatprep.subr.mxu0 0.0
    %1572 = vmatpush2.msra.mxu0 0.0
    %1573 = vmatprep.subr.mxu0 0.0
    %1574 = vmatpush2.msra.mxu0 0.0
    %1575 = vmatprep.subr.mxu0 0.0
    %1576 = vmatpush2.msra.mxu0 0.0
    %1577 = vmatprep.mubr.f32.mxu0 0.0
    %1578 = vmatmul.mubr.f32.gmra.mxu0 %v1511
    %v1579 = vpop.f32.mrf.mxu0
    %v1580 = vadd.f32 %v1508, %v1579
    %v1581 = vpop.f32.mrf.mxu0
    %1582 = vdwg.mxu0
    %v1583 = vadd.f32 %v1410, %v1496
    %v1584 = vxor.u32 %v1583, 2147483648
    %v1585 = vmul.f32 %v1584, 1.442695
    %v1586 = vpow.pop %v1585
    %v1587 = vadd.f32 %v1586, 1.0
    %v1588 = vrcp.pop %v1587
    %v1589 = vmul.f32 1.0, %v1588
    %1591 = vrot.lane.b32.xlu0 %v1496, 64
    %v1592 = vpop.permute.xlu0 %1591
    %v1594 = vmul.f32 %v1589, %v1592
    %1596 = vrot.lane.b32.xlu0 %v1594, 64
    %v1597 = vpop.permute.xlu0 %1596
    %v1599 = vadd.f32 %v1410, %v1597
    %v1600 = vtanh.pop %v1599
    %v1601 = vsub.f32 1.0, %v1589
    %1603 = vrot.lane.b32.xlu0 %v1600, 96
    %v1604 = vpop.permute.xlu0 %1603
    %v1606 = vmul.f32 %v1601, %v1604
    %v1607 = vmul.f32 %v1589, %v1387
    %v1608 = vadd.f32 %v1606, %v1607
    %1610 = vrot.lane.b32.xlu0 %v1580, 96
    %v1611 = vpop.permute.xlu0 %1610
    %v1613 = vadd.f32 %v1411, %v1611
    %v1614 = vxor.u32 %v1613, 2147483648
    %v1615 = vmul.f32 %v1614, 1.442695
    %v1616 = vpow.pop %v1615
    %v1617 = vadd.f32 %v1616, 1.0
    %v1618 = vrcp.pop %v1617
    %v1619 = vmul.f32 1.0, %v1618
    %v1620 = vadd.f32 %v1412, %v1611
    %v1621 = vxor.u32 %v1620, 2147483648
    %v1622 = vmul.f32 %v1621, 1.442695
    %v1623 = vpow.pop %v1622
    %v1624 = vadd.f32 %v1623, 1.0
    %v1625 = vrcp.pop %v1624
    %v1626 = vmul.f32 1.0, %v1625
    %1627 = vrot.lane.b32.xlu0 %v1580, 32
    %v1628 = vpop.permute.xlu0 %1627
    %v1630 = vmul.f32 %v1619, %v1628
    %1632 = vrot.lane.b32.xlu0 %v1630, 64
    %v1633 = vpop.permute.xlu0 %1632
    %v1635 = vadd.f32 %v1412, %v1633
    %v1636 = vtanh.pop %v1635
    %v1637 = vsub.f32 1.0, %v1626
    %1639 = vrot.lane.b32.xlu0 %v1636, 96
    %v1640 = vpop.permute.xlu0 %1639
    %v1642 = vmul.f32 %v1637, %v1640
    %v1643 = vmul.f32 %v1626, %v1401
    %v1644 = vadd.f32 %v1642, %v1643
    %v1645 = vld [vmem:[%s1372] sm:$0xff]
    %v1646 = vld [vmem:[%s1370] sm:$0xff]
    %1648 = vset.pattern.permute.xlu0 0
    %1649 = vperm.xlu0 %1648, %v1645
    %v1650 = vpop.permute.xlu0 %1649
    %v1652 = vmul.f32 %v1650, %v1608
    %v1653 = vsub.f32 1.0, %v1645
    %1655 = vset.pattern.permute.xlu0 0
    %1656 = vperm.xlu0 %1655, %v1653
    %v1657 = vpop.permute.xlu0 %1656
    %v1659 = vmul.f32 %v1657, %v1387
    %v1660 = vadd.f32 %v1652, %v1659
    %1662 = vset.pattern.permute.xlu0 0
    %1663 = vperm.xlu0 %1662, %v1646
    %v1664 = vpop.permute.xlu0 %1663
    %v1666 = vmul.f32 %v1664, %v1644
    %v1667 = vsub.f32 1.0, %v1646
    %1669 = vset.pattern.permute.xlu0 0
    %1670 = vperm.xlu0 %1669, %v1667
    %v1671 = vpop.permute.xlu0 %1670
    %v1673 = vmul.f32 %v1671, %v1401
    %v1674 = vadd.f32 %v1666, %v1673
    %1676 = vrot.lane.b32.xlu0 %v1652, 96
    %v1677 = vpop.permute.xlu0 %1676
    %s1679 = scalar_lea.vmem [#allocation3], 32
    %1680 = vst.msk [vmem:[%s1679] sm:$0xff] %vm324, %v1677
    %s1681 = scalar_lea.vmem [#allocation4], 24
    %1682 = vst.msk [vmem:[%s1681] sm:$0xff] %vm324, %v1666
    %v1683 = vld [vmem:[%s858] sm:$0xff]
    %v1684 = vld [vmem:[%s856] sm:$0xff]
    %v1685 = vld [vmem:[%s856 + $0x8] sm:$0xff]
    %v1686 = vld [vmem:[#allocation8] sm:$0xff]
    %v1687 = vld [vmem:[#allocation8 + $0x8] sm:$0xff]
    %v1688 = vld [vmem:[#allocation8 + $0x10] sm:$0xff]
    %v1689 = vld [vmem:[#allocation8 + $0x18] sm:$0xff]
    %v1690 = vld [vmem:[%s5] sm:$0x1]
    %v1692 = vlaneseq
    %v1693 = vshrl.u32 %v1692, 7
    %v1694 = vsub.s32 0, %v1693
    %v1695 = vrot.slane %v1690, %v1694
    %1698 = vrot.lane.b32.xlu0 %v1660, 96
    %v1699 = vpop.permute.xlu0 %1698
    %v1700 = vsel %vm324, %v1699, 0
    %1702 = vmatprep.subr.mxu0 0.0
    %1703 = vmatpush1.msra.mxu0 0.0
    %1704 = vmatprep.subr.mxu0 0.0
    %1705 = vmatpush1.msra.mxu0 0.0
    %1706 = vmatprep.subr.mxu0 0.0
    %1707 = vmatpush1.msra.mxu0 0.0
    %1708 = vmatprep.subr.mxu0 0.0
    %1709 = vmatpush1.msra.mxu0 0.0
    %1710 = vmatprep.subr.mxu0 0.0
    %1711 = vmatpush1.msra.mxu0 0.0
    %1712 = vmatprep.subr.mxu0 0.0
    %1713 = vmatpush1.msra.mxu0 0.0
    %1714 = vmatprep.subr.mxu0 0.0
    %1715 = vmatpush1.msra.mxu0 0.0
    %1716 = vmatprep.subr.mxu0 0.0
    %1717 = vmatpush1.msra.mxu0 0.0
    %1718 = vmatprep.subr.mxu0 0.0
    %1719 = vmatpush1.msra.mxu0 0.0
    %1720 = vmatprep.subr.mxu0 0.0
    %1721 = vmatpush1.msra.mxu0 0.0
    %1722 = vmatprep.subr.mxu0 0.0
    %1723 = vmatpush1.msra.mxu0 0.0
    %1724 = vmatprep.subr.mxu0 0.0
    %1725 = vmatpush1.msra.mxu0 0.0
    %1726 = vmatprep.subr.mxu0 0.0
    %1727 = vmatpush1.msra.mxu0 %v1689
    %1728 = vmatprep.subr.mxu0 0.0
    %1729 = vmatpush1.msra.mxu0 %v1688
    %1730 = vmatprep.subr.mxu0 0.0
    %1731 = vmatpush1.msra.mxu0 %v1687
    %1732 = vmatprep.subr.mxu0 0.0
    %1733 = vmatpush1.msra.mxu0 %v1686
    %1734 = vmatprep.subr.mxu0 0.0
    %1735 = vmatpush2.msra.mxu0 0.0
    %1736 = vmatprep.subr.mxu0 0.0
    %1737 = vmatpush2.msra.mxu0 0.0
    %1738 = vmatprep.subr.mxu0 0.0
    %1739 = vmatpush2.msra.mxu0 0.0
    %1740 = vmatprep.subr.mxu0 0.0
    %1741 = vmatpush2.msra.mxu0 0.0
    %1742 = vmatprep.subr.mxu0 0.0
    %1743 = vmatpush2.msra.mxu0 0.0
    %1744 = vmatprep.subr.mxu0 0.0
    %1745 = vmatpush2.msra.mxu0 0.0
    %1746 = vmatprep.subr.mxu0 0.0
    %1747 = vmatpush2.msra.mxu0 0.0
    %1748 = vmatprep.subr.mxu0 0.0
    %1749 = vmatpush2.msra.mxu0 0.0
    %1750 = vmatprep.subr.mxu0 0.0
    %1751 = vmatpush2.msra.mxu0 0.0
    %1752 = vmatprep.subr.mxu0 0.0
    %1753 = vmatpush2.msra.mxu0 0.0
    %1754 = vmatprep.subr.mxu0 0.0
    %1755 = vmatpush2.msra.mxu0 0.0
    %1756 = vmatprep.subr.mxu0 0.0
    %1757 = vmatpush2.msra.mxu0 0.0
    %1758 = vmatprep.subr.mxu0 0.0
    %1759 = vmatpush2.msra.mxu0 0.0
    %1760 = vmatprep.subr.mxu0 0.0
    %1761 = vmatpush2.msra.mxu0 0.0
    %1762 = vmatprep.subr.mxu0 0.0
    %1763 = vmatpush2.msra.mxu0 0.0
    %1764 = vmatprep.subr.mxu0 0.0
    %1765 = vmatpush2.msra.mxu0 0.0
    %1766 = vmatprep.mubr.f32.mxu0 0.0
    %1767 = vmatmul.mubr.f32.gmra.mxu0 %v1700
    %v1768 = vpop.f32.mrf.mxu0
    %v1769 = vadd.f32 %v1695, %v1768
    %v1770 = vpop.f32.mrf.mxu0
    %1771 = vdwg.mxu0
    %v1772 = vld [vmem:[#allocation10] sm:$0xff]
    %v1773 = vld [vmem:[#allocation10 + $0x8] sm:$0xff]
    %v1774 = vld [vmem:[#allocation10 + $0x10] sm:$0xff]
    %v1775 = vld [vmem:[#allocation10 + $0x18] sm:$0xff]
    %v1776 = vld [vmem:[%s7] sm:$0x1]
    %v1778 = vlaneseq
    %v1779 = vshrl.u32 %v1778, 7
    %v1780 = vsub.s32 0, %v1779
    %v1781 = vrot.slane %v1776, %v1780
    %v1784 = vsel %vm324, %v1674, 0
    %1786 = vmatprep.subr.mxu0 0.0
    %1787 = vmatpush1.msra.mxu0 0.0
    %1788 = vmatprep.subr.mxu0 0.0
    %1789 = vmatpush1.msra.mxu0 0.0
    %1790 = vmatprep.subr.mxu0 0.0
    %1791 = vmatpush1.msra.mxu0 0.0
    %1792 = vmatprep.subr.mxu0 0.0
    %1793 = vmatpush1.msra.mxu0 0.0
    %1794 = vmatprep.subr.mxu0 0.0
    %1795 = vmatpush1.msra.mxu0 0.0
    %1796 = vmatprep.subr.mxu0 0.0
    %1797 = vmatpush1.msra.mxu0 0.0
    %1798 = vmatprep.subr.mxu0 0.0
    %1799 = vmatpush1.msra.mxu0 0.0
    %1800 = vmatprep.subr.mxu0 0.0
    %1801 = vmatpush1.msra.mxu0 0.0
    %1802 = vmatprep.subr.mxu0 0.0
    %1803 = vmatpush1.msra.mxu0 0.0
    %1804 = vmatprep.subr.mxu0 0.0
    %1805 = vmatpush1.msra.mxu0 0.0
    %1806 = vmatprep.subr.mxu0 0.0
    %1807 = vmatpush1.msra.mxu0 0.0
    %1808 = vmatprep.subr.mxu0 0.0
    %1809 = vmatpush1.msra.mxu0 0.0
    %1810 = vmatprep.subr.mxu0 0.0
    %1811 = vmatpush1.msra.mxu0 %v1775
    %1812 = vmatprep.subr.mxu0 0.0
    %1813 = vmatpush1.msra.mxu0 %v1774
    %1814 = vmatprep.subr.mxu0 0.0
    %1815 = vmatpush1.msra.mxu0 %v1773
    %1816 = vmatprep.subr.mxu0 0.0
    %1817 = vmatpush1.msra.mxu0 %v1772
    %1818 = vmatprep.subr.mxu0 0.0
    %1819 = vmatpush2.msra.mxu0 0.0
    %1820 = vmatprep.subr.mxu0 0.0
    %1821 = vmatpush2.msra.mxu0 0.0
    %1822 = vmatprep.subr.mxu0 0.0
    %1823 = vmatpush2.msra.mxu0 0.0
    %1824 = vmatprep.subr.mxu0 0.0
    %1825 = vmatpush2.msra.mxu0 0.0
    %1826 = vmatprep.subr.mxu0 0.0
    %1827 = vmatpush2.msra.mxu0 0.0
    %1828 = vmatprep.subr.mxu0 0.0
    %1829 = vmatpush2.msra.mxu0 0.0
    %1830 = vmatprep.subr.mxu0 0.0
    %1831 = vmatpush2.msra.mxu0 0.0
    %1832 = vmatprep.subr.mxu0 0.0
    %1833 = vmatpush2.msra.mxu0 0.0
    %1834 = vmatprep.subr.mxu0 0.0
    %1835 = vmatpush2.msra.mxu0 0.0
    %1836 = vmatprep.subr.mxu0 0.0
    %1837 = vmatpush2.msra.mxu0 0.0
    %1838 = vmatprep.subr.mxu0 0.0
    %1839 = vmatpush2.msra.mxu0 0.0
    %1840 = vmatprep.subr.mxu0 0.0
    %1841 = vmatpush2.msra.mxu0 0.0
    %1842 = vmatprep.subr.mxu0 0.0
    %1843 = vmatpush2.msra.mxu0 0.0
    %1844 = vmatprep.subr.mxu0 0.0
    %1845 = vmatpush2.msra.mxu0 0.0
    %1846 = vmatprep.subr.mxu0 0.0
    %1847 = vmatpush2.msra.mxu0 0.0
    %1848 = vmatprep.subr.mxu0 0.0
    %1849 = vmatpush2.msra.mxu0 0.0
    %1850 = vmatprep.mubr.f32.mxu0 0.0
    %1851 = vmatmul.mubr.f32.gmra.mxu0 %v1784
    %v1852 = vpop.f32.mrf.mxu0
    %v1853 = vadd.f32 %v1781, %v1852
    %v1854 = vpop.f32.mrf.mxu0
    %1855 = vdwg.mxu0
    %v1856 = vadd.f32 %v1683, %v1769
    %v1857 = vxor.u32 %v1856, 2147483648
    %v1858 = vmul.f32 %v1857, 1.442695
    %v1859 = vpow.pop %v1858
    %v1860 = vadd.f32 %v1859, 1.0
    %v1861 = vrcp.pop %v1860
    %v1862 = vmul.f32 1.0, %v1861
    %1864 = vrot.lane.b32.xlu0 %v1769, 64
    %v1865 = vpop.permute.xlu0 %1864
    %v1867 = vmul.f32 %v1862, %v1865
    %1869 = vrot.lane.b32.xlu0 %v1867, 64
    %v1870 = vpop.permute.xlu0 %1869
    %v1872 = vadd.f32 %v1683, %v1870
    %v1873 = vtanh.pop %v1872
    %v1874 = vsub.f32 1.0, %v1862
    %1876 = vrot.lane.b32.xlu0 %v1873, 96
    %v1877 = vpop.permute.xlu0 %1876
    %v1879 = vmul.f32 %v1874, %v1877
    %v1880 = vmul.f32 %v1862, %v1660
    %v1881 = vadd.f32 %v1879, %v1880
    %1883 = vrot.lane.b32.xlu0 %v1853, 96
    %v1884 = vpop.permute.xlu0 %1883
    %v1886 = vadd.f32 %v1684, %v1884
    %v1887 = vxor.u32 %v1886, 2147483648
    %v1888 = vmul.f32 %v1887, 1.442695
    %v1889 = vpow.pop %v1888
    %v1890 = vadd.f32 %v1889, 1.0
    %v1891 = vrcp.pop %v1890
    %v1892 = vmul.f32 1.0, %v1891
    %v1893 = vadd.f32 %v1685, %v1884
    %v1894 = vxor.u32 %v1893, 2147483648
    %v1895 = vmul.f32 %v1894, 1.442695
    %v1896 = vpow.pop %v1895
    %v1897 = vadd.f32 %v1896, 1.0
    %v1898 = vrcp.pop %v1897
    %v1899 = vmul.f32 1.0, %v1898
    %1900 = vrot.lane.b32.xlu0 %v1853, 32
    %v1901 = vpop.permute.xlu0 %1900
    %v1903 = vmul.f32 %v1892, %v1901
    %1905 = vrot.lane.b32.xlu0 %v1903, 64
    %v1906 = vpop.permute.xlu0 %1905
    %v1908 = vadd.f32 %v1685, %v1906
    %v1909 = vtanh.pop %v1908
    %v1910 = vsub.f32 1.0, %v1899
    %1912 = vrot.lane.b32.xlu0 %v1909, 96
    %v1913 = vpop.permute.xlu0 %1912
    %v1915 = vmul.f32 %v1910, %v1913
    %v1916 = vmul.f32 %v1899, %v1674
    %v1917 = vadd.f32 %v1915, %v1916
    %v1918 = vld [vmem:[%s1095] sm:$0xff]
    %v1919 = vld [vmem:[%s1093] sm:$0xff]
    %1921 = vset.pattern.permute.xlu0 0
    %1922 = vperm.xlu0 %1921, %v1918
    %v1923 = vpop.permute.xlu0 %1922
    %v1925 = vmul.f32 %v1923, %v1881
    %v1926 = vsub.f32 1.0, %v1918
    %1928 = vset.pattern.permute.xlu0 0
    %1929 = vperm.xlu0 %1928, %v1926
    %v1930 = vpop.permute.xlu0 %1929
    %v1932 = vmul.f32 %v1930, %v1660
    %v1933 = vadd.f32 %v1925, %v1932
    %1935 = vset.pattern.permute.xlu0 0
    %1936 = vperm.xlu0 %1935, %v1919
    %v1937 = vpop.permute.xlu0 %1936
    %v1939 = vmul.f32 %v1937, %v1917
    %v1940 = vsub.f32 1.0, %v1919
    %1942 = vset.pattern.permute.xlu0 0
    %1943 = vperm.xlu0 %1942, %v1940
    %v1944 = vpop.permute.xlu0 %1943
    %v1946 = vmul.f32 %v1944, %v1674
    %v1947 = vadd.f32 %v1939, %v1946
    %1949 = vrot.lane.b32.xlu0 %v1925, 96
    %v1950 = vpop.permute.xlu0 %1949
    %s1952 = scalar_lea.vmem [#allocation3], 40
    %1953 = vst.msk [vmem:[%s1952] sm:$0xff] %vm324, %v1950
    %s1954 = scalar_lea.vmem [#allocation4], 16
    %1955 = vst.msk [vmem:[%s1954] sm:$0xff] %vm324, %v1939
    %v1956 = vld [vmem:[%s581] sm:$0xff]
    %v1957 = vld [vmem:[%s579] sm:$0xff]
    %v1958 = vld [vmem:[%s579 + $0x8] sm:$0xff]
    %v1959 = vld [vmem:[#allocation8] sm:$0xff]
    %v1960 = vld [vmem:[#allocation8 + $0x8] sm:$0xff]
    %v1961 = vld [vmem:[#allocation8 + $0x10] sm:$0xff]
    %v1962 = vld [vmem:[#allocation8 + $0x18] sm:$0xff]
    %v1963 = vld [vmem:[%s5] sm:$0x1]
    %v1965 = vlaneseq
    %v1966 = vshrl.u32 %v1965, 7
    %v1967 = vsub.s32 0, %v1966
    %v1968 = vrot.slane %v1963, %v1967
    %1971 = vrot.lane.b32.xlu0 %v1933, 96
    %v1972 = vpop.permute.xlu0 %1971
    %v1973 = vsel %vm324, %v1972, 0
    %1975 = vmatprep.subr.mxu0 0.0
    %1976 = vmatpush1.msra.mxu0 0.0
    %1977 = vmatprep.subr.mxu0 0.0
    %1978 = vmatpush1.msra.mxu0 0.0
    %1979 = vmatprep.subr.mxu0 0.0
    %1980 = vmatpush1.msra.mxu0 0.0
    %1981 = vmatprep.subr.mxu0 0.0
    %1982 = vmatpush1.msra.mxu0 0.0
    %1983 = vmatprep.subr.mxu0 0.0
    %1984 = vmatpush1.msra.mxu0 0.0
    %1985 = vmatprep.subr.mxu0 0.0
    %1986 = vmatpush1.msra.mxu0 0.0
    %1987 = vmatprep.subr.mxu0 0.0
    %1988 = vmatpush1.msra.mxu0 0.0
    %1989 = vmatprep.subr.mxu0 0.0
    %1990 = vmatpush1.msra.mxu0 0.0
    %1991 = vmatprep.subr.mxu0 0.0
    %1992 = vmatpush1.msra.mxu0 0.0
    %1993 = vmatprep.subr.mxu0 0.0
    %1994 = vmatpush1.msra.mxu0 0.0
    %1995 = vmatprep.subr.mxu0 0.0
    %1996 = vmatpush1.msra.mxu0 0.0
    %1997 = vmatprep.subr.mxu0 0.0
    %1998 = vmatpush1.msra.mxu0 0.0
    %1999 = vmatprep.subr.mxu0 0.0
    %2000 = vmatpush1.msra.mxu0 %v1962
    %2001 = vmatprep.subr.mxu0 0.0
    %2002 = vmatpush1.msra.mxu0 %v1961
    %2003 = vmatprep.subr.mxu0 0.0
    %2004 = vmatpush1.msra.mxu0 %v1960
    %2005 = vmatprep.subr.mxu0 0.0
    %2006 = vmatpush1.msra.mxu0 %v1959
    %2007 = vmatprep.subr.mxu0 0.0
    %2008 = vmatpush2.msra.mxu0 0.0
    %2009 = vmatprep.subr.mxu0 0.0
    %2010 = vmatpush2.msra.mxu0 0.0
    %2011 = vmatprep.subr.mxu0 0.0
    %2012 = vmatpush2.msra.mxu0 0.0
    %2013 = vmatprep.subr.mxu0 0.0
    %2014 = vmatpush2.msra.mxu0 0.0
    %2015 = vmatprep.subr.mxu0 0.0
    %2016 = vmatpush2.msra.mxu0 0.0
    %2017 = vmatprep.subr.mxu0 0.0
    %2018 = vmatpush2.msra.mxu0 0.0
    %2019 = vmatprep.subr.mxu0 0.0
    %2020 = vmatpush2.msra.mxu0 0.0
    %2021 = vmatprep.subr.mxu0 0.0
    %2022 = vmatpush2.msra.mxu0 0.0
    %2023 = vmatprep.subr.mxu0 0.0
    %2024 = vmatpush2.msra.mxu0 0.0
    %2025 = vmatprep.subr.mxu0 0.0
    %2026 = vmatpush2.msra.mxu0 0.0
    %2027 = vmatprep.subr.mxu0 0.0
    %2028 = vmatpush2.msra.mxu0 0.0
    %2029 = vmatprep.subr.mxu0 0.0
    %2030 = vmatpush2.msra.mxu0 0.0
    %2031 = vmatprep.subr.mxu0 0.0
    %2032 = vmatpush2.msra.mxu0 0.0
    %2033 = vmatprep.subr.mxu0 0.0
    %2034 = vmatpush2.msra.mxu0 0.0
    %2035 = vmatprep.subr.mxu0 0.0
    %2036 = vmatpush2.msra.mxu0 0.0
    %2037 = vmatprep.subr.mxu0 0.0
    %2038 = vmatpush2.msra.mxu0 0.0
    %2039 = vmatprep.mubr.f32.mxu0 0.0
    %2040 = vmatmul.mubr.f32.gmra.mxu0 %v1973
    %v2041 = vpop.f32.mrf.mxu0
    %v2042 = vadd.f32 %v1968, %v2041
    %v2043 = vpop.f32.mrf.mxu0
    %2044 = vdwg.mxu0
    %v2045 = vld [vmem:[#allocation10] sm:$0xff]
    %v2046 = vld [vmem:[#allocation10 + $0x8] sm:$0xff]
    %v2047 = vld [vmem:[#allocation10 + $0x10] sm:$0xff]
    %v2048 = vld [vmem:[#allocation10 + $0x18] sm:$0xff]
    %v2049 = vld [vmem:[%s7] sm:$0x1]
    %v2051 = vlaneseq
    %v2052 = vshrl.u32 %v2051, 7
    %v2053 = vsub.s32 0, %v2052
    %v2054 = vrot.slane %v2049, %v2053
    %v2057 = vsel %vm324, %v1947, 0
    %2059 = vmatprep.subr.mxu0 0.0
    %2060 = vmatpush1.msra.mxu0 0.0
    %2061 = vmatprep.subr.mxu0 0.0
    %2062 = vmatpush1.msra.mxu0 0.0
    %2063 = vmatprep.subr.mxu0 0.0
    %2064 = vmatpush1.msra.mxu0 0.0
    %2065 = vmatprep.subr.mxu0 0.0
    %2066 = vmatpush1.msra.mxu0 0.0
    %2067 = vmatprep.subr.mxu0 0.0
    %2068 = vmatpush1.msra.mxu0 0.0
    %2069 = vmatprep.subr.mxu0 0.0
    %2070 = vmatpush1.msra.mxu0 0.0
    %2071 = vmatprep.subr.mxu0 0.0
    %2072 = vmatpush1.msra.mxu0 0.0
    %2073 = vmatprep.subr.mxu0 0.0
    %2074 = vmatpush1.msra.mxu0 0.0
    %2075 = vmatprep.subr.mxu0 0.0
    %2076 = vmatpush1.msra.mxu0 0.0
    %2077 = vmatprep.subr.mxu0 0.0
    %2078 = vmatpush1.msra.mxu0 0.0
    %2079 = vmatprep.subr.mxu0 0.0
    %2080 = vmatpush1.msra.mxu0 0.0
    %2081 = vmatprep.subr.mxu0 0.0
    %2082 = vmatpush1.msra.mxu0 0.0
    %2083 = vmatprep.subr.mxu0 0.0
    %2084 = vmatpush1.msra.mxu0 %v2048
    %2085 = vmatprep.subr.mxu0 0.0
    %2086 = vmatpush1.msra.mxu0 %v2047
    %2087 = vmatprep.subr.mxu0 0.0
    %2088 = vmatpush1.msra.mxu0 %v2046
    %2089 = vmatprep.subr.mxu0 0.0
    %2090 = vmatpush1.msra.mxu0 %v2045
    %2091 = vmatprep.subr.mxu0 0.0
    %2092 = vmatpush2.msra.mxu0 0.0
    %2093 = vmatprep.subr.mxu0 0.0
    %2094 = vmatpush2.msra.mxu0 0.0
    %2095 = vmatprep.subr.mxu0 0.0
    %2096 = vmatpush2.msra.mxu0 0.0
    %2097 = vmatprep.subr.mxu0 0.0
    %2098 = vmatpush2.msra.mxu0 0.0
    %2099 = vmatprep.subr.mxu0 0.0
    %2100 = vmatpush2.msra.mxu0 0.0
    %2101 = vmatprep.subr.mxu0 0.0
    %2102 = vmatpush2.msra.mxu0 0.0
    %2103 = vmatprep.subr.mxu0 0.0
    %2104 = vmatpush2.msra.mxu0 0.0
    %2105 = vmatprep.subr.mxu0 0.0
    %2106 = vmatpush2.msra.mxu0 0.0
    %2107 = vmatprep.subr.mxu0 0.0
    %2108 = vmatpush2.msra.mxu0 0.0
    %2109 = vmatprep.subr.mxu0 0.0
    %2110 = vmatpush2.msra.mxu0 0.0
    %2111 = vmatprep.subr.mxu0 0.0
    %2112 = vmatpush2.msra.mxu0 0.0
    %2113 = vmatprep.subr.mxu0 0.0
    %2114 = vmatpush2.msra.mxu0 0.0
    %2115 = vmatprep.subr.mxu0 0.0
    %2116 = vmatpush2.msra.mxu0 0.0
    %2117 = vmatprep.subr.mxu0 0.0
    %2118 = vmatpush2.msra.mxu0 0.0
    %2119 = vmatprep.subr.mxu0 0.0
    %2120 = vmatpush2.msra.mxu0 0.0
    %2121 = vmatprep.subr.mxu0 0.0
    %2122 = vmatpush2.msra.mxu0 0.0
    %2123 = vmatprep.mubr.f32.mxu0 0.0
    %2124 = vmatmul.mubr.f32.gmra.mxu0 %v2057
    %v2125 = vpop.f32.mrf.mxu0
    %v2126 = vadd.f32 %v2054, %v2125
    %v2127 = vpop.f32.mrf.mxu0
    %2128 = vdwg.mxu0
    %v2129 = vadd.f32 %v1956, %v2042
    %v2130 = vxor.u32 %v2129, 2147483648
    %v2131 = vmul.f32 %v2130, 1.442695
    %v2132 = vpow.pop %v2131
    %v2133 = vadd.f32 %v2132, 1.0
    %v2134 = vrcp.pop %v2133
    %v2135 = vmul.f32 1.0, %v2134
    %2137 = vrot.lane.b32.xlu0 %v2042, 64
    %v2138 = vpop.permute.xlu0 %2137
    %v2140 = vmul.f32 %v2135, %v2138
    %2142 = vrot.lane.b32.xlu0 %v2140, 64
    %v2143 = vpop.permute.xlu0 %2142
    %v2145 = vadd.f32 %v1956, %v2143
    %v2146 = vtanh.pop %v2145
    %v2147 = vsub.f32 1.0, %v2135
    %2149 = vrot.lane.b32.xlu0 %v2146, 96
    %v2150 = vpop.permute.xlu0 %2149
    %v2152 = vmul.f32 %v2147, %v2150
    %v2153 = vmul.f32 %v2135, %v1933
    %v2154 = vadd.f32 %v2152, %v2153
    %2156 = vrot.lane.b32.xlu0 %v2126, 96
    %v2157 = vpop.permute.xlu0 %2156
    %v2159 = vadd.f32 %v1957, %v2157
    %v2160 = vxor.u32 %v2159, 2147483648
    %v2161 = vmul.f32 %v2160, 1.442695
    %v2162 = vpow.pop %v2161
    %v2163 = vadd.f32 %v2162, 1.0
    %v2164 = vrcp.pop %v2163
    %v2165 = vmul.f32 1.0, %v2164
    %v2166 = vadd.f32 %v1958, %v2157
    %v2167 = vxor.u32 %v2166, 2147483648
    %v2168 = vmul.f32 %v2167, 1.442695
    %v2169 = vpow.pop %v2168
    %v2170 = vadd.f32 %v2169, 1.0
    %v2171 = vrcp.pop %v2170
    %v2172 = vmul.f32 1.0, %v2171
    %2173 = vrot.lane.b32.xlu0 %v2126, 32
    %v2174 = vpop.permute.xlu0 %2173
    %v2176 = vmul.f32 %v2165, %v2174
    %2178 = vrot.lane.b32.xlu0 %v2176, 64
    %v2179 = vpop.permute.xlu0 %2178
    %v2181 = vadd.f32 %v1958, %v2179
    %v2182 = vtanh.pop %v2181
    %v2183 = vsub.f32 1.0, %v2172
    %2185 = vrot.lane.b32.xlu0 %v2182, 96
    %v2186 = vpop.permute.xlu0 %2185
    %v2188 = vmul.f32 %v2183, %v2186
    %v2189 = vmul.f32 %v2172, %v1947
    %v2190 = vadd.f32 %v2188, %v2189
    %v2191 = vld [vmem:[%s818] sm:$0xff]
    %v2192 = vld [vmem:[%s816] sm:$0xff]
    %2194 = vset.pattern.permute.xlu0 0
    %2195 = vperm.xlu0 %2194, %v2191
    %v2196 = vpop.permute.xlu0 %2195
    %v2198 = vmul.f32 %v2196, %v2154
    %v2199 = vsub.f32 1.0, %v2191
    %2201 = vset.pattern.permute.xlu0 0
    %2202 = vperm.xlu0 %2201, %v2199
    %v2203 = vpop.permute.xlu0 %2202
    %v2205 = vmul.f32 %v2203, %v1933
    %v2206 = vadd.f32 %v2198, %v2205
    %2208 = vset.pattern.permute.xlu0 0
    %2209 = vperm.xlu0 %2208, %v2192
    %v2210 = vpop.permute.xlu0 %2209
    %v2212 = vmul.f32 %v2210, %v2190
    %v2213 = vsub.f32 1.0, %v2192
    %2215 = vset.pattern.permute.xlu0 0
    %2216 = vperm.xlu0 %2215, %v2213
    %v2217 = vpop.permute.xlu0 %2216
    %v2219 = vmul.f32 %v2217, %v1947
    %v2220 = vadd.f32 %v2212, %v2219
    %2222 = vrot.lane.b32.xlu0 %v2198, 96
    %v2223 = vpop.permute.xlu0 %2222
    %s2225 = scalar_lea.vmem [#allocation3], 48
    %2226 = vst.msk [vmem:[%s2225] sm:$0xff] %vm324, %v2223
    %s2227 = scalar_lea.vmem [#allocation4], 8
    %2228 = vst.msk [vmem:[%s2227] sm:$0xff] %vm324, %v2212
    %v2229 = vld [vmem:[%s310] sm:$0xff]
    %v2230 = vld [vmem:[#allocation2] sm:$0xff]
    %v2231 = vld [vmem:[#allocation2 + $0x8] sm:$0xff]
    %v2232 = vld [vmem:[#allocation8] sm:$0xff]
    %v2233 = vld [vmem:[#allocation8 + $0x8] sm:$0xff]
    %v2234 = vld [vmem:[#allocation8 + $0x10] sm:$0xff]
    %v2235 = vld [vmem:[#allocation8 + $0x18] sm:$0xff]
    %v2236 = vld [vmem:[%s5] sm:$0x1]
    %v2238 = vlaneseq
    %v2239 = vshrl.u32 %v2238, 7
    %v2240 = vsub.s32 0, %v2239
    %v2241 = vrot.slane %v2236, %v2240
    %2244 = vrot.lane.b32.xlu0 %v2206, 96
    %v2245 = vpop.permute.xlu0 %2244
    %v2246 = vsel %vm324, %v2245, 0
    %2248 = vmatprep.subr.mxu0 0.0
    %2249 = vmatpush1.msra.mxu0 0.0
    %2250 = vmatprep.subr.mxu0 0.0
    %2251 = vmatpush1.msra.mxu0 0.0
    %2252 = vmatprep.subr.mxu0 0.0
    %2253 = vmatpush1.msra.mxu0 0.0
    %2254 = vmatprep.subr.mxu0 0.0
    %2255 = vmatpush1.msra.mxu0 0.0
    %2256 = vmatprep.subr.mxu0 0.0
    %2257 = vmatpush1.msra.mxu0 0.0
    %2258 = vmatprep.subr.mxu0 0.0
    %2259 = vmatpush1.msra.mxu0 0.0
    %2260 = vmatprep.subr.mxu0 0.0
    %2261 = vmatpush1.msra.mxu0 0.0
    %2262 = vmatprep.subr.mxu0 0.0
    %2263 = vmatpush1.msra.mxu0 0.0
    %2264 = vmatprep.subr.mxu0 0.0
    %2265 = vmatpush1.msra.mxu0 0.0
    %2266 = vmatprep.subr.mxu0 0.0
    %2267 = vmatpush1.msra.mxu0 0.0
    %2268 = vmatprep.subr.mxu0 0.0
    %2269 = vmatpush1.msra.mxu0 0.0
    %2270 = vmatprep.subr.mxu0 0.0
    %2271 = vmatpush1.msra.mxu0 0.0
    %2272 = vmatprep.subr.mxu0 0.0
    %2273 = vmatpush1.msra.mxu0 %v2235
    %2274 = vmatprep.subr.mxu0 0.0
    %2275 = vmatpush1.msra.mxu0 %v2234
    %2276 = vmatprep.subr.mxu0 0.0
    %2277 = vmatpush1.msra.mxu0 %v2233
    %2278 = vmatprep.subr.mxu0 0.0
    %2279 = vmatpush1.msra.mxu0 %v2232
    %2280 = vmatprep.subr.mxu0 0.0
    %2281 = vmatpush2.msra.mxu0 0.0
    %2282 = vmatprep.subr.mxu0 0.0
    %2283 = vmatpush2.msra.mxu0 0.0
    %2284 = vmatprep.subr.mxu0 0.0
    %2285 = vmatpush2.msra.mxu0 0.0
    %2286 = vmatprep.subr.mxu0 0.0
    %2287 = vmatpush2.msra.mxu0 0.0
    %2288 = vmatprep.subr.mxu0 0.0
    %2289 = vmatpush2.msra.mxu0 0.0
    %2290 = vmatprep.subr.mxu0 0.0
    %2291 = vmatpush2.msra.mxu0 0.0
    %2292 = vmatprep.subr.mxu0 0.0
    %2293 = vmatpush2.msra.mxu0 0.0
    %2294 = vmatprep.subr.mxu0 0.0
    %2295 = vmatpush2.msra.mxu0 0.0
    %2296 = vmatprep.subr.mxu0 0.0
    %2297 = vmatpush2.msra.mxu0 0.0
    %2298 = vmatprep.subr.mxu0 0.0
    %2299 = vmatpush2.msra.mxu0 0.0
    %2300 = vmatprep.subr.mxu0 0.0
    %2301 = vmatpush2.msra.mxu0 0.0
    %2302 = vmatprep.subr.mxu0 0.0
    %2303 = vmatpush2.msra.mxu0 0.0
    %2304 = vmatprep.subr.mxu0 0.0
    %2305 = vmatpush2.msra.mxu0 0.0
    %2306 = vmatprep.subr.mxu0 0.0
    %2307 = vmatpush2.msra.mxu0 0.0
    %2308 = vmatprep.subr.mxu0 0.0
    %2309 = vmatpush2.msra.mxu0 0.0
    %2310 = vmatprep.subr.mxu0 0.0
    %2311 = vmatpush2.msra.mxu0 0.0
    %2312 = vmatprep.mubr.f32.mxu0 0.0
    %2313 = vmatmul.mubr.f32.gmra.mxu0 %v2246
    %v2314 = vpop.f32.mrf.mxu0
    %v2315 = vadd.f32 %v2241, %v2314
    %v2316 = vpop.f32.mrf.mxu0
    %2317 = vdwg.mxu0
    %v2318 = vld [vmem:[#allocation10] sm:$0xff]
    %v2319 = vld [vmem:[#allocation10 + $0x8] sm:$0xff]
    %v2320 = vld [vmem:[#allocation10 + $0x10] sm:$0xff]
    %v2321 = vld [vmem:[#allocation10 + $0x18] sm:$0xff]
    %v2322 = vld [vmem:[%s7] sm:$0x1]
    %v2324 = vlaneseq
    %v2325 = vshrl.u32 %v2324, 7
    %v2326 = vsub.s32 0, %v2325
    %v2327 = vrot.slane %v2322, %v2326
    %v2330 = vsel %vm324, %v2220, 0
    %2332 = vmatprep.subr.mxu0 0.0
    %2333 = vmatpush1.msra.mxu0 0.0
    %2334 = vmatprep.subr.mxu0 0.0
    %2335 = vmatpush1.msra.mxu0 0.0
    %2336 = vmatprep.subr.mxu0 0.0
    %2337 = vmatpush1.msra.mxu0 0.0
    %2338 = vmatprep.subr.mxu0 0.0
    %2339 = vmatpush1.msra.mxu0 0.0
    %2340 = vmatprep.subr.mxu0 0.0
    %2341 = vmatpush1.msra.mxu0 0.0
    %2342 = vmatprep.subr.mxu0 0.0
    %2343 = vmatpush1.msra.mxu0 0.0
    %2344 = vmatprep.subr.mxu0 0.0
    %2345 = vmatpush1.msra.mxu0 0.0
    %2346 = vmatprep.subr.mxu0 0.0
    %2347 = vmatpush1.msra.mxu0 0.0
    %2348 = vmatprep.subr.mxu0 0.0
    %2349 = vmatpush1.msra.mxu0 0.0
    %2350 = vmatprep.subr.mxu0 0.0
    %2351 = vmatpush1.msra.mxu0 0.0
    %2352 = vmatprep.subr.mxu0 0.0
    %2353 = vmatpush1.msra.mxu0 0.0
    %2354 = vmatprep.subr.mxu0 0.0
    %2355 = vmatpush1.msra.mxu0 0.0
    %2356 = vmatprep.subr.mxu0 0.0
    %2357 = vmatpush1.msra.mxu0 %v2321
    %2358 = vmatprep.subr.mxu0 0.0
    %2359 = vmatpush1.msra.mxu0 %v2320
    %2360 = vmatprep.subr.mxu0 0.0
    %2361 = vmatpush1.msra.mxu0 %v2319
    %2362 = vmatprep.subr.mxu0 0.0
    %2363 = vmatpush1.msra.mxu0 %v2318
    %2364 = vmatprep.subr.mxu0 0.0
    %2365 = vmatpush2.msra.mxu0 0.0
    %2366 = vmatprep.subr.mxu0 0.0
    %2367 = vmatpush2.msra.mxu0 0.0
    %2368 = vmatprep.subr.mxu0 0.0
    %2369 = vmatpush2.msra.mxu0 0.0
    %2370 = vmatprep.subr.mxu0 0.0
    %2371 = vmatpush2.msra.mxu0 0.0
    %2372 = vmatprep.subr.mxu0 0.0
    %2373 = vmatpush2.msra.mxu0 0.0
    %2374 = vmatprep.subr.mxu0 0.0
    %2375 = vmatpush2.msra.mxu0 0.0
    %2376 = vmatprep.subr.mxu0 0.0
    %2377 = vmatpush2.msra.mxu0 0.0
    %2378 = vmatprep.subr.mxu0 0.0
    %2379 = vmatpush2.msra.mxu0 0.0
    %2380 = vmatprep.subr.mxu0 0.0
    %2381 = vmatpush2.msra.mxu0 0.0
    %2382 = vmatprep.subr.mxu0 0.0
    %2383 = vmatpush2.msra.mxu0 0.0
    %2384 = vmatprep.subr.mxu0 0.0
    %2385 = vmatpush2.msra.mxu0 0.0
    %2386 = vmatprep.subr.mxu0 0.0
    %2387 = vmatpush2.msra.mxu0 0.0
    %2388 = vmatprep.subr.mxu0 0.0
    %2389 = vmatpush2.msra.mxu0 0.0
    %2390 = vmatprep.subr.mxu0 0.0
    %2391 = vmatpush2.msra.mxu0 0.0
    %2392 = vmatprep.subr.mxu0 0.0
    %2393 = vmatpush2.msra.mxu0 0.0
    %2394 = vmatprep.subr.mxu0 0.0
    %2395 = vmatpush2.msra.mxu0 0.0
    %2396 = vmatprep.mubr.f32.mxu0 0.0
    %2397 = vmatmul.mubr.f32.gmra.mxu0 %v2330
    %v2398 = vpop.f32.mrf.mxu0
    %v2399 = vadd.f32 %v2327, %v2398
    %v2400 = vpop.f32.mrf.mxu0
    %2401 = vdwg.mxu0
    %v2402 = vadd.f32 %v2229, %v2315
    %v2403 = vxor.u32 %v2402, 2147483648
    %v2404 = vmul.f32 %v2403, 1.442695
    %v2405 = vpow.pop %v2404
    %v2406 = vadd.f32 %v2405, 1.0
    %v2407 = vrcp.pop %v2406
    %v2408 = vmul.f32 1.0, %v2407
    %2410 = vrot.lane.b32.xlu0 %v2315, 64
    %v2411 = vpop.permute.xlu0 %2410
    %v2413 = vmul.f32 %v2408, %v2411
    %2415 = vrot.lane.b32.xlu0 %v2413, 64
    %v2416 = vpop.permute.xlu0 %2415
    %v2418 = vadd.f32 %v2229, %v2416
    %v2419 = vtanh.pop %v2418
    %v2420 = vsub.f32 1.0, %v2408
    %2422 = vrot.lane.b32.xlu0 %v2419, 96
    %v2423 = vpop.permute.xlu0 %2422
    %v2425 = vmul.f32 %v2420, %v2423
    %v2426 = vmul.f32 %v2408, %v2206
    %v2427 = vadd.f32 %v2425, %v2426
    %2429 = vrot.lane.b32.xlu0 %v2399, 96
    %v2430 = vpop.permute.xlu0 %2429
    %v2432 = vadd.f32 %v2230, %v2430
    %v2433 = vxor.u32 %v2432, 2147483648
    %v2434 = vmul.f32 %v2433, 1.442695
    %v2435 = vpow.pop %v2434
    %v2436 = vadd.f32 %v2435, 1.0
    %v2437 = vrcp.pop %v2436
    %v2438 = vmul.f32 1.0, %v2437
    %v2439 = vadd.f32 %v2231, %v2430
    %v2440 = vxor.u32 %v2439, 2147483648
    %v2441 = vmul.f32 %v2440, 1.442695
    %v2442 = vpow.pop %v2441
    %v2443 = vadd.f32 %v2442, 1.0
    %v2444 = vrcp.pop %v2443
    %v2445 = vmul.f32 1.0, %v2444
    %2446 = vrot.lane.b32.xlu0 %v2399, 32
    %v2447 = vpop.permute.xlu0 %2446
    %v2449 = vmul.f32 %v2438, %v2447
    %2451 = vrot.lane.b32.xlu0 %v2449, 64
    %v2452 = vpop.permute.xlu0 %2451
    %v2454 = vadd.f32 %v2231, %v2452
    %v2455 = vtanh.pop %v2454
    %v2456 = vsub.f32 1.0, %v2445
    %2458 = vrot.lane.b32.xlu0 %v2455, 96
    %v2459 = vpop.permute.xlu0 %2458
    %v2461 = vmul.f32 %v2456, %v2459
    %v2462 = vmul.f32 %v2445, %v2220
    %v2463 = vadd.f32 %v2461, %v2462
    %v2464 = vld [vmem:[%s542] sm:$0xff]
    %v2465 = vld [vmem:[%s1] sm:$0xff]
    %2467 = vset.pattern.permute.xlu0 0
    %2468 = vperm.xlu0 %2467, %v2464
    %v2469 = vpop.permute.xlu0 %2468
    %v2471 = vmul.f32 %v2469, %v2427
    %2473 = vrot.lane.b32.xlu0 %v2471, 96
    %v2474 = vpop.permute.xlu0 %2473
    %s2476 = scalar_lea.vmem [#allocation3], 56
    %2477 = vst.msk [vmem:[%s2476] sm:$0xff] %vm324, %v2474
    %2479 = vset.pattern.permute.xlu0 0
    %2480 = vperm.xlu0 %2479, %v2465
    %v2481 = vpop.permute.xlu0 %2480
    %v2483 = vmul.f32 %v2481, %v2463
    %2484 = vst.msk [vmem:[#allocation4] sm:$0xff] %vm324, %v2483
    %v2485 = vld [vmem:[#allocation3] sm:$0xff]
    %v2486 = vld [vmem:[#allocation3 + $0x8] sm:$0xff]
    %v2487 = vld [vmem:[#allocation3 + $0x10] sm:$0xff]
    %v2488 = vld [vmem:[#allocation3 + $0x18] sm:$0xff]
    %v2489 = vld [vmem:[#allocation3 + $0x20] sm:$0xff]
    %v2490 = vld [vmem:[#allocation3 + $0x28] sm:$0xff]
    %v2491 = vld [vmem:[#allocation3 + $0x30] sm:$0xff]
    %v2492 = vld [vmem:[#allocation3 + $0x38] sm:$0xff]
    %v2493 = vld [vmem:[#allocation4] sm:$0xff]
    %v2494 = vld [vmem:[#allocation4 + $0x8] sm:$0xff]
    %v2495 = vld [vmem:[#allocation4 + $0x10] sm:$0xff]
    %v2496 = vld [vmem:[#allocation4 + $0x18] sm:$0xff]
    %v2497 = vld [vmem:[#allocation4 + $0x20] sm:$0xff]
    %v2498 = vld [vmem:[#allocation4 + $0x28] sm:$0xff]
    %v2499 = vld [vmem:[#allocation4 + $0x30] sm:$0xff]
    %v2500 = vld [vmem:[#allocation4 + $0x38] sm:$0xff]
    %2509 = vrot.lane.b32.xlu0 %v2493, 32
    %v2510 = vpop.permute.xlu0 %2509
    %2511 = vrot.lane.b32.xlu0 %v2494, 32
    %v2512 = vpop.permute.xlu0 %2511
    %2513 = vrot.lane.b32.xlu0 %v2495, 32
    %v2514 = vpop.permute.xlu0 %2513
    %2515 = vrot.lane.b32.xlu0 %v2496, 32
    %v2516 = vpop.permute.xlu0 %2515
    %2517 = vrot.lane.b32.xlu0 %v2497, 32
    %v2518 = vpop.permute.xlu0 %2517
    %2519 = vrot.lane.b32.xlu0 %v2498, 32
    %v2520 = vpop.permute.xlu0 %2519
    %2521 = vrot.lane.b32.xlu0 %v2499, 32
    %v2522 = vpop.permute.xlu0 %2521
    %2523 = vrot.lane.b32.xlu0 %v2500, 32
    %v2524 = vpop.permute.xlu0 %2523
    %v2533 = vsel %vm324, %v2485, %v2510
    %v2534 = vsel %vm324, %v2486, %v2512
    %v2535 = vsel %vm324, %v2487, %v2514
    %v2536 = vsel %vm324, %v2488, %v2516
    %v2537 = vsel %vm324, %v2489, %v2518
    %v2538 = vsel %vm324, %v2490, %v2520
    %v2539 = vsel %vm324, %v2491, %v2522
    %v2540 = vsel %vm324, %v2492, %v2524
    %v2541 = vld [vmem:[#allocation11] sm:$0xff]
    %v2542 = vld [vmem:[#allocation11 + $0x8] sm:$0xff]
    %v2543 = vld [vmem:[#allocation11 + $0x10] sm:$0xff]
    %v2544 = vld [vmem:[#allocation11 + $0x18] sm:$0xff]
    %v2545 = vld [vmem:[#allocation11 + $0x20] sm:$0xff]
    %v2546 = vld [vmem:[#allocation11 + $0x28] sm:$0xff]
    %v2547 = vld [vmem:[#allocation11 + $0x30] sm:$0xff]
    %v2548 = vld [vmem:[#allocation11 + $0x38] sm:$0xff]
    %v2549 = vld [vmem:[#allocation11 + $0x40] sm:$0xff]
    %v2550 = vld [vmem:[#allocation11 + $0x48] sm:$0xff]
    %v2551 = vld [vmem:[#allocation11 + $0x50] sm:$0xff]
    %v2552 = vld [vmem:[#allocation11 + $0x58] sm:$0xff]
    %v2553 = vld [vmem:[#allocation11 + $0x60] sm:$0xff]
    %v2554 = vld [vmem:[#allocation11 + $0x68] sm:$0xff]
    %v2555 = vld [vmem:[#allocation11 + $0x70] sm:$0xff]
    %v2556 = vld [vmem:[#allocation11 + $0x78] sm:$0xff]
    %v2557 = vld [vmem:[%s9] sm:$0x3]
    %v2559 = vlaneseq
    %v2560 = vshrl.u32 %v2559, 7
    %v2561 = vsub.s32 0, %v2560
    %v2562 = vrot.slane %v2557, %v2561
    %v2563 = vlaneseq
    %v2564 = vshrl.u32 %v2563, 7
    %v2565 = vsub.s32 1, %v2564
    %v2566 = vrot.slane %v2557, %v2565
    %v2570 = vsel %vm293, %v2533, 0
    %v2573 = vsel %vm293, %v2534, 0
    %v2576 = vsel %vm293, %v2535, 0
    %v2579 = vsel %vm293, %v2536, 0
    %v2582 = vsel %vm293, %v2537, 0
    %v2585 = vsel %vm293, %v2538, 0
    %v2588 = vsel %vm293, %v2539, 0
    %v2591 = vsel %vm293, %v2540, 0
    %2593 = vmatprep.subr.mxu0 0.0
    %2594 = vmatpush1.msra.mxu0 0.0
    %2595 = vmatprep.subr.mxu0 0.0
    %2596 = vmatpush1.msra.mxu0 0.0
    %2597 = vmatprep.subr.mxu0 0.0
    %2598 = vmatpush1.msra.mxu0 0.0
    %2599 = vmatprep.subr.mxu0 0.0
    %2600 = vmatpush1.msra.mxu0 0.0
    %2601 = vmatprep.subr.mxu0 0.0
    %2602 = vmatpush1.msra.mxu0 0.0
    %2603 = vmatprep.subr.mxu0 0.0
    %2604 = vmatpush1.msra.mxu0 0.0
    %2605 = vmatprep.subr.mxu0 0.0
    %2606 = vmatpush1.msra.mxu0 0.0
    %2607 = vmatprep.subr.mxu0 0.0
    %2608 = vmatpush1.msra.mxu0 0.0
    %2609 = vmatprep.subr.mxu0 %v2556
    %2610 = vmatpush1.msra.mxu0 %v2555
    %2611 = vmatprep.subr.mxu0 %v2554
    %2612 = vmatpush1.msra.mxu0 %v2553
    %2613 = vmatprep.subr.mxu0 %v2552
    %2614 = vmatpush1.msra.mxu0 %v2551
    %2615 = vmatprep.subr.mxu0 %v2550
    %2616 = vmatpush1.msra.mxu0 %v2549
    %2617 = vmatprep.subr.mxu0 %v2548
    %2618 = vmatpush1.msra.mxu0 %v2547
    %2619 = vmatprep.subr.mxu0 %v2546
    %2620 = vmatpush1.msra.mxu0 %v2545
    %2621 = vmatprep.subr.mxu0 %v2544
    %2622 = vmatpush1.msra.mxu0 %v2543
    %2623 = vmatprep.subr.mxu0 %v2542
    %2624 = vmatpush1.msra.mxu0 %v2541
    %2625 = vmatprep.subr.mxu0 0.0
    %2626 = vmatpush2.msra.mxu0 0.0
    %2627 = vmatprep.subr.mxu0 0.0
    %2628 = vmatpush2.msra.mxu0 0.0
    %2629 = vmatprep.subr.mxu0 0.0
    %2630 = vmatpush2.msra.mxu0 0.0
    %2631 = vmatprep.subr.mxu0 0.0
    %2632 = vmatpush2.msra.mxu0 0.0
    %2633 = vmatprep.subr.mxu0 0.0
    %2634 = vmatpush2.msra.mxu0 0.0
    %2635 = vmatprep.subr.mxu0 0.0
    %2636 = vmatpush2.msra.mxu0 0.0
    %2637 = vmatprep.subr.mxu0 0.0
    %2638 = vmatpush2.msra.mxu0 0.0
    %2639 = vmatprep.subr.mxu0 0.0
    %2640 = vmatpush2.msra.mxu0 0.0
    %2641 = vmatprep.subr.mxu0 0.0
    %2642 = vmatpush2.msra.mxu0 0.0
    %2643 = vmatprep.subr.mxu0 0.0
    %2644 = vmatpush2.msra.mxu0 0.0
    %2645 = vmatprep.subr.mxu0 0.0
    %2646 = vmatpush2.msra.mxu0 0.0
    %2647 = vmatprep.subr.mxu0 0.0
    %2648 = vmatpush2.msra.mxu0 0.0
    %2649 = vmatprep.subr.mxu0 0.0
    %2650 = vmatpush2.msra.mxu0 0.0
    %2651 = vmatprep.subr.mxu0 0.0
    %2652 = vmatpush2.msra.mxu0 0.0
    %2653 = vmatprep.subr.mxu0 0.0
    %2654 = vmatpush2.msra.mxu0 0.0
    %2655 = vmatprep.subr.mxu0 0.0
    %2656 = vmatpush2.msra.mxu0 0.0
    %2657 = vmatprep.mubr.f32.mxu0 0.0
    %2658 = vmatmul.mubr.f32.gmra.mxu0 %v2570
    %v2659 = vpop.f32.mrf.mxu0
    %v2660 = vadd.f32 %v2562, %v2659
    %v2661 = vpop.f32.mrf.mxu0
    %v2662 = vadd.f32 %v2566, %v2661
    %2663 = vmatprep.mubr.f32.mxu0 0.0
    %2664 = vmatmul.mubr.f32.gmra.mxu0 %v2573
    %v2665 = vpop.f32.mrf.mxu0
    %v2666 = vadd.f32 %v2562, %v2665
    %v2667 = vpop.f32.mrf.mxu0
    %v2668 = vadd.f32 %v2566, %v2667
    %2669 = vmatprep.mubr.f32.mxu0 0.0
    %2670 = vmatmul.mubr.f32.gmra.mxu0 %v2576
    %v2671 = vpop.f32.mrf.mxu0
    %v2672 = vadd.f32 %v2562, %v2671
    %v2673 = vpop.f32.mrf.mxu0
    %v2674 = vadd.f32 %v2566, %v2673
    %2675 = vmatprep.mubr.f32.mxu0 0.0
    %2676 = vmatmul.mubr.f32.gmra.mxu0 %v2579
    %v2677 = vpop.f32.mrf.mxu0
    %v2678 = vadd.f32 %v2562, %v2677
    %v2679 = vpop.f32.mrf.mxu0
    %v2680 = vadd.f32 %v2566, %v2679
    %2681 = vmatprep.mubr.f32.mxu0 0.0
    %2682 = vmatmul.mubr.f32.gmra.mxu0 %v2582
    %v2683 = vpop.f32.mrf.mxu0
    %v2684 = vadd.f32 %v2562, %v2683
    %v2685 = vpop.f32.mrf.mxu0
    %v2686 = vadd.f32 %v2566, %v2685
    %2687 = vmatprep.mubr.f32.mxu0 0.0
    %2688 = vmatmul.mubr.f32.gmra.mxu0 %v2585
    %v2689 = vpop.f32.mrf.mxu0
    %v2690 = vadd.f32 %v2562, %v2689
    %v2691 = vpop.f32.mrf.mxu0
    %v2692 = vadd.f32 %v2566, %v2691
    %2693 = vmatprep.mubr.f32.mxu0 0.0
    %2694 = vmatmul.mubr.f32.gmra.mxu0 %v2588
    %v2695 = vpop.f32.mrf.mxu0
    %v2696 = vadd.f32 %v2562, %v2695
    %v2697 = vpop.f32.mrf.mxu0
    %v2698 = vadd.f32 %v2566, %v2697
    %2699 = vmatprep.mubr.f32.mxu0 0.0
    %2700 = vmatmul.mubr.f32.gmra.mxu0 %v2591
    %v2701 = vpop.f32.mrf.mxu0
    %v2702 = vadd.f32 %v2562, %v2701
    %v2703 = vpop.f32.mrf.mxu0
    %v2704 = vadd.f32 %v2566, %v2703
    %2705 = vdwg.mxu0
    %2706 = vst [vmem:[#allocation2] sm:$0xff] %v2660
    %2707 = vst.msk [vmem:[#allocation2 + $0x8] sm:$0xff] %vm293, %v2662
    %2708 = vst [vmem:[#allocation2 + $0x10] sm:$0xff] %v2666
    %2709 = vst.msk [vmem:[#allocation2 + $0x18] sm:$0xff] %vm293, %v2668
    %2710 = vst [vmem:[#allocation2 + $0x20] sm:$0xff] %v2672
    %2711 = vst.msk [vmem:[#allocation2 + $0x28] sm:$0xff] %vm293, %v2674
    %2712 = vst [vmem:[#allocation2 + $0x30] sm:$0xff] %v2678
    %2713 = vst.msk [vmem:[#allocation2 + $0x38] sm:$0xff] %vm293, %v2680
    %2714 = vst [vmem:[#allocation2 + $0x40] sm:$0xff] %v2684
    %2715 = vst.msk [vmem:[#allocation2 + $0x48] sm:$0xff] %vm293, %v2686
    %2716 = vst [vmem:[#allocation2 + $0x50] sm:$0xff] %v2690
    %2717 = vst.msk [vmem:[#allocation2 + $0x58] sm:$0xff] %vm293, %v2692
    %2718 = vst [vmem:[#allocation2 + $0x60] sm:$0xff] %v2696
    %2719 = vst.msk [vmem:[#allocation2 + $0x68] sm:$0xff] %vm293, %v2698
    %2720 = vst [vmem:[#allocation2 + $0x70] sm:$0xff] %v2702
    %2721 = vst.msk [vmem:[#allocation2 + $0x78] sm:$0xff] %vm293, %v2704
    %v2722 = vld [vmem:[#allocation2] sm:$0xff]
    %v2723 = vld [vmem:[#allocation2 + $0x8] sm:$0xff]
    %v2724 = vld [vmem:[%s310] sm:$0xff]
    %v2725 = vld [vmem:[%s310 + $0x8] sm:$0xff]
    %v2726 = vld [vmem:[#allocation13] sm:$0xff]
    %v2727 = vld [vmem:[#allocation13 + $0x8] sm:$0xff]
    %v2728 = vld [vmem:[#allocation13 + $0x10] sm:$0xff]
    %v2729 = vld [vmem:[#allocation13 + $0x18] sm:$0xff]
    %v2730 = vld [vmem:[%s11] sm:$0x1]
    %v2732 = vlaneseq
    %v2733 = vshrl.u32 %v2732, 7
    %v2734 = vsub.s32 0, %v2733
    %v2735 = vrot.slane %v2730, %v2734
    %2737 = vmatprep.subr.mxu0 0.0
    %2738 = vmatpush1.msra.mxu0 0.0
    %2739 = vmatprep.subr.mxu0 0.0
    %2740 = vmatpush1.msra.mxu0 0.0
    %2741 = vmatprep.subr.mxu0 0.0
    %2742 = vmatpush1.msra.mxu0 0.0
    %2743 = vmatprep.subr.mxu0 0.0
    %2744 = vmatpush1.msra.mxu0 0.0
    %2745 = vmatprep.subr.mxu0 0.0
    %2746 = vmatpush1.msra.mxu0 0.0
    %2747 = vmatprep.subr.mxu0 0.0
    %2748 = vmatpush1.msra.mxu0 0.0
    %2749 = vmatprep.subr.mxu0 0.0
    %2750 = vmatpush1.msra.mxu0 0.0
    %2751 = vmatprep.subr.mxu0 0.0
    %2752 = vmatpush1.msra.mxu0 0.0
    %2753 = vmatprep.subr.mxu0 0.0
    %2754 = vmatpush1.msra.mxu0 0.0
    %2755 = vmatprep.subr.mxu0 0.0
    %2756 = vmatpush1.msra.mxu0 0.0
    %2757 = vmatprep.subr.mxu0 0.0
    %2758 = vmatpush1.msra.mxu0 0.0
    %2759 = vmatprep.subr.mxu0 0.0
    %2760 = vmatpush1.msra.mxu0 0.0
    %2761 = vmatprep.subr.mxu0 0.0
    %2762 = vmatpush1.msra.mxu0 %v2729
    %2763 = vmatprep.subr.mxu0 0.0
    %2764 = vmatpush1.msra.mxu0 %v2728
    %2765 = vmatprep.subr.mxu0 0.0
    %2766 = vmatpush1.msra.mxu0 %v2727
    %2767 = vmatprep.subr.mxu0 0.0
    %2768 = vmatpush1.msra.mxu0 %v2726
    %2769 = vmatprep.subr.mxu0 0.0
    %2770 = vmatpush2.msra.mxu0 0.0
    %2771 = vmatprep.subr.mxu0 0.0
    %2772 = vmatpush2.msra.mxu0 0.0
    %2773 = vmatprep.subr.mxu0 0.0
    %2774 = vmatpush2.msra.mxu0 0.0
    %2775 = vmatprep.subr.mxu0 0.0
    %2776 = vmatpush2.msra.mxu0 0.0
    %2777 = vmatprep.subr.mxu0 0.0
    %2778 = vmatpush2.msra.mxu0 0.0
    %2779 = vmatprep.subr.mxu0 0.0
    %2780 = vmatpush2.msra.mxu0 0.0
    %2781 = vmatprep.subr.mxu0 0.0
    %2782 = vmatpush2.msra.mxu0 0.0
    %2783 = vmatprep.subr.mxu0 0.0
    %2784 = vmatpush2.msra.mxu0 0.0
    %2785 = vmatprep.subr.mxu0 0.0
    %2786 = vmatpush2.msra.mxu0 0.0
    %2787 = vmatprep.subr.mxu0 0.0
    %2788 = vmatpush2.msra.mxu0 0.0
    %2789 = vmatprep.subr.mxu0 0.0
    %2790 = vmatpush2.msra.mxu0 0.0
    %2791 = vmatprep.subr.mxu0 0.0
    %2792 = vmatpush2.msra.mxu0 0.0
    %2793 = vmatprep.subr.mxu0 0.0
    %2794 = vmatpush2.msra.mxu0 0.0
    %2795 = vmatprep.subr.mxu0 0.0
    %2796 = vmatpush2.msra.mxu0 0.0
    %2797 = vmatprep.subr.mxu0 0.0
    %2798 = vmatpush2.msra.mxu0 0.0
    %2799 = vmatprep.subr.mxu0 0.0
    %2800 = vmatpush2.msra.mxu0 0.0
    %2801 = vmatprep.mubr.f32.mxu0 0.0
    %2802 = vmatmul.mubr.f32.gmra.mxu0 %v326
    %v2803 = vpop.f32.mrf.mxu0
    %v2804 = vadd.f32 %v2735, %v2803
    %v2805 = vpop.f32.mrf.mxu0
    %2806 = vdwg.mxu0
    %v2807 = vld [vmem:[#allocation14] sm:$0xff]
    %v2808 = vld [vmem:[#allocation14 + $0x8] sm:$0xff]
    %v2809 = vld [vmem:[#allocation14 + $0x10] sm:$0xff]
    %v2810 = vld [vmem:[#allocation14 + $0x18] sm:$0xff]
    %v2811 = vld [vmem:[%s13] sm:$0x1]
    %v2813 = vlaneseq
    %v2814 = vshrl.u32 %v2813, 7
    %v2815 = vsub.s32 0, %v2814
    %v2816 = vrot.slane %v2811, %v2815
    %2818 = vmatprep.subr.mxu0 0.0
    %2819 = vmatpush1.msra.mxu0 0.0
    %2820 = vmatprep.subr.mxu0 0.0
    %2821 = vmatpush1.msra.mxu0 0.0
    %2822 = vmatprep.subr.mxu0 0.0
    %2823 = vmatpush1.msra.mxu0 0.0
    %2824 = vmatprep.subr.mxu0 0.0
    %2825 = vmatpush1.msra.mxu0 0.0
    %2826 = vmatprep.subr.mxu0 0.0
    %2827 = vmatpush1.msra.mxu0 0.0
    %2828 = vmatprep.subr.mxu0 0.0
    %2829 = vmatpush1.msra.mxu0 0.0
    %2830 = vmatprep.subr.mxu0 0.0
    %2831 = vmatpush1.msra.mxu0 0.0
    %2832 = vmatprep.subr.mxu0 0.0
    %2833 = vmatpush1.msra.mxu0 0.0
    %2834 = vmatprep.subr.mxu0 0.0
    %2835 = vmatpush1.msra.mxu0 0.0
    %2836 = vmatprep.subr.mxu0 0.0
    %2837 = vmatpush1.msra.mxu0 0.0
    %2838 = vmatprep.subr.mxu0 0.0
    %2839 = vmatpush1.msra.mxu0 0.0
    %2840 = vmatprep.subr.mxu0 0.0
    %2841 = vmatpush1.msra.mxu0 0.0
    %2842 = vmatprep.subr.mxu0 0.0
    %2843 = vmatpush1.msra.mxu0 %v2810
    %2844 = vmatprep.subr.mxu0 0.0
    %2845 = vmatpush1.msra.mxu0 %v2809
    %2846 = vmatprep.subr.mxu0 0.0
    %2847 = vmatpush1.msra.mxu0 %v2808
    %2848 = vmatprep.subr.mxu0 0.0
    %2849 = vmatpush1.msra.mxu0 %v2807
    %2850 = vmatprep.subr.mxu0 0.0
    %2851 = vmatpush2.msra.mxu0 0.0
    %2852 = vmatprep.subr.mxu0 0.0
    %2853 = vmatpush2.msra.mxu0 0.0
    %2854 = vmatprep.subr.mxu0 0.0
    %2855 = vmatpush2.msra.mxu0 0.0
    %2856 = vmatprep.subr.mxu0 0.0
    %2857 = vmatpush2.msra.mxu0 0.0
    %2858 = vmatprep.subr.mxu0 0.0
    %2859 = vmatpush2.msra.mxu0 0.0
    %2860 = vmatprep.subr.mxu0 0.0
    %2861 = vmatpush2.msra.mxu0 0.0
    %2862 = vmatprep.subr.mxu0 0.0
    %2863 = vmatpush2.msra.mxu0 0.0
    %2864 = vmatprep.subr.mxu0 0.0
    %2865 = vmatpush2.msra.mxu0 0.0
    %2866 = vmatprep.subr.mxu0 0.0
    %2867 = vmatpush2.msra.mxu0 0.0
    %2868 = vmatprep.subr.mxu0 0.0
    %2869 = vmatpush2.msra.mxu0 0.0
    %2870 = vmatprep.subr.mxu0 0.0
    %2871 = vmatpush2.msra.mxu0 0.0
    %2872 = vmatprep.subr.mxu0 0.0
    %2873 = vmatpush2.msra.mxu0 0.0
    %2874 = vmatprep.subr.mxu0 0.0
    %2875 = vmatpush2.msra.mxu0 0.0
    %2876 = vmatprep.subr.mxu0 0.0
    %2877 = vmatpush2.msra.mxu0 0.0
    %2878 = vmatprep.subr.mxu0 0.0
    %2879 = vmatpush2.msra.mxu0 0.0
    %2880 = vmatprep.subr.mxu0 0.0
    %2881 = vmatpush2.msra.mxu0 0.0
    %2882 = vmatprep.mubr.f32.mxu0 0.0
    %2883 = vmatmul.mubr.f32.gmra.mxu0 %v326
    %v2884 = vpop.f32.mrf.mxu0
    %v2885 = vadd.f32 %v2816, %v2884
    %v2886 = vpop.f32.mrf.mxu0
    %2887 = vdwg.mxu0
    %v2888 = vadd.f32 %v2722, %v2804
    %v2889 = vxor.u32 %v2888, 2147483648
    %v2890 = vmul.f32 %v2889, 1.442695
    %v2891 = vpow.pop %v2890
    %v2892 = vadd.f32 %v2891, 1.0
    %v2893 = vrcp.pop %v2892
    %v2894 = vmul.f32 1.0, %v2893
    %2896 = vrot.lane.b32.xlu0 %v2804, 64
    %v2897 = vpop.permute.xlu0 %2896
    %v2899 = vmul.f32 %v2894, %v2897
    %2901 = vrot.lane.b32.xlu0 %v2899, 64
    %v2902 = vpop.permute.xlu0 %2901
    %v2904 = vadd.f32 %v2722, %v2902
    %v2905 = vtanh.pop %v2904
    %v2906 = vsub.f32 1.0, %v2894
    %2908 = vrot.lane.b32.xlu0 %v2905, 96
    %v2909 = vpop.permute.xlu0 %2908
    %v2911 = vmul.f32 %v2906, %v2909
    %v2912 = vmul.f32 %v2894, 0.0
    %v2913 = vadd.f32 %v2911, %v2912
    %2915 = vrot.lane.b32.xlu0 %v2885, 96
    %v2916 = vpop.permute.xlu0 %2915
    %v2918 = vadd.f32 %v2724, %v2916
    %v2919 = vxor.u32 %v2918, 2147483648
    %v2920 = vmul.f32 %v2919, 1.442695
    %v2921 = vpow.pop %v2920
    %v2922 = vadd.f32 %v2921, 1.0
    %v2923 = vrcp.pop %v2922
    %v2924 = vmul.f32 1.0, %v2923
    %v2925 = vadd.f32 %v2725, %v2916
    %v2926 = vxor.u32 %v2925, 2147483648
    %v2927 = vmul.f32 %v2926, 1.442695
    %v2928 = vpow.pop %v2927
    %v2929 = vadd.f32 %v2928, 1.0
    %v2930 = vrcp.pop %v2929
    %v2931 = vmul.f32 1.0, %v2930
    %2932 = vrot.lane.b32.xlu0 %v2885, 32
    %v2933 = vpop.permute.xlu0 %2932
    %v2935 = vmul.f32 %v2924, %v2933
    %2937 = vrot.lane.b32.xlu0 %v2935, 64
    %v2938 = vpop.permute.xlu0 %2937
    %v2940 = vadd.f32 %v2725, %v2938
    %v2941 = vtanh.pop %v2940
    %v2942 = vsub.f32 1.0, %v2931
    %2944 = vrot.lane.b32.xlu0 %v2941, 96
    %v2945 = vpop.permute.xlu0 %2944
    %v2947 = vmul.f32 %v2942, %v2945
    %v2948 = vmul.f32 %v2931, 0.0
    %v2949 = vadd.f32 %v2947, %v2948
    %v2950 = vld [vmem:[%s1] sm:$0xff]
    %v2951 = vld [vmem:[%s542] sm:$0xff]
    %2953 = vset.pattern.permute.xlu0 0
    %2954 = vperm.xlu0 %2953, %v2950
    %v2955 = vpop.permute.xlu0 %2954
    %v2957 = vmul.f32 %v2955, %v2913
    %v2958 = vsub.f32 1.0, %v2950
    %2960 = vset.pattern.permute.xlu0 0
    %2961 = vperm.xlu0 %2960, %v2958
    %v2962 = vpop.permute.xlu0 %2961
    %v2964 = vmul.f32 %v2962, 0.0
    %v2965 = vadd.f32 %v2957, %v2964
    %2967 = vset.pattern.permute.xlu0 0
    %2968 = vperm.xlu0 %2967, %v2951
    %v2969 = vpop.permute.xlu0 %2968
    %v2971 = vmul.f32 %v2969, %v2949
    %v2972 = vsub.f32 1.0, %v2951
    %2974 = vset.pattern.permute.xlu0 0
    %2975 = vperm.xlu0 %2974, %v2972
    %v2976 = vpop.permute.xlu0 %2975
    %v2978 = vmul.f32 %v2976, 0.0
    %v2979 = vadd.f32 %v2971, %v2978
    %v2980 = vld [vmem:[%s579] sm:$0xff]
    %v2981 = vld [vmem:[%s579 + $0x8] sm:$0xff]
    %v2982 = vld [vmem:[%s581] sm:$0xff]
    %v2983 = vld [vmem:[%s581 + $0x8] sm:$0xff]
    %2985 = vrot.lane.b32.xlu0 %v2965, 96
    %v2986 = vpop.permute.xlu0 %2985
    %v2987 = vsel %vm324, %v2986, 0
    %2989 = vmatprep.subr.mxu0 0.0
    %2990 = vmatpush1.msra.mxu0 0.0
    %2991 = vmatprep.subr.mxu0 0.0
    %2992 = vmatpush1.msra.mxu0 0.0
    %2993 = vmatprep.subr.mxu0 0.0
    %2994 = vmatpush1.msra.mxu0 0.0
    %2995 = vmatprep.subr.mxu0 0.0
    %2996 = vmatpush1.msra.mxu0 0.0
    %2997 = vmatprep.subr.mxu0 0.0
    %2998 = vmatpush1.msra.mxu0 0.0
    %2999 = vmatprep.subr.mxu0 0.0
    %3000 = vmatpush1.msra.mxu0 0.0
    %3001 = vmatprep.subr.mxu0 0.0
    %3002 = vmatpush1.msra.mxu0 0.0
    %3003 = vmatprep.subr.mxu0 0.0
    %3004 = vmatpush1.msra.mxu0 0.0
    %3005 = vmatprep.subr.mxu0 0.0
    %3006 = vmatpush1.msra.mxu0 0.0
    %3007 = vmatprep.subr.mxu0 0.0
    %3008 = vmatpush1.msra.mxu0 0.0
    %3009 = vmatprep.subr.mxu0 0.0
    %3010 = vmatpush1.msra.mxu0 0.0
    %3011 = vmatprep.subr.mxu0 0.0
    %3012 = vmatpush1.msra.mxu0 0.0
    %3013 = vmatprep.subr.mxu0 0.0
    %3014 = vmatpush1.msra.mxu0 %v2729
    %3015 = vmatprep.subr.mxu0 0.0
    %3016 = vmatpush1.msra.mxu0 %v2728
    %3017 = vmatprep.subr.mxu0 0.0
    %3018 = vmatpush1.msra.mxu0 %v2727
    %3019 = vmatprep.subr.mxu0 0.0
    %3020 = vmatpush1.msra.mxu0 %v2726
    %3021 = vmatprep.subr.mxu0 0.0
    %3022 = vmatpush2.msra.mxu0 0.0
    %3023 = vmatprep.subr.mxu0 0.0
    %3024 = vmatpush2.msra.mxu0 0.0
    %3025 = vmatprep.subr.mxu0 0.0
    %3026 = vmatpush2.msra.mxu0 0.0
    %3027 = vmatprep.subr.mxu0 0.0
    %3028 = vmatpush2.msra.mxu0 0.0
    %3029 = vmatprep.subr.mxu0 0.0
    %3030 = vmatpush2.msra.mxu0 0.0
    %3031 = vmatprep.subr.mxu0 0.0
    %3032 = vmatpush2.msra.mxu0 0.0
    %3033 = vmatprep.subr.mxu0 0.0
    %3034 = vmatpush2.msra.mxu0 0.0
    %3035 = vmatprep.subr.mxu0 0.0
    %3036 = vmatpush2.msra.mxu0 0.0
    %3037 = vmatprep.subr.mxu0 0.0
    %3038 = vmatpush2.msra.mxu0 0.0
    %3039 = vmatprep.subr.mxu0 0.0
    %3040 = vmatpush2.msra.mxu0 0.0
    %3041 = vmatprep.subr.mxu0 0.0
    %3042 = vmatpush2.msra.mxu0 0.0
    %3043 = vmatprep.subr.mxu0 0.0
    %3044 = vmatpush2.msra.mxu0 0.0
    %3045 = vmatprep.subr.mxu0 0.0
    %3046 = vmatpush2.msra.mxu0 0.0
    %3047 = vmatprep.subr.mxu0 0.0
    %3048 = vmatpush2.msra.mxu0 0.0
    %3049 = vmatprep.subr.mxu0 0.0
    %3050 = vmatpush2.msra.mxu0 0.0
    %3051 = vmatprep.subr.mxu0 0.0
    %3052 = vmatpush2.msra.mxu0 0.0
    %3053 = vmatprep.mubr.f32.mxu0 0.0
    %3054 = vmatmul.mubr.f32.gmra.mxu0 %v2987
    %v3055 = vpop.f32.mrf.mxu0
    %v3056 = vadd.f32 %v2735, %v3055
    %v3057 = vpop.f32.mrf.mxu0
    %3058 = vdwg.mxu0
    %v3060 = vsel %vm324, %v2979, 0
    %3062 = vmatprep.subr.mxu0 0.0
    %3063 = vmatpush1.msra.mxu0 0.0
    %3064 = vmatprep.subr.mxu0 0.0
    %3065 = vmatpush1.msra.mxu0 0.0
    %3066 = vmatprep.subr.mxu0 0.0
    %3067 = vmatpush1.msra.mxu0 0.0
    %3068 = vmatprep.subr.mxu0 0.0
    %3069 = vmatpush1.msra.mxu0 0.0
    %3070 = vmatprep.subr.mxu0 0.0
    %3071 = vmatpush1.msra.mxu0 0.0
    %3072 = vmatprep.subr.mxu0 0.0
    %3073 = vmatpush1.msra.mxu0 0.0
    %3074 = vmatprep.subr.mxu0 0.0
    %3075 = vmatpush1.msra.mxu0 0.0
    %3076 = vmatprep.subr.mxu0 0.0
    %3077 = vmatpush1.msra.mxu0 0.0
    %3078 = vmatprep.subr.mxu0 0.0
    %3079 = vmatpush1.msra.mxu0 0.0
    %3080 = vmatprep.subr.mxu0 0.0
    %3081 = vmatpush1.msra.mxu0 0.0
    %3082 = vmatprep.subr.mxu0 0.0
    %3083 = vmatpush1.msra.mxu0 0.0
    %3084 = vmatprep.subr.mxu0 0.0
    %3085 = vmatpush1.msra.mxu0 0.0
    %3086 = vmatprep.subr.mxu0 0.0
    %3087 = vmatpush1.msra.mxu0 %v2810
    %3088 = vmatprep.subr.mxu0 0.0
    %3089 = vmatpush1.msra.mxu0 %v2809
    %3090 = vmatprep.subr.mxu0 0.0
    %3091 = vmatpush1.msra.mxu0 %v2808
    %3092 = vmatprep.subr.mxu0 0.0
    %3093 = vmatpush1.msra.mxu0 %v2807
    %3094 = vmatprep.subr.mxu0 0.0
    %3095 = vmatpush2.msra.mxu0 0.0
    %3096 = vmatprep.subr.mxu0 0.0
    %3097 = vmatpush2.msra.mxu0 0.0
    %3098 = vmatprep.subr.mxu0 0.0
    %3099 = vmatpush2.msra.mxu0 0.0
    %3100 = vmatprep.subr.mxu0 0.0
    %3101 = vmatpush2.msra.mxu0 0.0
    %3102 = vmatprep.subr.mxu0 0.0
    %3103 = vmatpush2.msra.mxu0 0.0
    %3104 = vmatprep.subr.mxu0 0.0
    %3105 = vmatpush2.msra.mxu0 0.0
    %3106 = vmatprep.subr.mxu0 0.0
    %3107 = vmatpush2.msra.mxu0 0.0
    %3108 = vmatprep.subr.mxu0 0.0
    %3109 = vmatpush2.msra.mxu0 0.0
    %3110 = vmatprep.subr.mxu0 0.0
    %3111 = vmatpush2.msra.mxu0 0.0
    %3112 = vmatprep.subr.mxu0 0.0
    %3113 = vmatpush2.msra.mxu0 0.0
    %3114 = vmatprep.subr.mxu0 0.0
    %3115 = vmatpush2.msra.mxu0 0.0
    %3116 = vmatprep.subr.mxu0 0.0
    %3117 = vmatpush2.msra.mxu0 0.0
    %3118 = vmatprep.subr.mxu0 0.0
    %3119 = vmatpush2.msra.mxu0 0.0
    %3120 = vmatprep.subr.mxu0 0.0
    %3121 = vmatpush2.msra.mxu0 0.0
    %3122 = vmatprep.subr.mxu0 0.0
    %3123 = vmatpush2.msra.mxu0 0.0
    %3124 = vmatprep.subr.mxu0 0.0
    %3125 = vmatpush2.msra.mxu0 0.0
    %3126 = vmatprep.mubr.f32.mxu0 0.0
    %3127 = vmatmul.mubr.f32.gmra.mxu0 %v3060
    %v3128 = vpop.f32.mrf.mxu0
    %v3129 = vadd.f32 %v2816, %v3128
    %v3130 = vpop.f32.mrf.mxu0
    %3131 = vdwg.mxu0
    %v3132 = vadd.f32 %v2980, %v3056
    %v3133 = vxor.u32 %v3132, 2147483648
    %v3134 = vmul.f32 %v3133, 1.442695
    %v3135 = vpow.pop %v3134
    %v3136 = vadd.f32 %v3135, 1.0
    %v3137 = vrcp.pop %v3136
    %v3138 = vmul.f32 1.0, %v3137
    %3140 = vrot.lane.b32.xlu0 %v3056, 64
    %v3141 = vpop.permute.xlu0 %3140
    %v3143 = vmul.f32 %v3138, %v3141
    %3145 = vrot.lane.b32.xlu0 %v3143, 64
    %v3146 = vpop.permute.xlu0 %3145
    %v3148 = vadd.f32 %v2980, %v3146
    %v3149 = vtanh.pop %v3148
    %v3150 = vsub.f32 1.0, %v3138
    %3152 = vrot.lane.b32.xlu0 %v3149, 96
    %v3153 = vpop.permute.xlu0 %3152
    %v3155 = vmul.f32 %v3150, %v3153
    %v3156 = vmul.f32 %v3138, %v2965
    %v3157 = vadd.f32 %v3155, %v3156
    %3159 = vrot.lane.b32.xlu0 %v3129, 96
    %v3160 = vpop.permute.xlu0 %3159
    %v3162 = vadd.f32 %v2982, %v3160
    %v3163 = vxor.u32 %v3162, 2147483648
    %v3164 = vmul.f32 %v3163, 1.442695
    %v3165 = vpow.pop %v3164
    %v3166 = vadd.f32 %v3165, 1.0
    %v3167 = vrcp.pop %v3166
    %v3168 = vmul.f32 1.0, %v3167
    %v3169 = vadd.f32 %v2983, %v3160
    %v3170 = vxor.u32 %v3169, 2147483648
    %v3171 = vmul.f32 %v3170, 1.442695
    %v3172 = vpow.pop %v3171
    %v3173 = vadd.f32 %v3172, 1.0
    %v3174 = vrcp.pop %v3173
    %v3175 = vmul.f32 1.0, %v3174
    %3176 = vrot.lane.b32.xlu0 %v3129, 32
    %v3177 = vpop.permute.xlu0 %3176
    %v3179 = vmul.f32 %v3168, %v3177
    %3181 = vrot.lane.b32.xlu0 %v3179, 64
    %v3182 = vpop.permute.xlu0 %3181
    %v3184 = vadd.f32 %v2983, %v3182
    %v3185 = vtanh.pop %v3184
    %v3186 = vsub.f32 1.0, %v3175
    %3188 = vrot.lane.b32.xlu0 %v3185, 96
    %v3189 = vpop.permute.xlu0 %3188
    %v3191 = vmul.f32 %v3186, %v3189
    %v3192 = vmul.f32 %v3175, %v2979
    %v3193 = vadd.f32 %v3191, %v3192
    %v3194 = vld [vmem:[%s816] sm:$0xff]
    %v3195 = vld [vmem:[%s818] sm:$0xff]
    %3197 = vset.pattern.permute.xlu0 0
    %3198 = vperm.xlu0 %3197, %v3194
    %v3199 = vpop.permute.xlu0 %3198
    %v3201 = vmul.f32 %v3199, %v3157
    %v3202 = vsub.f32 1.0, %v3194
    %3204 = vset.pattern.permute.xlu0 0
    %3205 = vperm.xlu0 %3204, %v3202
    %v3206 = vpop.permute.xlu0 %3205
    %v3208 = vmul.f32 %v3206, %v2965
    %v3209 = vadd.f32 %v3201, %v3208
    %3211 = vset.pattern.permute.xlu0 0
    %3212 = vperm.xlu0 %3211, %v3195
    %v3213 = vpop.permute.xlu0 %3212
    %v3215 = vmul.f32 %v3213, %v3193
    %v3216 = vsub.f32 1.0, %v3195
    %3218 = vset.pattern.permute.xlu0 0
    %3219 = vperm.xlu0 %3218, %v3216
    %v3220 = vpop.permute.xlu0 %3219
    %v3222 = vmul.f32 %v3220, %v2979
    %v3223 = vadd.f32 %v3215, %v3222
    %v3224 = vld [vmem:[%s856] sm:$0xff]
    %v3225 = vld [vmem:[%s856 + $0x8] sm:$0xff]
    %v3226 = vld [vmem:[%s858] sm:$0xff]
    %v3227 = vld [vmem:[%s858 + $0x8] sm:$0xff]
    %3229 = vrot.lane.b32.xlu0 %v3209, 96
    %v3230 = vpop.permute.xlu0 %3229
    %v3231 = vsel %vm324, %v3230, 0
    %3233 = vmatprep.subr.mxu0 0.0
    %3234 = vmatpush1.msra.mxu0 0.0
    %3235 = vmatprep.subr.mxu0 0.0
    %3236 = vmatpush1.msra.mxu0 0.0
    %3237 = vmatprep.subr.mxu0 0.0
    %3238 = vmatpush1.msra.mxu0 0.0
    %3239 = vmatprep.subr.mxu0 0.0
    %3240 = vmatpush1.msra.mxu0 0.0
    %3241 = vmatprep.subr.mxu0 0.0
    %3242 = vmatpush1.msra.mxu0 0.0
    %3243 = vmatprep.subr.mxu0 0.0
    %3244 = vmatpush1.msra.mxu0 0.0
    %3245 = vmatprep.subr.mxu0 0.0
    %3246 = vmatpush1.msra.mxu0 0.0
    %3247 = vmatprep.subr.mxu0 0.0
    %3248 = vmatpush1.msra.mxu0 0.0
    %3249 = vmatprep.subr.mxu0 0.0
    %3250 = vmatpush1.msra.mxu0 0.0
    %3251 = vmatprep.subr.mxu0 0.0
    %3252 = vmatpush1.msra.mxu0 0.0
    %3253 = vmatprep.subr.mxu0 0.0
    %3254 = vmatpush1.msra.mxu0 0.0
    %3255 = vmatprep.subr.mxu0 0.0
    %3256 = vmatpush1.msra.mxu0 0.0
    %3257 = vmatprep.subr.mxu0 0.0
    %3258 = vmatpush1.msra.mxu0 %v2729
    %3259 = vmatprep.subr.mxu0 0.0
    %3260 = vmatpush1.msra.mxu0 %v2728
    %3261 = vmatprep.subr.mxu0 0.0
    %3262 = vmatpush1.msra.mxu0 %v2727
    %3263 = vmatprep.subr.mxu0 0.0
    %3264 = vmatpush1.msra.mxu0 %v2726
    %3265 = vmatprep.subr.mxu0 0.0
    %3266 = vmatpush2.msra.mxu0 0.0
    %3267 = vmatprep.subr.mxu0 0.0
    %3268 = vmatpush2.msra.mxu0 0.0
    %3269 = vmatprep.subr.mxu0 0.0
    %3270 = vmatpush2.msra.mxu0 0.0
    %3271 = vmatprep.subr.mxu0 0.0
    %3272 = vmatpush2.msra.mxu0 0.0
    %3273 = vmatprep.subr.mxu0 0.0
    %3274 = vmatpush2.msra.mxu0 0.0
    %3275 = vmatprep.subr.mxu0 0.0
    %3276 = vmatpush2.msra.mxu0 0.0
    %3277 = vmatprep.subr.mxu0 0.0
    %3278 = vmatpush2.msra.mxu0 0.0
    %3279 = vmatprep.subr.mxu0 0.0
    %3280 = vmatpush2.msra.mxu0 0.0
    %3281 = vmatprep.subr.mxu0 0.0
    %3282 = vmatpush2.msra.mxu0 0.0
    %3283 = vmatprep.subr.mxu0 0.0
    %3284 = vmatpush2.msra.mxu0 0.0
    %3285 = vmatprep.subr.mxu0 0.0
    %3286 = vmatpush2.msra.mxu0 0.0
    %3287 = vmatprep.subr.mxu0 0.0
    %3288 = vmatpush2.msra.mxu0 0.0
    %3289 = vmatprep.subr.mxu0 0.0
    %3290 = vmatpush2.msra.mxu0 0.0
    %3291 = vmatprep.subr.mxu0 0.0
    %3292 = vmatpush2.msra.mxu0 0.0
    %3293 = vmatprep.subr.mxu0 0.0
    %3294 = vmatpush2.msra.mxu0 0.0
    %3295 = vmatprep.subr.mxu0 0.0
    %3296 = vmatpush2.msra.mxu0 0.0
    %3297 = vmatprep.mubr.f32.mxu0 0.0
    %3298 = vmatmul.mubr.f32.gmra.mxu0 %v3231
    %v3299 = vpop.f32.mrf.mxu0
    %v3300 = vadd.f32 %v2735, %v3299
    %v3301 = vpop.f32.mrf.mxu0
    %3302 = vdwg.mxu0
    %v3304 = vsel %vm324, %v3223, 0
    %3306 = vmatprep.subr.mxu0 0.0
    %3307 = vmatpush1.msra.mxu0 0.0
    %3308 = vmatprep.subr.mxu0 0.0
    %3309 = vmatpush1.msra.mxu0 0.0
    %3310 = vmatprep.subr.mxu0 0.0
    %3311 = vmatpush1.msra.mxu0 0.0
    %3312 = vmatprep.subr.mxu0 0.0
    %3313 = vmatpush1.msra.mxu0 0.0
    %3314 = vmatprep.subr.mxu0 0.0
    %3315 = vmatpush1.msra.mxu0 0.0
    %3316 = vmatprep.subr.mxu0 0.0
    %3317 = vmatpush1.msra.mxu0 0.0
    %3318 = vmatprep.subr.mxu0 0.0
    %3319 = vmatpush1.msra.mxu0 0.0
    %3320 = vmatprep.subr.mxu0 0.0
    %3321 = vmatpush1.msra.mxu0 0.0
    %3322 = vmatprep.subr.mxu0 0.0
    %3323 = vmatpush1.msra.mxu0 0.0
    %3324 = vmatprep.subr.mxu0 0.0
    %3325 = vmatpush1.msra.mxu0 0.0
    %3326 = vmatprep.subr.mxu0 0.0
    %3327 = vmatpush1.msra.mxu0 0.0
    %3328 = vmatprep.subr.mxu0 0.0
    %3329 = vmatpush1.msra.mxu0 0.0
    %3330 = vmatprep.subr.mxu0 0.0
    %3331 = vmatpush1.msra.mxu0 %v2810
    %3332 = vmatprep.subr.mxu0 0.0
    %3333 = vmatpush1.msra.mxu0 %v2809
    %3334 = vmatprep.subr.mxu0 0.0
    %3335 = vmatpush1.msra.mxu0 %v2808
    %3336 = vmatprep.subr.mxu0 0.0
    %3337 = vmatpush1.msra.mxu0 %v2807
    %3338 = vmatprep.subr.mxu0 0.0
    %3339 = vmatpush2.msra.mxu0 0.0
    %3340 = vmatprep.subr.mxu0 0.0
    %3341 = vmatpush2.msra.mxu0 0.0
    %3342 = vmatprep.subr.mxu0 0.0
    %3343 = vmatpush2.msra.mxu0 0.0
    %3344 = vmatprep.subr.mxu0 0.0
    %3345 = vmatpush2.msra.mxu0 0.0
    %3346 = vmatprep.subr.mxu0 0.0
    %3347 = vmatpush2.msra.mxu0 0.0
    %3348 = vmatprep.subr.mxu0 0.0
    %3349 = vmatpush2.msra.mxu0 0.0
    %3350 = vmatprep.subr.mxu0 0.0
    %3351 = vmatpush2.msra.mxu0 0.0
    %3352 = vmatprep.subr.mxu0 0.0
    %3353 = vmatpush2.msra.mxu0 0.0
    %3354 = vmatprep.subr.mxu0 0.0
    %3355 = vmatpush2.msra.mxu0 0.0
    %3356 = vmatprep.subr.mxu0 0.0
    %3357 = vmatpush2.msra.mxu0 0.0
    %3358 = vmatprep.subr.mxu0 0.0
    %3359 = vmatpush2.msra.mxu0 0.0
    %3360 = vmatprep.subr.mxu0 0.0
    %3361 = vmatpush2.msra.mxu0 0.0
    %3362 = vmatprep.subr.mxu0 0.0
    %3363 = vmatpush2.msra.mxu0 0.0
    %3364 = vmatprep.subr.mxu0 0.0
    %3365 = vmatpush2.msra.mxu0 0.0
    %3366 = vmatprep.subr.mxu0 0.0
    %3367 = vmatpush2.msra.mxu0 0.0
    %3368 = vmatprep.subr.mxu0 0.0
    %3369 = vmatpush2.msra.mxu0 0.0
    %3370 = vmatprep.mubr.f32.mxu0 0.0
    %3371 = vmatmul.mubr.f32.gmra.mxu0 %v3304
    %v3372 = vpop.f32.mrf.mxu0
    %v3373 = vadd.f32 %v2816, %v3372
    %v3374 = vpop.f32.mrf.mxu0
    %3375 = vdwg.mxu0
    %v3376 = vadd.f32 %v3224, %v3300
    %v3377 = vxor.u32 %v3376, 2147483648
    %v3378 = vmul.f32 %v3377, 1.442695
    %v3379 = vpow.pop %v3378
    %v3380 = vadd.f32 %v3379, 1.0
    %v3381 = vrcp.pop %v3380
    %v3382 = vmul.f32 1.0, %v3381
    %3384 = vrot.lane.b32.xlu0 %v3300, 64
    %v3385 = vpop.permute.xlu0 %3384
    %v3387 = vmul.f32 %v3382, %v3385
    %3389 = vrot.lane.b32.xlu0 %v3387, 64
    %v3390 = vpop.permute.xlu0 %3389
    %v3392 = vadd.f32 %v3224, %v3390
    %v3393 = vtanh.pop %v3392
    %v3394 = vsub.f32 1.0, %v3382
    %3396 = vrot.lane.b32.xlu0 %v3393, 96
    %v3397 = vpop.permute.xlu0 %3396
    %v3399 = vmul.f32 %v3394, %v3397
    %v3400 = vmul.f32 %v3382, %v3209
    %v3401 = vadd.f32 %v3399, %v3400
    %3403 = vrot.lane.b32.xlu0 %v3373, 96
    %v3404 = vpop.permute.xlu0 %3403
    %v3406 = vadd.f32 %v3226, %v3404
    %v3407 = vxor.u32 %v3406, 2147483648
    %v3408 = vmul.f32 %v3407, 1.442695
    %v3409 = vpow.pop %v3408
    %v3410 = vadd.f32 %v3409, 1.0
    %v3411 = vrcp.pop %v3410
    %v3412 = vmul.f32 1.0, %v3411
    %v3413 = vadd.f32 %v3227, %v3404
    %v3414 = vxor.u32 %v3413, 2147483648
    %v3415 = vmul.f32 %v3414, 1.442695
    %v3416 = vpow.pop %v3415
    %v3417 = vadd.f32 %v3416, 1.0
    %v3418 = vrcp.pop %v3417
    %v3419 = vmul.f32 1.0, %v3418
    %3420 = vrot.lane.b32.xlu0 %v3373, 32
    %v3421 = vpop.permute.xlu0 %3420
    %v3423 = vmul.f32 %v3412, %v3421
    %3425 = vrot.lane.b32.xlu0 %v3423, 64
    %v3426 = vpop.permute.xlu0 %3425
    %v3428 = vadd.f32 %v3227, %v3426
    %v3429 = vtanh.pop %v3428
    %v3430 = vsub.f32 1.0, %v3419
    %3432 = vrot.lane.b32.xlu0 %v3429, 96
    %v3433 = vpop.permute.xlu0 %3432
    %v3435 = vmul.f32 %v3430, %v3433
    %v3436 = vmul.f32 %v3419, %v3223
    %v3437 = vadd.f32 %v3435, %v3436
    %v3438 = vld [vmem:[%s1093] sm:$0xff]
    %v3439 = vld [vmem:[%s1095] sm:$0xff]
    %3441 = vset.pattern.permute.xlu0 0
    %3442 = vperm.xlu0 %3441, %v3438
    %v3443 = vpop.permute.xlu0 %3442
    %v3445 = vmul.f32 %v3443, %v3401
    %v3446 = vsub.f32 1.0, %v3438
    %3448 = vset.pattern.permute.xlu0 0
    %3449 = vperm.xlu0 %3448, %v3446
    %v3450 = vpop.permute.xlu0 %3449
    %v3452 = vmul.f32 %v3450, %v3209
    %v3453 = vadd.f32 %v3445, %v3452
    %3455 = vset.pattern.permute.xlu0 0
    %3456 = vperm.xlu0 %3455, %v3439
    %v3457 = vpop.permute.xlu0 %3456
    %v3459 = vmul.f32 %v3457, %v3437
    %v3460 = vsub.f32 1.0, %v3439
    %3462 = vset.pattern.permute.xlu0 0
    %3463 = vperm.xlu0 %3462, %v3460
    %v3464 = vpop.permute.xlu0 %3463
    %v3466 = vmul.f32 %v3464, %v3223
    %v3467 = vadd.f32 %v3459, %v3466
    %v3468 = vld [vmem:[%s1133] sm:$0xff]
    %v3469 = vld [vmem:[%s1133 + $0x8] sm:$0xff]
    %v3470 = vld [vmem:[%s1135] sm:$0xff]
    %v3471 = vld [vmem:[%s1135 + $0x8] sm:$0xff]
    %3473 = vrot.lane.b32.xlu0 %v3453, 96
    %v3474 = vpop.permute.xlu0 %3473
    %v3475 = vsel %vm324, %v3474, 0
    %3477 = vmatprep.subr.mxu0 0.0
    %3478 = vmatpush1.msra.mxu0 0.0
    %3479 = vmatprep.subr.mxu0 0.0
    %3480 = vmatpush1.msra.mxu0 0.0
    %3481 = vmatprep.subr.mxu0 0.0
    %3482 = vmatpush1.msra.mxu0 0.0
    %3483 = vmatprep.subr.mxu0 0.0
    %3484 = vmatpush1.msra.mxu0 0.0
    %3485 = vmatprep.subr.mxu0 0.0
    %3486 = vmatpush1.msra.mxu0 0.0
    %3487 = vmatprep.subr.mxu0 0.0
    %3488 = vmatpush1.msra.mxu0 0.0
    %3489 = vmatprep.subr.mxu0 0.0
    %3490 = vmatpush1.msra.mxu0 0.0
    %3491 = vmatprep.subr.mxu0 0.0
    %3492 = vmatpush1.msra.mxu0 0.0
    %3493 = vmatprep.subr.mxu0 0.0
    %3494 = vmatpush1.msra.mxu0 0.0
    %3495 = vmatprep.subr.mxu0 0.0
    %3496 = vmatpush1.msra.mxu0 0.0
    %3497 = vmatprep.subr.mxu0 0.0
    %3498 = vmatpush1.msra.mxu0 0.0
    %3499 = vmatprep.subr.mxu0 0.0
    %3500 = vmatpush1.msra.mxu0 0.0
    %3501 = vmatprep.subr.mxu0 0.0
    %3502 = vmatpush1.msra.mxu0 %v2729
    %3503 = vmatprep.subr.mxu0 0.0
    %3504 = vmatpush1.msra.mxu0 %v2728
    %3505 = vmatprep.subr.mxu0 0.0
    %3506 = vmatpush1.msra.mxu0 %v2727
    %3507 = vmatprep.subr.mxu0 0.0
    %3508 = vmatpush1.msra.mxu0 %v2726
    %3509 = vmatprep.subr.mxu0 0.0
    %3510 = vmatpush2.msra.mxu0 0.0
    %3511 = vmatprep.subr.mxu0 0.0
    %3512 = vmatpush2.msra.mxu0 0.0
    %3513 = vmatprep.subr.mxu0 0.0
    %3514 = vmatpush2.msra.mxu0 0.0
    %3515 = vmatprep.subr.mxu0 0.0
    %3516 = vmatpush2.msra.mxu0 0.0
    %3517 = vmatprep.subr.mxu0 0.0
    %3518 = vmatpush2.msra.mxu0 0.0
    %3519 = vmatprep.subr.mxu0 0.0
    %3520 = vmatpush2.msra.mxu0 0.0
    %3521 = vmatprep.subr.mxu0 0.0
    %3522 = vmatpush2.msra.mxu0 0.0
    %3523 = vmatprep.subr.mxu0 0.0
    %3524 = vmatpush2.msra.mxu0 0.0
    %3525 = vmatprep.subr.mxu0 0.0
    %3526 = vmatpush2.msra.mxu0 0.0
    %3527 = vmatprep.subr.mxu0 0.0
    %3528 = vmatpush2.msra.mxu0 0.0
    %3529 = vmatprep.subr.mxu0 0.0
    %3530 = vmatpush2.msra.mxu0 0.0
    %3531 = vmatprep.subr.mxu0 0.0
    %3532 = vmatpush2.msra.mxu0 0.0
    %3533 = vmatprep.subr.mxu0 0.0
    %3534 = vmatpush2.msra.mxu0 0.0
    %3535 = vmatprep.subr.mxu0 0.0
    %3536 = vmatpush2.msra.mxu0 0.0
    %3537 = vmatprep.subr.mxu0 0.0
    %3538 = vmatpush2.msra.mxu0 0.0
    %3539 = vmatprep.subr.mxu0 0.0
    %3540 = vmatpush2.msra.mxu0 0.0
    %3541 = vmatprep.mubr.f32.mxu0 0.0
    %3542 = vmatmul.mubr.f32.gmra.mxu0 %v3475
    %v3543 = vpop.f32.mrf.mxu0
    %v3544 = vadd.f32 %v2735, %v3543
    %v3545 = vpop.f32.mrf.mxu0
    %3546 = vdwg.mxu0
    %v3548 = vsel %vm324, %v3467, 0
    %3550 = vmatprep.subr.mxu0 0.0
    %3551 = vmatpush1.msra.mxu0 0.0
    %3552 = vmatprep.subr.mxu0 0.0
    %3553 = vmatpush1.msra.mxu0 0.0
    %3554 = vmatprep.subr.mxu0 0.0
    %3555 = vmatpush1.msra.mxu0 0.0
    %3556 = vmatprep.subr.mxu0 0.0
    %3557 = vmatpush1.msra.mxu0 0.0
    %3558 = vmatprep.subr.mxu0 0.0
    %3559 = vmatpush1.msra.mxu0 0.0
    %3560 = vmatprep.subr.mxu0 0.0
    %3561 = vmatpush1.msra.mxu0 0.0
    %3562 = vmatprep.subr.mxu0 0.0
    %3563 = vmatpush1.msra.mxu0 0.0
    %3564 = vmatprep.subr.mxu0 0.0
    %3565 = vmatpush1.msra.mxu0 0.0
    %3566 = vmatprep.subr.mxu0 0.0
    %3567 = vmatpush1.msra.mxu0 0.0
    %3568 = vmatprep.subr.mxu0 0.0
    %3569 = vmatpush1.msra.mxu0 0.0
    %3570 = vmatprep.subr.mxu0 0.0
    %3571 = vmatpush1.msra.mxu0 0.0
    %3572 = vmatprep.subr.mxu0 0.0
    %3573 = vmatpush1.msra.mxu0 0.0
    %3574 = vmatprep.subr.mxu0 0.0
    %3575 = vmatpush1.msra.mxu0 %v2810
    %3576 = vmatprep.subr.mxu0 0.0
    %3577 = vmatpush1.msra.mxu0 %v2809
    %3578 = vmatprep.subr.mxu0 0.0
    %3579 = vmatpush1.msra.mxu0 %v2808
    %3580 = vmatprep.subr.mxu0 0.0
    %3581 = vmatpush1.msra.mxu0 %v2807
    %3582 = vmatprep.subr.mxu0 0.0
    %3583 = vmatpush2.msra.mxu0 0.0
    %3584 = vmatprep.subr.mxu0 0.0
    %3585 = vmatpush2.msra.mxu0 0.0
    %3586 = vmatprep.subr.mxu0 0.0
    %3587 = vmatpush2.msra.mxu0 0.0
    %3588 = vmatprep.subr.mxu0 0.0
    %3589 = vmatpush2.msra.mxu0 0.0
    %3590 = vmatprep.subr.mxu0 0.0
    %3591 = vmatpush2.msra.mxu0 0.0
    %3592 = vmatprep.subr.mxu0 0.0
    %3593 = vmatpush2.msra.mxu0 0.0
    %3594 = vmatprep.subr.mxu0 0.0
    %3595 = vmatpush2.msra.mxu0 0.0
    %3596 = vmatprep.subr.mxu0 0.0
    %3597 = vmatpush2.msra.mxu0 0.0
    %3598 = vmatprep.subr.mxu0 0.0
    %3599 = vmatpush2.msra.mxu0 0.0
    %3600 = vmatprep.subr.mxu0 0.0
    %3601 = vmatpush2.msra.mxu0 0.0
    %3602 = vmatprep.subr.mxu0 0.0
    %3603 = vmatpush2.msra.mxu0 0.0
    %3604 = vmatprep.subr.mxu0 0.0
    %3605 = vmatpush2.msra.mxu0 0.0
    %3606 = vmatprep.subr.mxu0 0.0
    %3607 = vmatpush2.msra.mxu0 0.0
    %3608 = vmatprep.subr.mxu0 0.0
    %3609 = vmatpush2.msra.mxu0 0.0
    %3610 = vmatprep.subr.mxu0 0.0
    %3611 = vmatpush2.msra.mxu0 0.0
    %3612 = vmatprep.subr.mxu0 0.0
    %3613 = vmatpush2.msra.mxu0 0.0
    %3614 = vmatprep.mubr.f32.mxu0 0.0
    %3615 = vmatmul.mubr.f32.gmra.mxu0 %v3548
    %v3616 = vpop.f32.mrf.mxu0
    %v3617 = vadd.f32 %v2816, %v3616
    %v3618 = vpop.f32.mrf.mxu0
    %3619 = vdwg.mxu0
    %v3620 = vadd.f32 %v3468, %v3544
    %v3621 = vxor.u32 %v3620, 2147483648
    %v3622 = vmul.f32 %v3621, 1.442695
    %v3623 = vpow.pop %v3622
    %v3624 = vadd.f32 %v3623, 1.0
    %v3625 = vrcp.pop %v3624
    %v3626 = vmul.f32 1.0, %v3625
    %3628 = vrot.lane.b32.xlu0 %v3544, 64
    %v3629 = vpop.permute.xlu0 %3628
    %v3631 = vmul.f32 %v3626, %v3629
    %3633 = vrot.lane.b32.xlu0 %v3631, 64
    %v3634 = vpop.permute.xlu0 %3633
    %v3636 = vadd.f32 %v3468, %v3634
    %v3637 = vtanh.pop %v3636
    %v3638 = vsub.f32 1.0, %v3626
    %3640 = vrot.lane.b32.xlu0 %v3637, 96
    %v3641 = vpop.permute.xlu0 %3640
    %v3643 = vmul.f32 %v3638, %v3641
    %v3644 = vmul.f32 %v3626, %v3453
    %v3645 = vadd.f32 %v3643, %v3644
    %3647 = vrot.lane.b32.xlu0 %v3617, 96
    %v3648 = vpop.permute.xlu0 %3647
    %v3650 = vadd.f32 %v3470, %v3648
    %v3651 = vxor.u32 %v3650, 2147483648
    %v3652 = vmul.f32 %v3651, 1.442695
    %v3653 = vpow.pop %v3652
    %v3654 = vadd.f32 %v3653, 1.0
    %v3655 = vrcp.pop %v3654
    %v3656 = vmul.f32 1.0, %v3655
    %v3657 = vadd.f32 %v3471, %v3648
    %v3658 = vxor.u32 %v3657, 2147483648
    %v3659 = vmul.f32 %v3658, 1.442695
    %v3660 = vpow.pop %v3659
    %v3661 = vadd.f32 %v3660, 1.0
    %v3662 = vrcp.pop %v3661
    %v3663 = vmul.f32 1.0, %v3662
    %3664 = vrot.lane.b32.xlu0 %v3617, 32
    %v3665 = vpop.permute.xlu0 %3664
    %v3667 = vmul.f32 %v3656, %v3665
    %3669 = vrot.lane.b32.xlu0 %v3667, 64
    %v3670 = vpop.permute.xlu0 %3669
    %v3672 = vadd.f32 %v3471, %v3670
    %v3673 = vtanh.pop %v3672
    %v3674 = vsub.f32 1.0, %v3663
    %3676 = vrot.lane.b32.xlu0 %v3673, 96
    %v3677 = vpop.permute.xlu0 %3676
    %v3679 = vmul.f32 %v3674, %v3677
    %v3680 = vmul.f32 %v3663, %v3467
    %v3681 = vadd.f32 %v3679, %v3680
    %v3682 = vld [vmem:[%s1370] sm:$0xff]
    %v3683 = vld [vmem:[%s1372] sm:$0xff]
    %3685 = vset.pattern.permute.xlu0 0
    %3686 = vperm.xlu0 %3685, %v3682
    %v3687 = vpop.permute.xlu0 %3686
    %v3689 = vmul.f32 %v3687, %v3645
    %v3690 = vsub.f32 1.0, %v3682
    %3692 = vset.pattern.permute.xlu0 0
    %3693 = vperm.xlu0 %3692, %v3690
    %v3694 = vpop.permute.xlu0 %3693
    %v3696 = vmul.f32 %v3694, %v3453
    %v3697 = vadd.f32 %v3689, %v3696
    %3699 = vset.pattern.permute.xlu0 0
    %3700 = vperm.xlu0 %3699, %v3683
    %v3701 = vpop.permute.xlu0 %3700
    %v3703 = vmul.f32 %v3701, %v3681
    %v3704 = vsub.f32 1.0, %v3683
    %3706 = vset.pattern.permute.xlu0 0
    %3707 = vperm.xlu0 %3706, %v3704
    %v3708 = vpop.permute.xlu0 %3707
    %v3710 = vmul.f32 %v3708, %v3467
    %v3711 = vadd.f32 %v3703, %v3710
    %3713 = vrot.lane.b32.xlu0 %v3697, 96
    %v3714 = vpop.permute.xlu0 %3713
    %v3715 = vsel %vm324, %v3714, 0
    %3717 = vmatprep.subr.mxu0 0.0
    %3718 = vmatpush1.msra.mxu0 0.0
    %3719 = vmatprep.subr.mxu0 0.0
    %3720 = vmatpush1.msra.mxu0 0.0
    %3721 = vmatprep.subr.mxu0 0.0
    %3722 = vmatpush1.msra.mxu0 0.0
    %3723 = vmatprep.subr.mxu0 0.0
    %3724 = vmatpush1.msra.mxu0 0.0
    %3725 = vmatprep.subr.mxu0 0.0
    %3726 = vmatpush1.msra.mxu0 0.0
    %3727 = vmatprep.subr.mxu0 0.0
    %3728 = vmatpush1.msra.mxu0 0.0
    %3729 = vmatprep.subr.mxu0 0.0
    %3730 = vmatpush1.msra.mxu0 0.0
    %3731 = vmatprep.subr.mxu0 0.0
    %3732 = vmatpush1.msra.mxu0 0.0
    %3733 = vmatprep.subr.mxu0 0.0
    %3734 = vmatpush1.msra.mxu0 0.0
    %3735 = vmatprep.subr.mxu0 0.0
    %3736 = vmatpush1.msra.mxu0 0.0
    %3737 = vmatprep.subr.mxu0 0.0
    %3738 = vmatpush1.msra.mxu0 0.0
    %3739 = vmatprep.subr.mxu0 0.0
    %3740 = vmatpush1.msra.mxu0 0.0
    %3741 = vmatprep.subr.mxu0 0.0
    %3742 = vmatpush1.msra.mxu0 %v2729
    %3743 = vmatprep.subr.mxu0 0.0
    %3744 = vmatpush1.msra.mxu0 %v2728
    %3745 = vmatprep.subr.mxu0 0.0
    %3746 = vmatpush1.msra.mxu0 %v2727
    %3747 = vmatprep.subr.mxu0 0.0
    %3748 = vmatpush1.msra.mxu0 %v2726
    %3749 = vmatprep.subr.mxu0 0.0
    %3750 = vmatpush2.msra.mxu0 0.0
    %3751 = vmatprep.subr.mxu0 0.0
    %3752 = vmatpush2.msra.mxu0 0.0
    %3753 = vmatprep.subr.mxu0 0.0
    %3754 = vmatpush2.msra.mxu0 0.0
    %3755 = vmatprep.subr.mxu0 0.0
    %3756 = vmatpush2.msra.mxu0 0.0
    %3757 = vmatprep.subr.mxu0 0.0
    %3758 = vmatpush2.msra.mxu0 0.0
    %3759 = vmatprep.subr.mxu0 0.0
    %3760 = vmatpush2.msra.mxu0 0.0
    %3761 = vmatprep.subr.mxu0 0.0
    %3762 = vmatpush2.msra.mxu0 0.0
    %3763 = vmatprep.subr.mxu0 0.0
    %3764 = vmatpush2.msra.mxu0 0.0
    %3765 = vmatprep.subr.mxu0 0.0
    %3766 = vmatpush2.msra.mxu0 0.0
    %3767 = vmatprep.subr.mxu0 0.0
    %3768 = vmatpush2.msra.mxu0 0.0
    %3769 = vmatprep.subr.mxu0 0.0
    %3770 = vmatpush2.msra.mxu0 0.0
    %3771 = vmatprep.subr.mxu0 0.0
    %3772 = vmatpush2.msra.mxu0 0.0
    %3773 = vmatprep.subr.mxu0 0.0
    %3774 = vmatpush2.msra.mxu0 0.0
    %3775 = vmatprep.subr.mxu0 0.0
    %3776 = vmatpush2.msra.mxu0 0.0
    %3777 = vmatprep.subr.mxu0 0.0
    %3778 = vmatpush2.msra.mxu0 0.0
    %3779 = vmatprep.subr.mxu0 0.0
    %3780 = vmatpush2.msra.mxu0 0.0
    %3781 = vmatprep.mubr.f32.mxu0 0.0
    %3782 = vmatmul.mubr.f32.gmra.mxu0 %v3715
    %v3783 = vpop.f32.mrf.mxu0
    %v3784 = vadd.f32 %v2735, %v3783
    %v3785 = vpop.f32.mrf.mxu0
    %3786 = vdwg.mxu0
    %v3788 = vsel %vm324, %v3711, 0
    %3790 = vmatprep.subr.mxu0 0.0
    %3791 = vmatpush1.msra.mxu0 0.0
    %3792 = vmatprep.subr.mxu0 0.0
    %3793 = vmatpush1.msra.mxu0 0.0
    %3794 = vmatprep.subr.mxu0 0.0
    %3795 = vmatpush1.msra.mxu0 0.0
    %3796 = vmatprep.subr.mxu0 0.0
    %3797 = vmatpush1.msra.mxu0 0.0
    %3798 = vmatprep.subr.mxu0 0.0
    %3799 = vmatpush1.msra.mxu0 0.0
    %3800 = vmatprep.subr.mxu0 0.0
    %3801 = vmatpush1.msra.mxu0 0.0
    %3802 = vmatprep.subr.mxu0 0.0
    %3803 = vmatpush1.msra.mxu0 0.0
    %3804 = vmatprep.subr.mxu0 0.0
    %3805 = vmatpush1.msra.mxu0 0.0
    %3806 = vmatprep.subr.mxu0 0.0
    %3807 = vmatpush1.msra.mxu0 0.0
    %3808 = vmatprep.subr.mxu0 0.0
    %3809 = vmatpush1.msra.mxu0 0.0
    %3810 = vmatprep.subr.mxu0 0.0
    %3811 = vmatpush1.msra.mxu0 0.0
    %3812 = vmatprep.subr.mxu0 0.0
    %3813 = vmatpush1.msra.mxu0 0.0
    %3814 = vmatprep.subr.mxu0 0.0
    %3815 = vmatpush1.msra.mxu0 %v2810
    %3816 = vmatprep.subr.mxu0 0.0
    %3817 = vmatpush1.msra.mxu0 %v2809
    %3818 = vmatprep.subr.mxu0 0.0
    %3819 = vmatpush1.msra.mxu0 %v2808
    %3820 = vmatprep.subr.mxu0 0.0
    %3821 = vmatpush1.msra.mxu0 %v2807
    %3822 = vmatprep.subr.mxu0 0.0
    %3823 = vmatpush2.msra.mxu0 0.0
    %3824 = vmatprep.subr.mxu0 0.0
    %3825 = vmatpush2.msra.mxu0 0.0
    %3826 = vmatprep.subr.mxu0 0.0
    %3827 = vmatpush2.msra.mxu0 0.0
    %3828 = vmatprep.subr.mxu0 0.0
    %3829 = vmatpush2.msra.mxu0 0.0
    %3830 = vmatprep.subr.mxu0 0.0
    %3831 = vmatpush2.msra.mxu0 0.0
    %3832 = vmatprep.subr.mxu0 0.0
    %3833 = vmatpush2.msra.mxu0 0.0
    %3834 = vmatprep.subr.mxu0 0.0
    %3835 = vmatpush2.msra.mxu0 0.0
    %3836 = vmatprep.subr.mxu0 0.0
    %3837 = vmatpush2.msra.mxu0 0.0
    %3838 = vmatprep.subr.mxu0 0.0
    %3839 = vmatpush2.msra.mxu0 0.0
    %3840 = vmatprep.subr.mxu0 0.0
    %3841 = vmatpush2.msra.mxu0 0.0
    %3842 = vmatprep.subr.mxu0 0.0
    %3843 = vmatpush2.msra.mxu0 0.0
    %3844 = vmatprep.subr.mxu0 0.0
    %3845 = vmatpush2.msra.mxu0 0.0
    %3846 = vmatprep.subr.mxu0 0.0
    %3847 = vmatpush2.msra.mxu0 0.0
    %3848 = vmatprep.subr.mxu0 0.0
    %3849 = vmatpush2.msra.mxu0 0.0
    %3850 = vmatprep.subr.mxu0 0.0
    %3851 = vmatpush2.msra.mxu0 0.0
    %3852 = vmatprep.subr.mxu0 0.0
    %3853 = vmatpush2.msra.mxu0 0.0
    %3854 = vmatprep.mubr.f32.mxu0 0.0
    %3855 = vmatmul.mubr.f32.gmra.mxu0 %v3788
    %v3856 = vpop.f32.mrf.mxu0
    %v3857 = vadd.f32 %v2816, %v3856
    %v3858 = vpop.f32.mrf.mxu0
    %3859 = vdwg.mxu0
    %v3860 = vadd.f32 %v3470, %v3784
    %v3861 = vxor.u32 %v3860, 2147483648
    %v3862 = vmul.f32 %v3861, 1.442695
    %v3863 = vpow.pop %v3862
    %v3864 = vadd.f32 %v3863, 1.0
    %v3865 = vrcp.pop %v3864
    %v3866 = vmul.f32 1.0, %v3865
    %3868 = vrot.lane.b32.xlu0 %v3784, 64
    %v3869 = vpop.permute.xlu0 %3868
    %v3871 = vmul.f32 %v3866, %v3869
    %3873 = vrot.lane.b32.xlu0 %v3871, 64
    %v3874 = vpop.permute.xlu0 %3873
    %v3876 = vadd.f32 %v3470, %v3874
    %v3877 = vtanh.pop %v3876
    %v3878 = vsub.f32 1.0, %v3866
    %3880 = vrot.lane.b32.xlu0 %v3877, 96
    %v3881 = vpop.permute.xlu0 %3880
    %v3883 = vmul.f32 %v3878, %v3881
    %v3884 = vmul.f32 %v3866, %v3697
    %v3885 = vadd.f32 %v3883, %v3884
    %3887 = vrot.lane.b32.xlu0 %v3857, 96
    %v3888 = vpop.permute.xlu0 %3887
    %v3890 = vadd.f32 %v3468, %v3888
    %v3891 = vxor.u32 %v3890, 2147483648
    %v3892 = vmul.f32 %v3891, 1.442695
    %v3893 = vpow.pop %v3892
    %v3894 = vadd.f32 %v3893, 1.0
    %v3895 = vrcp.pop %v3894
    %v3896 = vmul.f32 1.0, %v3895
    %v3897 = vadd.f32 %v3469, %v3888
    %v3898 = vxor.u32 %v3897, 2147483648
    %v3899 = vmul.f32 %v3898, 1.442695
    %v3900 = vpow.pop %v3899
    %v3901 = vadd.f32 %v3900, 1.0
    %v3902 = vrcp.pop %v3901
    %v3903 = vmul.f32 1.0, %v3902
    %3904 = vrot.lane.b32.xlu0 %v3857, 32
    %v3905 = vpop.permute.xlu0 %3904
    %v3907 = vmul.f32 %v3896, %v3905
    %3909 = vrot.lane.b32.xlu0 %v3907, 64
    %v3910 = vpop.permute.xlu0 %3909
    %v3912 = vadd.f32 %v3469, %v3910
    %v3913 = vtanh.pop %v3912
    %v3914 = vsub.f32 1.0, %v3903
    %3916 = vrot.lane.b32.xlu0 %v3913, 96
    %v3917 = vpop.permute.xlu0 %3916
    %v3919 = vmul.f32 %v3914, %v3917
    %v3920 = vmul.f32 %v3903, %v3711
    %v3921 = vadd.f32 %v3919, %v3920
    %v3922 = vmul.f32 %v3701, %v3885
    %v3923 = vmul.f32 %v3708, %v3697
    %v3924 = vadd.f32 %v3922, %v3923
    %v3925 = vmul.f32 %v3687, %v3921
    %v3926 = vmul.f32 %v3694, %v3711
    %v3927 = vadd.f32 %v3925, %v3926
    %3929 = vrot.lane.b32.xlu0 %v3924, 96
    %v3930 = vpop.permute.xlu0 %3929
    %v3931 = vsel %vm324, %v3930, 0
    %3933 = vmatprep.subr.mxu0 0.0
    %3934 = vmatpush1.msra.mxu0 0.0
    %3935 = vmatprep.subr.mxu0 0.0
    %3936 = vmatpush1.msra.mxu0 0.0
    %3937 = vmatprep.subr.mxu0 0.0
    %3938 = vmatpush1.msra.mxu0 0.0
    %3939 = vmatprep.subr.mxu0 0.0
    %3940 = vmatpush1.msra.mxu0 0.0
    %3941 = vmatprep.subr.mxu0 0.0
    %3942 = vmatpush1.msra.mxu0 0.0
    %3943 = vmatprep.subr.mxu0 0.0
    %3944 = vmatpush1.msra.mxu0 0.0
    %3945 = vmatprep.subr.mxu0 0.0
    %3946 = vmatpush1.msra.mxu0 0.0
    %3947 = vmatprep.subr.mxu0 0.0
    %3948 = vmatpush1.msra.mxu0 0.0
    %3949 = vmatprep.subr.mxu0 0.0
    %3950 = vmatpush1.msra.mxu0 0.0
    %3951 = vmatprep.subr.mxu0 0.0
    %3952 = vmatpush1.msra.mxu0 0.0
    %3953 = vmatprep.subr.mxu0 0.0
    %3954 = vmatpush1.msra.mxu0 0.0
    %3955 = vmatprep.subr.mxu0 0.0
    %3956 = vmatpush1.msra.mxu0 0.0
    %3957 = vmatprep.subr.mxu0 0.0
    %3958 = vmatpush1.msra.mxu0 %v2729
    %3959 = vmatprep.subr.mxu0 0.0
    %3960 = vmatpush1.msra.mxu0 %v2728
    %3961 = vmatprep.subr.mxu0 0.0
    %3962 = vmatpush1.msra.mxu0 %v2727
    %3963 = vmatprep.subr.mxu0 0.0
    %3964 = vmatpush1.msra.mxu0 %v2726
    %3965 = vmatprep.subr.mxu0 0.0
    %3966 = vmatpush2.msra.mxu0 0.0
    %3967 = vmatprep.subr.mxu0 0.0
    %3968 = vmatpush2.msra.mxu0 0.0
    %3969 = vmatprep.subr.mxu0 0.0
    %3970 = vmatpush2.msra.mxu0 0.0
    %3971 = vmatprep.subr.mxu0 0.0
    %3972 = vmatpush2.msra.mxu0 0.0
    %3973 = vmatprep.subr.mxu0 0.0
    %3974 = vmatpush2.msra.mxu0 0.0
    %3975 = vmatprep.subr.mxu0 0.0
    %3976 = vmatpush2.msra.mxu0 0.0
    %3977 = vmatprep.subr.mxu0 0.0
    %3978 = vmatpush2.msra.mxu0 0.0
    %3979 = vmatprep.subr.mxu0 0.0
    %3980 = vmatpush2.msra.mxu0 0.0
    %3981 = vmatprep.subr.mxu0 0.0
    %3982 = vmatpush2.msra.mxu0 0.0
    %3983 = vmatprep.subr.mxu0 0.0
    %3984 = vmatpush2.msra.mxu0 0.0
    %3985 = vmatprep.subr.mxu0 0.0
    %3986 = vmatpush2.msra.mxu0 0.0
    %3987 = vmatprep.subr.mxu0 0.0
    %3988 = vmatpush2.msra.mxu0 0.0
    %3989 = vmatprep.subr.mxu0 0.0
    %3990 = vmatpush2.msra.mxu0 0.0
    %3991 = vmatprep.subr.mxu0 0.0
    %3992 = vmatpush2.msra.mxu0 0.0
    %3993 = vmatprep.subr.mxu0 0.0
    %3994 = vmatpush2.msra.mxu0 0.0
    %3995 = vmatprep.subr.mxu0 0.0
    %3996 = vmatpush2.msra.mxu0 0.0
    %3997 = vmatprep.mubr.f32.mxu0 0.0
    %3998 = vmatmul.mubr.f32.gmra.mxu0 %v3931
    %v3999 = vpop.f32.mrf.mxu0
    %v4000 = vadd.f32 %v2735, %v3999
    %v4001 = vpop.f32.mrf.mxu0
    %4002 = vdwg.mxu0
    %v4004 = vsel %vm324, %v3927, 0
    %4006 = vmatprep.subr.mxu0 0.0
    %4007 = vmatpush1.msra.mxu0 0.0
    %4008 = vmatprep.subr.mxu0 0.0
    %4009 = vmatpush1.msra.mxu0 0.0
    %4010 = vmatprep.subr.mxu0 0.0
    %4011 = vmatpush1.msra.mxu0 0.0
    %4012 = vmatprep.subr.mxu0 0.0
    %4013 = vmatpush1.msra.mxu0 0.0
    %4014 = vmatprep.subr.mxu0 0.0
    %4015 = vmatpush1.msra.mxu0 0.0
    %4016 = vmatprep.subr.mxu0 0.0
    %4017 = vmatpush1.msra.mxu0 0.0
    %4018 = vmatprep.subr.mxu0 0.0
    %4019 = vmatpush1.msra.mxu0 0.0
    %4020 = vmatprep.subr.mxu0 0.0
    %4021 = vmatpush1.msra.mxu0 0.0
    %4022 = vmatprep.subr.mxu0 0.0
    %4023 = vmatpush1.msra.mxu0 0.0
    %4024 = vmatprep.subr.mxu0 0.0
    %4025 = vmatpush1.msra.mxu0 0.0
    %4026 = vmatprep.subr.mxu0 0.0
    %4027 = vmatpush1.msra.mxu0 0.0
    %4028 = vmatprep.subr.mxu0 0.0
    %4029 = vmatpush1.msra.mxu0 0.0
    %4030 = vmatprep.subr.mxu0 0.0
    %4031 = vmatpush1.msra.mxu0 %v2810
    %4032 = vmatprep.subr.mxu0 0.0
    %4033 = vmatpush1.msra.mxu0 %v2809
    %4034 = vmatprep.subr.mxu0 0.0
    %4035 = vmatpush1.msra.mxu0 %v2808
    %4036 = vmatprep.subr.mxu0 0.0
    %4037 = vmatpush1.msra.mxu0 %v2807
    %4038 = vmatprep.subr.mxu0 0.0
    %4039 = vmatpush2.msra.mxu0 0.0
    %4040 = vmatprep.subr.mxu0 0.0
    %4041 = vmatpush2.msra.mxu0 0.0
    %4042 = vmatprep.subr.mxu0 0.0
    %4043 = vmatpush2.msra.mxu0 0.0
    %4044 = vmatprep.subr.mxu0 0.0
    %4045 = vmatpush2.msra.mxu0 0.0
    %4046 = vmatprep.subr.mxu0 0.0
    %4047 = vmatpush2.msra.mxu0 0.0
    %4048 = vmatprep.subr.mxu0 0.0
    %4049 = vmatpush2.msra.mxu0 0.0
    %4050 = vmatprep.subr.mxu0 0.0
    %4051 = vmatpush2.msra.mxu0 0.0
    %4052 = vmatprep.subr.mxu0 0.0
    %4053 = vmatpush2.msra.mxu0 0.0
    %4054 = vmatprep.subr.mxu0 0.0
    %4055 = vmatpush2.msra.mxu0 0.0
    %4056 = vmatprep.subr.mxu0 0.0
    %4057 = vmatpush2.msra.mxu0 0.0
    %4058 = vmatprep.subr.mxu0 0.0
    %4059 = vmatpush2.msra.mxu0 0.0
    %4060 = vmatprep.subr.mxu0 0.0
    %4061 = vmatpush2.msra.mxu0 0.0
    %4062 = vmatprep.subr.mxu0 0.0
    %4063 = vmatpush2.msra.mxu0 0.0
    %4064 = vmatprep.subr.mxu0 0.0
    %4065 = vmatpush2.msra.mxu0 0.0
    %4066 = vmatprep.subr.mxu0 0.0
    %4067 = vmatpush2.msra.mxu0 0.0
    %4068 = vmatprep.subr.mxu0 0.0
    %4069 = vmatpush2.msra.mxu0 0.0
    %4070 = vmatprep.mubr.f32.mxu0 0.0
    %4071 = vmatmul.mubr.f32.gmra.mxu0 %v4004
    %v4072 = vpop.f32.mrf.mxu0
    %v4073 = vadd.f32 %v2816, %v4072
    %v4074 = vpop.f32.mrf.mxu0
    %4075 = vdwg.mxu0
    %v4076 = vadd.f32 %v3226, %v4000
    %v4077 = vxor.u32 %v4076, 2147483648
    %v4078 = vmul.f32 %v4077, 1.442695
    %v4079 = vpow.pop %v4078
    %v4080 = vadd.f32 %v4079, 1.0
    %v4081 = vrcp.pop %v4080
    %v4082 = vmul.f32 1.0, %v4081
    %4084 = vrot.lane.b32.xlu0 %v4000, 64
    %v4085 = vpop.permute.xlu0 %4084
    %v4087 = vmul.f32 %v4082, %v4085
    %4089 = vrot.lane.b32.xlu0 %v4087, 64
    %v4090 = vpop.permute.xlu0 %4089
    %v4092 = vadd.f32 %v3226, %v4090
    %v4093 = vtanh.pop %v4092
    %v4094 = vsub.f32 1.0, %v4082
    %4096 = vrot.lane.b32.xlu0 %v4093, 96
    %v4097 = vpop.permute.xlu0 %4096
    %v4099 = vmul.f32 %v4094, %v4097
    %v4100 = vmul.f32 %v4082, %v3924
    %v4101 = vadd.f32 %v4099, %v4100
    %4103 = vrot.lane.b32.xlu0 %v4073, 96
    %v4104 = vpop.permute.xlu0 %4103
    %v4106 = vadd.f32 %v3224, %v4104
    %v4107 = vxor.u32 %v4106, 2147483648
    %v4108 = vmul.f32 %v4107, 1.442695
    %v4109 = vpow.pop %v4108
    %v4110 = vadd.f32 %v4109, 1.0
    %v4111 = vrcp.pop %v4110
    %v4112 = vmul.f32 1.0, %v4111
    %v4113 = vadd.f32 %v3225, %v4104
    %v4114 = vxor.u32 %v4113, 2147483648
    %v4115 = vmul.f32 %v4114, 1.442695
    %v4116 = vpow.pop %v4115
    %v4117 = vadd.f32 %v4116, 1.0
    %v4118 = vrcp.pop %v4117
    %v4119 = vmul.f32 1.0, %v4118
    %4120 = vrot.lane.b32.xlu0 %v4073, 32
    %v4121 = vpop.permute.xlu0 %4120
    %v4123 = vmul.f32 %v4112, %v4121
    %4125 = vrot.lane.b32.xlu0 %v4123, 64
    %v4126 = vpop.permute.xlu0 %4125
    %v4128 = vadd.f32 %v3225, %v4126
    %v4129 = vtanh.pop %v4128
    %v4130 = vsub.f32 1.0, %v4119
    %4132 = vrot.lane.b32.xlu0 %v4129, 96
    %v4133 = vpop.permute.xlu0 %4132
    %v4135 = vmul.f32 %v4130, %v4133
    %v4136 = vmul.f32 %v4119, %v3927
    %v4137 = vadd.f32 %v4135, %v4136
    %v4138 = vmul.f32 %v3457, %v4101
    %v4139 = vmul.f32 %v3464, %v3924
    %v4140 = vadd.f32 %v4138, %v4139
    %v4141 = vmul.f32 %v3443, %v4137
    %v4142 = vmul.f32 %v3450, %v3927
    %v4143 = vadd.f32 %v4141, %v4142
    %4145 = vrot.lane.b32.xlu0 %v4140, 96
    %v4146 = vpop.permute.xlu0 %4145
    %v4147 = vsel %vm324, %v4146, 0
    %4149 = vmatprep.subr.mxu0 0.0
    %4150 = vmatpush1.msra.mxu0 0.0
    %4151 = vmatprep.subr.mxu0 0.0
    %4152 = vmatpush1.msra.mxu0 0.0
    %4153 = vmatprep.subr.mxu0 0.0
    %4154 = vmatpush1.msra.mxu0 0.0
    %4155 = vmatprep.subr.mxu0 0.0
    %4156 = vmatpush1.msra.mxu0 0.0
    %4157 = vmatprep.subr.mxu0 0.0
    %4158 = vmatpush1.msra.mxu0 0.0
    %4159 = vmatprep.subr.mxu0 0.0
    %4160 = vmatpush1.msra.mxu0 0.0
    %4161 = vmatprep.subr.mxu0 0.0
    %4162 = vmatpush1.msra.mxu0 0.0
    %4163 = vmatprep.subr.mxu0 0.0
    %4164 = vmatpush1.msra.mxu0 0.0
    %4165 = vmatprep.subr.mxu0 0.0
    %4166 = vmatpush1.msra.mxu0 0.0
    %4167 = vmatprep.subr.mxu0 0.0
    %4168 = vmatpush1.msra.mxu0 0.0
    %4169 = vmatprep.subr.mxu0 0.0
    %4170 = vmatpush1.msra.mxu0 0.0
    %4171 = vmatprep.subr.mxu0 0.0
    %4172 = vmatpush1.msra.mxu0 0.0
    %4173 = vmatprep.subr.mxu0 0.0
    %4174 = vmatpush1.msra.mxu0 %v2729
    %4175 = vmatprep.subr.mxu0 0.0
    %4176 = vmatpush1.msra.mxu0 %v2728
    %4177 = vmatprep.subr.mxu0 0.0
    %4178 = vmatpush1.msra.mxu0 %v2727
    %4179 = vmatprep.subr.mxu0 0.0
    %4180 = vmatpush1.msra.mxu0 %v2726
    %4181 = vmatprep.subr.mxu0 0.0
    %4182 = vmatpush2.msra.mxu0 0.0
    %4183 = vmatprep.subr.mxu0 0.0
    %4184 = vmatpush2.msra.mxu0 0.0
    %4185 = vmatprep.subr.mxu0 0.0
    %4186 = vmatpush2.msra.mxu0 0.0
    %4187 = vmatprep.subr.mxu0 0.0
    %4188 = vmatpush2.msra.mxu0 0.0
    %4189 = vmatprep.subr.mxu0 0.0
    %4190 = vmatpush2.msra.mxu0 0.0
    %4191 = vmatprep.subr.mxu0 0.0
    %4192 = vmatpush2.msra.mxu0 0.0
    %4193 = vmatprep.subr.mxu0 0.0
    %4194 = vmatpush2.msra.mxu0 0.0
    %4195 = vmatprep.subr.mxu0 0.0
    %4196 = vmatpush2.msra.mxu0 0.0
    %4197 = vmatprep.subr.mxu0 0.0
    %4198 = vmatpush2.msra.mxu0 0.0
    %4199 = vmatprep.subr.mxu0 0.0
    %4200 = vmatpush2.msra.mxu0 0.0
    %4201 = vmatprep.subr.mxu0 0.0
    %4202 = vmatpush2.msra.mxu0 0.0
    %4203 = vmatprep.subr.mxu0 0.0
    %4204 = vmatpush2.msra.mxu0 0.0
    %4205 = vmatprep.subr.mxu0 0.0
    %4206 = vmatpush2.msra.mxu0 0.0
    %4207 = vmatprep.subr.mxu0 0.0
    %4208 = vmatpush2.msra.mxu0 0.0
    %4209 = vmatprep.subr.mxu0 0.0
    %4210 = vmatpush2.msra.mxu0 0.0
    %4211 = vmatprep.subr.mxu0 0.0
    %4212 = vmatpush2.msra.mxu0 0.0
    %4213 = vmatprep.mubr.f32.mxu0 0.0
    %4214 = vmatmul.mubr.f32.gmra.mxu0 %v4147
    %v4215 = vpop.f32.mrf.mxu0
    %v4216 = vadd.f32 %v2735, %v4215
    %v4217 = vpop.f32.mrf.mxu0
    %4218 = vdwg.mxu0
    %v4220 = vsel %vm324, %v4143, 0
    %4222 = vmatprep.subr.mxu0 0.0
    %4223 = vmatpush1.msra.mxu0 0.0
    %4224 = vmatprep.subr.mxu0 0.0
    %4225 = vmatpush1.msra.mxu0 0.0
    %4226 = vmatprep.subr.mxu0 0.0
    %4227 = vmatpush1.msra.mxu0 0.0
    %4228 = vmatprep.subr.mxu0 0.0
    %4229 = vmatpush1.msra.mxu0 0.0
    %4230 = vmatprep.subr.mxu0 0.0
    %4231 = vmatpush1.msra.mxu0 0.0
    %4232 = vmatprep.subr.mxu0 0.0
    %4233 = vmatpush1.msra.mxu0 0.0
    %4234 = vmatprep.subr.mxu0 0.0
    %4235 = vmatpush1.msra.mxu0 0.0
    %4236 = vmatprep.subr.mxu0 0.0
    %4237 = vmatpush1.msra.mxu0 0.0
    %4238 = vmatprep.subr.mxu0 0.0
    %4239 = vmatpush1.msra.mxu0 0.0
    %4240 = vmatprep.subr.mxu0 0.0
    %4241 = vmatpush1.msra.mxu0 0.0
    %4242 = vmatprep.subr.mxu0 0.0
    %4243 = vmatpush1.msra.mxu0 0.0
    %4244 = vmatprep.subr.mxu0 0.0
    %4245 = vmatpush1.msra.mxu0 0.0
    %4246 = vmatprep.subr.mxu0 0.0
    %4247 = vmatpush1.msra.mxu0 %v2810
    %4248 = vmatprep.subr.mxu0 0.0
    %4249 = vmatpush1.msra.mxu0 %v2809
    %4250 = vmatprep.subr.mxu0 0.0
    %4251 = vmatpush1.msra.mxu0 %v2808
    %4252 = vmatprep.subr.mxu0 0.0
    %4253 = vmatpush1.msra.mxu0 %v2807
    %4254 = vmatprep.subr.mxu0 0.0
    %4255 = vmatpush2.msra.mxu0 0.0
    %4256 = vmatprep.subr.mxu0 0.0
    %4257 = vmatpush2.msra.mxu0 0.0
    %4258 = vmatprep.subr.mxu0 0.0
    %4259 = vmatpush2.msra.mxu0 0.0
    %4260 = vmatprep.subr.mxu0 0.0
    %4261 = vmatpush2.msra.mxu0 0.0
    %4262 = vmatprep.subr.mxu0 0.0
    %4263 = vmatpush2.msra.mxu0 0.0
    %4264 = vmatprep.subr.mxu0 0.0
    %4265 = vmatpush2.msra.mxu0 0.0
    %4266 = vmatprep.subr.mxu0 0.0
    %4267 = vmatpush2.msra.mxu0 0.0
    %4268 = vmatprep.subr.mxu0 0.0
    %4269 = vmatpush2.msra.mxu0 0.0
    %4270 = vmatprep.subr.mxu0 0.0
    %4271 = vmatpush2.msra.mxu0 0.0
    %4272 = vmatprep.subr.mxu0 0.0
    %4273 = vmatpush2.msra.mxu0 0.0
    %4274 = vmatprep.subr.mxu0 0.0
    %4275 = vmatpush2.msra.mxu0 0.0
    %4276 = vmatprep.subr.mxu0 0.0
    %4277 = vmatpush2.msra.mxu0 0.0
    %4278 = vmatprep.subr.mxu0 0.0
    %4279 = vmatpush2.msra.mxu0 0.0
    %4280 = vmatprep.subr.mxu0 0.0
    %4281 = vmatpush2.msra.mxu0 0.0
    %4282 = vmatprep.subr.mxu0 0.0
    %4283 = vmatpush2.msra.mxu0 0.0
    %4284 = vmatprep.subr.mxu0 0.0
    %4285 = vmatpush2.msra.mxu0 0.0
    %4286 = vmatprep.mubr.f32.mxu0 0.0
    %4287 = vmatmul.mubr.f32.gmra.mxu0 %v4220
    %v4288 = vpop.f32.mrf.mxu0
    %v4289 = vadd.f32 %v2816, %v4288
    %v4290 = vpop.f32.mrf.mxu0
    %4291 = vdwg.mxu0
    %v4292 = vadd.f32 %v2982, %v4216
    %v4293 = vxor.u32 %v4292, 2147483648
    %v4294 = vmul.f32 %v4293, 1.442695
    %v4295 = vpow.pop %v4294
    %v4296 = vadd.f32 %v4295, 1.0
    %v4297 = vrcp.pop %v4296
    %v4298 = vmul.f32 1.0, %v4297
    %4300 = vrot.lane.b32.xlu0 %v4216, 64
    %v4301 = vpop.permute.xlu0 %4300
    %v4303 = vmul.f32 %v4298, %v4301
    %4305 = vrot.lane.b32.xlu0 %v4303, 64
    %v4306 = vpop.permute.xlu0 %4305
    %v4308 = vadd.f32 %v2982, %v4306
    %v4309 = vtanh.pop %v4308
    %v4310 = vsub.f32 1.0, %v4298
    %4312 = vrot.lane.b32.xlu0 %v4309, 96
    %v4313 = vpop.permute.xlu0 %4312
    %v4315 = vmul.f32 %v4310, %v4313
    %v4316 = vmul.f32 %v4298, %v4140
    %v4317 = vadd.f32 %v4315, %v4316
    %4319 = vrot.lane.b32.xlu0 %v4289, 96
    %v4320 = vpop.permute.xlu0 %4319
    %v4322 = vadd.f32 %v2980, %v4320
    %v4323 = vxor.u32 %v4322, 2147483648
    %v4324 = vmul.f32 %v4323, 1.442695
    %v4325 = vpow.pop %v4324
    %v4326 = vadd.f32 %v4325, 1.0
    %v4327 = vrcp.pop %v4326
    %v4328 = vmul.f32 1.0, %v4327
    %v4329 = vadd.f32 %v2981, %v4320
    %v4330 = vxor.u32 %v4329, 2147483648
    %v4331 = vmul.f32 %v4330, 1.442695
    %v4332 = vpow.pop %v4331
    %v4333 = vadd.f32 %v4332, 1.0
    %v4334 = vrcp.pop %v4333
    %v4335 = vmul.f32 1.0, %v4334
    %4336 = vrot.lane.b32.xlu0 %v4289, 32
    %v4337 = vpop.permute.xlu0 %4336
    %v4339 = vmul.f32 %v4328, %v4337
    %4341 = vrot.lane.b32.xlu0 %v4339, 64
    %v4342 = vpop.permute.xlu0 %4341
    %v4344 = vadd.f32 %v2981, %v4342
    %v4345 = vtanh.pop %v4344
    %v4346 = vsub.f32 1.0, %v4335
    %4348 = vrot.lane.b32.xlu0 %v4345, 96
    %v4349 = vpop.permute.xlu0 %4348
    %v4351 = vmul.f32 %v4346, %v4349
    %v4352 = vmul.f32 %v4335, %v4143
    %v4353 = vadd.f32 %v4351, %v4352
    %v4354 = vmul.f32 %v3213, %v4317
    %v4355 = vmul.f32 %v3220, %v4140
    %v4356 = vadd.f32 %v4354, %v4355
    %v4357 = vmul.f32 %v3199, %v4353
    %v4358 = vmul.f32 %v3206, %v4143
    %v4359 = vadd.f32 %v4357, %v4358
    %4361 = vrot.lane.b32.xlu0 %v4356, 96
    %v4362 = vpop.permute.xlu0 %4361
    %v4363 = vsel %vm324, %v4362, 0
    %4365 = vmatprep.subr.mxu0 0.0
    %4366 = vmatpush1.msra.mxu0 0.0
    %4367 = vmatprep.subr.mxu0 0.0
    %4368 = vmatpush1.msra.mxu0 0.0
    %4369 = vmatprep.subr.mxu0 0.0
    %4370 = vmatpush1.msra.mxu0 0.0
    %4371 = vmatprep.subr.mxu0 0.0
    %4372 = vmatpush1.msra.mxu0 0.0
    %4373 = vmatprep.subr.mxu0 0.0
    %4374 = vmatpush1.msra.mxu0 0.0
    %4375 = vmatprep.subr.mxu0 0.0
    %4376 = vmatpush1.msra.mxu0 0.0
    %4377 = vmatprep.subr.mxu0 0.0
    %4378 = vmatpush1.msra.mxu0 0.0
    %4379 = vmatprep.subr.mxu0 0.0
    %4380 = vmatpush1.msra.mxu0 0.0
    %4381 = vmatprep.subr.mxu0 0.0
    %4382 = vmatpush1.msra.mxu0 0.0
    %4383 = vmatprep.subr.mxu0 0.0
    %4384 = vmatpush1.msra.mxu0 0.0
    %4385 = vmatprep.subr.mxu0 0.0
    %4386 = vmatpush1.msra.mxu0 0.0
    %4387 = vmatprep.subr.mxu0 0.0
    %4388 = vmatpush1.msra.mxu0 0.0
    %4389 = vmatprep.subr.mxu0 0.0
    %4390 = vmatpush1.msra.mxu0 %v2729
    %4391 = vmatprep.subr.mxu0 0.0
    %4392 = vmatpush1.msra.mxu0 %v2728
    %4393 = vmatprep.subr.mxu0 0.0
    %4394 = vmatpush1.msra.mxu0 %v2727
    %4395 = vmatprep.subr.mxu0 0.0
    %4396 = vmatpush1.msra.mxu0 %v2726
    %4397 = vmatprep.subr.mxu0 0.0
    %4398 = vmatpush2.msra.mxu0 0.0
    %4399 = vmatprep.subr.mxu0 0.0
    %4400 = vmatpush2.msra.mxu0 0.0
    %4401 = vmatprep.subr.mxu0 0.0
    %4402 = vmatpush2.msra.mxu0 0.0
    %4403 = vmatprep.subr.mxu0 0.0
    %4404 = vmatpush2.msra.mxu0 0.0
    %4405 = vmatprep.subr.mxu0 0.0
    %4406 = vmatpush2.msra.mxu0 0.0
    %4407 = vmatprep.subr.mxu0 0.0
    %4408 = vmatpush2.msra.mxu0 0.0
    %4409 = vmatprep.subr.mxu0 0.0
    %4410 = vmatpush2.msra.mxu0 0.0
    %4411 = vmatprep.subr.mxu0 0.0
    %4412 = vmatpush2.msra.mxu0 0.0
    %4413 = vmatprep.subr.mxu0 0.0
    %4414 = vmatpush2.msra.mxu0 0.0
    %4415 = vmatprep.subr.mxu0 0.0
    %4416 = vmatpush2.msra.mxu0 0.0
    %4417 = vmatprep.subr.mxu0 0.0
    %4418 = vmatpush2.msra.mxu0 0.0
    %4419 = vmatprep.subr.mxu0 0.0
    %4420 = vmatpush2.msra.mxu0 0.0
    %4421 = vmatprep.subr.mxu0 0.0
    %4422 = vmatpush2.msra.mxu0 0.0
    %4423 = vmatprep.subr.mxu0 0.0
    %4424 = vmatpush2.msra.mxu0 0.0
    %4425 = vmatprep.subr.mxu0 0.0
    %4426 = vmatpush2.msra.mxu0 0.0
    %4427 = vmatprep.subr.mxu0 0.0
    %4428 = vmatpush2.msra.mxu0 0.0
    %4429 = vmatprep.mubr.f32.mxu0 0.0
    %4430 = vmatmul.mubr.f32.gmra.mxu0 %v4363
    %v4431 = vpop.f32.mrf.mxu0
    %v4432 = vadd.f32 %v2735, %v4431
    %v4433 = vpop.f32.mrf.mxu0
    %4434 = vdwg.mxu0
    %v4436 = vsel %vm324, %v4359, 0
    %4438 = vmatprep.subr.mxu0 0.0
    %4439 = vmatpush1.msra.mxu0 0.0
    %4440 = vmatprep.subr.mxu0 0.0
    %4441 = vmatpush1.msra.mxu0 0.0
    %4442 = vmatprep.subr.mxu0 0.0
    %4443 = vmatpush1.msra.mxu0 0.0
    %4444 = vmatprep.subr.mxu0 0.0
    %4445 = vmatpush1.msra.mxu0 0.0
    %4446 = vmatprep.subr.mxu0 0.0
    %4447 = vmatpush1.msra.mxu0 0.0
    %4448 = vmatprep.subr.mxu0 0.0
    %4449 = vmatpush1.msra.mxu0 0.0
    %4450 = vmatprep.subr.mxu0 0.0
    %4451 = vmatpush1.msra.mxu0 0.0
    %4452 = vmatprep.subr.mxu0 0.0
    %4453 = vmatpush1.msra.mxu0 0.0
    %4454 = vmatprep.subr.mxu0 0.0
    %4455 = vmatpush1.msra.mxu0 0.0
    %4456 = vmatprep.subr.mxu0 0.0
    %4457 = vmatpush1.msra.mxu0 0.0
    %4458 = vmatprep.subr.mxu0 0.0
    %4459 = vmatpush1.msra.mxu0 0.0
    %4460 = vmatprep.subr.mxu0 0.0
    %4461 = vmatpush1.msra.mxu0 0.0
    %4462 = vmatprep.subr.mxu0 0.0
    %4463 = vmatpush1.msra.mxu0 %v2810
    %4464 = vmatprep.subr.mxu0 0.0
    %4465 = vmatpush1.msra.mxu0 %v2809
    %4466 = vmatprep.subr.mxu0 0.0
    %4467 = vmatpush1.msra.mxu0 %v2808
    %4468 = vmatprep.subr.mxu0 0.0
    %4469 = vmatpush1.msra.mxu0 %v2807
    %4470 = vmatprep.subr.mxu0 0.0
    %4471 = vmatpush2.msra.mxu0 0.0
    %4472 = vmatprep.subr.mxu0 0.0
    %4473 = vmatpush2.msra.mxu0 0.0
    %4474 = vmatprep.subr.mxu0 0.0
    %4475 = vmatpush2.msra.mxu0 0.0
    %4476 = vmatprep.subr.mxu0 0.0
    %4477 = vmatpush2.msra.mxu0 0.0
    %4478 = vmatprep.subr.mxu0 0.0
    %4479 = vmatpush2.msra.mxu0 0.0
    %4480 = vmatprep.subr.mxu0 0.0
    %4481 = vmatpush2.msra.mxu0 0.0
    %4482 = vmatprep.subr.mxu0 0.0
    %4483 = vmatpush2.msra.mxu0 0.0
    %4484 = vmatprep.subr.mxu0 0.0
    %4485 = vmatpush2.msra.mxu0 0.0
    %4486 = vmatprep.subr.mxu0 0.0
    %4487 = vmatpush2.msra.mxu0 0.0
    %4488 = vmatprep.subr.mxu0 0.0
    %4489 = vmatpush2.msra.mxu0 0.0
    %4490 = vmatprep.subr.mxu0 0.0
    %4491 = vmatpush2.msra.mxu0 0.0
    %4492 = vmatprep.subr.mxu0 0.0
    %4493 = vmatpush2.msra.mxu0 0.0
    %4494 = vmatprep.subr.mxu0 0.0
    %4495 = vmatpush2.msra.mxu0 0.0
    %4496 = vmatprep.subr.mxu0 0.0
    %4497 = vmatpush2.msra.mxu0 0.0
    %4498 = vmatprep.subr.mxu0 0.0
    %4499 = vmatpush2.msra.mxu0 0.0
    %4500 = vmatprep.subr.mxu0 0.0
    %4501 = vmatpush2.msra.mxu0 0.0
    %4502 = vmatprep.mubr.f32.mxu0 0.0
    %4503 = vmatmul.mubr.f32.gmra.mxu0 %v4436
    %v4504 = vpop.f32.mrf.mxu0
    %v4505 = vadd.f32 %v2816, %v4504
    %v4506 = vpop.f32.mrf.mxu0
    %4507 = vdwg.mxu0
    %v4508 = vadd.f32 %v2724, %v4432
    %v4509 = vxor.u32 %v4508, 2147483648
    %v4510 = vmul.f32 %v4509, 1.442695
    %v4511 = vpow.pop %v4510
    %v4512 = vadd.f32 %v4511, 1.0
    %v4513 = vrcp.pop %v4512
    %v4514 = vmul.f32 1.0, %v4513
    %4516 = vrot.lane.b32.xlu0 %v4432, 64
    %v4517 = vpop.permute.xlu0 %4516
    %v4519 = vmul.f32 %v4514, %v4517
    %4521 = vrot.lane.b32.xlu0 %v4519, 64
    %v4522 = vpop.permute.xlu0 %4521
    %v4524 = vadd.f32 %v2724, %v4522
    %v4525 = vtanh.pop %v4524
    %v4526 = vsub.f32 1.0, %v4514
    %4528 = vrot.lane.b32.xlu0 %v4525, 96
    %v4529 = vpop.permute.xlu0 %4528
    %v4531 = vmul.f32 %v4526, %v4529
    %v4532 = vmul.f32 %v4514, %v4356
    %v4533 = vadd.f32 %v4531, %v4532
    %4535 = vrot.lane.b32.xlu0 %v4505, 96
    %v4536 = vpop.permute.xlu0 %4535
    %v4538 = vadd.f32 %v2722, %v4536
    %v4539 = vxor.u32 %v4538, 2147483648
    %v4540 = vmul.f32 %v4539, 1.442695
    %v4541 = vpow.pop %v4540
    %v4542 = vadd.f32 %v4541, 1.0
    %v4543 = vrcp.pop %v4542
    %v4544 = vmul.f32 1.0, %v4543
    %v4545 = vadd.f32 %v2723, %v4536
    %v4546 = vxor.u32 %v4545, 2147483648
    %v4547 = vmul.f32 %v4546, 1.442695
    %v4548 = vpow.pop %v4547
    %v4549 = vadd.f32 %v4548, 1.0
    %v4550 = vrcp.pop %v4549
    %v4551 = vmul.f32 1.0, %v4550
    %4552 = vrot.lane.b32.xlu0 %v4505, 32
    %v4553 = vpop.permute.xlu0 %4552
    %v4555 = vmul.f32 %v4544, %v4553
    %4557 = vrot.lane.b32.xlu0 %v4555, 64
    %v4558 = vpop.permute.xlu0 %4557
    %v4560 = vadd.f32 %v2723, %v4558
    %v4561 = vtanh.pop %v4560
    %v4562 = vsub.f32 1.0, %v4551
    %4564 = vrot.lane.b32.xlu0 %v4561, 96
    %v4565 = vpop.permute.xlu0 %4564
    %v4567 = vmul.f32 %v4562, %v4565
    %v4568 = vmul.f32 %v4551, %v4359
    %v4569 = vadd.f32 %v4567, %v4568
    %v4570 = vmul.f32 %v2969, %v4533
    %v4571 = vmul.f32 %v2976, %v4356
    %v4572 = vadd.f32 %v4570, %v4571
    %v4573 = vmul.f32 %v2955, %v4569
    %v4574 = vmul.f32 %v2962, %v4359
    %v4575 = vadd.f32 %v4573, %v4574
    %4577 = vrot.lane.b32.xlu0 %v4572, 96
    %v4578 = vpop.permute.xlu0 %4577
    %4581 = vrot.lane.b32.xlu0 %v4575, 32
    %v4582 = vpop.permute.xlu0 %4581
    %v4584 = vsel %vm324, %v4578, %v4582
    %4585 = vst.msk [vmem:[#allocation16] sm:$0xff] %vm293, %v4584
    // Predicated region
    $region82: #{tpu_custom_call.1} parent=1 // pred_check
      _
    $region83: #{tpu_custom_call.1} parent=1 // pred_check_branch
      %4587 = sbr.rel (0) target = $region85
    $region84: #{tpu_custom_call.1} parent=1 // pred_region
      %s4589 = ssub.s32 128, 128
      %4590 = vsyncadd [#allocation7], %s4589
      %s4592 = sshll.u32 [#allocation16], 4
      %s4593 = int_to_ptr.vmem [resolvable:$true] %s4592
      %4595 = dma.vmem_to_hbm [thread:$0]  %s4593, 128, %s14, [#allocation7]
    $region85: #{tpu_custom_call.1} parent=1 // pred_fallthru
      _
    // Predicated region
    $region86: #{tpu_custom_call.1} parent=1 // pred_check
      _
    $region87: #{tpu_custom_call.1} parent=1 // pred_check_branch
      %4597 = sbr.rel (0) target = $region89
    $region88: #{tpu_custom_call.1} parent=1 // pred_region
      %4598 = dma.done [#allocation7], 128
    $region89: #{tpu_custom_call.1} parent=1 // pred_fallthru
      _
    %4599 = vsyncpa [#allocation6], 1
    %4600 = vsyncpa [#allocation9], 1
    %4601 = vsyncpa [#allocation12], 1
    %4602 = vsyncpa [#allocation15], 1
    %4603 = vsyncpa [#allocation7], 1

</llo_original>
